<compile_context>
chip_gen: v7x
topology: tpu7x:2x2x1
jax: 0.10.0
libtpu: 0.0.40
codegen_flags: <defaults>
</compile_context>

<pallas_src>
import functools

import jax
import jax.numpy as jnp
from jax.experimental import pallas as pl
from jax.experimental.pallas import tpu as pltpu

C_PAD = 128                      # lane-dense channel padding
_VMEM_LIMIT = 32 * 1024 * 1024   # safe on v5e/v6e/v7x


def _round_up(x, m):
    return (x + m - 1) // m * m


# --------------------------- fused conv3x3 kernel ---------------------------

def _conv3x3_kernel(x_ref, w_ref, b_ref, o_ref, acc_ref, *, H, W, pool, valid_w):
    # x_ref  : (1, H+2, W+2, Cin)  zero-padded NHWC image tile (bf16)
    # w_ref  : (9, Cin, 128)       taps in (kh, kw) row-major order (bf16)
    # b_ref  : (1, 128)            f32 bias (zero padded)
    # o_ref  : (1, Ho, Wo, 128)    bf16 output (pooled if pool=True)
    # acc_ref: (H*W, 128)          f32 accumulator scratch
    t = 0
    for kh in range(3):
        for kw in range(3):
            patch = x_ref[0, kh:kh + H, kw:kw + W, :]          # (H, W, Cin)
            patch = patch.reshape(H * W, patch.shape[-1])      # W % 8 == 0
            part = jnp.dot(patch, w_ref[t],
                           preferred_element_type=jnp.float32)
            if t == 0:
                acc_ref[...] = part
            else:
                acc_ref[...] += part
            t += 1

    bias = b_ref[...]                                          # (1, 128) f32

    if pool:
        Ho, Wo = H // 2, W // 2
        for ho in range(Ho):
            base = 2 * ho * W
            p00 = acc_ref[pl.ds(base, Wo, stride=2), :]
            p01 = acc_ref[pl.ds(base + 1, Wo, stride=2), :]
            p10 = acc_ref[pl.ds(base + W, Wo, stride=2), :]
            p11 = acc_ref[pl.ds(base + W + 1, Wo, stride=2), :]
            y = jnp.maximum(jnp.maximum(p00, p01), jnp.maximum(p10, p11))
            y = jnp.maximum(y + bias, 0.0)                     # relu(pool+b)
            if valid_w < Wo:
                col = jax.lax.broadcasted_iota(jnp.int32, y.shape, 0)
                y = jnp.where(col < valid_w, y, 0.0)
            o_ref[0, ho] = y.astype(o_ref.dtype)
    else:
        for h in range(H):
            y = acc_ref[pl.ds(h * W, W), :]
            y = jnp.maximum(y + bias, 0.0)
            if valid_w < W:
                col = jax.lax.broadcasted_iota(jnp.int32, y.shape, 0)
                y = jnp.where(col < valid_w, y, 0.0)
            o_ref[0, h] = y.astype(o_ref.dtype)


def conv3x3_relu_pool(x, wk, b, *, pool):
    """x: (B, H, W, Cin) bf16 NHWC; wk: (9, Cin, 128) bf16; b: (1, 128) f32."""
    B, H, W, Cin = x.shape
    Wc = _round_up(W, 8)                       # compute width (lane-friendly)
    if pool:
        assert Wc == W and H % 2 == 0, "pooled conv needs W%8==0 and even H"
    # 1-pixel 'same' halo + (Wc - W) extra zero columns on the right
    xp = jnp.pad(x, ((0, 0), (1, 1), (1, 1 + Wc - W), (0, 0)))
    Ho, Wo = (H // 2, Wc // 2) if pool else (H, Wc)
    valid_w = (W // 2) if pool else W

    flops = 2 * B * H * Wc * 9 * Cin * C_PAD
    bytes_accessed = int(xp.size) * 2 + int(wk.size) * 2 + int(b.size) * 4 \
        + B * Ho * Wo * C_PAD * 2

    return pl.pallas_call(
        functools.partial(_conv3x3_kernel, H=H, W=Wc, pool=pool,
                          valid_w=valid_w),
        grid=(B,),
        in_specs=[
            pl.BlockSpec((1, H + 2, Wc + 2, Cin), lambda i: (i, 0, 0, 0)),
            pl.BlockSpec((9, Cin, C_PAD), lambda i: (0, 0, 0)),
            pl.BlockSpec((1, C_PAD), lambda i: (0, 0)),
        ],
        out_specs=pl.BlockSpec((1, Ho, Wo, C_PAD), lambda i: (i, 0, 0, 0)),
        out_shape=jax.ShapeDtypeStruct((B, Ho, Wo, C_PAD), jnp.bfloat16),
        scratch_shapes=[pltpu.VMEM((H * Wc, C_PAD), jnp.float32)],
        compiler_params=pltpu.CompilerParams(
            dimension_semantics=("parallel",),
            vmem_limit_bytes=_VMEM_LIMIT),
        cost_estimate=pl.CostEstimate(flops=flops, transcendentals=0,
                                      bytes_accessed=bytes_accessed),
    )(xp, wk, b)


# --------------------------- tiled matmul kernel ----------------------------

def _mm_kernel(x_ref, w_ref, b_ref, o_ref, acc_ref, *, act):
    @pl.when(pl.program_id(2) == 0)
    def _():
        acc_ref[...] = jnp.zeros_like(acc_ref)

    acc_ref[...] += jnp.dot(x_ref[...], w_ref[...],
                            preferred_element_type=jnp.float32)

    @pl.when(pl.program_id(2) == pl.num_programs(2) - 1)
    def _():
        y = acc_ref[...] + b_ref[...]
        if act == "relu":
            y = jnp.maximum(y, 0.0)
        elif act == "sigmoid":
            y = jax.nn.sigmoid(y)
        o_ref[...] = y.astype(o_ref.dtype)


def matmul_bias_act(x, w, b, act="none", *, tm=256, tk=512, tn=256):
    """(M,K) @ (K,N) + b with optional relu/sigmoid.  bf16 MXU, f32 epilogue."""
    M, K = x.shape
    K2, N = w.shape
    assert K == K2
    Mp, Kp, Np = _round_up(M, 8), _round_up(K, 128), _round_up(N, 128)
    tm, tk, tn = min(tm, Mp), min(tk, Kp), min(tn, Np)
    Mp, Kp, Np = _round_up(Mp, tm), _round_up(Kp, tk), _round_up(Np, tn)

    xp = jnp.pad(x, ((0, Mp - M), (0, Kp - K))).astype(jnp.bfloat16)
    wp = jnp.pad(w, ((0, Kp - K), (0, Np - N))).astype(jnp.bfloat16)
    bp = jnp.pad(b.reshape(1, N).astype(jnp.float32), ((0, 0), (0, Np - N)))

    grid = (Mp // tm, Np // tn, Kp // tk)
    out = pl.pallas_call(
        functools.partial(_mm_kernel, act=act),
        grid=grid,
        in_specs=[
            pl.BlockSpec((tm, tk), lambda i, j, k: (i, k)),
            pl.BlockSpec((tk, tn), lambda i, j, k: (k, j)),
            pl.BlockSpec((1, tn), lambda i, j, k: (0, j)),
        ],
        out_specs=pl.BlockSpec((tm, tn), lambda i, j, k: (i, j)),
        out_shape=jax.ShapeDtypeStruct((Mp, Np), jnp.float32),
        scratch_shapes=[pltpu.VMEM((tm, tn), jnp.float32)],
        compiler_params=pltpu.CompilerParams(
            dimension_semantics=("parallel", "parallel", "arbitrary"),
            vmem_limit_bytes=_VMEM_LIMIT),
        cost_estimate=pl.CostEstimate(
            flops=2 * Mp * Np * Kp, transcendentals=0,
            bytes_accessed=Mp * Kp * 2 + Kp * Np * 2 + Mp * Np * 4),
    )(xp, wp, bp)
    return out[:M, :N]


# ------------------------ fc2 (N=1): VPU reduce kernel ----------------------

def _fc2_kernel(x_ref, w_ref, b_ref, o_ref):
    s = jnp.sum(x_ref[...] * w_ref[...], axis=1, keepdims=True)   # (M, 1)
    o_ref[...] = jax.nn.sigmoid(s + b_ref[...])


def fc2_sigmoid(x, w, b):
    M, K = x.shape
    w2 = w.reshape(1, K).astype(jnp.float32)
    b2 = b.reshape(1, 1).astype(jnp.float32)
    return pl.pallas_call(
        _fc2_kernel,
        grid=(1,),
        in_specs=[pl.BlockSpec((M, K), lambda i: (0, 0)),
                  pl.BlockSpec((1, K), lambda i: (0, 0)),
                  pl.BlockSpec((1, 1), lambda i: (0, 0))],
        out_specs=pl.BlockSpec((M, 1), lambda i: (0, 0)),
        out_shape=jax.ShapeDtypeStruct((M, 1), jnp.float32),
        compiler_params=pltpu.CompilerParams(vmem_limit_bytes=_VMEM_LIMIT),
    )(x.astype(jnp.float32), w2, b2)


# ---------------------- one-time weight repack (wrapper) --------------------

def prepare_params(params, input_shape):
    """Repack PyTorch-layout params into kernel-facing, lane-dense layouts."""
    H0, W0, C0 = input_shape
    H3, W3 = H0 // 4, W0 // 4
    W3p = _round_up(W3, 8)

    def conv_w(w, cin_pad):
        cout, cin = w.shape[0], w.shape[1]
        wk = jnp.transpose(w, (2, 3, 1, 0)).reshape(9, cin, cout)
        wk = jnp.pad(wk, ((0, 0), (0, cin_pad - cin), (0, C_PAD - cout)))
        return wk.astype(jnp.bfloat16)

    def conv_b(b):
        return jnp.pad(b.astype(jnp.float32), (0, C_PAD - b.shape[0])).reshape(1, C_PAD)

    # fc1: torch weight (64, 64*H3*W3); input index = c*(H3*W3) + h*W3 + w.
    # Scatter into padded NHWC-flattened order (h, w<=W3p, c<=128) -> 128 outs.
    w1 = params["fc1_w"].reshape(64, 64, H3, W3)
    w1 = jnp.transpose(w1, (2, 3, 1, 0))                      # (h, w, c, out)
    w1 = jnp.pad(w1, ((0, 0), (0, W3p - W3), (0, C_PAD - 64), (0, 128 - 64)))
    w1 = w1.reshape(H3 * W3p * C_PAD, 128)

    return {
        "c1w": conv_w(params["conv1_w"], cin_pad=C0),
        "c1b": conv_b(params["conv1_b"]),
        "c2w": conv_w(params["conv2_w"], cin_pad=C_PAD),
        "c2b": conv_b(params["conv2_b"]),
        "c3w": conv_w(params["conv3_w"], cin_pad=C_PAD),
        "c3b": conv_b(params["conv3_b"]),
        "fc1_w": w1.astype(jnp.float32),
        "fc1_b": jnp.pad(params["fc1_b"].astype(jnp.float32), (0, 128 - 64)),
        "fc2_w": params["fc2_w"].astype(jnp.float32),          # (1, 128)
        "fc2_b": params["fc2_b"].astype(jnp.float32),          # (1,)
    }


# ------------------------------ forward pass --------------------------------

def similarity_model(x1, x2, kp):
    # Batch the two Siamese branches through one shared trunk pass.
    xb = jnp.concatenate([x1, x2], axis=0)                     # (2N, C, H, W)
    x = jnp.transpose(xb, (0, 2, 3, 1)).astype(jnp.bfloat16)   # NHWC bf16
    x = conv3x3_relu_pool(x, kp["c1w"], kp["c1b"], pool=True)  # (2N, H/2, W/2, 128)
    x = conv3x3_relu_pool(x, kp["c2w"], kp["c2b"], pool=True)  # (2N, H/4, W/4, 128)
    x = conv3x3_relu_pool(x, kp["c3w"], kp["c3b"], pool=False) # (2N, H/4, W4p, 128)
    B2 = x.shape[0]
    flat = x.reshape(B2, -1)                                   # padded NHWC flatten
    h = matmul_bias_act(flat, kp["fc1_w"], kp["fc1_b"], act="relu")  # (2N, 128)
    n = B2 // 2
    e = jnp.concatenate([h[:n, :64], h[n:, :64]], axis=1)      # (N, 128) = cat(e1,e2)
    return fc2_sigmoid(e, kp["fc2_w"], kp["fc2_b"])            # (N, 1)


# ------------------------------- init / main --------------------------------

def init_params(key, input_shape):
    """input_shape = (H, W, C); PyTorch parameter layouts."""
    H, W, C = input_shape
    keys = jax.random.split(key, 10)

    def w(k, shape, scale=0.05):
        return (scale * jax.random.normal(k, shape)).astype(jnp.float32)

    fc1_in = 64 * (H // 4) * (W // 4)
    return {
        "conv1_w": w(keys[0], (32, C, 3, 3)),
        "conv1_b": w(keys[1], (32,)),
        "conv2_w": w(keys[2], (64, 32, 3, 3)),
        "conv2_b": w(keys[3], (64,)),
        "conv3_w": w(keys[4], (64, 64, 3, 3)),
        "conv3_b": w(keys[5], (64,)),
        "fc1_w": w(keys[6], (64, fc1_in)),   # torch Linear: (out, in)
        "fc1_b": w(keys[7], (64,)),
        "fc2_w": w(keys[8], (1, 128)),       # torch Linear: (out, in)
        "fc2_b": w(keys[9], (1,)),
    }


if __name__ == "__main__":
    key = jax.random.PRNGKey(0)
    k1, k2, kp = jax.random.split(key, 3)
    N, C, H, W = 2, 4, 16, 16
    x1 = jax.random.normal(k1, (N, C, H, W), dtype=jnp.float32)
    x2 = jax.random.normal(k2, (N, C, H, W), dtype=jnp.float32)
    params = init_params(kp, (H, W, C))
    kparams = prepare_params(params, (H, W, C))   # one-time weight repack

    out = jax.jit(similarity_model)(x1, x2, kparams)
    jax.block_until_ready(out)
    assert out.shape == (N, 1) and out.dtype == jnp.float32
    assert bool(jnp.all((out >= 0.0) & (out <= 1.0)))
    print("KERNEL_OK")
</pallas_src>

<mosaic_0001>
module attributes {stable_mosaic.version = 11 : i64} {
  func.func @_conv3x3_kernel(%arg0: i32, %arg1: memref<1x18x18x4xbf16, #tpu.memory_space<vmem>>, %arg2: memref<9x4x128xbf16, #tpu.memory_space<vmem>>, %arg3: memref<1x128xf32, #tpu.memory_space<vmem>>, %arg4: memref<1x8x8x128xbf16, #tpu.memory_space<vmem>>, %arg5: memref<256x128xf32, #tpu.memory_space<vmem>>) attributes {dimension_semantics = [#tpu.dimension_semantics<parallel>], iteration_bounds = array<i64: 4>, scalar_prefetch = 0 : i64, scratch_operands = 1 : i64, tpu.core_type = #tpu.core_type<tc>, window_params = [{transform_indices = @transform_0, window_bounds = array<i64: 1, 18, 18, 4>}, {pipeline_mode = #tpu.pipeline_mode<synchronous>, transform_indices = @transform_1, window_bounds = array<i64: 9, 4, 128>}, {pipeline_mode = #tpu.pipeline_mode<synchronous>, transform_indices = @transform_2, window_bounds = array<i64: 1, 128>}, {transform_indices = @transform_3, window_bounds = array<i64: 1, 8, 8, 128>}]} {
    %c0 = arith.constant 0 : index
    %c0_0 = arith.constant 0 : index
    %c0_1 = arith.constant 0 : index
    %c0_2 = arith.constant 0 : index
    %0 = vector.load %arg1[%c0, %c0_0, %c0_1, %c0_2] : memref<1x18x18x4xbf16, #tpu.memory_space<vmem>>, vector<1x16x16x4xbf16>
    %1 = vector.shape_cast %0 : vector<1x16x16x4xbf16> to vector<16x16x4xbf16>
    %2 = vector.shape_cast %1 : vector<16x16x4xbf16> to vector<256x4xbf16>
    %c0_3 = arith.constant 0 : index
    %c0_4 = arith.constant 0 : index
    %c0_5 = arith.constant 0 : index
    %3 = vector.load %arg2[%c0_3, %c0_4, %c0_5] : memref<9x4x128xbf16, #tpu.memory_space<vmem>>, vector<1x4x128xbf16>
    %4 = vector.shape_cast %3 : vector<1x4x128xbf16> to vector<4x128xbf16>
    %cst = arith.constant dense<0.000000e+00> : vector<256x128xf32>
    %5 = tpu.matmul %2, %4, %cst {dimension_numbers = #tpu.dot_dimension_numbers<[1], [0], [0], [1], [0, 0, 1, 1], [], []>} : vector<256x4xbf16>, vector<4x128xbf16>, vector<256x128xf32> -> vector<256x128xf32>
    %c0_6 = arith.constant 0 : index
    %c0_7 = arith.constant 0 : index
    %6 = vector.load %arg5[%c0_6, %c0_7] : memref<256x128xf32, #tpu.memory_space<vmem>>, vector<256x128xf32>
    tpu.vector_store %arg5[%c0_6, %c0_7], %5 {strides = array<i32>} : memref<256x128xf32, #tpu.memory_space<vmem>>, vector<256x128xf32>,
    %c0_8 = arith.constant 0 : index
    %c0_9 = arith.constant 0 : index
    %c1 = arith.constant 1 : index
    %c0_10 = arith.constant 0 : index
    %7 = vector.load %arg1[%c0_8, %c0_9, %c1, %c0_10] : memref<1x18x18x4xbf16, #tpu.memory_space<vmem>>, vector<1x16x16x4xbf16>
    %8 = vector.shape_cast %7 : vector<1x16x16x4xbf16> to vector<16x16x4xbf16>
    %9 = vector.shape_cast %8 : vector<16x16x4xbf16> to vector<256x4xbf16>
    %c1_11 = arith.constant 1 : index
    %c0_12 = arith.constant 0 : index
    %c0_13 = arith.constant 0 : index
    %10 = vector.load %arg2[%c1_11, %c0_12, %c0_13] : memref<9x4x128xbf16, #tpu.memory_space<vmem>>, vector<1x4x128xbf16>
    %11 = vector.shape_cast %10 : vector<1x4x128xbf16> to vector<4x128xbf16>
    %cst_14 = arith.constant dense<0.000000e+00> : vector<256x128xf32>
    %12 = tpu.matmul %9, %11, %cst_14 {dimension_numbers = #tpu.dot_dimension_numbers<[1], [0], [0], [1], [0, 0, 1, 1], [], []>} : vector<256x4xbf16>, vector<4x128xbf16>, vector<256x128xf32> -> vector<256x128xf32>
    %c0_15 = arith.constant 0 : index
    %c0_16 = arith.constant 0 : index
    %13 = vector.load %arg5[%c0_15, %c0_16] : memref<256x128xf32, #tpu.memory_space<vmem>>, vector<256x128xf32>
    %14 = arith.addf %13, %12 : vector<256x128xf32>
    %c0_17 = arith.constant 0 : index
    %c0_18 = arith.constant 0 : index
    %15 = vector.load %arg5[%c0_17, %c0_18] : memref<256x128xf32, #tpu.memory_space<vmem>>, vector<256x128xf32>
    tpu.vector_store %arg5[%c0_17, %c0_18], %14 {strides = array<i32>} : memref<256x128xf32, #tpu.memory_space<vmem>>, vector<256x128xf32>,
    %c0_19 = arith.constant 0 : index
    %c0_20 = arith.constant 0 : index
    %c2 = arith.constant 2 : index
    %c0_21 = arith.constant 0 : index
    %16 = vector.load %arg1[%c0_19, %c0_20, %c2, %c0_21] : memref<1x18x18x4xbf16, #tpu.memory_space<vmem>>, vector<1x16x16x4xbf16>
    %17 = vector.shape_cast %16 : vector<1x16x16x4xbf16> to vector<16x16x4xbf16>
    %18 = vector.shape_cast %17 : vector<16x16x4xbf16> to vector<256x4xbf16>
    %c2_22 = arith.constant 2 : index
    %c0_23 = arith.constant 0 : index
    %c0_24 = arith.constant 0 : index
    %19 = vector.load %arg2[%c2_22, %c0_23, %c0_24] : memref<9x4x128xbf16, #tpu.memory_space<vmem>>, vector<1x4x128xbf16>
    %20 = vector.shape_cast %19 : vector<1x4x128xbf16> to vector<4x128xbf16>
    %cst_25 = arith.constant dense<0.000000e+00> : vector<256x128xf32>
    %21 = tpu.matmul %18, %20, %cst_25 {dimension_numbers = #tpu.dot_dimension_numbers<[1], [0], [0], [1], [0, 0, 1, 1], [], []>} : vector<256x4xbf16>, vector<4x128xbf16>, vector<256x128xf32> -> vector<256x128xf32>
    %c0_26 = arith.constant 0 : index
    %c0_27 = arith.constant 0 : index
    %22 = vector.load %arg5[%c0_26, %c0_27] : memref<256x128xf32, #tpu.memory_space<vmem>>, vector<256x128xf32>
    %23 = arith.addf %22, %21 : vector<256x128xf32>
    %c0_28 = arith.constant 0 : index
    %c0_29 = arith.constant 0 : index
    %24 = vector.load %arg5[%c0_28, %c0_29] : memref<256x128xf32, #tpu.memory_space<vmem>>, vector<256x128xf32>
    tpu.vector_store %arg5[%c0_28, %c0_29], %23 {strides = array<i32>} : memref<256x128xf32, #tpu.memory_space<vmem>>, vector<256x128xf32>,
    %c0_30 = arith.constant 0 : index
    %c1_31 = arith.constant 1 : index
    %c0_32 = arith.constant 0 : index
    %c0_33 = arith.constant 0 : index
    %25 = vector.load %arg1[%c0_30, %c1_31, %c0_32, %c0_33] : memref<1x18x18x4xbf16, #tpu.memory_space<vmem>>, vector<1x16x16x4xbf16>
    %26 = vector.shape_cast %25 : vector<1x16x16x4xbf16> to vector<16x16x4xbf16>
    %27 = vector.shape_cast %26 : vector<16x16x4xbf16> to vector<256x4xbf16>
    %c3 = arith.constant 3 : index
    %c0_34 = arith.constant 0 : index
    %c0_35 = arith.constant 0 : index
    %28 = vector.load %arg2[%c3, %c0_34, %c0_35] : memref<9x4x128xbf16, #tpu.memory_space<vmem>>, vector<1x4x128xbf16>
    %29 = vector.shape_cast %28 : vector<1x4x128xbf16> to vector<4x128xbf16>
    %cst_36 = arith.constant dense<0.000000e+00> : vector<256x128xf32>
    %30 = tpu.matmul %27, %29, %cst_36 {dimension_numbers = #tpu.dot_dimension_numbers<[1], [0], [0], [1], [0, 0, 1, 1], [], []>} : vector<256x4xbf16>, vector<4x128xbf16>, vector<256x128xf32> -> vector<256x128xf32>
    %c0_37 = arith.constant 0 : index
    %c0_38 = arith.constant 0 : index
    %31 = vector.load %arg5[%c0_37, %c0_38] : memref<256x128xf32, #tpu.memory_space<vmem>>, vector<256x128xf32>
    %32 = arith.addf %31, %30 : vector<256x128xf32>
    %c0_39 = arith.constant 0 : index
    %c0_40 = arith.constant 0 : index
    %33 = vector.load %arg5[%c0_39, %c0_40] : memref<256x128xf32, #tpu.memory_space<vmem>>, vector<256x128xf32>
    tpu.vector_store %arg5[%c0_39, %c0_40], %32 {strides = array<i32>} : memref<256x128xf32, #tpu.memory_space<vmem>>, vector<256x128xf32>,
    %c0_41 = arith.constant 0 : index
    %c1_42 = arith.constant 1 : index
    %c1_43 = arith.constant 1 : index
    %c0_44 = arith.constant 0 : index
    %34 = vector.load %arg1[%c0_41, %c1_42, %c1_43, %c0_44] : memref<1x18x18x4xbf16, #tpu.memory_space<vmem>>, vector<1x16x16x4xbf16>
    %35 = vector.shape_cast %34 : vector<1x16x16x4xbf16> to vector<16x16x4xbf16>
    %36 = vector.shape_cast %35 : vector<16x16x4xbf16> to vector<256x4xbf16>
    %c4 = arith.constant 4 : index
    %c0_45 = arith.constant 0 : index
    %c0_46 = arith.constant 0 : index
    %37 = vector.load %arg2[%c4, %c0_45, %c0_46] : memref<9x4x128xbf16, #tpu.memory_space<vmem>>, vector<1x4x128xbf16>
    %38 = vector.shape_cast %37 : vector<1x4x128xbf16> to vector<4x128xbf16>
    %cst_47 = arith.constant dense<0.000000e+00> : vector<256x128xf32>
    %39 = tpu.matmul %36, %38, %cst_47 {dimension_numbers = #tpu.dot_dimension_numbers<[1], [0], [0], [1], [0, 0, 1, 1], [], []>} : vector<256x4xbf16>, vector<4x128xbf16>, vector<256x128xf32> -> vector<256x128xf32>
    %c0_48 = arith.constant 0 : index
    %c0_49 = arith.constant 0 : index
    %40 = vector.load %arg5[%c0_48, %c0_49] : memref<256x128xf32, #tpu.memory_space<vmem>>, vector<256x128xf32>
    %41 = arith.addf %40, %39 : vector<256x128xf32>
    %c0_50 = arith.constant 0 : index
    %c0_51 = arith.constant 0 : index
    %42 = vector.load %arg5[%c0_50, %c0_51] : memref<256x128xf32, #tpu.memory_space<vmem>>, vector<256x128xf32>
    tpu.vector_store %arg5[%c0_50, %c0_51], %41 {strides = array<i32>} : memref<256x128xf32, #tpu.memory_space<vmem>>, vector<256x128xf32>,
    %c0_52 = arith.constant 0 : index
    %c1_53 = arith.constant 1 : index
    %c2_54 = arith.constant 2 : index
    %c0_55 = arith.constant 0 : index
    %43 = vector.load %arg1[%c0_52, %c1_53, %c2_54, %c0_55] : memref<1x18x18x4xbf16, #tpu.memory_space<vmem>>, vector<1x16x16x4xbf16>
    %44 = vector.shape_cast %43 : vector<1x16x16x4xbf16> to vector<16x16x4xbf16>
    %45 = vector.shape_cast %44 : vector<16x16x4xbf16> to vector<256x4xbf16>
    %c5 = arith.constant 5 : index
    %c0_56 = arith.constant 0 : index
    %c0_57 = arith.constant 0 : index
    %46 = vector.load %arg2[%c5, %c0_56, %c0_57] : memref<9x4x128xbf16, #tpu.memory_space<vmem>>, vector<1x4x128xbf16>
    %47 = vector.shape_cast %46 : vector<1x4x128xbf16> to vector<4x128xbf16>
    %cst_58 = arith.constant dense<0.000000e+00> : vector<256x128xf32>
    %48 = tpu.matmul %45, %47, %cst_58 {dimension_numbers = #tpu.dot_dimension_numbers<[1], [0], [0], [1], [0, 0, 1, 1], [], []>} : vector<256x4xbf16>, vector<4x128xbf16>, vector<256x128xf32> -> vector<256x128xf32>
    %c0_59 = arith.constant 0 : index
    %c0_60 = arith.constant 0 : index
    %49 = vector.load %arg5[%c0_59, %c0_60] : memref<256x128xf32, #tpu.memory_space<vmem>>, vector<256x128xf32>
    %50 = arith.addf %49, %48 : vector<256x128xf32>
    %c0_61 = arith.constant 0 : index
    %c0_62 = arith.constant 0 : index
    %51 = vector.load %arg5[%c0_61, %c0_62] : memref<256x128xf32, #tpu.memory_space<vmem>>, vector<256x128xf32>
    tpu.vector_store %arg5[%c0_61, %c0_62], %50 {strides = array<i32>} : memref<256x128xf32, #tpu.memory_space<vmem>>, vector<256x128xf32>,
    %c0_63 = arith.constant 0 : index
    %c2_64 = arith.constant 2 : index
    %c0_65 = arith.constant 0 : index
    %c0_66 = arith.constant 0 : index
    %52 = vector.load %arg1[%c0_63, %c2_64, %c0_65, %c0_66] : memref<1x18x18x4xbf16, #tpu.memory_space<vmem>>, vector<1x16x16x4xbf16>
    %53 = vector.shape_cast %52 : vector<1x16x16x4xbf16> to vector<16x16x4xbf16>
    %54 = vector.shape_cast %53 : vector<16x16x4xbf16> to vector<256x4xbf16>
    %c6 = arith.constant 6 : index
    %c0_67 = arith.constant 0 : index
    %c0_68 = arith.constant 0 : index
    %55 = vector.load %arg2[%c6, %c0_67, %c0_68] : memref<9x4x128xbf16, #tpu.memory_space<vmem>>, vector<1x4x128xbf16>
    %56 = vector.shape_cast %55 : vector<1x4x128xbf16> to vector<4x128xbf16>
    %cst_69 = arith.constant dense<0.000000e+00> : vector<256x128xf32>
    %57 = tpu.matmul %54, %56, %cst_69 {dimension_numbers = #tpu.dot_dimension_numbers<[1], [0], [0], [1], [0, 0, 1, 1], [], []>} : vector<256x4xbf16>, vector<4x128xbf16>, vector<256x128xf32> -> vector<256x128xf32>
    %c0_70 = arith.constant 0 : index
    %c0_71 = arith.constant 0 : index
    %58 = vector.load %arg5[%c0_70, %c0_71] : memref<256x128xf32, #tpu.memory_space<vmem>>, vector<256x128xf32>
    %59 = arith.addf %58, %57 : vector<256x128xf32>
    %c0_72 = arith.constant 0 : index
    %c0_73 = arith.constant 0 : index
    %60 = vector.load %arg5[%c0_72, %c0_73] : memref<256x128xf32, #tpu.memory_space<vmem>>, vector<256x128xf32>
    tpu.vector_store %arg5[%c0_72, %c0_73], %59 {strides = array<i32>} : memref<256x128xf32, #tpu.memory_space<vmem>>, vector<256x128xf32>,
    %c0_74 = arith.constant 0 : index
    %c2_75 = arith.constant 2 : index
    %c1_76 = arith.constant 1 : index
    %c0_77 = arith.constant 0 : index
    %61 = vector.load %arg1[%c0_74, %c2_75, %c1_76, %c0_77] : memref<1x18x18x4xbf16, #tpu.memory_space<vmem>>, vector<1x16x16x4xbf16>
    %62 = vector.shape_cast %61 : vector<1x16x16x4xbf16> to vector<16x16x4xbf16>
    %63 = vector.shape_cast %62 : vector<16x16x4xbf16> to vector<256x4xbf16>
    %c7 = arith.constant 7 : index
    %c0_78 = arith.constant 0 : index
    %c0_79 = arith.constant 0 : index
    %64 = vector.load %arg2[%c7, %c0_78, %c0_79] : memref<9x4x128xbf16, #tpu.memory_space<vmem>>, vector<1x4x128xbf16>
    %65 = vector.shape_cast %64 : vector<1x4x128xbf16> to vector<4x128xbf16>
    %cst_80 = arith.constant dense<0.000000e+00> : vector<256x128xf32>
    %66 = tpu.matmul %63, %65, %cst_80 {dimension_numbers = #tpu.dot_dimension_numbers<[1], [0], [0], [1], [0, 0, 1, 1], [], []>} : vector<256x4xbf16>, vector<4x128xbf16>, vector<256x128xf32> -> vector<256x128xf32>
    %c0_81 = arith.constant 0 : index
    %c0_82 = arith.constant 0 : index
    %67 = vector.load %arg5[%c0_81, %c0_82] : memref<256x128xf32, #tpu.memory_space<vmem>>, vector<256x128xf32>
    %68 = arith.addf %67, %66 : vector<256x128xf32>
    %c0_83 = arith.constant 0 : index
    %c0_84 = arith.constant 0 : index
    %69 = vector.load %arg5[%c0_83, %c0_84] : memref<256x128xf32, #tpu.memory_space<vmem>>, vector<256x128xf32>
    tpu.vector_store %arg5[%c0_83, %c0_84], %68 {strides = array<i32>} : memref<256x128xf32, #tpu.memory_space<vmem>>, vector<256x128xf32>,
    %c0_85 = arith.constant 0 : index
    %c2_86 = arith.constant 2 : index
    %c2_87 = arith.constant 2 : index
    %c0_88 = arith.constant 0 : index
    %70 = vector.load %arg1[%c0_85, %c2_86, %c2_87, %c0_88] : memref<1x18x18x4xbf16, #tpu.memory_space<vmem>>, vector<1x16x16x4xbf16>
    %71 = vector.shape_cast %70 : vector<1x16x16x4xbf16> to vector<16x16x4xbf16>
    %72 = vector.shape_cast %71 : vector<16x16x4xbf16> to vector<256x4xbf16>
    %c8 = arith.constant 8 : index
    %c0_89 = arith.constant 0 : index
    %c0_90 = arith.constant 0 : index
    %73 = vector.load %arg2[%c8, %c0_89, %c0_90] : memref<9x4x128xbf16, #tpu.memory_space<vmem>>, vector<1x4x128xbf16>
    %74 = vector.shape_cast %73 : vector<1x4x128xbf16> to vector<4x128xbf16>
    %cst_91 = arith.constant dense<0.000000e+00> : vector<256x128xf32>
    %75 = tpu.matmul %72, %74, %cst_91 {dimension_numbers = #tpu.dot_dimension_numbers<[1], [0], [0], [1], [0, 0, 1, 1], [], []>} : vector<256x4xbf16>, vector<4x128xbf16>, vector<256x128xf32> -> vector<256x128xf32>
    %c0_92 = arith.constant 0 : index
    %c0_93 = arith.constant 0 : index
    %76 = vector.load %arg5[%c0_92, %c0_93] : memref<256x128xf32, #tpu.memory_space<vmem>>, vector<256x128xf32>
    %77 = arith.addf %76, %75 : vector<256x128xf32>
    %c0_94 = arith.constant 0 : index
    %c0_95 = arith.constant 0 : index
    %78 = vector.load %arg5[%c0_94, %c0_95] : memref<256x128xf32, #tpu.memory_space<vmem>>, vector<256x128xf32>
    tpu.vector_store %arg5[%c0_94, %c0_95], %77 {strides = array<i32>} : memref<256x128xf32, #tpu.memory_space<vmem>>, vector<256x128xf32>,
    %c0_96 = arith.constant 0 : index
    %c0_97 = arith.constant 0 : index
    %79 = vector.load %arg3[%c0_96, %c0_97] : memref<1x128xf32, #tpu.memory_space<vmem>>, vector<1x128xf32>
    %c0_98 = arith.constant 0 : index
    %c0_99 = arith.constant 0 : index
    %80 = tpu.strided_load %arg5[%c0_98, %c0_99] {strides = array<i32: 2, 1>} : memref<256x128xf32, #tpu.memory_space<vmem>>, vector<8x128xf32>
    %c1_100 = arith.constant 1 : index
    %c0_101 = arith.constant 0 : index
    %81 = tpu.strided_load %arg5[%c1_100, %c0_101] {strides = array<i32: 2, 1>} : memref<256x128xf32, #tpu.memory_space<vmem>>, vector<8x128xf32>
    %c16 = arith.constant 16 : index
    %c0_102 = arith.constant 0 : index
    %82 = tpu.strided_load %arg5[%c16, %c0_102] {strides = array<i32: 2, 1>} : memref<256x128xf32, #tpu.memory_space<vmem>>, vector<8x128xf32>
    %c17 = arith.constant 17 : index
    %c0_103 = arith.constant 0 : index
    %83 = tpu.strided_load %arg5[%c17, %c0_103] {strides = array<i32: 2, 1>} : memref<256x128xf32, #tpu.memory_space<vmem>>, vector<8x128xf32>
    %84 = arith.maximumf %80, %81 : vector<8x128xf32>
    %85 = arith.maximumf %82, %83 : vector<8x128xf32>
    %86 = arith.maximumf %84, %85 : vector<8x128xf32>
    %87 = vector.broadcast %79 : vector<1x128xf32> to vector<8x128xf32>
    %88 = arith.addf %86, %87 : vector<8x128xf32>
    %cst_104 = arith.constant 0.000000e+00 : f32
    %89 = vector.broadcast %cst_104 : f32 to vector<8x128xf32>
    %90 = arith.maximumf %88, %89 : vector<8x128xf32>
    %91 = arith.truncf %90 : vector<8x128xf32> to vector<8x128xbf16>
    %c0_105 = arith.constant 0 : index
    %c0_106 = arith.constant 0 : index
    %c0_107 = arith.constant 0 : index
    %c0_108 = arith.constant 0 : index
    %92 = vector.load %arg4[%c0_105, %c0_106, %c0_107, %c0_108] : memref<1x8x8x128xbf16, #tpu.memory_space<vmem>>, vector<1x1x8x128xbf16>
    %93 = vector.shape_cast %92 : vector<1x1x8x128xbf16> to vector<8x128xbf16>
    %94 = vector.shape_cast %91 : vector<8x128xbf16> to vector<1x1x8x128xbf16>
    tpu.vector_store %arg4[%c0_105, %c0_106, %c0_107, %c0_108], %94 {strides = array<i32>} : memref<1x8x8x128xbf16, #tpu.memory_space<vmem>>, vector<1x1x8x128xbf16>,
    %c32 = arith.constant 32 : index
    %c0_109 = arith.constant 0 : index
    %95 = tpu.strided_load %arg5[%c32, %c0_109] {strides = array<i32: 2, 1>} : memref<256x128xf32, #tpu.memory_space<vmem>>, vector<8x128xf32>
    %c33 = arith.constant 33 : index
    %c0_110 = arith.constant 0 : index
    %96 = tpu.strided_load %arg5[%c33, %c0_110] {strides = array<i32: 2, 1>} : memref<256x128xf32, #tpu.memory_space<vmem>>, vector<8x128xf32>
    %c48 = arith.constant 48 : index
    %c0_111 = arith.constant 0 : index
    %97 = tpu.strided_load %arg5[%c48, %c0_111] {strides = array<i32: 2, 1>} : memref<256x128xf32, #tpu.memory_space<vmem>>, vector<8x128xf32>
    %c49 = arith.constant 49 : index
    %c0_112 = arith.constant 0 : index
    %98 = tpu.strided_load %arg5[%c49, %c0_112] {strides = array<i32: 2, 1>} : memref<256x128xf32, #tpu.memory_space<vmem>>, vector<8x128xf32>
    %99 = arith.maximumf %95, %96 : vector<8x128xf32>
    %100 = arith.maximumf %97, %98 : vector<8x128xf32>
    %101 = arith.maximumf %99, %100 : vector<8x128xf32>
    %102 = vector.broadcast %79 : vector<1x128xf32> to vector<8x128xf32>
    %103 = arith.addf %101, %102 : vector<8x128xf32>
    %cst_113 = arith.constant 0.000000e+00 : f32
    %104 = vector.broadcast %cst_113 : f32 to vector<8x128xf32>
    %105 = arith.maximumf %103, %104 : vector<8x128xf32>
    %106 = arith.truncf %105 : vector<8x128xf32> to vector<8x128xbf16>
    %c0_114 = arith.constant 0 : index
    %c1_115 = arith.constant 1 : index
    %c0_116 = arith.constant 0 : index
    %c0_117 = arith.constant 0 : index
    %107 = vector.load %arg4[%c0_114, %c1_115, %c0_116, %c0_117] : memref<1x8x8x128xbf16, #tpu.memory_space<vmem>>, vector<1x1x8x128xbf16>
    %108 = vector.shape_cast %107 : vector<1x1x8x128xbf16> to vector<8x128xbf16>
    %109 = vector.shape_cast %106 : vector<8x128xbf16> to vector<1x1x8x128xbf16>
    tpu.vector_store %arg4[%c0_114, %c1_115, %c0_116, %c0_117], %109 {strides = array<i32>} : memref<1x8x8x128xbf16, #tpu.memory_space<vmem>>, vector<1x1x8x128xbf16>,
    %c64 = arith.constant 64 : index
    %c0_118 = arith.constant 0 : index
    %110 = tpu.strided_load %arg5[%c64, %c0_118] {strides = array<i32: 2, 1>} : memref<256x128xf32, #tpu.memory_space<vmem>>, vector<8x128xf32>
    %c65 = arith.constant 65 : index
    %c0_119 = arith.constant 0 : index
    %111 = tpu.strided_load %arg5[%c65, %c0_119] {strides = array<i32: 2, 1>} : memref<256x128xf32, #tpu.memory_space<vmem>>, vector<8x128xf32>
    %c80 = arith.constant 80 : index
    %c0_120 = arith.constant 0 : index
    %112 = tpu.strided_load %arg5[%c80, %c0_120] {strides = array<i32: 2, 1>} : memref<256x128xf32, #tpu.memory_space<vmem>>, vector<8x128xf32>
    %c81 = arith.constant 81 : index
    %c0_121 = arith.constant 0 : index
    %113 = tpu.strided_load %arg5[%c81, %c0_121] {strides = array<i32: 2, 1>} : memref<256x128xf32, #tpu.memory_space<vmem>>, vector<8x128xf32>
    %114 = arith.maximumf %110, %111 : vector<8x128xf32>
    %115 = arith.maximumf %112, %113 : vector<8x128xf32>
    %116 = arith.maximumf %114, %115 : vector<8x128xf32>
    %117 = vector.broadcast %79 : vector<1x128xf32> to vector<8x128xf32>
    %118 = arith.addf %116, %117 : vector<8x128xf32>
    %cst_122 = arith.constant 0.000000e+00 : f32
    %119 = vector.broadcast %cst_122 : f32 to vector<8x128xf32>
    %120 = arith.maximumf %118, %119 : vector<8x128xf32>
    %121 = arith.truncf %120 : vector<8x128xf32> to vector<8x128xbf16>
    %c0_123 = arith.constant 0 : index
    %c2_124 = arith.constant 2 : index
    %c0_125 = arith.constant 0 : index
    %c0_126 = arith.constant 0 : index
    %122 = vector.load %arg4[%c0_123, %c2_124, %c0_125, %c0_126] : memref<1x8x8x128xbf16, #tpu.memory_space<vmem>>, vector<1x1x8x128xbf16>
    %123 = vector.shape_cast %122 : vector<1x1x8x128xbf16> to vector<8x128xbf16>
    %124 = vector.shape_cast %121 : vector<8x128xbf16> to vector<1x1x8x128xbf16>
    tpu.vector_store %arg4[%c0_123, %c2_124, %c0_125, %c0_126], %124 {strides = array<i32>} : memref<1x8x8x128xbf16, #tpu.memory_space<vmem>>, vector<1x1x8x128xbf16>,
    %c96 = arith.constant 96 : index
    %c0_127 = arith.constant 0 : index
    %125 = tpu.strided_load %arg5[%c96, %c0_127] {strides = array<i32: 2, 1>} : memref<256x128xf32, #tpu.memory_space<vmem>>, vector<8x128xf32>
    %c97 = arith.constant 97 : index
    %c0_128 = arith.constant 0 : index
    %126 = tpu.strided_load %arg5[%c97, %c0_128] {strides = array<i32: 2, 1>} : memref<256x128xf32, #tpu.memory_space<vmem>>, vector<8x128xf32>
    %c112 = arith.constant 112 : index
    %c0_129 = arith.constant 0 : index
    %127 = tpu.strided_load %arg5[%c112, %c0_129] {strides = array<i32: 2, 1>} : memref<256x128xf32, #tpu.memory_space<vmem>>, vector<8x128xf32>
    %c113 = arith.constant 113 : index
    %c0_130 = arith.constant 0 : index
    %128 = tpu.strided_load %arg5[%c113, %c0_130] {strides = array<i32: 2, 1>} : memref<256x128xf32, #tpu.memory_space<vmem>>, vector<8x128xf32>
    %129 = arith.maximumf %125, %126 : vector<8x128xf32>
    %130 = arith.maximumf %127, %128 : vector<8x128xf32>
    %131 = arith.maximumf %129, %130 : vector<8x128xf32>
    %132 = vector.broadcast %79 : vector<1x128xf32> to vector<8x128xf32>
    %133 = arith.addf %131, %132 : vector<8x128xf32>
    %cst_131 = arith.constant 0.000000e+00 : f32
    %134 = vector.broadcast %cst_131 : f32 to vector<8x128xf32>
    %135 = arith.maximumf %133, %134 : vector<8x128xf32>
    %136 = arith.truncf %135 : vector<8x128xf32> to vector<8x128xbf16>
    %c0_132 = arith.constant 0 : index
    %c3_133 = arith.constant 3 : index
    %c0_134 = arith.constant 0 : index
    %c0_135 = arith.constant 0 : index
    %137 = vector.load %arg4[%c0_132, %c3_133, %c0_134, %c0_135] : memref<1x8x8x128xbf16, #tpu.memory_space<vmem>>, vector<1x1x8x128xbf16>
    %138 = vector.shape_cast %137 : vector<1x1x8x128xbf16> to vector<8x128xbf16>
    %139 = vector.shape_cast %136 : vector<8x128xbf16> to vector<1x1x8x128xbf16>
    tpu.vector_store %arg4[%c0_132, %c3_133, %c0_134, %c0_135], %139 {strides = array<i32>} : memref<1x8x8x128xbf16, #tpu.memory_space<vmem>>, vector<1x1x8x128xbf16>,
    %c128 = arith.constant 128 : index
    %c0_136 = arith.constant 0 : index
    %140 = tpu.strided_load %arg5[%c128, %c0_136] {strides = array<i32: 2, 1>} : memref<256x128xf32, #tpu.memory_space<vmem>>, vector<8x128xf32>
    %c129 = arith.constant 129 : index
    %c0_137 = arith.constant 0 : index
    %141 = tpu.strided_load %arg5[%c129, %c0_137] {strides = array<i32: 2, 1>} : memref<256x128xf32, #tpu.memory_space<vmem>>, vector<8x128xf32>
    %c144 = arith.constant 144 : index
    %c0_138 = arith.constant 0 : index
    %142 = tpu.strided_load %arg5[%c144, %c0_138] {strides = array<i32: 2, 1>} : memref<256x128xf32, #tpu.memory_space<vmem>>, vector<8x128xf32>
    %c145 = arith.constant 145 : index
    %c0_139 = arith.constant 0 : index
    %143 = tpu.strided_load %arg5[%c145, %c0_139] {strides = array<i32: 2, 1>} : memref<256x128xf32, #tpu.memory_space<vmem>>, vector<8x128xf32>
    %144 = arith.maximumf %140, %141 : vector<8x128xf32>
    %145 = arith.maximumf %142, %143 : vector<8x128xf32>
    %146 = arith.maximumf %144, %145 : vector<8x128xf32>
    %147 = vector.broadcast %79 : vector<1x128xf32> to vector<8x128xf32>
    %148 = arith.addf %146, %147 : vector<8x128xf32>
    %cst_140 = arith.constant 0.000000e+00 : f32
    %149 = vector.broadcast %cst_140 : f32 to vector<8x128xf32>
    %150 = arith.maximumf %148, %149 : vector<8x128xf32>
    %151 = arith.truncf %150 : vector<8x128xf32> to vector<8x128xbf16>
    %c0_141 = arith.constant 0 : index
    %c4_142 = arith.constant 4 : index
    %c0_143 = arith.constant 0 : index
    %c0_144 = arith.constant 0 : index
    %152 = vector.load %arg4[%c0_141, %c4_142, %c0_143, %c0_144] : memref<1x8x8x128xbf16, #tpu.memory_space<vmem>>, vector<1x1x8x128xbf16>
    %153 = vector.shape_cast %152 : vector<1x1x8x128xbf16> to vector<8x128xbf16>
    %154 = vector.shape_cast %151 : vector<8x128xbf16> to vector<1x1x8x128xbf16>
    tpu.vector_store %arg4[%c0_141, %c4_142, %c0_143, %c0_144], %154 {strides = array<i32>} : memref<1x8x8x128xbf16, #tpu.memory_space<vmem>>, vector<1x1x8x128xbf16>,
    %c160 = arith.constant 160 : index
    %c0_145 = arith.constant 0 : index
    %155 = tpu.strided_load %arg5[%c160, %c0_145] {strides = array<i32: 2, 1>} : memref<256x128xf32, #tpu.memory_space<vmem>>, vector<8x128xf32>
    %c161 = arith.constant 161 : index
    %c0_146 = arith.constant 0 : index
    %156 = tpu.strided_load %arg5[%c161, %c0_146] {strides = array<i32: 2, 1>} : memref<256x128xf32, #tpu.memory_space<vmem>>, vector<8x128xf32>
    %c176 = arith.constant 176 : index
    %c0_147 = arith.constant 0 : index
    %157 = tpu.strided_load %arg5[%c176, %c0_147] {strides = array<i32: 2, 1>} : memref<256x128xf32, #tpu.memory_space<vmem>>, vector<8x128xf32>
    %c177 = arith.constant 177 : index
    %c0_148 = arith.constant 0 : index
    %158 = tpu.strided_load %arg5[%c177, %c0_148] {strides = array<i32: 2, 1>} : memref<256x128xf32, #tpu.memory_space<vmem>>, vector<8x128xf32>
    %159 = arith.maximumf %155, %156 : vector<8x128xf32>
    %160 = arith.maximumf %157, %158 : vector<8x128xf32>
    %161 = arith.maximumf %159, %160 : vector<8x128xf32>
    %162 = vector.broadcast %79 : vector<1x128xf32> to vector<8x128xf32>
    %163 = arith.addf %161, %162 : vector<8x128xf32>
    %cst_149 = arith.constant 0.000000e+00 : f32
    %164 = vector.broadcast %cst_149 : f32 to vector<8x128xf32>
    %165 = arith.maximumf %163, %164 : vector<8x128xf32>
    %166 = arith.truncf %165 : vector<8x128xf32> to vector<8x128xbf16>
    %c0_150 = arith.constant 0 : index
    %c5_151 = arith.constant 5 : index
    %c0_152 = arith.constant 0 : index
    %c0_153 = arith.constant 0 : index
    %167 = vector.load %arg4[%c0_150, %c5_151, %c0_152, %c0_153] : memref<1x8x8x128xbf16, #tpu.memory_space<vmem>>, vector<1x1x8x128xbf16>
    %168 = vector.shape_cast %167 : vector<1x1x8x128xbf16> to vector<8x128xbf16>
    %169 = vector.shape_cast %166 : vector<8x128xbf16> to vector<1x1x8x128xbf16>
    tpu.vector_store %arg4[%c0_150, %c5_151, %c0_152, %c0_153], %169 {strides = array<i32>} : memref<1x8x8x128xbf16, #tpu.memory_space<vmem>>, vector<1x1x8x128xbf16>,
    %c192 = arith.constant 192 : index
    %c0_154 = arith.constant 0 : index
    %170 = tpu.strided_load %arg5[%c192, %c0_154] {strides = array<i32: 2, 1>} : memref<256x128xf32, #tpu.memory_space<vmem>>, vector<8x128xf32>
    %c193 = arith.constant 193 : index
    %c0_155 = arith.constant 0 : index
    %171 = tpu.strided_load %arg5[%c193, %c0_155] {strides = array<i32: 2, 1>} : memref<256x128xf32, #tpu.memory_space<vmem>>, vector<8x128xf32>
    %c208 = arith.constant 208 : index
    %c0_156 = arith.constant 0 : index
    %172 = tpu.strided_load %arg5[%c208, %c0_156] {strides = array<i32: 2, 1>} : memref<256x128xf32, #tpu.memory_space<vmem>>, vector<8x128xf32>
    %c209 = arith.constant 209 : index
    %c0_157 = arith.constant 0 : index
    %173 = tpu.strided_load %arg5[%c209, %c0_157] {strides = array<i32: 2, 1>} : memref<256x128xf32, #tpu.memory_space<vmem>>, vector<8x128xf32>
    %174 = arith.maximumf %170, %171 : vector<8x128xf32>
    %175 = arith.maximumf %172, %173 : vector<8x128xf32>
    %176 = arith.maximumf %174, %175 : vector<8x128xf32>
    %177 = vector.broadcast %79 : vector<1x128xf32> to vector<8x128xf32>
    %178 = arith.addf %176, %177 : vector<8x128xf32>
    %cst_158 = arith.constant 0.000000e+00 : f32
    %179 = vector.broadcast %cst_158 : f32 to vector<8x128xf32>
    %180 = arith.maximumf %178, %179 : vector<8x128xf32>
    %181 = arith.truncf %180 : vector<8x128xf32> to vector<8x128xbf16>
    %c0_159 = arith.constant 0 : index
    %c6_160 = arith.constant 6 : index
    %c0_161 = arith.constant 0 : index
    %c0_162 = arith.constant 0 : index
    %182 = vector.load %arg4[%c0_159, %c6_160, %c0_161, %c0_162] : memref<1x8x8x128xbf16, #tpu.memory_space<vmem>>, vector<1x1x8x128xbf16>
    %183 = vector.shape_cast %182 : vector<1x1x8x128xbf16> to vector<8x128xbf16>
    %184 = vector.shape_cast %181 : vector<8x128xbf16> to vector<1x1x8x128xbf16>
    tpu.vector_store %arg4[%c0_159, %c6_160, %c0_161, %c0_162], %184 {strides = array<i32>} : memref<1x8x8x128xbf16, #tpu.memory_space<vmem>>, vector<1x1x8x128xbf16>,
    %c224 = arith.constant 224 : index
    %c0_163 = arith.constant 0 : index
    %185 = tpu.strided_load %arg5[%c224, %c0_163] {strides = array<i32: 2, 1>} : memref<256x128xf32, #tpu.memory_space<vmem>>, vector<8x128xf32>
    %c225 = arith.constant 225 : index
    %c0_164 = arith.constant 0 : index
    %186 = tpu.strided_load %arg5[%c225, %c0_164] {strides = array<i32: 2, 1>} : memref<256x128xf32, #tpu.memory_space<vmem>>, vector<8x128xf32>
    %c240 = arith.constant 240 : index
    %c0_165 = arith.constant 0 : index
    %187 = tpu.strided_load %arg5[%c240, %c0_165] {strides = array<i32: 2, 1>} : memref<256x128xf32, #tpu.memory_space<vmem>>, vector<8x128xf32>
    %c241 = arith.constant 241 : index
    %c0_166 = arith.constant 0 : index
    %188 = tpu.strided_load %arg5[%c241, %c0_166] {strides = array<i32: 2, 1>} : memref<256x128xf32, #tpu.memory_space<vmem>>, vector<8x128xf32>
    %189 = arith.maximumf %185, %186 : vector<8x128xf32>
    %190 = arith.maximumf %187, %188 : vector<8x128xf32>
    %191 = arith.maximumf %189, %190 : vector<8x128xf32>
    %192 = vector.broadcast %79 : vector<1x128xf32> to vector<8x128xf32>
    %193 = arith.addf %191, %192 : vector<8x128xf32>
    %cst_167 = arith.constant 0.000000e+00 : f32
    %194 = vector.broadcast %cst_167 : f32 to vector<8x128xf32>
    %195 = arith.maximumf %193, %194 : vector<8x128xf32>
    %196 = arith.truncf %195 : vector<8x128xf32> to vector<8x128xbf16>
    %c0_168 = arith.constant 0 : index
    %c7_169 = arith.constant 7 : index
    %c0_170 = arith.constant 0 : index
    %c0_171 = arith.constant 0 : index
    %197 = vector.load %arg4[%c0_168, %c7_169, %c0_170, %c0_171] : memref<1x8x8x128xbf16, #tpu.memory_space<vmem>>, vector<1x1x8x128xbf16>
    %198 = vector.shape_cast %197 : vector<1x1x8x128xbf16> to vector<8x128xbf16>
    %199 = vector.shape_cast %196 : vector<8x128xbf16> to vector<1x1x8x128xbf16>
    tpu.vector_store %arg4[%c0_168, %c7_169, %c0_170, %c0_171], %199 {strides = array<i32>} : memref<1x8x8x128xbf16, #tpu.memory_space<vmem>>, vector<1x1x8x128xbf16>,
    return
  }
  func.func @transform_0(%arg0: i32) -> (i32, i32, i32, i32) {
    %c0_i32 = arith.constant 0 : i32
    %c0_i32_0 = arith.constant 0 : i32
    %c0_i32_1 = arith.constant 0 : i32
    %c0_i32_2 = arith.constant 0 : i32
    return %arg0, %c0_i32, %c0_i32_0, %c0_i32_1 : i32, i32, i32, i32
  }
  func.func @transform_1(%arg0: i32) -> (i32, i32, i32) {
    %c0_i32 = arith.constant 0 : i32
    %c0_i32_0 = arith.constant 0 : i32
    %c0_i32_1 = arith.constant 0 : i32
    %c0_i32_2 = arith.constant 0 : i32
    return %c0_i32, %c0_i32_0, %c0_i32_1 : i32, i32, i32
  }
  func.func @transform_2(%arg0: i32) -> (i32, i32) {
    %c0_i32 = arith.constant 0 : i32
    %c0_i32_0 = arith.constant 0 : i32
    %c0_i32_1 = arith.constant 0 : i32
    return %c0_i32, %c0_i32_0 : i32, i32
  }
  func.func @transform_3(%arg0: i32) -> (i32, i32, i32, i32) {
    %c0_i32 = arith.constant 0 : i32
    %c0_i32_0 = arith.constant 0 : i32
    %c0_i32_1 = arith.constant 0 : i32
    %c0_i32_2 = arith.constant 0 : i32
    return %arg0, %c0_i32, %c0_i32_0, %c0_i32_1 : i32, i32, i32, i32
  }
}

module attributes {stable_mosaic.version = 11 : i64} {
  func.func @_conv3x3_kernel(%arg0: i32, %arg1: memref<1x10x10x128xbf16, #tpu.memory_space<vmem>>, %arg2: memref<9x128x128xbf16, #tpu.memory_space<vmem>>, %arg3: memref<1x128xf32, #tpu.memory_space<vmem>>, %arg4: memref<1x4x4x128xbf16, #tpu.memory_space<vmem>>, %arg5: memref<64x128xf32, #tpu.memory_space<vmem>>) attributes {dimension_semantics = [#tpu.dimension_semantics<parallel>], iteration_bounds = array<i64: 4>, scalar_prefetch = 0 : i64, scratch_operands = 1 : i64, tpu.core_type = #tpu.core_type<tc>, window_params = [{transform_indices = @transform_0, window_bounds = array<i64: 1, 10, 10, 128>}, {pipeline_mode = #tpu.pipeline_mode<synchronous>, transform_indices = @transform_1, window_bounds = array<i64: 9, 128, 128>}, {pipeline_mode = #tpu.pipeline_mode<synchronous>, transform_indices = @transform_2, window_bounds = array<i64: 1, 128>}, {transform_indices = @transform_3, window_bounds = array<i64: 1, 4, 4, 128>}]} {
    %c0 = arith.constant 0 : index
    %c0_0 = arith.constant 0 : index
    %c0_1 = arith.constant 0 : index
    %c0_2 = arith.constant 0 : index
    %0 = vector.load %arg1[%c0, %c0_0, %c0_1, %c0_2] : memref<1x10x10x128xbf16, #tpu.memory_space<vmem>>, vector<1x8x8x128xbf16>
    %1 = vector.shape_cast %0 : vector<1x8x8x128xbf16> to vector<8x8x128xbf16>
    %2 = vector.shape_cast %1 : vector<8x8x128xbf16> to vector<64x128xbf16>
    %c0_3 = arith.constant 0 : index
    %c0_4 = arith.constant 0 : index
    %c0_5 = arith.constant 0 : index
    %3 = vector.load %arg2[%c0_3, %c0_4, %c0_5] : memref<9x128x128xbf16, #tpu.memory_space<vmem>>, vector<1x128x128xbf16>
    %4 = vector.shape_cast %3 : vector<1x128x128xbf16> to vector<128x128xbf16>
    %cst = arith.constant dense<0.000000e+00> : vector<64x128xf32>
    %5 = tpu.matmul %2, %4, %cst {dimension_numbers = #tpu.dot_dimension_numbers<[1], [0], [0], [1], [0, 0, 1, 1], [], []>} : vector<64x128xbf16>, vector<128x128xbf16>, vector<64x128xf32> -> vector<64x128xf32>
    %c0_6 = arith.constant 0 : index
    %c0_7 = arith.constant 0 : index
    %6 = vector.load %arg5[%c0_6, %c0_7] : memref<64x128xf32, #tpu.memory_space<vmem>>, vector<64x128xf32>
    tpu.vector_store %arg5[%c0_6, %c0_7], %5 {strides = array<i32>} : memref<64x128xf32, #tpu.memory_space<vmem>>, vector<64x128xf32>,
    %c0_8 = arith.constant 0 : index
    %c0_9 = arith.constant 0 : index
    %c1 = arith.constant 1 : index
    %c0_10 = arith.constant 0 : index
    %7 = vector.load %arg1[%c0_8, %c0_9, %c1, %c0_10] : memref<1x10x10x128xbf16, #tpu.memory_space<vmem>>, vector<1x8x8x128xbf16>
    %8 = vector.shape_cast %7 : vector<1x8x8x128xbf16> to vector<8x8x128xbf16>
    %9 = vector.shape_cast %8 : vector<8x8x128xbf16> to vector<64x128xbf16>
    %c1_11 = arith.constant 1 : index
    %c0_12 = arith.constant 0 : index
    %c0_13 = arith.constant 0 : index
    %10 = vector.load %arg2[%c1_11, %c0_12, %c0_13] : memref<9x128x128xbf16, #tpu.memory_space<vmem>>, vector<1x128x128xbf16>
    %11 = vector.shape_cast %10 : vector<1x128x128xbf16> to vector<128x128xbf16>
    %cst_14 = arith.constant dense<0.000000e+00> : vector<64x128xf32>
    %12 = tpu.matmul %9, %11, %cst_14 {dimension_numbers = #tpu.dot_dimension_numbers<[1], [0], [0], [1], [0, 0, 1, 1], [], []>} : vector<64x128xbf16>, vector<128x128xbf16>, vector<64x128xf32> -> vector<64x128xf32>
    %c0_15 = arith.constant 0 : index
    %c0_16 = arith.constant 0 : index
    %13 = vector.load %arg5[%c0_15, %c0_16] : memref<64x128xf32, #tpu.memory_space<vmem>>, vector<64x128xf32>
    %14 = arith.addf %13, %12 : vector<64x128xf32>
    %c0_17 = arith.constant 0 : index
    %c0_18 = arith.constant 0 : index
    %15 = vector.load %arg5[%c0_17, %c0_18] : memref<64x128xf32, #tpu.memory_space<vmem>>, vector<64x128xf32>
    tpu.vector_store %arg5[%c0_17, %c0_18], %14 {strides = array<i32>} : memref<64x128xf32, #tpu.memory_space<vmem>>, vector<64x128xf32>,
    %c0_19 = arith.constant 0 : index
    %c0_20 = arith.constant 0 : index
    %c2 = arith.constant 2 : index
    %c0_21 = arith.constant 0 : index
    %16 = vector.load %arg1[%c0_19, %c0_20, %c2, %c0_21] : memref<1x10x10x128xbf16, #tpu.memory_space<vmem>>, vector<1x8x8x128xbf16>
    %17 = vector.shape_cast %16 : vector<1x8x8x128xbf16> to vector<8x8x128xbf16>
    %18 = vector.shape_cast %17 : vector<8x8x128xbf16> to vector<64x128xbf16>
    %c2_22 = arith.constant 2 : index
    %c0_23 = arith.constant 0 : index
    %c0_24 = arith.constant 0 : index
    %19 = vector.load %arg2[%c2_22, %c0_23, %c0_24] : memref<9x128x128xbf16, #tpu.memory_space<vmem>>, vector<1x128x128xbf16>
    %20 = vector.shape_cast %19 : vector<1x128x128xbf16> to vector<128x128xbf16>
    %cst_25 = arith.constant dense<0.000000e+00> : vector<64x128xf32>
    %21 = tpu.matmul %18, %20, %cst_25 {dimension_numbers = #tpu.dot_dimension_numbers<[1], [0], [0], [1], [0, 0, 1, 1], [], []>} : vector<64x128xbf16>, vector<128x128xbf16>, vector<64x128xf32> -> vector<64x128xf32>
    %c0_26 = arith.constant 0 : index
    %c0_27 = arith.constant 0 : index
    %22 = vector.load %arg5[%c0_26, %c0_27] : memref<64x128xf32, #tpu.memory_space<vmem>>, vector<64x128xf32>
    %23 = arith.addf %22, %21 : vector<64x128xf32>
    %c0_28 = arith.constant 0 : index
    %c0_29 = arith.constant 0 : index
    %24 = vector.load %arg5[%c0_28, %c0_29] : memref<64x128xf32, #tpu.memory_space<vmem>>, vector<64x128xf32>
    tpu.vector_store %arg5[%c0_28, %c0_29], %23 {strides = array<i32>} : memref<64x128xf32, #tpu.memory_space<vmem>>, vector<64x128xf32>,
    %c0_30 = arith.constant 0 : index
    %c1_31 = arith.constant 1 : index
    %c0_32 = arith.constant 0 : index
    %c0_33 = arith.constant 0 : index
    %25 = vector.load %arg1[%c0_30, %c1_31, %c0_32, %c0_33] : memref<1x10x10x128xbf16, #tpu.memory_space<vmem>>, vector<1x8x8x128xbf16>
    %26 = vector.shape_cast %25 : vector<1x8x8x128xbf16> to vector<8x8x128xbf16>
    %27 = vector.shape_cast %26 : vector<8x8x128xbf16> to vector<64x128xbf16>
    %c3 = arith.constant 3 : index
    %c0_34 = arith.constant 0 : index
    %c0_35 = arith.constant 0 : index
    %28 = vector.load %arg2[%c3, %c0_34, %c0_35] : memref<9x128x128xbf16, #tpu.memory_space<vmem>>, vector<1x128x128xbf16>
    %29 = vector.shape_cast %28 : vector<1x128x128xbf16> to vector<128x128xbf16>
    %cst_36 = arith.constant dense<0.000000e+00> : vector<64x128xf32>
    %30 = tpu.matmul %27, %29, %cst_36 {dimension_numbers = #tpu.dot_dimension_numbers<[1], [0], [0], [1], [0, 0, 1, 1], [], []>} : vector<64x128xbf16>, vector<128x128xbf16>, vector<64x128xf32> -> vector<64x128xf32>
    %c0_37 = arith.constant 0 : index
    %c0_38 = arith.constant 0 : index
    %31 = vector.load %arg5[%c0_37, %c0_38] : memref<64x128xf32, #tpu.memory_space<vmem>>, vector<64x128xf32>
    %32 = arith.addf %31, %30 : vector<64x128xf32>
    %c0_39 = arith.constant 0 : index
    %c0_40 = arith.constant 0 : index
    %33 = vector.load %arg5[%c0_39, %c0_40] : memref<64x128xf32, #tpu.memory_space<vmem>>, vector<64x128xf32>
    tpu.vector_store %arg5[%c0_39, %c0_40], %32 {strides = array<i32>} : memref<64x128xf32, #tpu.memory_space<vmem>>, vector<64x128xf32>,
    %c0_41 = arith.constant 0 : index
    %c1_42 = arith.constant 1 : index
    %c1_43 = arith.constant 1 : index
    %c0_44 = arith.constant 0 : index
    %34 = vector.load %arg1[%c0_41, %c1_42, %c1_43, %c0_44] : memref<1x10x10x128xbf16, #tpu.memory_space<vmem>>, vector<1x8x8x128xbf16>
    %35 = vector.shape_cast %34 : vector<1x8x8x128xbf16> to vector<8x8x128xbf16>
    %36 = vector.shape_cast %35 : vector<8x8x128xbf16> to vector<64x128xbf16>
    %c4 = arith.constant 4 : index
    %c0_45 = arith.constant 0 : index
    %c0_46 = arith.constant 0 : index
    %37 = vector.load %arg2[%c4, %c0_45, %c0_46] : memref<9x128x128xbf16, #tpu.memory_space<vmem>>, vector<1x128x128xbf16>
    %38 = vector.shape_cast %37 : vector<1x128x128xbf16> to vector<128x128xbf16>
    %cst_47 = arith.constant dense<0.000000e+00> : vector<64x128xf32>
    %39 = tpu.matmul %36, %38, %cst_47 {dimension_numbers = #tpu.dot_dimension_numbers<[1], [0], [0], [1], [0, 0, 1, 1], [], []>} : vector<64x128xbf16>, vector<128x128xbf16>, vector<64x128xf32> -> vector<64x128xf32>
    %c0_48 = arith.constant 0 : index
    %c0_49 = arith.constant 0 : index
    %40 = vector.load %arg5[%c0_48, %c0_49] : memref<64x128xf32, #tpu.memory_space<vmem>>, vector<64x128xf32>
    %41 = arith.addf %40, %39 : vector<64x128xf32>
    %c0_50 = arith.constant 0 : index
    %c0_51 = arith.constant 0 : index
    %42 = vector.load %arg5[%c0_50, %c0_51] : memref<64x128xf32, #tpu.memory_space<vmem>>, vector<64x128xf32>
    tpu.vector_store %arg5[%c0_50, %c0_51], %41 {strides = array<i32>} : memref<64x128xf32, #tpu.memory_space<vmem>>, vector<64x128xf32>,
    %c0_52 = arith.constant 0 : index
    %c1_53 = arith.constant 1 : index
    %c2_54 = arith.constant 2 : index
    %c0_55 = arith.constant 0 : index
    %43 = vector.load %arg1[%c0_52, %c1_53, %c2_54, %c0_55] : memref<1x10x10x128xbf16, #tpu.memory_space<vmem>>, vector<1x8x8x128xbf16>
    %44 = vector.shape_cast %43 : vector<1x8x8x128xbf16> to vector<8x8x128xbf16>
    %45 = vector.shape_cast %44 : vector<8x8x128xbf16> to vector<64x128xbf16>
    %c5 = arith.constant 5 : index
    %c0_56 = arith.constant 0 : index
    %c0_57 = arith.constant 0 : index
    %46 = vector.load %arg2[%c5, %c0_56, %c0_57] : memref<9x128x128xbf16, #tpu.memory_space<vmem>>, vector<1x128x128xbf16>
    %47 = vector.shape_cast %46 : vector<1x128x128xbf16> to vector<128x128xbf16>
    %cst_58 = arith.constant dense<0.000000e+00> : vector<64x128xf32>
    %48 = tpu.matmul %45, %47, %cst_58 {dimension_numbers = #tpu.dot_dimension_numbers<[1], [0], [0], [1], [0, 0, 1, 1], [], []>} : vector<64x128xbf16>, vector<128x128xbf16>, vector<64x128xf32> -> vector<64x128xf32>
    %c0_59 = arith.constant 0 : index
    %c0_60 = arith.constant 0 : index
    %49 = vector.load %arg5[%c0_59, %c0_60] : memref<64x128xf32, #tpu.memory_space<vmem>>, vector<64x128xf32>
    %50 = arith.addf %49, %48 : vector<64x128xf32>
    %c0_61 = arith.constant 0 : index
    %c0_62 = arith.constant 0 : index
    %51 = vector.load %arg5[%c0_61, %c0_62] : memref<64x128xf32, #tpu.memory_space<vmem>>, vector<64x128xf32>
    tpu.vector_store %arg5[%c0_61, %c0_62], %50 {strides = array<i32>} : memref<64x128xf32, #tpu.memory_space<vmem>>, vector<64x128xf32>,
    %c0_63 = arith.constant 0 : index
    %c2_64 = arith.constant 2 : index
    %c0_65 = arith.constant 0 : index
    %c0_66 = arith.constant 0 : index
    %52 = vector.load %arg1[%c0_63, %c2_64, %c0_65, %c0_66] : memref<1x10x10x128xbf16, #tpu.memory_space<vmem>>, vector<1x8x8x128xbf16>
    %53 = vector.shape_cast %52 : vector<1x8x8x128xbf16> to vector<8x8x128xbf16>
    %54 = vector.shape_cast %53 : vector<8x8x128xbf16> to vector<64x128xbf16>
    %c6 = arith.constant 6 : index
    %c0_67 = arith.constant 0 : index
    %c0_68 = arith.constant 0 : index
    %55 = vector.load %arg2[%c6, %c0_67, %c0_68] : memref<9x128x128xbf16, #tpu.memory_space<vmem>>, vector<1x128x128xbf16>
    %56 = vector.shape_cast %55 : vector<1x128x128xbf16> to vector<128x128xbf16>
    %cst_69 = arith.constant dense<0.000000e+00> : vector<64x128xf32>
    %57 = tpu.matmul %54, %56, %cst_69 {dimension_numbers = #tpu.dot_dimension_numbers<[1], [0], [0], [1], [0, 0, 1, 1], [], []>} : vector<64x128xbf16>, vector<128x128xbf16>, vector<64x128xf32> -> vector<64x128xf32>
    %c0_70 = arith.constant 0 : index
    %c0_71 = arith.constant 0 : index
    %58 = vector.load %arg5[%c0_70, %c0_71] : memref<64x128xf32, #tpu.memory_space<vmem>>, vector<64x128xf32>
    %59 = arith.addf %58, %57 : vector<64x128xf32>
    %c0_72 = arith.constant 0 : index
    %c0_73 = arith.constant 0 : index
    %60 = vector.load %arg5[%c0_72, %c0_73] : memref<64x128xf32, #tpu.memory_space<vmem>>, vector<64x128xf32>
    tpu.vector_store %arg5[%c0_72, %c0_73], %59 {strides = array<i32>} : memref<64x128xf32, #tpu.memory_space<vmem>>, vector<64x128xf32>,
    %c0_74 = arith.constant 0 : index
    %c2_75 = arith.constant 2 : index
    %c1_76 = arith.constant 1 : index
    %c0_77 = arith.constant 0 : index
    %61 = vector.load %arg1[%c0_74, %c2_75, %c1_76, %c0_77] : memref<1x10x10x128xbf16, #tpu.memory_space<vmem>>, vector<1x8x8x128xbf16>
    %62 = vector.shape_cast %61 : vector<1x8x8x128xbf16> to vector<8x8x128xbf16>
    %63 = vector.shape_cast %62 : vector<8x8x128xbf16> to vector<64x128xbf16>
    %c7 = arith.constant 7 : index
    %c0_78 = arith.constant 0 : index
    %c0_79 = arith.constant 0 : index
    %64 = vector.load %arg2[%c7, %c0_78, %c0_79] : memref<9x128x128xbf16, #tpu.memory_space<vmem>>, vector<1x128x128xbf16>
    %65 = vector.shape_cast %64 : vector<1x128x128xbf16> to vector<128x128xbf16>
    %cst_80 = arith.constant dense<0.000000e+00> : vector<64x128xf32>
    %66 = tpu.matmul %63, %65, %cst_80 {dimension_numbers = #tpu.dot_dimension_numbers<[1], [0], [0], [1], [0, 0, 1, 1], [], []>} : vector<64x128xbf16>, vector<128x128xbf16>, vector<64x128xf32> -> vector<64x128xf32>
    %c0_81 = arith.constant 0 : index
    %c0_82 = arith.constant 0 : index
    %67 = vector.load %arg5[%c0_81, %c0_82] : memref<64x128xf32, #tpu.memory_space<vmem>>, vector<64x128xf32>
    %68 = arith.addf %67, %66 : vector<64x128xf32>
    %c0_83 = arith.constant 0 : index
    %c0_84 = arith.constant 0 : index
    %69 = vector.load %arg5[%c0_83, %c0_84] : memref<64x128xf32, #tpu.memory_space<vmem>>, vector<64x128xf32>
    tpu.vector_store %arg5[%c0_83, %c0_84], %68 {strides = array<i32>} : memref<64x128xf32, #tpu.memory_space<vmem>>, vector<64x128xf32>,
    %c0_85 = arith.constant 0 : index
    %c2_86 = arith.constant 2 : index
    %c2_87 = arith.constant 2 : index
    %c0_88 = arith.constant 0 : index
    %70 = vector.load %arg1[%c0_85, %c2_86, %c2_87, %c0_88] : memref<1x10x10x128xbf16, #tpu.memory_space<vmem>>, vector<1x8x8x128xbf16>
    %71 = vector.shape_cast %70 : vector<1x8x8x128xbf16> to vector<8x8x128xbf16>
    %72 = vector.shape_cast %71 : vector<8x8x128xbf16> to vector<64x128xbf16>
    %c8 = arith.constant 8 : index
    %c0_89 = arith.constant 0 : index
    %c0_90 = arith.constant 0 : index
    %73 = vector.load %arg2[%c8, %c0_89, %c0_90] : memref<9x128x128xbf16, #tpu.memory_space<vmem>>, vector<1x128x128xbf16>
    %74 = vector.shape_cast %73 : vector<1x128x128xbf16> to vector<128x128xbf16>
    %cst_91 = arith.constant dense<0.000000e+00> : vector<64x128xf32>
    %75 = tpu.matmul %72, %74, %cst_91 {dimension_numbers = #tpu.dot_dimension_numbers<[1], [0], [0], [1], [0, 0, 1, 1], [], []>} : vector<64x128xbf16>, vector<128x128xbf16>, vector<64x128xf32> -> vector<64x128xf32>
    %c0_92 = arith.constant 0 : index
    %c0_93 = arith.constant 0 : index
    %76 = vector.load %arg5[%c0_92, %c0_93] : memref<64x128xf32, #tpu.memory_space<vmem>>, vector<64x128xf32>
    %77 = arith.addf %76, %75 : vector<64x128xf32>
    %c0_94 = arith.constant 0 : index
    %c0_95 = arith.constant 0 : index
    %78 = vector.load %arg5[%c0_94, %c0_95] : memref<64x128xf32, #tpu.memory_space<vmem>>, vector<64x128xf32>
    tpu.vector_store %arg5[%c0_94, %c0_95], %77 {strides = array<i32>} : memref<64x128xf32, #tpu.memory_space<vmem>>, vector<64x128xf32>,
    %c0_96 = arith.constant 0 : index
    %c0_97 = arith.constant 0 : index
    %79 = vector.load %arg3[%c0_96, %c0_97] : memref<1x128xf32, #tpu.memory_space<vmem>>, vector<1x128xf32>
    %c0_98 = arith.constant 0 : index
    %c0_99 = arith.constant 0 : index
    %80 = tpu.strided_load %arg5[%c0_98, %c0_99] {strides = array<i32: 2, 1>} : memref<64x128xf32, #tpu.memory_space<vmem>>, vector<4x128xf32>
    %c1_100 = arith.constant 1 : index
    %c0_101 = arith.constant 0 : index
    %81 = tpu.strided_load %arg5[%c1_100, %c0_101] {strides = array<i32: 2, 1>} : memref<64x128xf32, #tpu.memory_space<vmem>>, vector<4x128xf32>
    %c8_102 = arith.constant 8 : index
    %c0_103 = arith.constant 0 : index
    %82 = tpu.strided_load %arg5[%c8_102, %c0_103] {strides = array<i32: 2, 1>} : memref<64x128xf32, #tpu.memory_space<vmem>>, vector<4x128xf32>
    %c9 = arith.constant 9 : index
    %c0_104 = arith.constant 0 : index
    %83 = tpu.strided_load %arg5[%c9, %c0_104] {strides = array<i32: 2, 1>} : memref<64x128xf32, #tpu.memory_space<vmem>>, vector<4x128xf32>
    %84 = arith.maximumf %80, %81 : vector<4x128xf32>
    %85 = arith.maximumf %82, %83 : vector<4x128xf32>
    %86 = arith.maximumf %84, %85 : vector<4x128xf32>
    %87 = vector.broadcast %79 : vector<1x128xf32> to vector<4x128xf32>
    %88 = arith.addf %86, %87 : vector<4x128xf32>
    %cst_105 = arith.constant 0.000000e+00 : f32
    %89 = vector.broadcast %cst_105 : f32 to vector<4x128xf32>
    %90 = arith.maximumf %88, %89 : vector<4x128xf32>
    %91 = arith.truncf %90 : vector<4x128xf32> to vector<4x128xbf16>
    %c0_106 = arith.constant 0 : index
    %c0_107 = arith.constant 0 : index
    %c0_108 = arith.constant 0 : index
    %c0_109 = arith.constant 0 : index
    %92 = vector.load %arg4[%c0_106, %c0_107, %c0_108, %c0_109] : memref<1x4x4x128xbf16, #tpu.memory_space<vmem>>, vector<1x1x4x128xbf16>
    %93 = vector.shape_cast %92 : vector<1x1x4x128xbf16> to vector<4x128xbf16>
    %94 = vector.shape_cast %91 : vector<4x128xbf16> to vector<1x1x4x128xbf16>
    tpu.vector_store %arg4[%c0_106, %c0_107, %c0_108, %c0_109], %94 {strides = array<i32>} : memref<1x4x4x128xbf16, #tpu.memory_space<vmem>>, vector<1x1x4x128xbf16>,
    %c16 = arith.constant 16 : index
    %c0_110 = arith.constant 0 : index
    %95 = tpu.strided_load %arg5[%c16, %c0_110] {strides = array<i32: 2, 1>} : memref<64x128xf32, #tpu.memory_space<vmem>>, vector<4x128xf32>
    %c17 = arith.constant 17 : index
    %c0_111 = arith.constant 0 : index
    %96 = tpu.strided_load %arg5[%c17, %c0_111] {strides = array<i32: 2, 1>} : memref<64x128xf32, #tpu.memory_space<vmem>>, vector<4x128xf32>
    %c24 = arith.constant 24 : index
    %c0_112 = arith.constant 0 : index
    %97 = tpu.strided_load %arg5[%c24, %c0_112] {strides = array<i32: 2, 1>} : memref<64x128xf32, #tpu.memory_space<vmem>>, vector<4x128xf32>
    %c25 = arith.constant 25 : index
    %c0_113 = arith.constant 0 : index
    %98 = tpu.strided_load %arg5[%c25, %c0_113] {strides = array<i32: 2, 1>} : memref<64x128xf32, #tpu.memory_space<vmem>>, vector<4x128xf32>
    %99 = arith.maximumf %95, %96 : vector<4x128xf32>
    %100 = arith.maximumf %97, %98 : vector<4x128xf32>
    %101 = arith.maximumf %99, %100 : vector<4x128xf32>
    %102 = vector.broadcast %79 : vector<1x128xf32> to vector<4x128xf32>
    %103 = arith.addf %101, %102 : vector<4x128xf32>
    %cst_114 = arith.constant 0.000000e+00 : f32
    %104 = vector.broadcast %cst_114 : f32 to vector<4x128xf32>
    %105 = arith.maximumf %103, %104 : vector<4x128xf32>
    %106 = arith.truncf %105 : vector<4x128xf32> to vector<4x128xbf16>
    %c0_115 = arith.constant 0 : index
    %c1_116 = arith.constant 1 : index
    %c0_117 = arith.constant 0 : index
    %c0_118 = arith.constant 0 : index
    %107 = vector.load %arg4[%c0_115, %c1_116, %c0_117, %c0_118] : memref<1x4x4x128xbf16, #tpu.memory_space<vmem>>, vector<1x1x4x128xbf16>
    %108 = vector.shape_cast %107 : vector<1x1x4x128xbf16> to vector<4x128xbf16>
    %109 = vector.shape_cast %106 : vector<4x128xbf16> to vector<1x1x4x128xbf16>
    tpu.vector_store %arg4[%c0_115, %c1_116, %c0_117, %c0_118], %109 {strides = array<i32>} : memref<1x4x4x128xbf16, #tpu.memory_space<vmem>>, vector<1x1x4x128xbf16>,
    %c32 = arith.constant 32 : index
    %c0_119 = arith.constant 0 : index
    %110 = tpu.strided_load %arg5[%c32, %c0_119] {strides = array<i32: 2, 1>} : memref<64x128xf32, #tpu.memory_space<vmem>>, vector<4x128xf32>
    %c33 = arith.constant 33 : index
    %c0_120 = arith.constant 0 : index
    %111 = tpu.strided_load %arg5[%c33, %c0_120] {strides = array<i32: 2, 1>} : memref<64x128xf32, #tpu.memory_space<vmem>>, vector<4x128xf32>
    %c40 = arith.constant 40 : index
    %c0_121 = arith.constant 0 : index
    %112 = tpu.strided_load %arg5[%c40, %c0_121] {strides = array<i32: 2, 1>} : memref<64x128xf32, #tpu.memory_space<vmem>>, vector<4x128xf32>
    %c41 = arith.constant 41 : index
    %c0_122 = arith.constant 0 : index
    %113 = tpu.strided_load %arg5[%c41, %c0_122] {strides = array<i32: 2, 1>} : memref<64x128xf32, #tpu.memory_space<vmem>>, vector<4x128xf32>
    %114 = arith.maximumf %110, %111 : vector<4x128xf32>
    %115 = arith.maximumf %112, %113 : vector<4x128xf32>
    %116 = arith.maximumf %114, %115 : vector<4x128xf32>
    %117 = vector.broadcast %79 : vector<1x128xf32> to vector<4x128xf32>
    %118 = arith.addf %116, %117 : vector<4x128xf32>
    %cst_123 = arith.constant 0.000000e+00 : f32
    %119 = vector.broadcast %cst_123 : f32 to vector<4x128xf32>
    %120 = arith.maximumf %118, %119 : vector<4x128xf32>
    %121 = arith.truncf %120 : vector<4x128xf32> to vector<4x128xbf16>
    %c0_124 = arith.constant 0 : index
    %c2_125 = arith.constant 2 : index
    %c0_126 = arith.constant 0 : index
    %c0_127 = arith.constant 0 : index
    %122 = vector.load %arg4[%c0_124, %c2_125, %c0_126, %c0_127] : memref<1x4x4x128xbf16, #tpu.memory_space<vmem>>, vector<1x1x4x128xbf16>
    %123 = vector.shape_cast %122 : vector<1x1x4x128xbf16> to vector<4x128xbf16>
    %124 = vector.shape_cast %121 : vector<4x128xbf16> to vector<1x1x4x128xbf16>
    tpu.vector_store %arg4[%c0_124, %c2_125, %c0_126, %c0_127], %124 {strides = array<i32>} : memref<1x4x4x128xbf16, #tpu.memory_space<vmem>>, vector<1x1x4x128xbf16>,
    %c48 = arith.constant 48 : index
    %c0_128 = arith.constant 0 : index
    %125 = tpu.strided_load %arg5[%c48, %c0_128] {strides = array<i32: 2, 1>} : memref<64x128xf32, #tpu.memory_space<vmem>>, vector<4x128xf32>
    %c49 = arith.constant 49 : index
    %c0_129 = arith.constant 0 : index
    %126 = tpu.strided_load %arg5[%c49, %c0_129] {strides = array<i32: 2, 1>} : memref<64x128xf32, #tpu.memory_space<vmem>>, vector<4x128xf32>
    %c56 = arith.constant 56 : index
    %c0_130 = arith.constant 0 : index
    %127 = tpu.strided_load %arg5[%c56, %c0_130] {strides = array<i32: 2, 1>} : memref<64x128xf32, #tpu.memory_space<vmem>>, vector<4x128xf32>
    %c57 = arith.constant 57 : index
    %c0_131 = arith.constant 0 : index
    %128 = tpu.strided_load %arg5[%c57, %c0_131] {strides = array<i32: 2, 1>} : memref<64x128xf32, #tpu.memory_space<vmem>>, vector<4x128xf32>
    %129 = arith.maximumf %125, %126 : vector<4x128xf32>
    %130 = arith.maximumf %127, %128 : vector<4x128xf32>
    %131 = arith.maximumf %129, %130 : vector<4x128xf32>
    %132 = vector.broadcast %79 : vector<1x128xf32> to vector<4x128xf32>
    %133 = arith.addf %131, %132 : vector<4x128xf32>
    %cst_132 = arith.constant 0.000000e+00 : f32
    %134 = vector.broadcast %cst_132 : f32 to vector<4x128xf32>
    %135 = arith.maximumf %133, %134 : vector<4x128xf32>
    %136 = arith.truncf %135 : vector<4x128xf32> to vector<4x128xbf16>
    %c0_133 = arith.constant 0 : index
    %c3_134 = arith.constant 3 : index
    %c0_135 = arith.constant 0 : index
    %c0_136 = arith.constant 0 : index
    %137 = vector.load %arg4[%c0_133, %c3_134, %c0_135, %c0_136] : memref<1x4x4x128xbf16, #tpu.memory_space<vmem>>, vector<1x1x4x128xbf16>
    %138 = vector.shape_cast %137 : vector<1x1x4x128xbf16> to vector<4x128xbf16>
    %139 = vector.shape_cast %136 : vector<4x128xbf16> to vector<1x1x4x128xbf16>
    tpu.vector_store %arg4[%c0_133, %c3_134, %c0_135, %c0_136], %139 {strides = array<i32>} : memref<1x4x4x128xbf16, #tpu.memory_space<vmem>>, vector<1x1x4x128xbf16>,
    return
  }
  func.func @transform_0(%arg0: i32) -> (i32, i32, i32, i32) {
    %c0_i32 = arith.constant 0 : i32
    %c0_i32_0 = arith.constant 0 : i32
    %c0_i32_1 = arith.constant 0 : i32
    %c0_i32_2 = arith.constant 0 : i32
    return %arg0, %c0_i32, %c0_i32_0, %c0_i32_1 : i32, i32, i32, i32
  }
  func.func @transform_1(%arg0: i32) -> (i32, i32, i32) {
    %c0_i32 = arith.constant 0 : i32
    %c0_i32_0 = arith.constant 0 : i32
    %c0_i32_1 = arith.constant 0 : i32
    %c0_i32_2 = arith.constant 0 : i32
    return %c0_i32, %c0_i32_0, %c0_i32_1 : i32, i32, i32
  }
  func.func @transform_2(%arg0: i32) -> (i32, i32) {
    %c0_i32 = arith.constant 0 : i32
    %c0_i32_0 = arith.constant 0 : i32
    %c0_i32_1 = arith.constant 0 : i32
    return %c0_i32, %c0_i32_0 : i32, i32
  }
  func.func @transform_3(%arg0: i32) -> (i32, i32, i32, i32) {
    %c0_i32 = arith.constant 0 : i32
    %c0_i32_0 = arith.constant 0 : i32
    %c0_i32_1 = arith.constant 0 : i32
    %c0_i32_2 = arith.constant 0 : i32
    return %arg0, %c0_i32, %c0_i32_0, %c0_i32_1 : i32, i32, i32, i32
  }
}

module attributes {stable_mosaic.version = 11 : i64} {
  func.func @_conv3x3_kernel(%arg0: i32, %arg1: memref<1x6x10x128xbf16, #tpu.memory_space<vmem>>, %arg2: memref<9x128x128xbf16, #tpu.memory_space<vmem>>, %arg3: memref<1x128xf32, #tpu.memory_space<vmem>>, %arg4: memref<1x4x8x128xbf16, #tpu.memory_space<vmem>>, %arg5: memref<32x128xf32, #tpu.memory_space<vmem>>) attributes {dimension_semantics = [#tpu.dimension_semantics<parallel>], iteration_bounds = array<i64: 4>, scalar_prefetch = 0 : i64, scratch_operands = 1 : i64, tpu.core_type = #tpu.core_type<tc>, window_params = [{transform_indices = @transform_0, window_bounds = array<i64: 1, 6, 10, 128>}, {pipeline_mode = #tpu.pipeline_mode<synchronous>, transform_indices = @transform_1, window_bounds = array<i64: 9, 128, 128>}, {pipeline_mode = #tpu.pipeline_mode<synchronous>, transform_indices = @transform_2, window_bounds = array<i64: 1, 128>}, {transform_indices = @transform_3, window_bounds = array<i64: 1, 4, 8, 128>}]} {
    %c0 = arith.constant 0 : index
    %c0_0 = arith.constant 0 : index
    %c0_1 = arith.constant 0 : index
    %c0_2 = arith.constant 0 : index
    %0 = vector.load %arg1[%c0, %c0_0, %c0_1, %c0_2] : memref<1x6x10x128xbf16, #tpu.memory_space<vmem>>, vector<1x4x8x128xbf16>
    %1 = vector.shape_cast %0 : vector<1x4x8x128xbf16> to vector<4x8x128xbf16>
    %2 = vector.shape_cast %1 : vector<4x8x128xbf16> to vector<32x128xbf16>
    %c0_3 = arith.constant 0 : index
    %c0_4 = arith.constant 0 : index
    %c0_5 = arith.constant 0 : index
    %3 = vector.load %arg2[%c0_3, %c0_4, %c0_5] : memref<9x128x128xbf16, #tpu.memory_space<vmem>>, vector<1x128x128xbf16>
    %4 = vector.shape_cast %3 : vector<1x128x128xbf16> to vector<128x128xbf16>
    %cst = arith.constant dense<0.000000e+00> : vector<32x128xf32>
    %5 = tpu.matmul %2, %4, %cst {dimension_numbers = #tpu.dot_dimension_numbers<[1], [0], [0], [1], [0, 0, 1, 1], [], []>} : vector<32x128xbf16>, vector<128x128xbf16>, vector<32x128xf32> -> vector<32x128xf32>
    %c0_6 = arith.constant 0 : index
    %c0_7 = arith.constant 0 : index
    %6 = vector.load %arg5[%c0_6, %c0_7] : memref<32x128xf32, #tpu.memory_space<vmem>>, vector<32x128xf32>
    tpu.vector_store %arg5[%c0_6, %c0_7], %5 {strides = array<i32>} : memref<32x128xf32, #tpu.memory_space<vmem>>, vector<32x128xf32>,
    %c0_8 = arith.constant 0 : index
    %c0_9 = arith.constant 0 : index
    %c1 = arith.constant 1 : index
    %c0_10 = arith.constant 0 : index
    %7 = vector.load %arg1[%c0_8, %c0_9, %c1, %c0_10] : memref<1x6x10x128xbf16, #tpu.memory_space<vmem>>, vector<1x4x8x128xbf16>
    %8 = vector.shape_cast %7 : vector<1x4x8x128xbf16> to vector<4x8x128xbf16>
    %9 = vector.shape_cast %8 : vector<4x8x128xbf16> to vector<32x128xbf16>
    %c1_11 = arith.constant 1 : index
    %c0_12 = arith.constant 0 : index
    %c0_13 = arith.constant 0 : index
    %10 = vector.load %arg2[%c1_11, %c0_12, %c0_13] : memref<9x128x128xbf16, #tpu.memory_space<vmem>>, vector<1x128x128xbf16>
    %11 = vector.shape_cast %10 : vector<1x128x128xbf16> to vector<128x128xbf16>
    %cst_14 = arith.constant dense<0.000000e+00> : vector<32x128xf32>
    %12 = tpu.matmul %9, %11, %cst_14 {dimension_numbers = #tpu.dot_dimension_numbers<[1], [0], [0], [1], [0, 0, 1, 1], [], []>} : vector<32x128xbf16>, vector<128x128xbf16>, vector<32x128xf32> -> vector<32x128xf32>
    %c0_15 = arith.constant 0 : index
    %c0_16 = arith.constant 0 : index
    %13 = vector.load %arg5[%c0_15, %c0_16] : memref<32x128xf32, #tpu.memory_space<vmem>>, vector<32x128xf32>
    %14 = arith.addf %13, %12 : vector<32x128xf32>
    %c0_17 = arith.constant 0 : index
    %c0_18 = arith.constant 0 : index
    %15 = vector.load %arg5[%c0_17, %c0_18] : memref<32x128xf32, #tpu.memory_space<vmem>>, vector<32x128xf32>
    tpu.vector_store %arg5[%c0_17, %c0_18], %14 {strides = array<i32>} : memref<32x128xf32, #tpu.memory_space<vmem>>, vector<32x128xf32>,
    %c0_19 = arith.constant 0 : index
    %c0_20 = arith.constant 0 : index
    %c2 = arith.constant 2 : index
    %c0_21 = arith.constant 0 : index
    %16 = vector.load %arg1[%c0_19, %c0_20, %c2, %c0_21] : memref<1x6x10x128xbf16, #tpu.memory_space<vmem>>, vector<1x4x8x128xbf16>
    %17 = vector.shape_cast %16 : vector<1x4x8x128xbf16> to vector<4x8x128xbf16>
    %18 = vector.shape_cast %17 : vector<4x8x128xbf16> to vector<32x128xbf16>
    %c2_22 = arith.constant 2 : index
    %c0_23 = arith.constant 0 : index
    %c0_24 = arith.constant 0 : index
    %19 = vector.load %arg2[%c2_22, %c0_23, %c0_24] : memref<9x128x128xbf16, #tpu.memory_space<vmem>>, vector<1x128x128xbf16>
    %20 = vector.shape_cast %19 : vector<1x128x128xbf16> to vector<128x128xbf16>
    %cst_25 = arith.constant dense<0.000000e+00> : vector<32x128xf32>
    %21 = tpu.matmul %18, %20, %cst_25 {dimension_numbers = #tpu.dot_dimension_numbers<[1], [0], [0], [1], [0, 0, 1, 1], [], []>} : vector<32x128xbf16>, vector<128x128xbf16>, vector<32x128xf32> -> vector<32x128xf32>
    %c0_26 = arith.constant 0 : index
    %c0_27 = arith.constant 0 : index
    %22 = vector.load %arg5[%c0_26, %c0_27] : memref<32x128xf32, #tpu.memory_space<vmem>>, vector<32x128xf32>
    %23 = arith.addf %22, %21 : vector<32x128xf32>
    %c0_28 = arith.constant 0 : index
    %c0_29 = arith.constant 0 : index
    %24 = vector.load %arg5[%c0_28, %c0_29] : memref<32x128xf32, #tpu.memory_space<vmem>>, vector<32x128xf32>
    tpu.vector_store %arg5[%c0_28, %c0_29], %23 {strides = array<i32>} : memref<32x128xf32, #tpu.memory_space<vmem>>, vector<32x128xf32>,
    %c0_30 = arith.constant 0 : index
    %c1_31 = arith.constant 1 : index
    %c0_32 = arith.constant 0 : index
    %c0_33 = arith.constant 0 : index
    %25 = vector.load %arg1[%c0_30, %c1_31, %c0_32, %c0_33] : memref<1x6x10x128xbf16, #tpu.memory_space<vmem>>, vector<1x4x8x128xbf16>
    %26 = vector.shape_cast %25 : vector<1x4x8x128xbf16> to vector<4x8x128xbf16>
    %27 = vector.shape_cast %26 : vector<4x8x128xbf16> to vector<32x128xbf16>
    %c3 = arith.constant 3 : index
    %c0_34 = arith.constant 0 : index
    %c0_35 = arith.constant 0 : index
    %28 = vector.load %arg2[%c3, %c0_34, %c0_35] : memref<9x128x128xbf16, #tpu.memory_space<vmem>>, vector<1x128x128xbf16>
    %29 = vector.shape_cast %28 : vector<1x128x128xbf16> to vector<128x128xbf16>
    %cst_36 = arith.constant dense<0.000000e+00> : vector<32x128xf32>
    %30 = tpu.matmul %27, %29, %cst_36 {dimension_numbers = #tpu.dot_dimension_numbers<[1], [0], [0], [1], [0, 0, 1, 1], [], []>} : vector<32x128xbf16>, vector<128x128xbf16>, vector<32x128xf32> -> vector<32x128xf32>
    %c0_37 = arith.constant 0 : index
    %c0_38 = arith.constant 0 : index
    %31 = vector.load %arg5[%c0_37, %c0_38] : memref<32x128xf32, #tpu.memory_space<vmem>>, vector<32x128xf32>
    %32 = arith.addf %31, %30 : vector<32x128xf32>
    %c0_39 = arith.constant 0 : index
    %c0_40 = arith.constant 0 : index
    %33 = vector.load %arg5[%c0_39, %c0_40] : memref<32x128xf32, #tpu.memory_space<vmem>>, vector<32x128xf32>
    tpu.vector_store %arg5[%c0_39, %c0_40], %32 {strides = array<i32>} : memref<32x128xf32, #tpu.memory_space<vmem>>, vector<32x128xf32>,
    %c0_41 = arith.constant 0 : index
    %c1_42 = arith.constant 1 : index
    %c1_43 = arith.constant 1 : index
    %c0_44 = arith.constant 0 : index
    %34 = vector.load %arg1[%c0_41, %c1_42, %c1_43, %c0_44] : memref<1x6x10x128xbf16, #tpu.memory_space<vmem>>, vector<1x4x8x128xbf16>
    %35 = vector.shape_cast %34 : vector<1x4x8x128xbf16> to vector<4x8x128xbf16>
    %36 = vector.shape_cast %35 : vector<4x8x128xbf16> to vector<32x128xbf16>
    %c4 = arith.constant 4 : index
    %c0_45 = arith.constant 0 : index
    %c0_46 = arith.constant 0 : index
    %37 = vector.load %arg2[%c4, %c0_45, %c0_46] : memref<9x128x128xbf16, #tpu.memory_space<vmem>>, vector<1x128x128xbf16>
    %38 = vector.shape_cast %37 : vector<1x128x128xbf16> to vector<128x128xbf16>
    %cst_47 = arith.constant dense<0.000000e+00> : vector<32x128xf32>
    %39 = tpu.matmul %36, %38, %cst_47 {dimension_numbers = #tpu.dot_dimension_numbers<[1], [0], [0], [1], [0, 0, 1, 1], [], []>} : vector<32x128xbf16>, vector<128x128xbf16>, vector<32x128xf32> -> vector<32x128xf32>
    %c0_48 = arith.constant 0 : index
    %c0_49 = arith.constant 0 : index
    %40 = vector.load %arg5[%c0_48, %c0_49] : memref<32x128xf32, #tpu.memory_space<vmem>>, vector<32x128xf32>
    %41 = arith.addf %40, %39 : vector<32x128xf32>
    %c0_50 = arith.constant 0 : index
    %c0_51 = arith.constant 0 : index
    %42 = vector.load %arg5[%c0_50, %c0_51] : memref<32x128xf32, #tpu.memory_space<vmem>>, vector<32x128xf32>
    tpu.vector_store %arg5[%c0_50, %c0_51], %41 {strides = array<i32>} : memref<32x128xf32, #tpu.memory_space<vmem>>, vector<32x128xf32>,
    %c0_52 = arith.constant 0 : index
    %c1_53 = arith.constant 1 : index
    %c2_54 = arith.constant 2 : index
    %c0_55 = arith.constant 0 : index
    %43 = vector.load %arg1[%c0_52, %c1_53, %c2_54, %c0_55] : memref<1x6x10x128xbf16, #tpu.memory_space<vmem>>, vector<1x4x8x128xbf16>
    %44 = vector.shape_cast %43 : vector<1x4x8x128xbf16> to vector<4x8x128xbf16>
    %45 = vector.shape_cast %44 : vector<4x8x128xbf16> to vector<32x128xbf16>
    %c5 = arith.constant 5 : index
    %c0_56 = arith.constant 0 : index
    %c0_57 = arith.constant 0 : index
    %46 = vector.load %arg2[%c5, %c0_56, %c0_57] : memref<9x128x128xbf16, #tpu.memory_space<vmem>>, vector<1x128x128xbf16>
    %47 = vector.shape_cast %46 : vector<1x128x128xbf16> to vector<128x128xbf16>
    %cst_58 = arith.constant dense<0.000000e+00> : vector<32x128xf32>
    %48 = tpu.matmul %45, %47, %cst_58 {dimension_numbers = #tpu.dot_dimension_numbers<[1], [0], [0], [1], [0, 0, 1, 1], [], []>} : vector<32x128xbf16>, vector<128x128xbf16>, vector<32x128xf32> -> vector<32x128xf32>
    %c0_59 = arith.constant 0 : index
    %c0_60 = arith.constant 0 : index
    %49 = vector.load %arg5[%c0_59, %c0_60] : memref<32x128xf32, #tpu.memory_space<vmem>>, vector<32x128xf32>
    %50 = arith.addf %49, %48 : vector<32x128xf32>
    %c0_61 = arith.constant 0 : index
    %c0_62 = arith.constant 0 : index
    %51 = vector.load %arg5[%c0_61, %c0_62] : memref<32x128xf32, #tpu.memory_space<vmem>>, vector<32x128xf32>
    tpu.vector_store %arg5[%c0_61, %c0_62], %50 {strides = array<i32>} : memref<32x128xf32, #tpu.memory_space<vmem>>, vector<32x128xf32>,
    %c0_63 = arith.constant 0 : index
    %c2_64 = arith.constant 2 : index
    %c0_65 = arith.constant 0 : index
    %c0_66 = arith.constant 0 : index
    %52 = vector.load %arg1[%c0_63, %c2_64, %c0_65, %c0_66] : memref<1x6x10x128xbf16, #tpu.memory_space<vmem>>, vector<1x4x8x128xbf16>
    %53 = vector.shape_cast %52 : vector<1x4x8x128xbf16> to vector<4x8x128xbf16>
    %54 = vector.shape_cast %53 : vector<4x8x128xbf16> to vector<32x128xbf16>
    %c6 = arith.constant 6 : index
    %c0_67 = arith.constant 0 : index
    %c0_68 = arith.constant 0 : index
    %55 = vector.load %arg2[%c6, %c0_67, %c0_68] : memref<9x128x128xbf16, #tpu.memory_space<vmem>>, vector<1x128x128xbf16>
    %56 = vector.shape_cast %55 : vector<1x128x128xbf16> to vector<128x128xbf16>
    %cst_69 = arith.constant dense<0.000000e+00> : vector<32x128xf32>
    %57 = tpu.matmul %54, %56, %cst_69 {dimension_numbers = #tpu.dot_dimension_numbers<[1], [0], [0], [1], [0, 0, 1, 1], [], []>} : vector<32x128xbf16>, vector<128x128xbf16>, vector<32x128xf32> -> vector<32x128xf32>
    %c0_70 = arith.constant 0 : index
    %c0_71 = arith.constant 0 : index
    %58 = vector.load %arg5[%c0_70, %c0_71] : memref<32x128xf32, #tpu.memory_space<vmem>>, vector<32x128xf32>
    %59 = arith.addf %58, %57 : vector<32x128xf32>
    %c0_72 = arith.constant 0 : index
    %c0_73 = arith.constant 0 : index
    %60 = vector.load %arg5[%c0_72, %c0_73] : memref<32x128xf32, #tpu.memory_space<vmem>>, vector<32x128xf32>
    tpu.vector_store %arg5[%c0_72, %c0_73], %59 {strides = array<i32>} : memref<32x128xf32, #tpu.memory_space<vmem>>, vector<32x128xf32>,
    %c0_74 = arith.constant 0 : index
    %c2_75 = arith.constant 2 : index
    %c1_76 = arith.constant 1 : index
    %c0_77 = arith.constant 0 : index
    %61 = vector.load %arg1[%c0_74, %c2_75, %c1_76, %c0_77] : memref<1x6x10x128xbf16, #tpu.memory_space<vmem>>, vector<1x4x8x128xbf16>
    %62 = vector.shape_cast %61 : vector<1x4x8x128xbf16> to vector<4x8x128xbf16>
    %63 = vector.shape_cast %62 : vector<4x8x128xbf16> to vector<32x128xbf16>
    %c7 = arith.constant 7 : index
    %c0_78 = arith.constant 0 : index
    %c0_79 = arith.constant 0 : index
    %64 = vector.load %arg2[%c7, %c0_78, %c0_79] : memref<9x128x128xbf16, #tpu.memory_space<vmem>>, vector<1x128x128xbf16>
    %65 = vector.shape_cast %64 : vector<1x128x128xbf16> to vector<128x128xbf16>
    %cst_80 = arith.constant dense<0.000000e+00> : vector<32x128xf32>
    %66 = tpu.matmul %63, %65, %cst_80 {dimension_numbers = #tpu.dot_dimension_numbers<[1], [0], [0], [1], [0, 0, 1, 1], [], []>} : vector<32x128xbf16>, vector<128x128xbf16>, vector<32x128xf32> -> vector<32x128xf32>
    %c0_81 = arith.constant 0 : index
    %c0_82 = arith.constant 0 : index
    %67 = vector.load %arg5[%c0_81, %c0_82] : memref<32x128xf32, #tpu.memory_space<vmem>>, vector<32x128xf32>
    %68 = arith.addf %67, %66 : vector<32x128xf32>
    %c0_83 = arith.constant 0 : index
    %c0_84 = arith.constant 0 : index
    %69 = vector.load %arg5[%c0_83, %c0_84] : memref<32x128xf32, #tpu.memory_space<vmem>>, vector<32x128xf32>
    tpu.vector_store %arg5[%c0_83, %c0_84], %68 {strides = array<i32>} : memref<32x128xf32, #tpu.memory_space<vmem>>, vector<32x128xf32>,
    %c0_85 = arith.constant 0 : index
    %c2_86 = arith.constant 2 : index
    %c2_87 = arith.constant 2 : index
    %c0_88 = arith.constant 0 : index
    %70 = vector.load %arg1[%c0_85, %c2_86, %c2_87, %c0_88] : memref<1x6x10x128xbf16, #tpu.memory_space<vmem>>, vector<1x4x8x128xbf16>
    %71 = vector.shape_cast %70 : vector<1x4x8x128xbf16> to vector<4x8x128xbf16>
    %72 = vector.shape_cast %71 : vector<4x8x128xbf16> to vector<32x128xbf16>
    %c8 = arith.constant 8 : index
    %c0_89 = arith.constant 0 : index
    %c0_90 = arith.constant 0 : index
    %73 = vector.load %arg2[%c8, %c0_89, %c0_90] : memref<9x128x128xbf16, #tpu.memory_space<vmem>>, vector<1x128x128xbf16>
    %74 = vector.shape_cast %73 : vector<1x128x128xbf16> to vector<128x128xbf16>
    %cst_91 = arith.constant dense<0.000000e+00> : vector<32x128xf32>
    %75 = tpu.matmul %72, %74, %cst_91 {dimension_numbers = #tpu.dot_dimension_numbers<[1], [0], [0], [1], [0, 0, 1, 1], [], []>} : vector<32x128xbf16>, vector<128x128xbf16>, vector<32x128xf32> -> vector<32x128xf32>
    %c0_92 = arith.constant 0 : index
    %c0_93 = arith.constant 0 : index
    %76 = vector.load %arg5[%c0_92, %c0_93] : memref<32x128xf32, #tpu.memory_space<vmem>>, vector<32x128xf32>
    %77 = arith.addf %76, %75 : vector<32x128xf32>
    %c0_94 = arith.constant 0 : index
    %c0_95 = arith.constant 0 : index
    %78 = vector.load %arg5[%c0_94, %c0_95] : memref<32x128xf32, #tpu.memory_space<vmem>>, vector<32x128xf32>
    tpu.vector_store %arg5[%c0_94, %c0_95], %77 {strides = array<i32>} : memref<32x128xf32, #tpu.memory_space<vmem>>, vector<32x128xf32>,
    %c0_96 = arith.constant 0 : index
    %c0_97 = arith.constant 0 : index
    %79 = vector.load %arg3[%c0_96, %c0_97] : memref<1x128xf32, #tpu.memory_space<vmem>>, vector<1x128xf32>
    %c0_98 = arith.constant 0 : index
    %c0_99 = arith.constant 0 : index
    %80 = vector.load %arg5[%c0_98, %c0_99] : memref<32x128xf32, #tpu.memory_space<vmem>>, vector<8x128xf32>
    %81 = vector.broadcast %79 : vector<1x128xf32> to vector<8x128xf32>
    %82 = arith.addf %80, %81 : vector<8x128xf32>
    %cst_100 = arith.constant 0.000000e+00 : f32
    %83 = vector.broadcast %cst_100 : f32 to vector<8x128xf32>
    %84 = arith.maximumf %82, %83 : vector<8x128xf32>
    %85 = tpu.iota {dimensions = array<i32: 0>} : vector<8x128xi32>
    %c4_i32 = arith.constant 4 : i32
    %86 = vector.broadcast %c4_i32 : i32 to vector<8x128xi32>
    %87 = arith.cmpi slt, %85, %86 : vector<8x128xi32>
    %cst_101 = arith.constant 0.000000e+00 : f32
    %88 = vector.broadcast %cst_101 : f32 to vector<8x128xf32>
    %89 = arith.select %87, %84, %88 : vector<8x128xi1>, vector<8x128xf32>
    %90 = arith.truncf %89 : vector<8x128xf32> to vector<8x128xbf16>
    %c0_102 = arith.constant 0 : index
    %c0_103 = arith.constant 0 : index
    %c0_104 = arith.constant 0 : index
    %c0_105 = arith.constant 0 : index
    %91 = vector.load %arg4[%c0_102, %c0_103, %c0_104, %c0_105] : memref<1x4x8x128xbf16, #tpu.memory_space<vmem>>, vector<1x1x8x128xbf16>
    %92 = vector.shape_cast %91 : vector<1x1x8x128xbf16> to vector<8x128xbf16>
    %93 = vector.shape_cast %90 : vector<8x128xbf16> to vector<1x1x8x128xbf16>
    tpu.vector_store %arg4[%c0_102, %c0_103, %c0_104, %c0_105], %93 {strides = array<i32>} : memref<1x4x8x128xbf16, #tpu.memory_space<vmem>>, vector<1x1x8x128xbf16>,
    %c8_106 = arith.constant 8 : index
    %c0_107 = arith.constant 0 : index
    %94 = vector.load %arg5[%c8_106, %c0_107] : memref<32x128xf32, #tpu.memory_space<vmem>>, vector<8x128xf32>
    %95 = vector.broadcast %79 : vector<1x128xf32> to vector<8x128xf32>
    %96 = arith.addf %94, %95 : vector<8x128xf32>
    %cst_108 = arith.constant 0.000000e+00 : f32
    %97 = vector.broadcast %cst_108 : f32 to vector<8x128xf32>
    %98 = arith.maximumf %96, %97 : vector<8x128xf32>
    %99 = tpu.iota {dimensions = array<i32: 0>} : vector<8x128xi32>
    %c4_i32_109 = arith.constant 4 : i32
    %100 = vector.broadcast %c4_i32_109 : i32 to vector<8x128xi32>
    %101 = arith.cmpi slt, %99, %100 : vector<8x128xi32>
    %cst_110 = arith.constant 0.000000e+00 : f32
    %102 = vector.broadcast %cst_110 : f32 to vector<8x128xf32>
    %103 = arith.select %101, %98, %102 : vector<8x128xi1>, vector<8x128xf32>
    %104 = arith.truncf %103 : vector<8x128xf32> to vector<8x128xbf16>
    %c0_111 = arith.constant 0 : index
    %c1_112 = arith.constant 1 : index
    %c0_113 = arith.constant 0 : index
    %c0_114 = arith.constant 0 : index
    %105 = vector.load %arg4[%c0_111, %c1_112, %c0_113, %c0_114] : memref<1x4x8x128xbf16, #tpu.memory_space<vmem>>, vector<1x1x8x128xbf16>
    %106 = vector.shape_cast %105 : vector<1x1x8x128xbf16> to vector<8x128xbf16>
    %107 = vector.shape_cast %104 : vector<8x128xbf16> to vector<1x1x8x128xbf16>
    tpu.vector_store %arg4[%c0_111, %c1_112, %c0_113, %c0_114], %107 {strides = array<i32>} : memref<1x4x8x128xbf16, #tpu.memory_space<vmem>>, vector<1x1x8x128xbf16>,
    %c16 = arith.constant 16 : index
    %c0_115 = arith.constant 0 : index
    %108 = vector.load %arg5[%c16, %c0_115] : memref<32x128xf32, #tpu.memory_space<vmem>>, vector<8x128xf32>
    %109 = vector.broadcast %79 : vector<1x128xf32> to vector<8x128xf32>
    %110 = arith.addf %108, %109 : vector<8x128xf32>
    %cst_116 = arith.constant 0.000000e+00 : f32
    %111 = vector.broadcast %cst_116 : f32 to vector<8x128xf32>
    %112 = arith.maximumf %110, %111 : vector<8x128xf32>
    %113 = tpu.iota {dimensions = array<i32: 0>} : vector<8x128xi32>
    %c4_i32_117 = arith.constant 4 : i32
    %114 = vector.broadcast %c4_i32_117 : i32 to vector<8x128xi32>
    %115 = arith.cmpi slt, %113, %114 : vector<8x128xi32>
    %cst_118 = arith.constant 0.000000e+00 : f32
    %116 = vector.broadcast %cst_118 : f32 to vector<8x128xf32>
    %117 = arith.select %115, %112, %116 : vector<8x128xi1>, vector<8x128xf32>
    %118 = arith.truncf %117 : vector<8x128xf32> to vector<8x128xbf16>
    %c0_119 = arith.constant 0 : index
    %c2_120 = arith.constant 2 : index
    %c0_121 = arith.constant 0 : index
    %c0_122 = arith.constant 0 : index
    %119 = vector.load %arg4[%c0_119, %c2_120, %c0_121, %c0_122] : memref<1x4x8x128xbf16, #tpu.memory_space<vmem>>, vector<1x1x8x128xbf16>
    %120 = vector.shape_cast %119 : vector<1x1x8x128xbf16> to vector<8x128xbf16>
    %121 = vector.shape_cast %118 : vector<8x128xbf16> to vector<1x1x8x128xbf16>
    tpu.vector_store %arg4[%c0_119, %c2_120, %c0_121, %c0_122], %121 {strides = array<i32>} : memref<1x4x8x128xbf16, #tpu.memory_space<vmem>>, vector<1x1x8x128xbf16>,
    %c24 = arith.constant 24 : index
    %c0_123 = arith.constant 0 : index
    %122 = vector.load %arg5[%c24, %c0_123] : memref<32x128xf32, #tpu.memory_space<vmem>>, vector<8x128xf32>
    %123 = vector.broadcast %79 : vector<1x128xf32> to vector<8x128xf32>
    %124 = arith.addf %122, %123 : vector<8x128xf32>
    %cst_124 = arith.constant 0.000000e+00 : f32
    %125 = vector.broadcast %cst_124 : f32 to vector<8x128xf32>
    %126 = arith.maximumf %124, %125 : vector<8x128xf32>
    %127 = tpu.iota {dimensions = array<i32: 0>} : vector<8x128xi32>
    %c4_i32_125 = arith.constant 4 : i32
    %128 = vector.broadcast %c4_i32_125 : i32 to vector<8x128xi32>
    %129 = arith.cmpi slt, %127, %128 : vector<8x128xi32>
    %cst_126 = arith.constant 0.000000e+00 : f32
    %130 = vector.broadcast %cst_126 : f32 to vector<8x128xf32>
    %131 = arith.select %129, %126, %130 : vector<8x128xi1>, vector<8x128xf32>
    %132 = arith.truncf %131 : vector<8x128xf32> to vector<8x128xbf16>
    %c0_127 = arith.constant 0 : index
    %c3_128 = arith.constant 3 : index
    %c0_129 = arith.constant 0 : index
    %c0_130 = arith.constant 0 : index
    %133 = vector.load %arg4[%c0_127, %c3_128, %c0_129, %c0_130] : memref<1x4x8x128xbf16, #tpu.memory_space<vmem>>, vector<1x1x8x128xbf16>
    %134 = vector.shape_cast %133 : vector<1x1x8x128xbf16> to vector<8x128xbf16>
    %135 = vector.shape_cast %132 : vector<8x128xbf16> to vector<1x1x8x128xbf16>
    tpu.vector_store %arg4[%c0_127, %c3_128, %c0_129, %c0_130], %135 {strides = array<i32>} : memref<1x4x8x128xbf16, #tpu.memory_space<vmem>>, vector<1x1x8x128xbf16>,
    return
  }
  func.func @transform_0(%arg0: i32) -> (i32, i32, i32, i32) {
    %c0_i32 = arith.constant 0 : i32
    %c0_i32_0 = arith.constant 0 : i32
    %c0_i32_1 = arith.constant 0 : i32
    %c0_i32_2 = arith.constant 0 : i32
    return %arg0, %c0_i32, %c0_i32_0, %c0_i32_1 : i32, i32, i32, i32
  }
  func.func @transform_1(%arg0: i32) -> (i32, i32, i32) {
    %c0_i32 = arith.constant 0 : i32
    %c0_i32_0 = arith.constant 0 : i32
    %c0_i32_1 = arith.constant 0 : i32
    %c0_i32_2 = arith.constant 0 : i32
    return %c0_i32, %c0_i32_0, %c0_i32_1 : i32, i32, i32
  }
  func.func @transform_2(%arg0: i32) -> (i32, i32) {
    %c0_i32 = arith.constant 0 : i32
    %c0_i32_0 = arith.constant 0 : i32
    %c0_i32_1 = arith.constant 0 : i32
    return %c0_i32, %c0_i32_0 : i32, i32
  }
  func.func @transform_3(%arg0: i32) -> (i32, i32, i32, i32) {
    %c0_i32 = arith.constant 0 : i32
    %c0_i32_0 = arith.constant 0 : i32
    %c0_i32_1 = arith.constant 0 : i32
    %c0_i32_2 = arith.constant 0 : i32
    return %arg0, %c0_i32, %c0_i32_0, %c0_i32_1 : i32, i32, i32, i32
  }
}

module attributes {stable_mosaic.version = 11 : i64} {
  func.func @_mm_kernel(%arg0: i32, %arg1: i32, %arg2: i32, %arg3: memref<8x512xbf16, #tpu.memory_space<vmem>>, %arg4: memref<512x128xbf16, #tpu.memory_space<vmem>>, %arg5: memref<1x128xf32, #tpu.memory_space<vmem>>, %arg6: memref<8x128xf32, #tpu.memory_space<vmem>>, %arg7: memref<8x128xf32, #tpu.memory_space<vmem>>) attributes {dimension_semantics = [#tpu.dimension_semantics<parallel>, #tpu.dimension_semantics<parallel>, #tpu.dimension_semantics<arbitrary>], iteration_bounds = array<i64: 1, 1, 8>, scalar_prefetch = 0 : i64, scratch_operands = 1 : i64, tpu.core_type = #tpu.core_type<tc>, window_params = [{transform_indices = @transform_0, window_bounds = array<i64: 8, 512>}, {transform_indices = @transform_1, window_bounds = array<i64: 512, 128>}, {transform_indices = @transform_2, window_bounds = array<i64: 1, 128>}, {transform_indices = @transform_3, window_bounds = array<i64: 8, 128>}]} {
    %c0_i32 = arith.constant 0 : i32
    %0 = arith.cmpi eq, %arg2, %c0_i32 : i32
    %1 = arith.extui %0 : i1 to i32
    %c0_i32_0 = arith.constant 0 : i32
    %2 = arith.cmpi ne, %1, %c0_i32_0 : i32
    scf.if %2 {
      %cst_9 = arith.constant 0.000000e+00 : f32
      %12 = vector.broadcast %cst_9 : f32 to vector<8x128xf32>
      %c0_10 = arith.constant 0 : index
      %c0_11 = arith.constant 0 : index
      %13 = vector.load %arg7[%c0_10, %c0_11] : memref<8x128xf32, #tpu.memory_space<vmem>>, vector<8x128xf32>
      tpu.vector_store %arg7[%c0_10, %c0_11], %12 {strides = array<i32>} : memref<8x128xf32, #tpu.memory_space<vmem>>, vector<8x128xf32>,
    } else {
    }
    %c0 = arith.constant 0 : index
    %c0_1 = arith.constant 0 : index
    %3 = vector.load %arg7[%c0, %c0_1] : memref<8x128xf32, #tpu.memory_space<vmem>>, vector<8x128xf32>
    %c0_2 = arith.constant 0 : index
    %c0_3 = arith.constant 0 : index
    %4 = vector.load %arg3[%c0_2, %c0_3] : memref<8x512xbf16, #tpu.memory_space<vmem>>, vector<8x512xbf16>
    %c0_4 = arith.constant 0 : index
    %c0_5 = arith.constant 0 : index
    %5 = vector.load %arg4[%c0_4, %c0_5] : memref<512x128xbf16, #tpu.memory_space<vmem>>, vector<512x128xbf16>
    %cst = arith.constant dense<0.000000e+00> : vector<8x128xf32>
    %6 = tpu.matmul %4, %5, %cst {dimension_numbers = #tpu.dot_dimension_numbers<[1], [0], [0], [1], [0, 0, 1, 1], [], []>} : vector<8x512xbf16>, vector<512x128xbf16>, vector<8x128xf32> -> vector<8x128xf32>
    %7 = arith.addf %3, %6 : vector<8x128xf32>
    %c0_6 = arith.constant 0 : index
    %c0_7 = arith.constant 0 : index
    %8 = vector.load %arg7[%c0_6, %c0_7] : memref<8x128xf32, #tpu.memory_space<vmem>>, vector<8x128xf32>
    tpu.vector_store %arg7[%c0_6, %c0_7], %7 {strides = array<i32>} : memref<8x128xf32, #tpu.memory_space<vmem>>, vector<8x128xf32>,
    %c7_i32 = arith.constant 7 : i32
    %9 = arith.cmpi eq, %arg2, %c7_i32 : i32
    %10 = arith.extui %9 : i1 to i32
    %c0_i32_8 = arith.constant 0 : i32
    %11 = arith.cmpi ne, %10, %c0_i32_8 : i32
    scf.if %11 {
      %c0_9 = arith.constant 0 : index
      %c0_10 = arith.constant 0 : index
      %12 = vector.load %arg7[%c0_9, %c0_10] : memref<8x128xf32, #tpu.memory_space<vmem>>, vector<8x128xf32>
      %c0_11 = arith.constant 0 : index
      %c0_12 = arith.constant 0 : index
      %13 = vector.load %arg5[%c0_11, %c0_12] : memref<1x128xf32, #tpu.memory_space<vmem>>, vector<1x128xf32>
      %14 = vector.broadcast %13 : vector<1x128xf32> to vector<8x128xf32>
      %15 = arith.addf %12, %14 : vector<8x128xf32>
      %cst_13 = arith.constant 0.000000e+00 : f32
      %16 = vector.broadcast %cst_13 : f32 to vector<8x128xf32>
      %17 = arith.maximumf %15, %16 : vector<8x128xf32>
      %c0_14 = arith.constant 0 : index
      %c0_15 = arith.constant 0 : index
      %18 = vector.load %arg6[%c0_14, %c0_15] : memref<8x128xf32, #tpu.memory_space<vmem>>, vector<8x128xf32>
      tpu.vector_store %arg6[%c0_14, %c0_15], %17 {strides = array<i32>} : memref<8x128xf32, #tpu.memory_space<vmem>>, vector<8x128xf32>,
    } else {
    }
    return
  }
  func.func @transform_0(%arg0: i32, %arg1: i32, %arg2: i32) -> (i32, i32) {
    %c0_i32 = arith.constant 0 : i32
    return %arg0, %arg2 : i32, i32
  }
  func.func @transform_1(%arg0: i32, %arg1: i32, %arg2: i32) -> (i32, i32) {
    %c0_i32 = arith.constant 0 : i32
    return %arg2, %arg1 : i32, i32
  }
  func.func @transform_2(%arg0: i32, %arg1: i32, %arg2: i32) -> (i32, i32) {
    %c0_i32 = arith.constant 0 : i32
    %c0_i32_0 = arith.constant 0 : i32
    return %c0_i32, %arg1 : i32, i32
  }
  func.func @transform_3(%arg0: i32, %arg1: i32, %arg2: i32) -> (i32, i32) {
    %c0_i32 = arith.constant 0 : i32
    return %arg0, %arg1 : i32, i32
  }
}

module attributes {stable_mosaic.version = 11 : i64} {
  func.func @_fc2_kernel(%arg0: i32, %arg1: memref<2x128xf32, #tpu.memory_space<vmem>>, %arg2: memref<1x128xf32, #tpu.memory_space<vmem>>, %arg3: memref<1x1xf32, #tpu.memory_space<vmem>>, %arg4: memref<2x1xf32, #tpu.memory_space<vmem>>) attributes {dimension_semantics = [#tpu.dimension_semantics<arbitrary>], iteration_bounds = array<i64: 1>, scalar_prefetch = 0 : i64, scratch_operands = 0 : i64, tpu.core_type = #tpu.core_type<tc>, window_params = [{pipeline_mode = #tpu.pipeline_mode<synchronous>, transform_indices = @transform_0, window_bounds = array<i64: 2, 128>}, {pipeline_mode = #tpu.pipeline_mode<synchronous>, transform_indices = @transform_1, window_bounds = array<i64: 1, 128>}, {pipeline_mode = #tpu.pipeline_mode<synchronous>, transform_indices = @transform_2, window_bounds = array<i64: 1, 1>}, {pipeline_mode = #tpu.pipeline_mode<synchronous>, transform_indices = @transform_3, window_bounds = array<i64: 2, 1>}]} {
    %c0 = arith.constant 0 : index
    %c0_0 = arith.constant 0 : index
    %0 = vector.load %arg1[%c0, %c0_0] : memref<2x128xf32, #tpu.memory_space<vmem>>, vector<2x128xf32>
    %c0_1 = arith.constant 0 : index
    %c0_2 = arith.constant 0 : index
    %1 = vector.load %arg2[%c0_1, %c0_2] : memref<1x128xf32, #tpu.memory_space<vmem>>, vector<1x128xf32>
    %2 = vector.broadcast %1 : vector<1x128xf32> to vector<2x128xf32>
    %3 = arith.mulf %0, %2 : vector<2x128xf32>
    %cst = arith.constant dense<0.000000e+00> : vector<2xf32>
    %4 = vector.multi_reduction <add>, %3, %cst [1] : vector<2x128xf32> to vector<2xf32>
    %5 = vector.shape_cast %4 : vector<2xf32> to vector<2x1xf32>
    %c0_3 = arith.constant 0 : index
    %c0_4 = arith.constant 0 : index
    %6 = vector.load %arg3[%c0_3, %c0_4] : memref<1x1xf32, #tpu.memory_space<vmem>>, vector<1x1xf32>
    %7 = vector.broadcast %6 : vector<1x1xf32> to vector<2x1xf32>
    %8 = arith.addf %5, %7 : vector<2x1xf32>
    %9 = arith.negf %8 : vector<2x1xf32>
    %10 = math.exp %9 : vector<2x1xf32>
    %cst_5 = arith.constant 1.000000e+00 : f32
    %11 = vector.broadcast %cst_5 : f32 to vector<2x1xf32>
    %12 = arith.addf %11, %10 : vector<2x1xf32>
    %13 = arith.divf %11, %12 : vector<2x1xf32>
    %c0_6 = arith.constant 0 : index
    %c0_7 = arith.constant 0 : index
    %14 = vector.load %arg4[%c0_6, %c0_7] : memref<2x1xf32, #tpu.memory_space<vmem>>, vector<2x1xf32>
    tpu.vector_store %arg4[%c0_6, %c0_7], %13 {strides = array<i32>} : memref<2x1xf32, #tpu.memory_space<vmem>>, vector<2x1xf32>,
    return
  }
  func.func @transform_0(%arg0: i32) -> (i32, i32) {
    %c0_i32 = arith.constant 0 : i32
    %c0_i32_0 = arith.constant 0 : i32
    %c0_i32_1 = arith.constant 0 : i32
    return %c0_i32, %c0_i32_0 : i32, i32
  }
  func.func @transform_1(%arg0: i32) -> (i32, i32) {
    %c0_i32 = arith.constant 0 : i32
    %c0_i32_0 = arith.constant 0 : i32
    %c0_i32_1 = arith.constant 0 : i32
    return %c0_i32, %c0_i32_0 : i32, i32
  }
  func.func @transform_2(%arg0: i32) -> (i32, i32) {
    %c0_i32 = arith.constant 0 : i32
    %c0_i32_0 = arith.constant 0 : i32
    %c0_i32_1 = arith.constant 0 : i32
    return %c0_i32, %c0_i32_0 : i32, i32
  }
  func.func @transform_3(%arg0: i32) -> (i32, i32) {
    %c0_i32 = arith.constant 0 : i32
    %c0_i32_0 = arith.constant 0 : i32
    %c0_i32_1 = arith.constant 0 : i32
    return %c0_i32, %c0_i32_0 : i32, i32
  }
}

</mosaic_0001>

<llo_original>
// kernel: similarity_model.7
$region0: #{similarity_model.7}
  #allocation0 [shape = 'u32[]', space=smem, size = 0x4, offset = 0x4, fixed_abs, tag = 'smem constant byte address 0x4 - core index']
  #allocation1 [shape = 'u32[144,128]{1,0:T(1,128)}', space=vmem, size = 0x12000, scoped, tag = 'internal scratch']
  #allocation2 [shape = 'f32[32,128]{1,0:T(8,128)}', space=vmem, size = 0x4000, scoped, tag = 'scratch operand']
  %s0 = inlined_call_operand.vmem [shape: bf16[4,6,10,128], index: 0, kind: input, shape index: {}]
  %s1 = inlined_call_operand.vmem [shape: bf16[9,128,128], index: 1, kind: input, shape index: {}]
  %s2 = inlined_call_operand.vmem [shape: f32[1,128], index: 2, kind: input, shape index: {}]
  %s3 = inlined_call_operand.vmem [shape: bf16[4,4,8,128], index: 3, kind: output, shape index: {}]
  %s4 = sld [smem:[#allocation0]]
  $region45: #{similarity_model.7} parent=0
    _
  %s6 = ssub.s32 1, %s4
  %s7 = scalar_select 0, %s6, %s4
  loop: start=0, step=1, limit=6
  $region2: #{similarity_model.7} parent=0 // loop_pre_header
    _
  $region3: #{similarity_model.7} parent=0 // loop_header
    %s9 = sphi 0, %s13
    %p10 = scmp.ge.s32.totalorder %s9, 6
    %s19 = sphi 0, %s21
    %s22 = sphi 0, %s19
    %s23 = sphi 0, %s22
    %s39 = sphi 0, %s23
    %s43 = sphi 0, %s43
    %s45 = sphi 0, %s43
    %s46 = sphi 0, %s45
    %s60 = sphi 0, %s46
    %s64 = sphi 0, %s64
    %s66 = sphi 0, %s64
    %s67 = sphi 0, %s66
    %s81 = sphi 0, %s67
    %s87 = sphi 0, %s89
    %s90 = sphi 0, %s87
    %s91 = sphi 0, %s90
    %s107 = sphi 0, %s91
  $region4: #{similarity_model.7} parent=0 // loop_header_branch
    %12 = sbr.rel (%p10) target = $region8
  $region5: #{similarity_model.7} parent=0 // loop_body
    %s14 = ssub.s32 %s9, 1
    %s15 = ssub.s32 %s9, 2
    %s16 = sadd.s32 %s9, 1
    %s17 = ssub.s32 %s9, %s16
    %p18 = scmp.eq.s32.totalorder %s17, 0
    %s20 = sadd.s32 %s19, 1
    %s21 = scalar_select %p18, %s19, %s20
    %p24 = pneg %p18
    %p25 = scmp.eq.s32.totalorder %s9, 3
    %p26 = por %p24, %p25
    %p27 = scmp.ne.s32.totalorder %s19, %s22
    %p28 = scmp.eq.s32.totalorder %s9, 0
    %p29 = por %p27, %p28
    %p30 = scmp.ne.s32.totalorder %s19, %s22
    %p31 = scmp.eq.s32.totalorder %s14, 3
    %p32 = por %p30, %p31
    %p33 = scmp.ne.s32.totalorder %s22, %s23
    %p34 = scmp.eq.s32.totalorder %s14, 0
    %p35 = por %p33, %p34
    %p36 = scmp.ne.s32.totalorder %s22, %s23
    %p37 = scmp.eq.s32.totalorder %s15, 3
    %p38 = por %p36, %p37
    %p40 = scmp.ne.s32.totalorder %s23, %s39
    %p41 = scmp.eq.s32.totalorder %s15, 0
    %p42 = por %p40, %p41
    %s44 = sadd.s32 %s43, 1
    %p47 = scmp.eq.s32.totalorder %s9, 3
    %p48 = scmp.ne.s32.totalorder %s43, %s45
    %p49 = scmp.eq.s32.totalorder %s9, 0
    %p50 = por %p48, %p49
    %p51 = scmp.ne.s32.totalorder %s43, %s45
    %p52 = scmp.eq.s32.totalorder %s14, 3
    %p53 = por %p51, %p52
    %p54 = scmp.ne.s32.totalorder %s45, %s46
    %p55 = scmp.eq.s32.totalorder %s14, 0
    %p56 = por %p54, %p55
    %p57 = scmp.ne.s32.totalorder %s45, %s46
    %p58 = scmp.eq.s32.totalorder %s15, 3
    %p59 = por %p57, %p58
    %p61 = scmp.ne.s32.totalorder %s46, %s60
    %p62 = scmp.eq.s32.totalorder %s15, 0
    %p63 = por %p61, %p62
    %s65 = sadd.s32 %s64, 1
    %p68 = scmp.eq.s32.totalorder %s9, 3
    %p69 = scmp.ne.s32.totalorder %s64, %s66
    %p70 = scmp.eq.s32.totalorder %s9, 0
    %p71 = por %p69, %p70
    %p72 = scmp.ne.s32.totalorder %s64, %s66
    %p73 = scmp.eq.s32.totalorder %s14, 3
    %p74 = por %p72, %p73
    %p75 = scmp.ne.s32.totalorder %s66, %s67
    %p76 = scmp.eq.s32.totalorder %s14, 0
    %p77 = por %p75, %p76
    %p78 = scmp.ne.s32.totalorder %s66, %s67
    %p79 = scmp.eq.s32.totalorder %s15, 3
    %p80 = por %p78, %p79
    %p82 = scmp.ne.s32.totalorder %s67, %s81
    %p83 = scmp.eq.s32.totalorder %s15, 0
    %p84 = por %p82, %p83
    %s85 = ssub.s32 %s9, %s16
    %p86 = scmp.eq.s32.totalorder %s85, 0
    %s88 = sadd.s32 %s87, 1
    %s89 = scalar_select %p86, %s87, %s88
    %p92 = pneg %p86
    %p93 = scmp.eq.s32.totalorder %s9, 3
    %p94 = por %p92, %p93
    %p95 = scmp.ne.s32.totalorder %s87, %s90
    %p96 = scmp.eq.s32.totalorder %s9, 0
    %p97 = por %p95, %p96
    %p98 = scmp.ne.s32.totalorder %s87, %s90
    %p99 = scmp.eq.s32.totalorder %s14, 3
    %p100 = por %p98, %p99
    %p101 = scmp.ne.s32.totalorder %s90, %s91
    %p102 = scmp.eq.s32.totalorder %s14, 0
    %p103 = por %p101, %p102
    %p104 = scmp.ne.s32.totalorder %s90, %s91
    %p105 = scmp.eq.s32.totalorder %s15, 3
    %p106 = por %p104, %p105
    %p108 = scmp.ne.s32.totalorder %s91, %s107
    %p109 = scmp.eq.s32.totalorder %s15, 0
    %p110 = por %p108, %p109
    %p111 = scmp.le.s32.totalorder 1, %s9
    %p112 = scmp.lt.s32.totalorder %s9, 5
    %p113 = pnand %p111, %p112
    %p114 = pneg %p113
    // Predicated region
    $region9: #{similarity_model.7} parent=5 // pred_check
      _
    $region10: #{similarity_model.7} parent=5 // pred_check_branch
      %116 = sbr.rel (%p113) target = $region12
    $region11: #{similarity_model.7} parent=5 // pred_region
      %s117 = ssub.s32 %s9, 1
      // Predicated region
      $region13: #{similarity_model.7} parent=11 // pred_check
        %p118 = pneg %p56
      $region14: #{similarity_model.7} parent=11 // pred_check_branch
        %120 = sbr.rel (%p118) target = $region16
      $region15: #{similarity_model.7} parent=11 // pred_region
        _
      $region16: #{similarity_model.7} parent=11 // pred_fallthru
        _
      // Predicated region
      $region17: #{similarity_model.7} parent=11 // pred_check
        %p121 = pneg %p77
      $region18: #{similarity_model.7} parent=11 // pred_check_branch
        %123 = sbr.rel (%p121) target = $region20
      $region19: #{similarity_model.7} parent=11 // pred_region
        _
      $region20: #{similarity_model.7} parent=11 // pred_fallthru
        _
    $region12: #{similarity_model.7} parent=5 // pred_fallthru
      _
    %p124 = scmp.lt.s32.totalorder %s9, 4
    // Predicated region
    $region21: #{similarity_model.7} parent=5 // pred_check
      %p125 = pneg %p124
    $region22: #{similarity_model.7} parent=5 // pred_check_branch
      %127 = sbr.rel (%p125) target = $region24
    $region23: #{similarity_model.7} parent=5 // pred_region
      // Predicated region
      $region25: #{similarity_model.7} parent=23 // pred_check
        %p128 = pneg %p29
      $region26: #{similarity_model.7} parent=23 // pred_check_branch
        %130 = sbr.rel (%p128) target = $region28
      $region27: #{similarity_model.7} parent=23 // pred_region
        %p131 = scmp.lt.s32.totalorder %s9, 3
        %s132 = scalar_select %p131, %s9, 3
        %s133 = smul.addr %s132, 12
        %s134 = smul.addr %s133, 4
        %s135 = scalar_lea.vmem %s0, %s134
      $region28: #{similarity_model.7} parent=23 // pred_fallthru
        _
    $region24: #{similarity_model.7} parent=5 // pred_fallthru
      _
    %p136 = scmp.le.s32.totalorder 1, %s9
    %p137 = scmp.lt.s32.totalorder %s9, 5
    %p138 = pnand %p136, %p137
    %p139 = pneg %p138
    // Predicated region
    $region29: #{similarity_model.7} parent=5 // pred_check
      _
    $region30: #{similarity_model.7} parent=5 // pred_check_branch
      %141 = sbr.rel (%p138) target = $region32
    $region31: #{similarity_model.7} parent=5 // pred_region
      %s142 = ssub.s32 %s9, 1
      %p143 = scmp.lt.s32.totalorder %s14, 3
      %s144 = scalar_select %p143, %s14, 3
      %s145 = smul.addr %s144, 12
      %s146 = smul.addr %s145, 4
      %s147 = scalar_lea.vmem %s0, %s146
      %p148 = pneg %p35
      %p149 = pneg %p32
      %p150 = pneg %p56
      %p151 = pneg %p53
      %p152 = pneg %p77
      %p153 = pneg %p74
      %p154 = pneg %p103
      %p155 = pneg %p100
      %p156 = scmp.lt.s32.totalorder %s14, 3
      %s157 = scalar_select %p156, %s14, 3
      %s158 = smul.addr %s157, 4
      %s159 = smul.addr %s158, 4
      %s160 = scalar_lea.vmem %s3, %s159
      %p161 = scmp.lt.s32.totalorder %s14, 3
      %s162 = scalar_select %p161, %s14, 3
      %s163 = smul.addr %s162, 12
      %s164 = smul.addr %s163, 4
      %s165 = scalar_lea.vmem %s0, %s164
      %p166 = scmp.lt.s32.totalorder %s14, 3
      %s167 = scalar_select %p166, %s14, 3
      %s168 = smul.addr %s167, 4
      %s169 = smul.addr %s168, 4
      %s170 = scalar_lea.vmem %s3, %s169
      %v172 = vld [vmem:[%s165] sm:$0xf]
      %v173 = vld [vmem:[%s165 + $0x8] sm:$0xf]
      %v174 = vld [vmem:[%s165 + $0x10] sm:$0xf]
      %v175 = vld [vmem:[%s165 + $0x18] sm:$0xf]
      %v176 = vld [vmem:[%s1] sm:$0xf]
      %v177 = vld [vmem:[%s1 + $0x4] sm:$0xf]
      %v178 = vld [vmem:[%s1 + $0x8] sm:$0xf]
      %v179 = vld [vmem:[%s1 + $0xc] sm:$0xf]
      %v180 = vld [vmem:[%s1 + $0x10] sm:$0xf]
      %v181 = vld [vmem:[%s1 + $0x14] sm:$0xf]
      %v182 = vld [vmem:[%s1 + $0x18] sm:$0xf]
      %v183 = vld [vmem:[%s1 + $0x1c] sm:$0xf]
      %v184 = vld [vmem:[%s1 + $0x20] sm:$0xf]
      %v185 = vld [vmem:[%s1 + $0x24] sm:$0xf]
      %v186 = vld [vmem:[%s1 + $0x28] sm:$0xf]
      %v187 = vld [vmem:[%s1 + $0x2c] sm:$0xf]
      %v188 = vld [vmem:[%s1 + $0x30] sm:$0xf]
      %v189 = vld [vmem:[%s1 + $0x34] sm:$0xf]
      %v190 = vld [vmem:[%s1 + $0x38] sm:$0xf]
      %v191 = vld [vmem:[%s1 + $0x3c] sm:$0xf]
      %v196 = vunpack.c.l.b16 %v172
      %v197 = vunpack.c.l.b16 %v173
      %v198 = vunpack.c.l.b16 %v174
      %v199 = vunpack.c.l.b16 %v175
      %v200 = vpack.c.b16 %v197, %v196
      %v201 = vpack.c.b16 %v199, %v198
      %v220 = vunpack.c.l.b16 %v176
      %v221 = vunpack.c.l.b16 %v177
      %v222 = vunpack.c.l.b16 %v178
      %v223 = vunpack.c.l.b16 %v179
      %v224 = vunpack.c.l.b16 %v180
      %v225 = vunpack.c.l.b16 %v181
      %v226 = vunpack.c.l.b16 %v182
      %v227 = vunpack.c.l.b16 %v183
      %v228 = vunpack.c.l.b16 %v184
      %v229 = vunpack.c.l.b16 %v185
      %v230 = vunpack.c.l.b16 %v186
      %v231 = vunpack.c.l.b16 %v187
      %v232 = vunpack.c.l.b16 %v188
      %v233 = vunpack.c.l.b16 %v189
      %v234 = vunpack.c.l.b16 %v190
      %v235 = vunpack.c.l.b16 %v191
      %v236 = vpack.c.b16 %v221, %v220
      %v237 = vpack.c.b16 %v223, %v222
      %v238 = vpack.c.b16 %v225, %v224
      %v239 = vpack.c.b16 %v227, %v226
      %v240 = vpack.c.b16 %v229, %v228
      %v241 = vpack.c.b16 %v231, %v230
      %v242 = vpack.c.b16 %v233, %v232
      %v243 = vpack.c.b16 %v235, %v234
      %252 = vmatprep.subr.bf16.mxu0 0
      %253 = vmatpush1.bf16.msra.mxu0 %v236
      %254 = vmatprep.subr.bf16.mxu0 0
      %255 = vmatpush1.bf16.msra.mxu0 %v237
      %256 = vmatprep.subr.bf16.mxu0 0
      %257 = vmatpush1.bf16.msra.mxu0 %v238
      %258 = vmatprep.subr.bf16.mxu0 0
      %259 = vmatpush1.bf16.msra.mxu0 %v239
      %260 = vmatprep.subr.bf16.mxu0 0
      %261 = vmatpush1.bf16.msra.mxu0 %v240
      %262 = vmatprep.subr.bf16.mxu0 0
      %263 = vmatpush1.bf16.msra.mxu0 %v241
      %264 = vmatprep.subr.bf16.mxu0 0
      %265 = vmatpush1.bf16.msra.mxu0 %v242
      %266 = vmatprep.subr.bf16.mxu0 0
      %267 = vmatpush1.bf16.msra.mxu0 %v243
      %268 = vmatprep.subr.bf16.mxu0 0
      %269 = vmatpush1.bf16.msra.mxu0 0
      %270 = vmatprep.subr.bf16.mxu0 0
      %271 = vmatpush1.bf16.msra.mxu0 0
      %272 = vmatprep.subr.bf16.mxu0 0
      %273 = vmatpush1.bf16.msra.mxu0 0
      %274 = vmatprep.subr.bf16.mxu0 0
      %275 = vmatpush1.bf16.msra.mxu0 0
      %276 = vmatprep.subr.bf16.mxu0 0
      %277 = vmatpush1.bf16.msra.mxu0 0
      %278 = vmatprep.subr.bf16.mxu0 0
      %279 = vmatpush1.bf16.msra.mxu0 0
      %280 = vmatprep.subr.bf16.mxu0 0
      %281 = vmatpush1.bf16.msra.mxu0 0
      %282 = vmatprep.subr.bf16.mxu0 0
      %283 = vmatpush1.bf16.msra.mxu0 0
      %284 = vmatprep.mubr.bf16.mxu0 0
      %285 = vmatmul.mubr.bf16.gmra.mrb[0].mxu0 %v200
      %v286 = vpop.f32.mrb[0].mxu0
      %v287 = vadd.f32 0.0, %v286
      %v288 = vpop.f32.mrb[0].mxu0
      %v289 = vpop.f32.mrb[0].mxu0
      %v290 = vadd.f32 0.0, %v289
      %v291 = vpop.f32.mrb[0].mxu0
      %292 = vmatprep.mubr.bf16.mxu0 0
      %293 = vmatmul.mubr.bf16.gmra.mrb[0].mxu0 %v201
      %v294 = vpop.f32.mrb[0].mxu0
      %v295 = vadd.f32 0.0, %v294
      %v296 = vpop.f32.mrb[0].mxu0
      %v297 = vpop.f32.mrb[0].mxu0
      %v298 = vadd.f32 0.0, %v297
      %v299 = vpop.f32.mrb[0].mxu0
      %300 = vdwg.mxu0
      %301 = vst [vmem:[#allocation2] sm:$0xff] %v287
      %302 = vst [vmem:[#allocation2 + $0x8] sm:$0xff] %v290
      %303 = vst [vmem:[#allocation2 + $0x10] sm:$0xff] %v295
      %304 = vst [vmem:[#allocation2 + $0x18] sm:$0xff] %v298
      %v305 = vld [vmem:[%s165] sm:$0xf]
      %v306 = vld [vmem:[%s165 + $0x4] sm:$0x1]
      %v307 = vld [vmem:[%s165 + $0x8] sm:$0xf]
      %v308 = vld [vmem:[%s165 + $0xc] sm:$0x1]
      %v309 = vld [vmem:[%s165 + $0x10] sm:$0xf]
      %v310 = vld [vmem:[%s165 + $0x14] sm:$0x1]
      %v311 = vld [vmem:[%s165 + $0x18] sm:$0xf]
      %v312 = vld [vmem:[%s165 + $0x1c] sm:$0x1]
      %vm313 = vsmask.f32 3328
      %vm314 = vsmask.f32 7440
      %vm315 = vmor %vm313, %vm314
      %v317 = vshrl.u32 %v305, 16
      %v319 = vrot.slane %v317, 4
      %v320 = vshll.u32 %v305, 16
      %v322 = vrot.slane %v320, 5
      %v323 = vor.u32 %v319, %v322
      %v324 = vrot.slane %v323, 4
      %v326 = vshll.u32 %v306, 16
      %v328 = vrot.slane %v326, 5
      %v329 = vsel %vm315, %v324, %v328
      %v331 = vshrl.u32 %v307, 16
      %v333 = vrot.slane %v331, 4
      %v334 = vshll.u32 %v307, 16
      %v336 = vrot.slane %v334, 5
      %v337 = vor.u32 %v333, %v336
      %v338 = vrot.slane %v337, 4
      %v340 = vshll.u32 %v308, 16
      %v342 = vrot.slane %v340, 5
      %v343 = vsel %vm315, %v338, %v342
      %v345 = vshrl.u32 %v309, 16
      %v347 = vrot.slane %v345, 4
      %v348 = vshll.u32 %v309, 16
      %v350 = vrot.slane %v348, 5
      %v351 = vor.u32 %v347, %v350
      %v352 = vrot.slane %v351, 4
      %v354 = vshll.u32 %v310, 16
      %v356 = vrot.slane %v354, 5
      %v357 = vsel %vm315, %v352, %v356
      %v359 = vshrl.u32 %v311, 16
      %v361 = vrot.slane %v359, 4
      %v362 = vshll.u32 %v311, 16
      %v364 = vrot.slane %v362, 5
      %v365 = vor.u32 %v361, %v364
      %v366 = vrot.slane %v365, 4
      %v368 = vshll.u32 %v312, 16
      %v370 = vrot.slane %v368, 5
      %v371 = vsel %vm315, %v366, %v370
      %s372 = scalar_lea.vmem %s1, 64
      %v373 = vld [vmem:[%s372] sm:$0xf]
      %v374 = vld [vmem:[%s372 + $0x4] sm:$0xf]
      %v375 = vld [vmem:[%s372 + $0x8] sm:$0xf]
      %v376 = vld [vmem:[%s372 + $0xc] sm:$0xf]
      %v377 = vld [vmem:[%s372 + $0x10] sm:$0xf]
      %v378 = vld [vmem:[%s372 + $0x14] sm:$0xf]
      %v379 = vld [vmem:[%s372 + $0x18] sm:$0xf]
      %v380 = vld [vmem:[%s372 + $0x1c] sm:$0xf]
      %v381 = vld [vmem:[%s372 + $0x20] sm:$0xf]
      %v382 = vld [vmem:[%s372 + $0x24] sm:$0xf]
      %v383 = vld [vmem:[%s372 + $0x28] sm:$0xf]
      %v384 = vld [vmem:[%s372 + $0x2c] sm:$0xf]
      %v385 = vld [vmem:[%s372 + $0x30] sm:$0xf]
      %v386 = vld [vmem:[%s372 + $0x34] sm:$0xf]
      %v387 = vld [vmem:[%s372 + $0x38] sm:$0xf]
      %v388 = vld [vmem:[%s372 + $0x3c] sm:$0xf]
      %v389 = vunpack.c.l.b16 %v329
      %v390 = vunpack.c.l.b16 %v343
      %v391 = vunpack.c.l.b16 %v357
      %v392 = vunpack.c.l.b16 %v371
      %v393 = vpack.c.b16 %v390, %v389
      %v394 = vpack.c.b16 %v392, %v391
      %v413 = vunpack.c.l.b16 %v373
      %v414 = vunpack.c.l.b16 %v374
      %v415 = vunpack.c.l.b16 %v375
      %v416 = vunpack.c.l.b16 %v376
      %v417 = vunpack.c.l.b16 %v377
      %v418 = vunpack.c.l.b16 %v378
      %v419 = vunpack.c.l.b16 %v379
      %v420 = vunpack.c.l.b16 %v380
      %v421 = vunpack.c.l.b16 %v381
      %v422 = vunpack.c.l.b16 %v382
      %v423 = vunpack.c.l.b16 %v383
      %v424 = vunpack.c.l.b16 %v384
      %v425 = vunpack.c.l.b16 %v385
      %v426 = vunpack.c.l.b16 %v386
      %v427 = vunpack.c.l.b16 %v387
      %v428 = vunpack.c.l.b16 %v388
      %v429 = vpack.c.b16 %v414, %v413
      %v430 = vpack.c.b16 %v416, %v415
      %v431 = vpack.c.b16 %v418, %v417
      %v432 = vpack.c.b16 %v420, %v419
      %v433 = vpack.c.b16 %v422, %v421
      %v434 = vpack.c.b16 %v424, %v423
      %v435 = vpack.c.b16 %v426, %v425
      %v436 = vpack.c.b16 %v428, %v427
      %445 = vmatprep.subr.bf16.mxu0 0
      %446 = vmatpush1.bf16.msra.mxu0 %v429
      %447 = vmatprep.subr.bf16.mxu0 0
      %448 = vmatpush1.bf16.msra.mxu0 %v430
      %449 = vmatprep.subr.bf16.mxu0 0
      %450 = vmatpush1.bf16.msra.mxu0 %v431
      %451 = vmatprep.subr.bf16.mxu0 0
      %452 = vmatpush1.bf16.msra.mxu0 %v432
      %453 = vmatprep.subr.bf16.mxu0 0
      %454 = vmatpush1.bf16.msra.mxu0 %v433
      %455 = vmatprep.subr.bf16.mxu0 0
      %456 = vmatpush1.bf16.msra.mxu0 %v434
      %457 = vmatprep.subr.bf16.mxu0 0
      %458 = vmatpush1.bf16.msra.mxu0 %v435
      %459 = vmatprep.subr.bf16.mxu0 0
      %460 = vmatpush1.bf16.msra.mxu0 %v436
      %461 = vmatprep.subr.bf16.mxu0 0
      %462 = vmatpush1.bf16.msra.mxu0 0
      %463 = vmatprep.subr.bf16.mxu0 0
      %464 = vmatpush1.bf16.msra.mxu0 0
      %465 = vmatprep.subr.bf16.mxu0 0
      %466 = vmatpush1.bf16.msra.mxu0 0
      %467 = vmatprep.subr.bf16.mxu0 0
      %468 = vmatpush1.bf16.msra.mxu0 0
      %469 = vmatprep.subr.bf16.mxu0 0
      %470 = vmatpush1.bf16.msra.mxu0 0
      %471 = vmatprep.subr.bf16.mxu0 0
      %472 = vmatpush1.bf16.msra.mxu0 0
      %473 = vmatprep.subr.bf16.mxu0 0
      %474 = vmatpush1.bf16.msra.mxu0 0
      %475 = vmatprep.subr.bf16.mxu0 0
      %476 = vmatpush1.bf16.msra.mxu0 0
      %477 = vmatprep.mubr.bf16.mxu0 0
      %478 = vmatmul.mubr.bf16.gmra.mrb[0].mxu0 %v393
      %v479 = vpop.f32.mrb[0].mxu0
      %v480 = vadd.f32 0.0, %v479
      %v481 = vpop.f32.mrb[0].mxu0
      %v482 = vpop.f32.mrb[0].mxu0
      %v483 = vadd.f32 0.0, %v482
      %v484 = vpop.f32.mrb[0].mxu0
      %485 = vmatprep.mubr.bf16.mxu0 0
      %486 = vmatmul.mubr.bf16.gmra.mrb[0].mxu0 %v394
      %v487 = vpop.f32.mrb[0].mxu0
      %v488 = vadd.f32 0.0, %v487
      %v489 = vpop.f32.mrb[0].mxu0
      %v490 = vpop.f32.mrb[0].mxu0
      %v491 = vadd.f32 0.0, %v490
      %v492 = vpop.f32.mrb[0].mxu0
      %493 = vdwg.mxu0
      %v494 = vld [vmem:[#allocation2] sm:$0xff]
      %v495 = vld [vmem:[#allocation2 + $0x8] sm:$0xff]
      %v496 = vld [vmem:[#allocation2 + $0x10] sm:$0xff]
      %v497 = vld [vmem:[#allocation2 + $0x18] sm:$0xff]
      %v498 = vadd.f32 %v494, %v480
      %v499 = vadd.f32 %v495, %v483
      %v500 = vadd.f32 %v496, %v488
      %v501 = vadd.f32 %v497, %v491
      %502 = vst [vmem:[#allocation2] sm:$0xff] %v498
      %503 = vst [vmem:[#allocation2 + $0x8] sm:$0xff] %v499
      %504 = vst [vmem:[#allocation2 + $0x10] sm:$0xff] %v500
      %505 = vst [vmem:[#allocation2 + $0x18] sm:$0xff] %v501
      %v506 = vld [vmem:[%s165] sm:$0xe]
      %v507 = vld [vmem:[%s165 + $0x4] sm:$0x1]
      %v508 = vld [vmem:[%s165 + $0x8] sm:$0xe]
      %v509 = vld [vmem:[%s165 + $0xc] sm:$0x1]
      %v510 = vld [vmem:[%s165 + $0x10] sm:$0xe]
      %v511 = vld [vmem:[%s165 + $0x14] sm:$0x1]
      %v512 = vld [vmem:[%s165 + $0x18] sm:$0xe]
      %v513 = vld [vmem:[%s165 + $0x1c] sm:$0x1]
      %vm522 = vcmask 1042432
      %vm523 = vcmask 1046532
      %vm524 = vmor %vm522, %vm523
      %v525 = vrot.slane %v506, 5
      %v526 = vrot.slane %v525, 4
      %v527 = vrot.slane %v507, 5
      %v528 = vsel %vm524, %v526, %v527
      %v529 = vrot.slane %v508, 5
      %v530 = vrot.slane %v529, 4
      %v531 = vrot.slane %v509, 5
      %v532 = vsel %vm524, %v530, %v531
      %v533 = vrot.slane %v510, 5
      %v534 = vrot.slane %v533, 4
      %v535 = vrot.slane %v511, 5
      %v536 = vsel %vm524, %v534, %v535
      %v537 = vrot.slane %v512, 5
      %v538 = vrot.slane %v537, 4
      %v539 = vrot.slane %v513, 5
      %v540 = vsel %vm524, %v538, %v539
      %s541 = scalar_lea.vmem %s1, 128
      %v542 = vld [vmem:[%s541] sm:$0xf]
      %v543 = vld [vmem:[%s541 + $0x4] sm:$0xf]
      %v544 = vld [vmem:[%s541 + $0x8] sm:$0xf]
      %v545 = vld [vmem:[%s541 + $0xc] sm:$0xf]
      %v546 = vld [vmem:[%s541 + $0x10] sm:$0xf]
      %v547 = vld [vmem:[%s541 + $0x14] sm:$0xf]
      %v548 = vld [vmem:[%s541 + $0x18] sm:$0xf]
      %v549 = vld [vmem:[%s541 + $0x1c] sm:$0xf]
      %v550 = vld [vmem:[%s541 + $0x20] sm:$0xf]
      %v551 = vld [vmem:[%s541 + $0x24] sm:$0xf]
      %v552 = vld [vmem:[%s541 + $0x28] sm:$0xf]
      %v553 = vld [vmem:[%s541 + $0x2c] sm:$0xf]
      %v554 = vld [vmem:[%s541 + $0x30] sm:$0xf]
      %v555 = vld [vmem:[%s541 + $0x34] sm:$0xf]
      %v556 = vld [vmem:[%s541 + $0x38] sm:$0xf]
      %v557 = vld [vmem:[%s541 + $0x3c] sm:$0xf]
      %v558 = vunpack.c.l.b16 %v528
      %v559 = vunpack.c.l.b16 %v532
      %v560 = vunpack.c.l.b16 %v536
      %v561 = vunpack.c.l.b16 %v540
      %v562 = vpack.c.b16 %v559, %v558
      %v563 = vpack.c.b16 %v561, %v560
      %v582 = vunpack.c.l.b16 %v542
      %v583 = vunpack.c.l.b16 %v543
      %v584 = vunpack.c.l.b16 %v544
      %v585 = vunpack.c.l.b16 %v545
      %v586 = vunpack.c.l.b16 %v546
      %v587 = vunpack.c.l.b16 %v547
      %v588 = vunpack.c.l.b16 %v548
      %v589 = vunpack.c.l.b16 %v549
      %v590 = vunpack.c.l.b16 %v550
      %v591 = vunpack.c.l.b16 %v551
      %v592 = vunpack.c.l.b16 %v552
      %v593 = vunpack.c.l.b16 %v553
      %v594 = vunpack.c.l.b16 %v554
      %v595 = vunpack.c.l.b16 %v555
      %v596 = vunpack.c.l.b16 %v556
      %v597 = vunpack.c.l.b16 %v557
      %v598 = vpack.c.b16 %v583, %v582
      %v599 = vpack.c.b16 %v585, %v584
      %v600 = vpack.c.b16 %v587, %v586
      %v601 = vpack.c.b16 %v589, %v588
      %v602 = vpack.c.b16 %v591, %v590
      %v603 = vpack.c.b16 %v593, %v592
      %v604 = vpack.c.b16 %v595, %v594
      %v605 = vpack.c.b16 %v597, %v596
      %614 = vmatprep.subr.bf16.mxu0 0
      %615 = vmatpush1.bf16.msra.mxu0 %v598
      %616 = vmatprep.subr.bf16.mxu0 0
      %617 = vmatpush1.bf16.msra.mxu0 %v599
      %618 = vmatprep.subr.bf16.mxu0 0
      %619 = vmatpush1.bf16.msra.mxu0 %v600
      %620 = vmatprep.subr.bf16.mxu0 0
      %621 = vmatpush1.bf16.msra.mxu0 %v601
      %622 = vmatprep.subr.bf16.mxu0 0
      %623 = vmatpush1.bf16.msra.mxu0 %v602
      %624 = vmatprep.subr.bf16.mxu0 0
      %625 = vmatpush1.bf16.msra.mxu0 %v603
      %626 = vmatprep.subr.bf16.mxu0 0
      %627 = vmatpush1.bf16.msra.mxu0 %v604
      %628 = vmatprep.subr.bf16.mxu0 0
      %629 = vmatpush1.bf16.msra.mxu0 %v605
      %630 = vmatprep.subr.bf16.mxu0 0
      %631 = vmatpush1.bf16.msra.mxu0 0
      %632 = vmatprep.subr.bf16.mxu0 0
      %633 = vmatpush1.bf16.msra.mxu0 0
      %634 = vmatprep.subr.bf16.mxu0 0
      %635 = vmatpush1.bf16.msra.mxu0 0
      %636 = vmatprep.subr.bf16.mxu0 0
      %637 = vmatpush1.bf16.msra.mxu0 0
      %638 = vmatprep.subr.bf16.mxu0 0
      %639 = vmatpush1.bf16.msra.mxu0 0
      %640 = vmatprep.subr.bf16.mxu0 0
      %641 = vmatpush1.bf16.msra.mxu0 0
      %642 = vmatprep.subr.bf16.mxu0 0
      %643 = vmatpush1.bf16.msra.mxu0 0
      %644 = vmatprep.subr.bf16.mxu0 0
      %645 = vmatpush1.bf16.msra.mxu0 0
      %646 = vmatprep.mubr.bf16.mxu0 0
      %647 = vmatmul.mubr.bf16.gmra.mrb[0].mxu0 %v562
      %v648 = vpop.f32.mrb[0].mxu0
      %v649 = vadd.f32 0.0, %v648
      %v650 = vpop.f32.mrb[0].mxu0
      %v651 = vpop.f32.mrb[0].mxu0
      %v652 = vadd.f32 0.0, %v651
      %v653 = vpop.f32.mrb[0].mxu0
      %654 = vmatprep.mubr.bf16.mxu0 0
      %655 = vmatmul.mubr.bf16.gmra.mrb[0].mxu0 %v563
      %v656 = vpop.f32.mrb[0].mxu0
      %v657 = vadd.f32 0.0, %v656
      %v658 = vpop.f32.mrb[0].mxu0
      %v659 = vpop.f32.mrb[0].mxu0
      %v660 = vadd.f32 0.0, %v659
      %v661 = vpop.f32.mrb[0].mxu0
      %662 = vdwg.mxu0
      %v663 = vld [vmem:[#allocation2] sm:$0xff]
      %v664 = vld [vmem:[#allocation2 + $0x8] sm:$0xff]
      %v665 = vld [vmem:[#allocation2 + $0x10] sm:$0xff]
      %v666 = vld [vmem:[#allocation2 + $0x18] sm:$0xff]
      %v667 = vadd.f32 %v663, %v649
      %v668 = vadd.f32 %v664, %v652
      %v669 = vadd.f32 %v665, %v657
      %v670 = vadd.f32 %v666, %v660
      %671 = vst [vmem:[#allocation2] sm:$0xff] %v667
      %672 = vst [vmem:[#allocation2 + $0x8] sm:$0xff] %v668
      %673 = vst [vmem:[#allocation2 + $0x10] sm:$0xff] %v669
      %674 = vst [vmem:[#allocation2 + $0x18] sm:$0xff] %v670
      %s675 = scalar_lea.vmem %s165, 8
      %v676 = vld [vmem:[%s675] sm:$0xf]
      %v677 = vld [vmem:[%s675 + $0x8] sm:$0xf]
      %v678 = vld [vmem:[%s675 + $0x10] sm:$0xf]
      %v679 = vld [vmem:[%s675 + $0x18] sm:$0xf]
      %s680 = scalar_lea.vmem %s1, 192
      %v681 = vld [vmem:[%s680] sm:$0xf]
      %v682 = vld [vmem:[%s680 + $0x4] sm:$0xf]
      %v683 = vld [vmem:[%s680 + $0x8] sm:$0xf]
      %v684 = vld [vmem:[%s680 + $0xc] sm:$0xf]
      %v685 = vld [vmem:[%s680 + $0x10] sm:$0xf]
      %v686 = vld [vmem:[%s680 + $0x14] sm:$0xf]
      %v687 = vld [vmem:[%s680 + $0x18] sm:$0xf]
      %v688 = vld [vmem:[%s680 + $0x1c] sm:$0xf]
      %v689 = vld [vmem:[%s680 + $0x20] sm:$0xf]
      %v690 = vld [vmem:[%s680 + $0x24] sm:$0xf]
      %v691 = vld [vmem:[%s680 + $0x28] sm:$0xf]
      %v692 = vld [vmem:[%s680 + $0x2c] sm:$0xf]
      %v693 = vld [vmem:[%s680 + $0x30] sm:$0xf]
      %v694 = vld [vmem:[%s680 + $0x34] sm:$0xf]
      %v695 = vld [vmem:[%s680 + $0x38] sm:$0xf]
      %v696 = vld [vmem:[%s680 + $0x3c] sm:$0xf]
      %v701 = vunpack.c.l.b16 %v676
      %v702 = vunpack.c.l.b16 %v677
      %v703 = vunpack.c.l.b16 %v678
      %v704 = vunpack.c.l.b16 %v679
      %v705 = vpack.c.b16 %v702, %v701
      %v706 = vpack.c.b16 %v704, %v703
      %v725 = vunpack.c.l.b16 %v681
      %v726 = vunpack.c.l.b16 %v682
      %v727 = vunpack.c.l.b16 %v683
      %v728 = vunpack.c.l.b16 %v684
      %v729 = vunpack.c.l.b16 %v685
      %v730 = vunpack.c.l.b16 %v686
      %v731 = vunpack.c.l.b16 %v687
      %v732 = vunpack.c.l.b16 %v688
      %v733 = vunpack.c.l.b16 %v689
      %v734 = vunpack.c.l.b16 %v690
      %v735 = vunpack.c.l.b16 %v691
      %v736 = vunpack.c.l.b16 %v692
      %v737 = vunpack.c.l.b16 %v693
      %v738 = vunpack.c.l.b16 %v694
      %v739 = vunpack.c.l.b16 %v695
      %v740 = vunpack.c.l.b16 %v696
      %v741 = vpack.c.b16 %v726, %v725
      %v742 = vpack.c.b16 %v728, %v727
      %v743 = vpack.c.b16 %v730, %v729
      %v744 = vpack.c.b16 %v732, %v731
      %v745 = vpack.c.b16 %v734, %v733
      %v746 = vpack.c.b16 %v736, %v735
      %v747 = vpack.c.b16 %v738, %v737
      %v748 = vpack.c.b16 %v740, %v739
      %757 = vmatprep.subr.bf16.mxu0 0
      %758 = vmatpush1.bf16.msra.mxu0 %v741
      %759 = vmatprep.subr.bf16.mxu0 0
      %760 = vmatpush1.bf16.msra.mxu0 %v742
      %761 = vmatprep.subr.bf16.mxu0 0
      %762 = vmatpush1.bf16.msra.mxu0 %v743
      %763 = vmatprep.subr.bf16.mxu0 0
      %764 = vmatpush1.bf16.msra.mxu0 %v744
      %765 = vmatprep.subr.bf16.mxu0 0
      %766 = vmatpush1.bf16.msra.mxu0 %v745
      %767 = vmatprep.subr.bf16.mxu0 0
      %768 = vmatpush1.bf16.msra.mxu0 %v746
      %769 = vmatprep.subr.bf16.mxu0 0
      %770 = vmatpush1.bf16.msra.mxu0 %v747
      %771 = vmatprep.subr.bf16.mxu0 0
      %772 = vmatpush1.bf16.msra.mxu0 %v748
      %773 = vmatprep.subr.bf16.mxu0 0
      %774 = vmatpush1.bf16.msra.mxu0 0
      %775 = vmatprep.subr.bf16.mxu0 0
      %776 = vmatpush1.bf16.msra.mxu0 0
      %777 = vmatprep.subr.bf16.mxu0 0
      %778 = vmatpush1.bf16.msra.mxu0 0
      %779 = vmatprep.subr.bf16.mxu0 0
      %780 = vmatpush1.bf16.msra.mxu0 0
      %781 = vmatprep.subr.bf16.mxu0 0
      %782 = vmatpush1.bf16.msra.mxu0 0
      %783 = vmatprep.subr.bf16.mxu0 0
      %784 = vmatpush1.bf16.msra.mxu0 0
      %785 = vmatprep.subr.bf16.mxu0 0
      %786 = vmatpush1.bf16.msra.mxu0 0
      %787 = vmatprep.subr.bf16.mxu0 0
      %788 = vmatpush1.bf16.msra.mxu0 0
      %789 = vmatprep.mubr.bf16.mxu0 0
      %790 = vmatmul.mubr.bf16.gmra.mrb[0].mxu0 %v705
      %v791 = vpop.f32.mrb[0].mxu0
      %v792 = vadd.f32 0.0, %v791
      %v793 = vpop.f32.mrb[0].mxu0
      %v794 = vpop.f32.mrb[0].mxu0
      %v795 = vadd.f32 0.0, %v794
      %v796 = vpop.f32.mrb[0].mxu0
      %797 = vmatprep.mubr.bf16.mxu0 0
      %798 = vmatmul.mubr.bf16.gmra.mrb[0].mxu0 %v706
      %v799 = vpop.f32.mrb[0].mxu0
      %v800 = vadd.f32 0.0, %v799
      %v801 = vpop.f32.mrb[0].mxu0
      %v802 = vpop.f32.mrb[0].mxu0
      %v803 = vadd.f32 0.0, %v802
      %v804 = vpop.f32.mrb[0].mxu0
      %805 = vdwg.mxu0
      %v806 = vld [vmem:[#allocation2] sm:$0xff]
      %v807 = vld [vmem:[#allocation2 + $0x8] sm:$0xff]
      %v808 = vld [vmem:[#allocation2 + $0x10] sm:$0xff]
      %v809 = vld [vmem:[#allocation2 + $0x18] sm:$0xff]
      %v810 = vadd.f32 %v806, %v792
      %v811 = vadd.f32 %v807, %v795
      %v812 = vadd.f32 %v808, %v800
      %v813 = vadd.f32 %v809, %v803
      %814 = vst [vmem:[#allocation2] sm:$0xff] %v810
      %815 = vst [vmem:[#allocation2 + $0x8] sm:$0xff] %v811
      %816 = vst [vmem:[#allocation2 + $0x10] sm:$0xff] %v812
      %817 = vst [vmem:[#allocation2 + $0x18] sm:$0xff] %v813
      %v818 = vld [vmem:[%s675] sm:$0xf]
      %v819 = vld [vmem:[%s675 + $0x4] sm:$0x1]
      %v820 = vld [vmem:[%s675 + $0x8] sm:$0xf]
      %v821 = vld [vmem:[%s675 + $0xc] sm:$0x1]
      %v822 = vld [vmem:[%s675 + $0x10] sm:$0xf]
      %v823 = vld [vmem:[%s675 + $0x14] sm:$0x1]
      %v824 = vld [vmem:[%s675 + $0x18] sm:$0xf]
      %v825 = vld [vmem:[%s675 + $0x1c] sm:$0x1]
      %v827 = vshrl.u32 %v818, 16
      %v829 = vrot.slane %v827, 4
      %v830 = vshll.u32 %v818, 16
      %v832 = vrot.slane %v830, 5
      %v833 = vor.u32 %v829, %v832
      %v834 = vrot.slane %v833, 4
      %v836 = vshll.u32 %v819, 16
      %v838 = vrot.slane %v836, 5
      %v839 = vsel %vm315, %v834, %v838
      %v841 = vshrl.u32 %v820, 16
      %v843 = vrot.slane %v841, 4
      %v844 = vshll.u32 %v820, 16
      %v846 = vrot.slane %v844, 5
      %v847 = vor.u32 %v843, %v846
      %v848 = vrot.slane %v847, 4
      %v850 = vshll.u32 %v821, 16
      %v852 = vrot.slane %v850, 5
      %v853 = vsel %vm315, %v848, %v852
      %v855 = vshrl.u32 %v822, 16
      %v857 = vrot.slane %v855, 4
      %v858 = vshll.u32 %v822, 16
      %v860 = vrot.slane %v858, 5
      %v861 = vor.u32 %v857, %v860
      %v862 = vrot.slane %v861, 4
      %v864 = vshll.u32 %v823, 16
      %v866 = vrot.slane %v864, 5
      %v867 = vsel %vm315, %v862, %v866
      %v869 = vshrl.u32 %v824, 16
      %v871 = vrot.slane %v869, 4
      %v872 = vshll.u32 %v824, 16
      %v874 = vrot.slane %v872, 5
      %v875 = vor.u32 %v871, %v874
      %v876 = vrot.slane %v875, 4
      %v878 = vshll.u32 %v825, 16
      %v880 = vrot.slane %v878, 5
      %v881 = vsel %vm315, %v876, %v880
      %s882 = scalar_lea.vmem %s1, 256
      %v883 = vld [vmem:[%s882] sm:$0xf]
      %v884 = vld [vmem:[%s882 + $0x4] sm:$0xf]
      %v885 = vld [vmem:[%s882 + $0x8] sm:$0xf]
      %v886 = vld [vmem:[%s882 + $0xc] sm:$0xf]
      %v887 = vld [vmem:[%s882 + $0x10] sm:$0xf]
      %v888 = vld [vmem:[%s882 + $0x14] sm:$0xf]
      %v889 = vld [vmem:[%s882 + $0x18] sm:$0xf]
      %v890 = vld [vmem:[%s882 + $0x1c] sm:$0xf]
      %v891 = vld [vmem:[%s882 + $0x20] sm:$0xf]
      %v892 = vld [vmem:[%s882 + $0x24] sm:$0xf]
      %v893 = vld [vmem:[%s882 + $0x28] sm:$0xf]
      %v894 = vld [vmem:[%s882 + $0x2c] sm:$0xf]
      %v895 = vld [vmem:[%s882 + $0x30] sm:$0xf]
      %v896 = vld [vmem:[%s882 + $0x34] sm:$0xf]
      %v897 = vld [vmem:[%s882 + $0x38] sm:$0xf]
      %v898 = vld [vmem:[%s882 + $0x3c] sm:$0xf]
      %v899 = vunpack.c.l.b16 %v839
      %v900 = vunpack.c.l.b16 %v853
      %v901 = vunpack.c.l.b16 %v867
      %v902 = vunpack.c.l.b16 %v881
      %v903 = vpack.c.b16 %v900, %v899
      %v904 = vpack.c.b16 %v902, %v901
      %v923 = vunpack.c.l.b16 %v883
      %v924 = vunpack.c.l.b16 %v884
      %v925 = vunpack.c.l.b16 %v885
      %v926 = vunpack.c.l.b16 %v886
      %v927 = vunpack.c.l.b16 %v887
      %v928 = vunpack.c.l.b16 %v888
      %v929 = vunpack.c.l.b16 %v889
      %v930 = vunpack.c.l.b16 %v890
      %v931 = vunpack.c.l.b16 %v891
      %v932 = vunpack.c.l.b16 %v892
      %v933 = vunpack.c.l.b16 %v893
      %v934 = vunpack.c.l.b16 %v894
      %v935 = vunpack.c.l.b16 %v895
      %v936 = vunpack.c.l.b16 %v896
      %v937 = vunpack.c.l.b16 %v897
      %v938 = vunpack.c.l.b16 %v898
      %v939 = vpack.c.b16 %v924, %v923
      %v940 = vpack.c.b16 %v926, %v925
      %v941 = vpack.c.b16 %v928, %v927
      %v942 = vpack.c.b16 %v930, %v929
      %v943 = vpack.c.b16 %v932, %v931
      %v944 = vpack.c.b16 %v934, %v933
      %v945 = vpack.c.b16 %v936, %v935
      %v946 = vpack.c.b16 %v938, %v937
      %955 = vmatprep.subr.bf16.mxu0 0
      %956 = vmatpush1.bf16.msra.mxu0 %v939
      %957 = vmatprep.subr.bf16.mxu0 0
      %958 = vmatpush1.bf16.msra.mxu0 %v940
      %959 = vmatprep.subr.bf16.mxu0 0
      %960 = vmatpush1.bf16.msra.mxu0 %v941
      %961 = vmatprep.subr.bf16.mxu0 0
      %962 = vmatpush1.bf16.msra.mxu0 %v942
      %963 = vmatprep.subr.bf16.mxu0 0
      %964 = vmatpush1.bf16.msra.mxu0 %v943
      %965 = vmatprep.subr.bf16.mxu0 0
      %966 = vmatpush1.bf16.msra.mxu0 %v944
      %967 = vmatprep.subr.bf16.mxu0 0
      %968 = vmatpush1.bf16.msra.mxu0 %v945
      %969 = vmatprep.subr.bf16.mxu0 0
      %970 = vmatpush1.bf16.msra.mxu0 %v946
      %971 = vmatprep.subr.bf16.mxu0 0
      %972 = vmatpush1.bf16.msra.mxu0 0
      %973 = vmatprep.subr.bf16.mxu0 0
      %974 = vmatpush1.bf16.msra.mxu0 0
      %975 = vmatprep.subr.bf16.mxu0 0
      %976 = vmatpush1.bf16.msra.mxu0 0
      %977 = vmatprep.subr.bf16.mxu0 0
      %978 = vmatpush1.bf16.msra.mxu0 0
      %979 = vmatprep.subr.bf16.mxu0 0
      %980 = vmatpush1.bf16.msra.mxu0 0
      %981 = vmatprep.subr.bf16.mxu0 0
      %982 = vmatpush1.bf16.msra.mxu0 0
      %983 = vmatprep.subr.bf16.mxu0 0
      %984 = vmatpush1.bf16.msra.mxu0 0
      %985 = vmatprep.subr.bf16.mxu0 0
      %986 = vmatpush1.bf16.msra.mxu0 0
      %987 = vmatprep.mubr.bf16.mxu0 0
      %988 = vmatmul.mubr.bf16.gmra.mrb[0].mxu0 %v903
      %v989 = vpop.f32.mrb[0].mxu0
      %v990 = vadd.f32 0.0, %v989
      %v991 = vpop.f32.mrb[0].mxu0
      %v992 = vpop.f32.mrb[0].mxu0
      %v993 = vadd.f32 0.0, %v992
      %v994 = vpop.f32.mrb[0].mxu0
      %995 = vmatprep.mubr.bf16.mxu0 0
      %996 = vmatmul.mubr.bf16.gmra.mrb[0].mxu0 %v904
      %v997 = vpop.f32.mrb[0].mxu0
      %v998 = vadd.f32 0.0, %v997
      %v999 = vpop.f32.mrb[0].mxu0
      %v1000 = vpop.f32.mrb[0].mxu0
      %v1001 = vadd.f32 0.0, %v1000
      %v1002 = vpop.f32.mrb[0].mxu0
      %1003 = vdwg.mxu0
      %v1004 = vld [vmem:[#allocation2] sm:$0xff]
      %v1005 = vld [vmem:[#allocation2 + $0x8] sm:$0xff]
      %v1006 = vld [vmem:[#allocation2 + $0x10] sm:$0xff]
      %v1007 = vld [vmem:[#allocation2 + $0x18] sm:$0xff]
      %v1008 = vadd.f32 %v1004, %v990
      %v1009 = vadd.f32 %v1005, %v993
      %v1010 = vadd.f32 %v1006, %v998
      %v1011 = vadd.f32 %v1007, %v1001
      %1012 = vst [vmem:[#allocation2] sm:$0xff] %v1008
      %1013 = vst [vmem:[#allocation2 + $0x8] sm:$0xff] %v1009
      %1014 = vst [vmem:[#allocation2 + $0x10] sm:$0xff] %v1010
      %1015 = vst [vmem:[#allocation2 + $0x18] sm:$0xff] %v1011
      %v1016 = vld [vmem:[%s675] sm:$0xe]
      %v1017 = vld [vmem:[%s675 + $0x4] sm:$0x1]
      %v1018 = vld [vmem:[%s675 + $0x8] sm:$0xe]
      %v1019 = vld [vmem:[%s675 + $0xc] sm:$0x1]
      %v1020 = vld [vmem:[%s675 + $0x10] sm:$0xe]
      %v1021 = vld [vmem:[%s675 + $0x14] sm:$0x1]
      %v1022 = vld [vmem:[%s675 + $0x18] sm:$0xe]
      %v1023 = vld [vmem:[%s675 + $0x1c] sm:$0x1]
      %v1032 = vrot.slane %v1016, 5
      %v1033 = vrot.slane %v1032, 4
      %v1034 = vrot.slane %v1017, 5
      %v1035 = vsel %vm524, %v1033, %v1034
      %v1036 = vrot.slane %v1018, 5
      %v1037 = vrot.slane %v1036, 4
      %v1038 = vrot.slane %v1019, 5
      %v1039 = vsel %vm524, %v1037, %v1038
      %v1040 = vrot.slane %v1020, 5
      %v1041 = vrot.slane %v1040, 4
      %v1042 = vrot.slane %v1021, 5
      %v1043 = vsel %vm524, %v1041, %v1042
      %v1044 = vrot.slane %v1022, 5
      %v1045 = vrot.slane %v1044, 4
      %v1046 = vrot.slane %v1023, 5
      %v1047 = vsel %vm524, %v1045, %v1046
      %s1048 = scalar_lea.vmem %s1, 320
      %v1049 = vld [vmem:[%s1048] sm:$0xf]
      %v1050 = vld [vmem:[%s1048 + $0x4] sm:$0xf]
      %v1051 = vld [vmem:[%s1048 + $0x8] sm:$0xf]
      %v1052 = vld [vmem:[%s1048 + $0xc] sm:$0xf]
      %v1053 = vld [vmem:[%s1048 + $0x10] sm:$0xf]
      %v1054 = vld [vmem:[%s1048 + $0x14] sm:$0xf]
      %v1055 = vld [vmem:[%s1048 + $0x18] sm:$0xf]
      %v1056 = vld [vmem:[%s1048 + $0x1c] sm:$0xf]
      %v1057 = vld [vmem:[%s1048 + $0x20] sm:$0xf]
      %v1058 = vld [vmem:[%s1048 + $0x24] sm:$0xf]
      %v1059 = vld [vmem:[%s1048 + $0x28] sm:$0xf]
      %v1060 = vld [vmem:[%s1048 + $0x2c] sm:$0xf]
      %v1061 = vld [vmem:[%s1048 + $0x30] sm:$0xf]
      %v1062 = vld [vmem:[%s1048 + $0x34] sm:$0xf]
      %v1063 = vld [vmem:[%s1048 + $0x38] sm:$0xf]
      %v1064 = vld [vmem:[%s1048 + $0x3c] sm:$0xf]
      %v1065 = vunpack.c.l.b16 %v1035
      %v1066 = vunpack.c.l.b16 %v1039
      %v1067 = vunpack.c.l.b16 %v1043
      %v1068 = vunpack.c.l.b16 %v1047
      %v1069 = vpack.c.b16 %v1066, %v1065
      %v1070 = vpack.c.b16 %v1068, %v1067
      %v1089 = vunpack.c.l.b16 %v1049
      %v1090 = vunpack.c.l.b16 %v1050
      %v1091 = vunpack.c.l.b16 %v1051
      %v1092 = vunpack.c.l.b16 %v1052
      %v1093 = vunpack.c.l.b16 %v1053
      %v1094 = vunpack.c.l.b16 %v1054
      %v1095 = vunpack.c.l.b16 %v1055
      %v1096 = vunpack.c.l.b16 %v1056
      %v1097 = vunpack.c.l.b16 %v1057
      %v1098 = vunpack.c.l.b16 %v1058
      %v1099 = vunpack.c.l.b16 %v1059
      %v1100 = vunpack.c.l.b16 %v1060
      %v1101 = vunpack.c.l.b16 %v1061
      %v1102 = vunpack.c.l.b16 %v1062
      %v1103 = vunpack.c.l.b16 %v1063
      %v1104 = vunpack.c.l.b16 %v1064
      %v1105 = vpack.c.b16 %v1090, %v1089
      %v1106 = vpack.c.b16 %v1092, %v1091
      %v1107 = vpack.c.b16 %v1094, %v1093
      %v1108 = vpack.c.b16 %v1096, %v1095
      %v1109 = vpack.c.b16 %v1098, %v1097
      %v1110 = vpack.c.b16 %v1100, %v1099
      %v1111 = vpack.c.b16 %v1102, %v1101
      %v1112 = vpack.c.b16 %v1104, %v1103
      %1121 = vmatprep.subr.bf16.mxu0 0
      %1122 = vmatpush1.bf16.msra.mxu0 %v1105
      %1123 = vmatprep.subr.bf16.mxu0 0
      %1124 = vmatpush1.bf16.msra.mxu0 %v1106
      %1125 = vmatprep.subr.bf16.mxu0 0
      %1126 = vmatpush1.bf16.msra.mxu0 %v1107
      %1127 = vmatprep.subr.bf16.mxu0 0
      %1128 = vmatpush1.bf16.msra.mxu0 %v1108
      %1129 = vmatprep.subr.bf16.mxu0 0
      %1130 = vmatpush1.bf16.msra.mxu0 %v1109
      %1131 = vmatprep.subr.bf16.mxu0 0
      %1132 = vmatpush1.bf16.msra.mxu0 %v1110
      %1133 = vmatprep.subr.bf16.mxu0 0
      %1134 = vmatpush1.bf16.msra.mxu0 %v1111
      %1135 = vmatprep.subr.bf16.mxu0 0
      %1136 = vmatpush1.bf16.msra.mxu0 %v1112
      %1137 = vmatprep.subr.bf16.mxu0 0
      %1138 = vmatpush1.bf16.msra.mxu0 0
      %1139 = vmatprep.subr.bf16.mxu0 0
      %1140 = vmatpush1.bf16.msra.mxu0 0
      %1141 = vmatprep.subr.bf16.mxu0 0
      %1142 = vmatpush1.bf16.msra.mxu0 0
      %1143 = vmatprep.subr.bf16.mxu0 0
      %1144 = vmatpush1.bf16.msra.mxu0 0
      %1145 = vmatprep.subr.bf16.mxu0 0
      %1146 = vmatpush1.bf16.msra.mxu0 0
      %1147 = vmatprep.subr.bf16.mxu0 0
      %1148 = vmatpush1.bf16.msra.mxu0 0
      %1149 = vmatprep.subr.bf16.mxu0 0
      %1150 = vmatpush1.bf16.msra.mxu0 0
      %1151 = vmatprep.subr.bf16.mxu0 0
      %1152 = vmatpush1.bf16.msra.mxu0 0
      %1153 = vmatprep.mubr.bf16.mxu0 0
      %1154 = vmatmul.mubr.bf16.gmra.mrb[0].mxu0 %v1069
      %v1155 = vpop.f32.mrb[0].mxu0
      %v1156 = vadd.f32 0.0, %v1155
      %v1157 = vpop.f32.mrb[0].mxu0
      %v1158 = vpop.f32.mrb[0].mxu0
      %v1159 = vadd.f32 0.0, %v1158
      %v1160 = vpop.f32.mrb[0].mxu0
      %1161 = vmatprep.mubr.bf16.mxu0 0
      %1162 = vmatmul.mubr.bf16.gmra.mrb[0].mxu0 %v1070
      %v1163 = vpop.f32.mrb[0].mxu0
      %v1164 = vadd.f32 0.0, %v1163
      %v1165 = vpop.f32.mrb[0].mxu0
      %v1166 = vpop.f32.mrb[0].mxu0
      %v1167 = vadd.f32 0.0, %v1166
      %v1168 = vpop.f32.mrb[0].mxu0
      %1169 = vdwg.mxu0
      %v1170 = vld [vmem:[#allocation2] sm:$0xff]
      %v1171 = vld [vmem:[#allocation2 + $0x8] sm:$0xff]
      %v1172 = vld [vmem:[#allocation2 + $0x10] sm:$0xff]
      %v1173 = vld [vmem:[#allocation2 + $0x18] sm:$0xff]
      %v1174 = vadd.f32 %v1170, %v1156
      %v1175 = vadd.f32 %v1171, %v1159
      %v1176 = vadd.f32 %v1172, %v1164
      %v1177 = vadd.f32 %v1173, %v1167
      %1178 = vst [vmem:[#allocation2] sm:$0xff] %v1174
      %1179 = vst [vmem:[#allocation2 + $0x8] sm:$0xff] %v1175
      %1180 = vst [vmem:[#allocation2 + $0x10] sm:$0xff] %v1176
      %1181 = vst [vmem:[#allocation2 + $0x18] sm:$0xff] %v1177
      %s1182 = scalar_lea.vmem %s165, 16
      %v1183 = vld [vmem:[%s1182] sm:$0xf]
      %v1184 = vld [vmem:[%s1182 + $0x8] sm:$0xf]
      %v1185 = vld [vmem:[%s1182 + $0x10] sm:$0xf]
      %v1186 = vld [vmem:[%s1182 + $0x18] sm:$0xf]
      %s1187 = scalar_lea.vmem %s1, 384
      %v1188 = vld [vmem:[%s1187] sm:$0xf]
      %v1189 = vld [vmem:[%s1187 + $0x4] sm:$0xf]
      %v1190 = vld [vmem:[%s1187 + $0x8] sm:$0xf]
      %v1191 = vld [vmem:[%s1187 + $0xc] sm:$0xf]
      %v1192 = vld [vmem:[%s1187 + $0x10] sm:$0xf]
      %v1193 = vld [vmem:[%s1187 + $0x14] sm:$0xf]
      %v1194 = vld [vmem:[%s1187 + $0x18] sm:$0xf]
      %v1195 = vld [vmem:[%s1187 + $0x1c] sm:$0xf]
      %v1196 = vld [vmem:[%s1187 + $0x20] sm:$0xf]
      %v1197 = vld [vmem:[%s1187 + $0x24] sm:$0xf]
      %v1198 = vld [vmem:[%s1187 + $0x28] sm:$0xf]
      %v1199 = vld [vmem:[%s1187 + $0x2c] sm:$0xf]
      %v1200 = vld [vmem:[%s1187 + $0x30] sm:$0xf]
      %v1201 = vld [vmem:[%s1187 + $0x34] sm:$0xf]
      %v1202 = vld [vmem:[%s1187 + $0x38] sm:$0xf]
      %v1203 = vld [vmem:[%s1187 + $0x3c] sm:$0xf]
      %v1208 = vunpack.c.l.b16 %v1183
      %v1209 = vunpack.c.l.b16 %v1184
      %v1210 = vunpack.c.l.b16 %v1185
      %v1211 = vunpack.c.l.b16 %v1186
      %v1212 = vpack.c.b16 %v1209, %v1208
      %v1213 = vpack.c.b16 %v1211, %v1210
      %v1232 = vunpack.c.l.b16 %v1188
      %v1233 = vunpack.c.l.b16 %v1189
      %v1234 = vunpack.c.l.b16 %v1190
      %v1235 = vunpack.c.l.b16 %v1191
      %v1236 = vunpack.c.l.b16 %v1192
      %v1237 = vunpack.c.l.b16 %v1193
      %v1238 = vunpack.c.l.b16 %v1194
      %v1239 = vunpack.c.l.b16 %v1195
      %v1240 = vunpack.c.l.b16 %v1196
      %v1241 = vunpack.c.l.b16 %v1197
      %v1242 = vunpack.c.l.b16 %v1198
      %v1243 = vunpack.c.l.b16 %v1199
      %v1244 = vunpack.c.l.b16 %v1200
      %v1245 = vunpack.c.l.b16 %v1201
      %v1246 = vunpack.c.l.b16 %v1202
      %v1247 = vunpack.c.l.b16 %v1203
      %v1248 = vpack.c.b16 %v1233, %v1232
      %v1249 = vpack.c.b16 %v1235, %v1234
      %v1250 = vpack.c.b16 %v1237, %v1236
      %v1251 = vpack.c.b16 %v1239, %v1238
      %v1252 = vpack.c.b16 %v1241, %v1240
      %v1253 = vpack.c.b16 %v1243, %v1242
      %v1254 = vpack.c.b16 %v1245, %v1244
      %v1255 = vpack.c.b16 %v1247, %v1246
      %1264 = vmatprep.subr.bf16.mxu0 0
      %1265 = vmatpush1.bf16.msra.mxu0 %v1248
      %1266 = vmatprep.subr.bf16.mxu0 0
      %1267 = vmatpush1.bf16.msra.mxu0 %v1249
      %1268 = vmatprep.subr.bf16.mxu0 0
      %1269 = vmatpush1.bf16.msra.mxu0 %v1250
      %1270 = vmatprep.subr.bf16.mxu0 0
      %1271 = vmatpush1.bf16.msra.mxu0 %v1251
      %1272 = vmatprep.subr.bf16.mxu0 0
      %1273 = vmatpush1.bf16.msra.mxu0 %v1252
      %1274 = vmatprep.subr.bf16.mxu0 0
      %1275 = vmatpush1.bf16.msra.mxu0 %v1253
      %1276 = vmatprep.subr.bf16.mxu0 0
      %1277 = vmatpush1.bf16.msra.mxu0 %v1254
      %1278 = vmatprep.subr.bf16.mxu0 0
      %1279 = vmatpush1.bf16.msra.mxu0 %v1255
      %1280 = vmatprep.subr.bf16.mxu0 0
      %1281 = vmatpush1.bf16.msra.mxu0 0
      %1282 = vmatprep.subr.bf16.mxu0 0
      %1283 = vmatpush1.bf16.msra.mxu0 0
      %1284 = vmatprep.subr.bf16.mxu0 0
      %1285 = vmatpush1.bf16.msra.mxu0 0
      %1286 = vmatprep.subr.bf16.mxu0 0
      %1287 = vmatpush1.bf16.msra.mxu0 0
      %1288 = vmatprep.subr.bf16.mxu0 0
      %1289 = vmatpush1.bf16.msra.mxu0 0
      %1290 = vmatprep.subr.bf16.mxu0 0
      %1291 = vmatpush1.bf16.msra.mxu0 0
      %1292 = vmatprep.subr.bf16.mxu0 0
      %1293 = vmatpush1.bf16.msra.mxu0 0
      %1294 = vmatprep.subr.bf16.mxu0 0
      %1295 = vmatpush1.bf16.msra.mxu0 0
      %1296 = vmatprep.mubr.bf16.mxu0 0
      %1297 = vmatmul.mubr.bf16.gmra.mrb[0].mxu0 %v1212
      %v1298 = vpop.f32.mrb[0].mxu0
      %v1299 = vadd.f32 0.0, %v1298
      %v1300 = vpop.f32.mrb[0].mxu0
      %v1301 = vpop.f32.mrb[0].mxu0
      %v1302 = vadd.f32 0.0, %v1301
      %v1303 = vpop.f32.mrb[0].mxu0
      %1304 = vmatprep.mubr.bf16.mxu0 0
      %1305 = vmatmul.mubr.bf16.gmra.mrb[0].mxu0 %v1213
      %v1306 = vpop.f32.mrb[0].mxu0
      %v1307 = vadd.f32 0.0, %v1306
      %v1308 = vpop.f32.mrb[0].mxu0
      %v1309 = vpop.f32.mrb[0].mxu0
      %v1310 = vadd.f32 0.0, %v1309
      %v1311 = vpop.f32.mrb[0].mxu0
      %1312 = vdwg.mxu0
      %v1313 = vld [vmem:[#allocation2] sm:$0xff]
      %v1314 = vld [vmem:[#allocation2 + $0x8] sm:$0xff]
      %v1315 = vld [vmem:[#allocation2 + $0x10] sm:$0xff]
      %v1316 = vld [vmem:[#allocation2 + $0x18] sm:$0xff]
      %v1317 = vadd.f32 %v1313, %v1299
      %v1318 = vadd.f32 %v1314, %v1302
      %v1319 = vadd.f32 %v1315, %v1307
      %v1320 = vadd.f32 %v1316, %v1310
      %1321 = vst [vmem:[#allocation2] sm:$0xff] %v1317
      %1322 = vst [vmem:[#allocation2 + $0x8] sm:$0xff] %v1318
      %1323 = vst [vmem:[#allocation2 + $0x10] sm:$0xff] %v1319
      %1324 = vst [vmem:[#allocation2 + $0x18] sm:$0xff] %v1320
      %v1325 = vld [vmem:[%s1182] sm:$0xf]
      %v1326 = vld [vmem:[%s1182 + $0x4] sm:$0x1]
      %v1327 = vld [vmem:[%s1182 + $0x8] sm:$0xf]
      %v1328 = vld [vmem:[%s1182 + $0xc] sm:$0x1]
      %v1329 = vld [vmem:[%s1182 + $0x10] sm:$0xf]
      %v1330 = vld [vmem:[%s1182 + $0x14] sm:$0x1]
      %v1331 = vld [vmem:[%s1182 + $0x18] sm:$0xf]
      %v1332 = vld [vmem:[%s1182 + $0x1c] sm:$0x1]
      %v1334 = vshrl.u32 %v1325, 16
      %v1336 = vrot.slane %v1334, 4
      %v1337 = vshll.u32 %v1325, 16
      %v1339 = vrot.slane %v1337, 5
      %v1340 = vor.u32 %v1336, %v1339
      %v1341 = vrot.slane %v1340, 4
      %v1343 = vshll.u32 %v1326, 16
      %v1345 = vrot.slane %v1343, 5
      %v1346 = vsel %vm315, %v1341, %v1345
      %v1348 = vshrl.u32 %v1327, 16
      %v1350 = vrot.slane %v1348, 4
      %v1351 = vshll.u32 %v1327, 16
      %v1353 = vrot.slane %v1351, 5
      %v1354 = vor.u32 %v1350, %v1353
      %v1355 = vrot.slane %v1354, 4
      %v1357 = vshll.u32 %v1328, 16
      %v1359 = vrot.slane %v1357, 5
      %v1360 = vsel %vm315, %v1355, %v1359
      %v1362 = vshrl.u32 %v1329, 16
      %v1364 = vrot.slane %v1362, 4
      %v1365 = vshll.u32 %v1329, 16
      %v1367 = vrot.slane %v1365, 5
      %v1368 = vor.u32 %v1364, %v1367
      %v1369 = vrot.slane %v1368, 4
      %v1371 = vshll.u32 %v1330, 16
      %v1373 = vrot.slane %v1371, 5
      %v1374 = vsel %vm315, %v1369, %v1373
      %v1376 = vshrl.u32 %v1331, 16
      %v1378 = vrot.slane %v1376, 4
      %v1379 = vshll.u32 %v1331, 16
      %v1381 = vrot.slane %v1379, 5
      %v1382 = vor.u32 %v1378, %v1381
      %v1383 = vrot.slane %v1382, 4
      %v1385 = vshll.u32 %v1332, 16
      %v1387 = vrot.slane %v1385, 5
      %v1388 = vsel %vm315, %v1383, %v1387
      %s1389 = scalar_lea.vmem %s1, 448
      %v1390 = vld [vmem:[%s1389] sm:$0xf]
      %v1391 = vld [vmem:[%s1389 + $0x4] sm:$0xf]
      %v1392 = vld [vmem:[%s1389 + $0x8] sm:$0xf]
      %v1393 = vld [vmem:[%s1389 + $0xc] sm:$0xf]
      %v1394 = vld [vmem:[%s1389 + $0x10] sm:$0xf]
      %v1395 = vld [vmem:[%s1389 + $0x14] sm:$0xf]
      %v1396 = vld [vmem:[%s1389 + $0x18] sm:$0xf]
      %v1397 = vld [vmem:[%s1389 + $0x1c] sm:$0xf]
      %v1398 = vld [vmem:[%s1389 + $0x20] sm:$0xf]
      %v1399 = vld [vmem:[%s1389 + $0x24] sm:$0xf]
      %v1400 = vld [vmem:[%s1389 + $0x28] sm:$0xf]
      %v1401 = vld [vmem:[%s1389 + $0x2c] sm:$0xf]
      %v1402 = vld [vmem:[%s1389 + $0x30] sm:$0xf]
      %v1403 = vld [vmem:[%s1389 + $0x34] sm:$0xf]
      %v1404 = vld [vmem:[%s1389 + $0x38] sm:$0xf]
      %v1405 = vld [vmem:[%s1389 + $0x3c] sm:$0xf]
      %v1406 = vunpack.c.l.b16 %v1346
      %v1407 = vunpack.c.l.b16 %v1360
      %v1408 = vunpack.c.l.b16 %v1374
      %v1409 = vunpack.c.l.b16 %v1388
      %v1410 = vpack.c.b16 %v1407, %v1406
      %v1411 = vpack.c.b16 %v1409, %v1408
      %v1430 = vunpack.c.l.b16 %v1390
      %v1431 = vunpack.c.l.b16 %v1391
      %v1432 = vunpack.c.l.b16 %v1392
      %v1433 = vunpack.c.l.b16 %v1393
      %v1434 = vunpack.c.l.b16 %v1394
      %v1435 = vunpack.c.l.b16 %v1395
      %v1436 = vunpack.c.l.b16 %v1396
      %v1437 = vunpack.c.l.b16 %v1397
      %v1438 = vunpack.c.l.b16 %v1398
      %v1439 = vunpack.c.l.b16 %v1399
      %v1440 = vunpack.c.l.b16 %v1400
      %v1441 = vunpack.c.l.b16 %v1401
      %v1442 = vunpack.c.l.b16 %v1402
      %v1443 = vunpack.c.l.b16 %v1403
      %v1444 = vunpack.c.l.b16 %v1404
      %v1445 = vunpack.c.l.b16 %v1405
      %v1446 = vpack.c.b16 %v1431, %v1430
      %v1447 = vpack.c.b16 %v1433, %v1432
      %v1448 = vpack.c.b16 %v1435, %v1434
      %v1449 = vpack.c.b16 %v1437, %v1436
      %v1450 = vpack.c.b16 %v1439, %v1438
      %v1451 = vpack.c.b16 %v1441, %v1440
      %v1452 = vpack.c.b16 %v1443, %v1442
      %v1453 = vpack.c.b16 %v1445, %v1444
      %1462 = vmatprep.subr.bf16.mxu0 0
      %1463 = vmatpush1.bf16.msra.mxu0 %v1446
      %1464 = vmatprep.subr.bf16.mxu0 0
      %1465 = vmatpush1.bf16.msra.mxu0 %v1447
      %1466 = vmatprep.subr.bf16.mxu0 0
      %1467 = vmatpush1.bf16.msra.mxu0 %v1448
      %1468 = vmatprep.subr.bf16.mxu0 0
      %1469 = vmatpush1.bf16.msra.mxu0 %v1449
      %1470 = vmatprep.subr.bf16.mxu0 0
      %1471 = vmatpush1.bf16.msra.mxu0 %v1450
      %1472 = vmatprep.subr.bf16.mxu0 0
      %1473 = vmatpush1.bf16.msra.mxu0 %v1451
      %1474 = vmatprep.subr.bf16.mxu0 0
      %1475 = vmatpush1.bf16.msra.mxu0 %v1452
      %1476 = vmatprep.subr.bf16.mxu0 0
      %1477 = vmatpush1.bf16.msra.mxu0 %v1453
      %1478 = vmatprep.subr.bf16.mxu0 0
      %1479 = vmatpush1.bf16.msra.mxu0 0
      %1480 = vmatprep.subr.bf16.mxu0 0
      %1481 = vmatpush1.bf16.msra.mxu0 0
      %1482 = vmatprep.subr.bf16.mxu0 0
      %1483 = vmatpush1.bf16.msra.mxu0 0
      %1484 = vmatprep.subr.bf16.mxu0 0
      %1485 = vmatpush1.bf16.msra.mxu0 0
      %1486 = vmatprep.subr.bf16.mxu0 0
      %1487 = vmatpush1.bf16.msra.mxu0 0
      %1488 = vmatprep.subr.bf16.mxu0 0
      %1489 = vmatpush1.bf16.msra.mxu0 0
      %1490 = vmatprep.subr.bf16.mxu0 0
      %1491 = vmatpush1.bf16.msra.mxu0 0
      %1492 = vmatprep.subr.bf16.mxu0 0
      %1493 = vmatpush1.bf16.msra.mxu0 0
      %1494 = vmatprep.mubr.bf16.mxu0 0
      %1495 = vmatmul.mubr.bf16.gmra.mrb[0].mxu0 %v1410
      %v1496 = vpop.f32.mrb[0].mxu0
      %v1497 = vadd.f32 0.0, %v1496
      %v1498 = vpop.f32.mrb[0].mxu0
      %v1499 = vpop.f32.mrb[0].mxu0
      %v1500 = vadd.f32 0.0, %v1499
      %v1501 = vpop.f32.mrb[0].mxu0
      %1502 = vmatprep.mubr.bf16.mxu0 0
      %1503 = vmatmul.mubr.bf16.gmra.mrb[0].mxu0 %v1411
      %v1504 = vpop.f32.mrb[0].mxu0
      %v1505 = vadd.f32 0.0, %v1504
      %v1506 = vpop.f32.mrb[0].mxu0
      %v1507 = vpop.f32.mrb[0].mxu0
      %v1508 = vadd.f32 0.0, %v1507
      %v1509 = vpop.f32.mrb[0].mxu0
      %1510 = vdwg.mxu0
      %v1511 = vld [vmem:[#allocation2] sm:$0xff]
      %v1512 = vld [vmem:[#allocation2 + $0x8] sm:$0xff]
      %v1513 = vld [vmem:[#allocation2 + $0x10] sm:$0xff]
      %v1514 = vld [vmem:[#allocation2 + $0x18] sm:$0xff]
      %v1515 = vadd.f32 %v1511, %v1497
      %v1516 = vadd.f32 %v1512, %v1500
      %v1517 = vadd.f32 %v1513, %v1505
      %v1518 = vadd.f32 %v1514, %v1508
      %1519 = vst [vmem:[#allocation2] sm:$0xff] %v1515
      %1520 = vst [vmem:[#allocation2 + $0x8] sm:$0xff] %v1516
      %1521 = vst [vmem:[#allocation2 + $0x10] sm:$0xff] %v1517
      %1522 = vst [vmem:[#allocation2 + $0x18] sm:$0xff] %v1518
      %v1523 = vld [vmem:[%s1182] sm:$0xe]
      %v1524 = vld [vmem:[%s1182 + $0x4] sm:$0x1]
      %v1525 = vld [vmem:[%s1182 + $0x8] sm:$0xe]
      %v1526 = vld [vmem:[%s1182 + $0xc] sm:$0x1]
      %v1527 = vld [vmem:[%s1182 + $0x10] sm:$0xe]
      %v1528 = vld [vmem:[%s1182 + $0x14] sm:$0x1]
      %v1529 = vld [vmem:[%s1182 + $0x18] sm:$0xe]
      %v1530 = vld [vmem:[%s1182 + $0x1c] sm:$0x1]
      %v1539 = vrot.slane %v1523, 5
      %v1540 = vrot.slane %v1539, 4
      %v1541 = vrot.slane %v1524, 5
      %v1542 = vsel %vm524, %v1540, %v1541
      %v1543 = vrot.slane %v1525, 5
      %v1544 = vrot.slane %v1543, 4
      %v1545 = vrot.slane %v1526, 5
      %v1546 = vsel %vm524, %v1544, %v1545
      %v1547 = vrot.slane %v1527, 5
      %v1548 = vrot.slane %v1547, 4
      %v1549 = vrot.slane %v1528, 5
      %v1550 = vsel %vm524, %v1548, %v1549
      %v1551 = vrot.slane %v1529, 5
      %v1552 = vrot.slane %v1551, 4
      %v1553 = vrot.slane %v1530, 5
      %v1554 = vsel %vm524, %v1552, %v1553
      %s1555 = scalar_lea.vmem %s1, 512
      %v1556 = vld [vmem:[%s1555] sm:$0xf]
      %v1557 = vld [vmem:[%s1555 + $0x4] sm:$0xf]
      %v1558 = vld [vmem:[%s1555 + $0x8] sm:$0xf]
      %v1559 = vld [vmem:[%s1555 + $0xc] sm:$0xf]
      %v1560 = vld [vmem:[%s1555 + $0x10] sm:$0xf]
      %v1561 = vld [vmem:[%s1555 + $0x14] sm:$0xf]
      %v1562 = vld [vmem:[%s1555 + $0x18] sm:$0xf]
      %v1563 = vld [vmem:[%s1555 + $0x1c] sm:$0xf]
      %v1564 = vld [vmem:[%s1555 + $0x20] sm:$0xf]
      %v1565 = vld [vmem:[%s1555 + $0x24] sm:$0xf]
      %v1566 = vld [vmem:[%s1555 + $0x28] sm:$0xf]
      %v1567 = vld [vmem:[%s1555 + $0x2c] sm:$0xf]
      %v1568 = vld [vmem:[%s1555 + $0x30] sm:$0xf]
      %v1569 = vld [vmem:[%s1555 + $0x34] sm:$0xf]
      %v1570 = vld [vmem:[%s1555 + $0x38] sm:$0xf]
      %v1571 = vld [vmem:[%s1555 + $0x3c] sm:$0xf]
      %v1572 = vunpack.c.l.b16 %v1542
      %v1573 = vunpack.c.l.b16 %v1546
      %v1574 = vunpack.c.l.b16 %v1550
      %v1575 = vunpack.c.l.b16 %v1554
      %v1576 = vpack.c.b16 %v1573, %v1572
      %v1577 = vpack.c.b16 %v1575, %v1574
      %v1596 = vunpack.c.l.b16 %v1556
      %v1597 = vunpack.c.l.b16 %v1557
      %v1598 = vunpack.c.l.b16 %v1558
      %v1599 = vunpack.c.l.b16 %v1559
      %v1600 = vunpack.c.l.b16 %v1560
      %v1601 = vunpack.c.l.b16 %v1561
      %v1602 = vunpack.c.l.b16 %v1562
      %v1603 = vunpack.c.l.b16 %v1563
      %v1604 = vunpack.c.l.b16 %v1564
      %v1605 = vunpack.c.l.b16 %v1565
      %v1606 = vunpack.c.l.b16 %v1566
      %v1607 = vunpack.c.l.b16 %v1567
      %v1608 = vunpack.c.l.b16 %v1568
      %v1609 = vunpack.c.l.b16 %v1569
      %v1610 = vunpack.c.l.b16 %v1570
      %v1611 = vunpack.c.l.b16 %v1571
      %v1612 = vpack.c.b16 %v1597, %v1596
      %v1613 = vpack.c.b16 %v1599, %v1598
      %v1614 = vpack.c.b16 %v1601, %v1600
      %v1615 = vpack.c.b16 %v1603, %v1602
      %v1616 = vpack.c.b16 %v1605, %v1604
      %v1617 = vpack.c.b16 %v1607, %v1606
      %v1618 = vpack.c.b16 %v1609, %v1608
      %v1619 = vpack.c.b16 %v1611, %v1610
      %1628 = vmatprep.subr.bf16.mxu0 0
      %1629 = vmatpush1.bf16.msra.mxu0 %v1612
      %1630 = vmatprep.subr.bf16.mxu0 0
      %1631 = vmatpush1.bf16.msra.mxu0 %v1613
      %1632 = vmatprep.subr.bf16.mxu0 0
      %1633 = vmatpush1.bf16.msra.mxu0 %v1614
      %1634 = vmatprep.subr.bf16.mxu0 0
      %1635 = vmatpush1.bf16.msra.mxu0 %v1615
      %1636 = vmatprep.subr.bf16.mxu0 0
      %1637 = vmatpush1.bf16.msra.mxu0 %v1616
      %1638 = vmatprep.subr.bf16.mxu0 0
      %1639 = vmatpush1.bf16.msra.mxu0 %v1617
      %1640 = vmatprep.subr.bf16.mxu0 0
      %1641 = vmatpush1.bf16.msra.mxu0 %v1618
      %1642 = vmatprep.subr.bf16.mxu0 0
      %1643 = vmatpush1.bf16.msra.mxu0 %v1619
      %1644 = vmatprep.subr.bf16.mxu0 0
      %1645 = vmatpush1.bf16.msra.mxu0 0
      %1646 = vmatprep.subr.bf16.mxu0 0
      %1647 = vmatpush1.bf16.msra.mxu0 0
      %1648 = vmatprep.subr.bf16.mxu0 0
      %1649 = vmatpush1.bf16.msra.mxu0 0
      %1650 = vmatprep.subr.bf16.mxu0 0
      %1651 = vmatpush1.bf16.msra.mxu0 0
      %1652 = vmatprep.subr.bf16.mxu0 0
      %1653 = vmatpush1.bf16.msra.mxu0 0
      %1654 = vmatprep.subr.bf16.mxu0 0
      %1655 = vmatpush1.bf16.msra.mxu0 0
      %1656 = vmatprep.subr.bf16.mxu0 0
      %1657 = vmatpush1.bf16.msra.mxu0 0
      %1658 = vmatprep.subr.bf16.mxu0 0
      %1659 = vmatpush1.bf16.msra.mxu0 0
      %1660 = vmatprep.mubr.bf16.mxu0 0
      %1661 = vmatmul.mubr.bf16.gmra.mrb[0].mxu0 %v1576
      %v1662 = vpop.f32.mrb[0].mxu0
      %v1663 = vadd.f32 0.0, %v1662
      %v1664 = vpop.f32.mrb[0].mxu0
      %v1665 = vpop.f32.mrb[0].mxu0
      %v1666 = vadd.f32 0.0, %v1665
      %v1667 = vpop.f32.mrb[0].mxu0
      %1668 = vmatprep.mubr.bf16.mxu0 0
      %1669 = vmatmul.mubr.bf16.gmra.mrb[0].mxu0 %v1577
      %v1670 = vpop.f32.mrb[0].mxu0
      %v1671 = vadd.f32 0.0, %v1670
      %v1672 = vpop.f32.mrb[0].mxu0
      %v1673 = vpop.f32.mrb[0].mxu0
      %v1674 = vadd.f32 0.0, %v1673
      %v1675 = vpop.f32.mrb[0].mxu0
      %1676 = vdwg.mxu0
      %v1677 = vld [vmem:[#allocation2] sm:$0xff]
      %v1678 = vld [vmem:[#allocation2 + $0x8] sm:$0xff]
      %v1679 = vld [vmem:[#allocation2 + $0x10] sm:$0xff]
      %v1680 = vld [vmem:[#allocation2 + $0x18] sm:$0xff]
      %v1681 = vadd.f32 %v1677, %v1663
      %v1682 = vadd.f32 %v1678, %v1666
      %v1683 = vadd.f32 %v1679, %v1671
      %v1684 = vadd.f32 %v1680, %v1674
      %1685 = vst [vmem:[#allocation2] sm:$0xff] %v1681
      %1686 = vst [vmem:[#allocation2 + $0x8] sm:$0xff] %v1682
      %1687 = vst [vmem:[#allocation2 + $0x10] sm:$0xff] %v1683
      %1688 = vst [vmem:[#allocation2 + $0x18] sm:$0xff] %v1684
      %v1689 = vld [vmem:[%s2] sm:$0x1]
      %v1690 = vld [vmem:[#allocation2] sm:$0xff]
      %v1692 = vlaneseq
      %v1693 = vshrl.u32 %v1692, 7
      %v1694 = vsub.s32 0, %v1693
      %v1695 = vrot.slane %v1689, %v1694
      %v1697 = vadd.f32 %v1690, %v1695
      %v1698 = vmax.f32 %v1697, 0.0
      %v1699 = vlaneseq
      %v1700 = vshrl.u32 %v1699, 7
      %vm1701 = vcmp.lt.s32.totalorder %v1700, 4
      %v1702 = vsel %vm1701, %v1698, 0.0
      %v1703 = vpack.c.bf16 %v1702, %v1702
      %1704 = vst [vmem:[%s170] sm:$0xf] %v1703
      %v1705 = vld [vmem:[#allocation2 + $0x8] sm:$0xff]
      %v1706 = vadd.f32 %v1705, %v1695
      %v1707 = vmax.f32 %v1706, 0.0
      %v1708 = vsel %vm1701, %v1707, 0.0
      %v1709 = vpack.c.bf16 %v1708, %v1708
      %s1710 = scalar_lea.vmem %s170, 4
      %1711 = vst [vmem:[%s1710] sm:$0xf] %v1709
      %v1712 = vld [vmem:[#allocation2 + $0x10] sm:$0xff]
      %v1713 = vadd.f32 %v1712, %v1695
      %v1714 = vmax.f32 %v1713, 0.0
      %v1715 = vsel %vm1701, %v1714, 0.0
      %v1716 = vpack.c.bf16 %v1715, %v1715
      %s1717 = scalar_lea.vmem %s170, 8
      %1718 = vst [vmem:[%s1717] sm:$0xf] %v1716
      %v1719 = vld [vmem:[#allocation2 + $0x18] sm:$0xff]
      %v1720 = vadd.f32 %v1719, %v1695
      %v1721 = vmax.f32 %v1720, 0.0
      %v1722 = vsel %vm1701, %v1721, 0.0
      %v1723 = vpack.c.bf16 %v1722, %v1722
      %s1724 = scalar_lea.vmem %s170, 12
      %1725 = vst [vmem:[%s1724] sm:$0xf] %v1723
      %p1726 = scmp.lt.s32.totalorder %s14, 3
      %s1727 = scalar_select %p1726, %s14, 3
      %s1728 = smul.addr %s1727, 4
      %s1729 = smul.addr %s1728, 4
      %s1730 = scalar_lea.vmem %s3, %s1729
      // Predicated region
      $region33: #{similarity_model.7} parent=31 // pred_check
        %p1731 = pneg %p100
      $region34: #{similarity_model.7} parent=31 // pred_check_branch
        %1733 = sbr.rel (%p1731) target = $region36
      $region35: #{similarity_model.7} parent=31 // pred_region
        _
      $region36: #{similarity_model.7} parent=31 // pred_fallthru
        _
    $region32: #{similarity_model.7} parent=5 // pred_fallthru
      _
    %p1734 = scmp.le.s32.totalorder 2, %s9
    // Predicated region
    $region37: #{similarity_model.7} parent=5 // pred_check
      %p1735 = pneg %p1734
    $region38: #{similarity_model.7} parent=5 // pred_check_branch
      %1737 = sbr.rel (%p1735) target = $region40
    $region39: #{similarity_model.7} parent=5 // pred_region
      %s1738 = ssub.s32 %s9, 2
      // Predicated region
      $region41: #{similarity_model.7} parent=39 // pred_check
        %p1739 = pneg %p106
      $region42: #{similarity_model.7} parent=39 // pred_check_branch
        %1741 = sbr.rel (%p1739) target = $region44
      $region43: #{similarity_model.7} parent=39 // pred_region
        %p1742 = scmp.lt.s32.totalorder %s15, 3
        %s1743 = scalar_select %p1742, %s15, 3
        %s1744 = smul.addr %s1743, 4
        %s1745 = smul.addr %s1744, 4
        %s1746 = scalar_lea.vmem %s3, %s1745
      $region44: #{similarity_model.7} parent=39 // pred_fallthru
        _
    $region40: #{similarity_model.7} parent=5 // pred_fallthru
      _
  $region6: #{similarity_model.7} parent=0 // loop_footer
    %s13 = sadd.s32 1, %s9
  $region7: #{similarity_model.7} parent=0 // loop_footer_branch
    %8 = sbr.rel target = $region3
  $region8: #{similarity_model.7} parent=0 // loop_exit
    _

// kernel: similarity_model.6
$region0: #{similarity_model.6}
  #allocation0 [shape = 'u32[]', space=smem, size = 0x4, offset = 0x4, fixed_abs, tag = 'smem constant byte address 0x4 - core index']
  #allocation1 [shape = 'u32[144,128]{1,0:T(1,128)}', space=vmem, size = 0x12000, scoped, tag = 'internal scratch']
  #allocation2 [shape = 'f32[64,128]{1,0:T(8,128)}', space=vmem, size = 0x8000, scoped, tag = 'scratch operand']
  %s0 = inlined_call_operand.vmem [shape: bf16[4,10,10,128], index: 0, kind: input, shape index: {}]
  %s1 = inlined_call_operand.vmem [shape: bf16[9,128,128], index: 1, kind: input, shape index: {}]
  %s2 = inlined_call_operand.vmem [shape: f32[1,128], index: 2, kind: input, shape index: {}]
  %s3 = inlined_call_operand.vmem [shape: bf16[4,4,4,128], index: 3, kind: output, shape index: {}]
  %s4 = sld [smem:[#allocation0]]
  $region45: #{similarity_model.6} parent=0
    _
  %s6 = ssub.s32 1, %s4
  %s7 = scalar_select 0, %s6, %s4
  loop: start=0, step=1, limit=6
  $region2: #{similarity_model.6} parent=0 // loop_pre_header
    _
  $region3: #{similarity_model.6} parent=0 // loop_header
    %s9 = sphi 0, %s13
    %p10 = scmp.ge.s32.totalorder %s9, 6
    %s19 = sphi 0, %s21
    %s22 = sphi 0, %s19
    %s23 = sphi 0, %s22
    %s39 = sphi 0, %s23
    %s43 = sphi 0, %s43
    %s45 = sphi 0, %s43
    %s46 = sphi 0, %s45
    %s60 = sphi 0, %s46
    %s64 = sphi 0, %s64
    %s66 = sphi 0, %s64
    %s67 = sphi 0, %s66
    %s81 = sphi 0, %s67
    %s87 = sphi 0, %s89
    %s90 = sphi 0, %s87
    %s91 = sphi 0, %s90
    %s107 = sphi 0, %s91
  $region4: #{similarity_model.6} parent=0 // loop_header_branch
    %12 = sbr.rel (%p10) target = $region8
  $region5: #{similarity_model.6} parent=0 // loop_body
    %s14 = ssub.s32 %s9, 1
    %s15 = ssub.s32 %s9, 2
    %s16 = sadd.s32 %s9, 1
    %s17 = ssub.s32 %s9, %s16
    %p18 = scmp.eq.s32.totalorder %s17, 0
    %s20 = sadd.s32 %s19, 1
    %s21 = scalar_select %p18, %s19, %s20
    %p24 = pneg %p18
    %p25 = scmp.eq.s32.totalorder %s9, 3
    %p26 = por %p24, %p25
    %p27 = scmp.ne.s32.totalorder %s19, %s22
    %p28 = scmp.eq.s32.totalorder %s9, 0
    %p29 = por %p27, %p28
    %p30 = scmp.ne.s32.totalorder %s19, %s22
    %p31 = scmp.eq.s32.totalorder %s14, 3
    %p32 = por %p30, %p31
    %p33 = scmp.ne.s32.totalorder %s22, %s23
    %p34 = scmp.eq.s32.totalorder %s14, 0
    %p35 = por %p33, %p34
    %p36 = scmp.ne.s32.totalorder %s22, %s23
    %p37 = scmp.eq.s32.totalorder %s15, 3
    %p38 = por %p36, %p37
    %p40 = scmp.ne.s32.totalorder %s23, %s39
    %p41 = scmp.eq.s32.totalorder %s15, 0
    %p42 = por %p40, %p41
    %s44 = sadd.s32 %s43, 1
    %p47 = scmp.eq.s32.totalorder %s9, 3
    %p48 = scmp.ne.s32.totalorder %s43, %s45
    %p49 = scmp.eq.s32.totalorder %s9, 0
    %p50 = por %p48, %p49
    %p51 = scmp.ne.s32.totalorder %s43, %s45
    %p52 = scmp.eq.s32.totalorder %s14, 3
    %p53 = por %p51, %p52
    %p54 = scmp.ne.s32.totalorder %s45, %s46
    %p55 = scmp.eq.s32.totalorder %s14, 0
    %p56 = por %p54, %p55
    %p57 = scmp.ne.s32.totalorder %s45, %s46
    %p58 = scmp.eq.s32.totalorder %s15, 3
    %p59 = por %p57, %p58
    %p61 = scmp.ne.s32.totalorder %s46, %s60
    %p62 = scmp.eq.s32.totalorder %s15, 0
    %p63 = por %p61, %p62
    %s65 = sadd.s32 %s64, 1
    %p68 = scmp.eq.s32.totalorder %s9, 3
    %p69 = scmp.ne.s32.totalorder %s64, %s66
    %p70 = scmp.eq.s32.totalorder %s9, 0
    %p71 = por %p69, %p70
    %p72 = scmp.ne.s32.totalorder %s64, %s66
    %p73 = scmp.eq.s32.totalorder %s14, 3
    %p74 = por %p72, %p73
    %p75 = scmp.ne.s32.totalorder %s66, %s67
    %p76 = scmp.eq.s32.totalorder %s14, 0
    %p77 = por %p75, %p76
    %p78 = scmp.ne.s32.totalorder %s66, %s67
    %p79 = scmp.eq.s32.totalorder %s15, 3
    %p80 = por %p78, %p79
    %p82 = scmp.ne.s32.totalorder %s67, %s81
    %p83 = scmp.eq.s32.totalorder %s15, 0
    %p84 = por %p82, %p83
    %s85 = ssub.s32 %s9, %s16
    %p86 = scmp.eq.s32.totalorder %s85, 0
    %s88 = sadd.s32 %s87, 1
    %s89 = scalar_select %p86, %s87, %s88
    %p92 = pneg %p86
    %p93 = scmp.eq.s32.totalorder %s9, 3
    %p94 = por %p92, %p93
    %p95 = scmp.ne.s32.totalorder %s87, %s90
    %p96 = scmp.eq.s32.totalorder %s9, 0
    %p97 = por %p95, %p96
    %p98 = scmp.ne.s32.totalorder %s87, %s90
    %p99 = scmp.eq.s32.totalorder %s14, 3
    %p100 = por %p98, %p99
    %p101 = scmp.ne.s32.totalorder %s90, %s91
    %p102 = scmp.eq.s32.totalorder %s14, 0
    %p103 = por %p101, %p102
    %p104 = scmp.ne.s32.totalorder %s90, %s91
    %p105 = scmp.eq.s32.totalorder %s15, 3
    %p106 = por %p104, %p105
    %p108 = scmp.ne.s32.totalorder %s91, %s107
    %p109 = scmp.eq.s32.totalorder %s15, 0
    %p110 = por %p108, %p109
    %p111 = scmp.le.s32.totalorder 1, %s9
    %p112 = scmp.lt.s32.totalorder %s9, 5
    %p113 = pnand %p111, %p112
    %p114 = pneg %p113
    // Predicated region
    $region9: #{similarity_model.6} parent=5 // pred_check
      _
    $region10: #{similarity_model.6} parent=5 // pred_check_branch
      %116 = sbr.rel (%p113) target = $region12
    $region11: #{similarity_model.6} parent=5 // pred_region
      %s117 = ssub.s32 %s9, 1
      // Predicated region
      $region13: #{similarity_model.6} parent=11 // pred_check
        %p118 = pneg %p56
      $region14: #{similarity_model.6} parent=11 // pred_check_branch
        %120 = sbr.rel (%p118) target = $region16
      $region15: #{similarity_model.6} parent=11 // pred_region
        _
      $region16: #{similarity_model.6} parent=11 // pred_fallthru
        _
      // Predicated region
      $region17: #{similarity_model.6} parent=11 // pred_check
        %p121 = pneg %p77
      $region18: #{similarity_model.6} parent=11 // pred_check_branch
        %123 = sbr.rel (%p121) target = $region20
      $region19: #{similarity_model.6} parent=11 // pred_region
        _
      $region20: #{similarity_model.6} parent=11 // pred_fallthru
        _
    $region12: #{similarity_model.6} parent=5 // pred_fallthru
      _
    %p124 = scmp.lt.s32.totalorder %s9, 4
    // Predicated region
    $region21: #{similarity_model.6} parent=5 // pred_check
      %p125 = pneg %p124
    $region22: #{similarity_model.6} parent=5 // pred_check_branch
      %127 = sbr.rel (%p125) target = $region24
    $region23: #{similarity_model.6} parent=5 // pred_region
      // Predicated region
      $region25: #{similarity_model.6} parent=23 // pred_check
        %p128 = pneg %p29
      $region26: #{similarity_model.6} parent=23 // pred_check_branch
        %130 = sbr.rel (%p128) target = $region28
      $region27: #{similarity_model.6} parent=23 // pred_region
        %p131 = scmp.lt.s32.totalorder %s9, 3
        %s132 = scalar_select %p131, %s9, 3
        %s133 = smul.addr %s132, 20
        %s134 = smul.addr %s133, 4
        %s135 = scalar_lea.vmem %s0, %s134
      $region28: #{similarity_model.6} parent=23 // pred_fallthru
        _
    $region24: #{similarity_model.6} parent=5 // pred_fallthru
      _
    %p136 = scmp.le.s32.totalorder 1, %s9
    %p137 = scmp.lt.s32.totalorder %s9, 5
    %p138 = pnand %p136, %p137
    %p139 = pneg %p138
    // Predicated region
    $region29: #{similarity_model.6} parent=5 // pred_check
      _
    $region30: #{similarity_model.6} parent=5 // pred_check_branch
      %141 = sbr.rel (%p138) target = $region32
    $region31: #{similarity_model.6} parent=5 // pred_region
      %s142 = ssub.s32 %s9, 1
      %p143 = scmp.lt.s32.totalorder %s14, 3
      %s144 = scalar_select %p143, %s14, 3
      %s145 = smul.addr %s144, 20
      %s146 = smul.addr %s145, 4
      %s147 = scalar_lea.vmem %s0, %s146
      %p148 = pneg %p35
      %p149 = pneg %p32
      %p150 = pneg %p56
      %p151 = pneg %p53
      %p152 = pneg %p77
      %p153 = pneg %p74
      %p154 = pneg %p103
      %p155 = pneg %p100
      %p156 = scmp.lt.s32.totalorder %s14, 3
      %s157 = scalar_select %p156, %s14, 3
      %s158 = smul.addr %s157, 4
      %s159 = smul.addr %s158, 2
      %s160 = scalar_lea.vmem %s3, %s159
      %p161 = scmp.lt.s32.totalorder %s14, 3
      %s162 = scalar_select %p161, %s14, 3
      %s163 = smul.addr %s162, 20
      %s164 = smul.addr %s163, 4
      %s165 = scalar_lea.vmem %s0, %s164
      %p166 = scmp.lt.s32.totalorder %s14, 3
      %s167 = scalar_select %p166, %s14, 3
      %s168 = smul.addr %s167, 4
      %s169 = smul.addr %s168, 2
      %s170 = scalar_lea.vmem %s3, %s169
      %v172 = vld [vmem:[%s165] sm:$0xf]
      %v173 = vld [vmem:[%s165 + $0x8] sm:$0xf]
      %v174 = vld [vmem:[%s165 + $0x10] sm:$0xf]
      %v175 = vld [vmem:[%s165 + $0x18] sm:$0xf]
      %v176 = vld [vmem:[%s165 + $0x20] sm:$0xf]
      %v177 = vld [vmem:[%s165 + $0x28] sm:$0xf]
      %v178 = vld [vmem:[%s165 + $0x30] sm:$0xf]
      %v179 = vld [vmem:[%s165 + $0x38] sm:$0xf]
      %v180 = vld [vmem:[%s1] sm:$0xf]
      %v181 = vld [vmem:[%s1 + $0x4] sm:$0xf]
      %v182 = vld [vmem:[%s1 + $0x8] sm:$0xf]
      %v183 = vld [vmem:[%s1 + $0xc] sm:$0xf]
      %v184 = vld [vmem:[%s1 + $0x10] sm:$0xf]
      %v185 = vld [vmem:[%s1 + $0x14] sm:$0xf]
      %v186 = vld [vmem:[%s1 + $0x18] sm:$0xf]
      %v187 = vld [vmem:[%s1 + $0x1c] sm:$0xf]
      %v188 = vld [vmem:[%s1 + $0x20] sm:$0xf]
      %v189 = vld [vmem:[%s1 + $0x24] sm:$0xf]
      %v190 = vld [vmem:[%s1 + $0x28] sm:$0xf]
      %v191 = vld [vmem:[%s1 + $0x2c] sm:$0xf]
      %v192 = vld [vmem:[%s1 + $0x30] sm:$0xf]
      %v193 = vld [vmem:[%s1 + $0x34] sm:$0xf]
      %v194 = vld [vmem:[%s1 + $0x38] sm:$0xf]
      %v195 = vld [vmem:[%s1 + $0x3c] sm:$0xf]
      %v204 = vunpack.c.l.b16 %v172
      %v205 = vunpack.c.l.b16 %v173
      %v206 = vunpack.c.l.b16 %v174
      %v207 = vunpack.c.l.b16 %v175
      %v208 = vunpack.c.l.b16 %v176
      %v209 = vunpack.c.l.b16 %v177
      %v210 = vunpack.c.l.b16 %v178
      %v211 = vunpack.c.l.b16 %v179
      %v212 = vpack.c.b16 %v205, %v204
      %v213 = vpack.c.b16 %v207, %v206
      %v214 = vpack.c.b16 %v209, %v208
      %v215 = vpack.c.b16 %v211, %v210
      %v236 = vunpack.c.l.b16 %v180
      %v237 = vunpack.c.l.b16 %v181
      %v238 = vunpack.c.l.b16 %v182
      %v239 = vunpack.c.l.b16 %v183
      %v240 = vunpack.c.l.b16 %v184
      %v241 = vunpack.c.l.b16 %v185
      %v242 = vunpack.c.l.b16 %v186
      %v243 = vunpack.c.l.b16 %v187
      %v244 = vunpack.c.l.b16 %v188
      %v245 = vunpack.c.l.b16 %v189
      %v246 = vunpack.c.l.b16 %v190
      %v247 = vunpack.c.l.b16 %v191
      %v248 = vunpack.c.l.b16 %v192
      %v249 = vunpack.c.l.b16 %v193
      %v250 = vunpack.c.l.b16 %v194
      %v251 = vunpack.c.l.b16 %v195
      %v252 = vpack.c.b16 %v237, %v236
      %v253 = vpack.c.b16 %v239, %v238
      %v254 = vpack.c.b16 %v241, %v240
      %v255 = vpack.c.b16 %v243, %v242
      %v256 = vpack.c.b16 %v245, %v244
      %v257 = vpack.c.b16 %v247, %v246
      %v258 = vpack.c.b16 %v249, %v248
      %v259 = vpack.c.b16 %v251, %v250
      %268 = vmatprep.subr.bf16.mxu0 0
      %269 = vmatpush1.bf16.msra.mxu0 %v252
      %270 = vmatprep.subr.bf16.mxu0 0
      %271 = vmatpush1.bf16.msra.mxu0 %v253
      %272 = vmatprep.subr.bf16.mxu0 0
      %273 = vmatpush1.bf16.msra.mxu0 %v254
      %274 = vmatprep.subr.bf16.mxu0 0
      %275 = vmatpush1.bf16.msra.mxu0 %v255
      %276 = vmatprep.subr.bf16.mxu0 0
      %277 = vmatpush1.bf16.msra.mxu0 %v256
      %278 = vmatprep.subr.bf16.mxu0 0
      %279 = vmatpush1.bf16.msra.mxu0 %v257
      %280 = vmatprep.subr.bf16.mxu0 0
      %281 = vmatpush1.bf16.msra.mxu0 %v258
      %282 = vmatprep.subr.bf16.mxu0 0
      %283 = vmatpush1.bf16.msra.mxu0 %v259
      %284 = vmatprep.subr.bf16.mxu0 0
      %285 = vmatpush1.bf16.msra.mxu0 0
      %286 = vmatprep.subr.bf16.mxu0 0
      %287 = vmatpush1.bf16.msra.mxu0 0
      %288 = vmatprep.subr.bf16.mxu0 0
      %289 = vmatpush1.bf16.msra.mxu0 0
      %290 = vmatprep.subr.bf16.mxu0 0
      %291 = vmatpush1.bf16.msra.mxu0 0
      %292 = vmatprep.subr.bf16.mxu0 0
      %293 = vmatpush1.bf16.msra.mxu0 0
      %294 = vmatprep.subr.bf16.mxu0 0
      %295 = vmatpush1.bf16.msra.mxu0 0
      %296 = vmatprep.subr.bf16.mxu0 0
      %297 = vmatpush1.bf16.msra.mxu0 0
      %298 = vmatprep.subr.bf16.mxu0 0
      %299 = vmatpush1.bf16.msra.mxu0 0
      %300 = vmatprep.mubr.bf16.mxu0 0
      %301 = vmatmul.mubr.bf16.gmra.mrb[0].mxu0 %v212
      %v302 = vpop.f32.mrb[0].mxu0
      %v303 = vadd.f32 0.0, %v302
      %v304 = vpop.f32.mrb[0].mxu0
      %v305 = vpop.f32.mrb[0].mxu0
      %v306 = vadd.f32 0.0, %v305
      %v307 = vpop.f32.mrb[0].mxu0
      %308 = vmatprep.mubr.bf16.mxu0 0
      %309 = vmatmul.mubr.bf16.gmra.mrb[0].mxu0 %v213
      %v310 = vpop.f32.mrb[0].mxu0
      %v311 = vadd.f32 0.0, %v310
      %v312 = vpop.f32.mrb[0].mxu0
      %v313 = vpop.f32.mrb[0].mxu0
      %v314 = vadd.f32 0.0, %v313
      %v315 = vpop.f32.mrb[0].mxu0
      %316 = vmatprep.mubr.bf16.mxu0 0
      %317 = vmatmul.mubr.bf16.gmra.mrb[0].mxu0 %v214
      %v318 = vpop.f32.mrb[0].mxu0
      %v319 = vadd.f32 0.0, %v318
      %v320 = vpop.f32.mrb[0].mxu0
      %v321 = vpop.f32.mrb[0].mxu0
      %v322 = vadd.f32 0.0, %v321
      %v323 = vpop.f32.mrb[0].mxu0
      %324 = vmatprep.mubr.bf16.mxu0 0
      %325 = vmatmul.mubr.bf16.gmra.mrb[0].mxu0 %v215
      %v326 = vpop.f32.mrb[0].mxu0
      %v327 = vadd.f32 0.0, %v326
      %v328 = vpop.f32.mrb[0].mxu0
      %v329 = vpop.f32.mrb[0].mxu0
      %v330 = vadd.f32 0.0, %v329
      %v331 = vpop.f32.mrb[0].mxu0
      %332 = vdwg.mxu0
      %333 = vst [vmem:[#allocation2] sm:$0xff] %v303
      %334 = vst [vmem:[#allocation2 + $0x8] sm:$0xff] %v306
      %335 = vst [vmem:[#allocation2 + $0x10] sm:$0xff] %v311
      %336 = vst [vmem:[#allocation2 + $0x18] sm:$0xff] %v314
      %337 = vst [vmem:[#allocation2 + $0x20] sm:$0xff] %v319
      %338 = vst [vmem:[#allocation2 + $0x28] sm:$0xff] %v322
      %339 = vst [vmem:[#allocation2 + $0x30] sm:$0xff] %v327
      %340 = vst [vmem:[#allocation2 + $0x38] sm:$0xff] %v330
      %v341 = vld [vmem:[%s165] sm:$0xf]
      %v342 = vld [vmem:[%s165 + $0x4] sm:$0x1]
      %v343 = vld [vmem:[%s165 + $0x8] sm:$0xf]
      %v344 = vld [vmem:[%s165 + $0xc] sm:$0x1]
      %v345 = vld [vmem:[%s165 + $0x10] sm:$0xf]
      %v346 = vld [vmem:[%s165 + $0x14] sm:$0x1]
      %v347 = vld [vmem:[%s165 + $0x18] sm:$0xf]
      %v348 = vld [vmem:[%s165 + $0x1c] sm:$0x1]
      %v349 = vld [vmem:[%s165 + $0x20] sm:$0xf]
      %v350 = vld [vmem:[%s165 + $0x24] sm:$0x1]
      %v351 = vld [vmem:[%s165 + $0x28] sm:$0xf]
      %v352 = vld [vmem:[%s165 + $0x2c] sm:$0x1]
      %v353 = vld [vmem:[%s165 + $0x30] sm:$0xf]
      %v354 = vld [vmem:[%s165 + $0x34] sm:$0x1]
      %v355 = vld [vmem:[%s165 + $0x38] sm:$0xf]
      %v356 = vld [vmem:[%s165 + $0x3c] sm:$0x1]
      %vm357 = vsmask.f32 3328
      %vm358 = vsmask.f32 7440
      %vm359 = vmor %vm357, %vm358
      %v361 = vshrl.u32 %v341, 16
      %v363 = vrot.slane %v361, 4
      %v364 = vshll.u32 %v341, 16
      %v366 = vrot.slane %v364, 5
      %v367 = vor.u32 %v363, %v366
      %v368 = vrot.slane %v367, 4
      %v370 = vshll.u32 %v342, 16
      %v372 = vrot.slane %v370, 5
      %v373 = vsel %vm359, %v368, %v372
      %v375 = vshrl.u32 %v343, 16
      %v377 = vrot.slane %v375, 4
      %v378 = vshll.u32 %v343, 16
      %v380 = vrot.slane %v378, 5
      %v381 = vor.u32 %v377, %v380
      %v382 = vrot.slane %v381, 4
      %v384 = vshll.u32 %v344, 16
      %v386 = vrot.slane %v384, 5
      %v387 = vsel %vm359, %v382, %v386
      %v389 = vshrl.u32 %v345, 16
      %v391 = vrot.slane %v389, 4
      %v392 = vshll.u32 %v345, 16
      %v394 = vrot.slane %v392, 5
      %v395 = vor.u32 %v391, %v394
      %v396 = vrot.slane %v395, 4
      %v398 = vshll.u32 %v346, 16
      %v400 = vrot.slane %v398, 5
      %v401 = vsel %vm359, %v396, %v400
      %v403 = vshrl.u32 %v347, 16
      %v405 = vrot.slane %v403, 4
      %v406 = vshll.u32 %v347, 16
      %v408 = vrot.slane %v406, 5
      %v409 = vor.u32 %v405, %v408
      %v410 = vrot.slane %v409, 4
      %v412 = vshll.u32 %v348, 16
      %v414 = vrot.slane %v412, 5
      %v415 = vsel %vm359, %v410, %v414
      %v417 = vshrl.u32 %v349, 16
      %v419 = vrot.slane %v417, 4
      %v420 = vshll.u32 %v349, 16
      %v422 = vrot.slane %v420, 5
      %v423 = vor.u32 %v419, %v422
      %v424 = vrot.slane %v423, 4
      %v426 = vshll.u32 %v350, 16
      %v428 = vrot.slane %v426, 5
      %v429 = vsel %vm359, %v424, %v428
      %v431 = vshrl.u32 %v351, 16
      %v433 = vrot.slane %v431, 4
      %v434 = vshll.u32 %v351, 16
      %v436 = vrot.slane %v434, 5
      %v437 = vor.u32 %v433, %v436
      %v438 = vrot.slane %v437, 4
      %v440 = vshll.u32 %v352, 16
      %v442 = vrot.slane %v440, 5
      %v443 = vsel %vm359, %v438, %v442
      %v445 = vshrl.u32 %v353, 16
      %v447 = vrot.slane %v445, 4
      %v448 = vshll.u32 %v353, 16
      %v450 = vrot.slane %v448, 5
      %v451 = vor.u32 %v447, %v450
      %v452 = vrot.slane %v451, 4
      %v454 = vshll.u32 %v354, 16
      %v456 = vrot.slane %v454, 5
      %v457 = vsel %vm359, %v452, %v456
      %v459 = vshrl.u32 %v355, 16
      %v461 = vrot.slane %v459, 4
      %v462 = vshll.u32 %v355, 16
      %v464 = vrot.slane %v462, 5
      %v465 = vor.u32 %v461, %v464
      %v466 = vrot.slane %v465, 4
      %v468 = vshll.u32 %v356, 16
      %v470 = vrot.slane %v468, 5
      %v471 = vsel %vm359, %v466, %v470
      %s472 = scalar_lea.vmem %s1, 64
      %v473 = vld [vmem:[%s472] sm:$0xf]
      %v474 = vld [vmem:[%s472 + $0x4] sm:$0xf]
      %v475 = vld [vmem:[%s472 + $0x8] sm:$0xf]
      %v476 = vld [vmem:[%s472 + $0xc] sm:$0xf]
      %v477 = vld [vmem:[%s472 + $0x10] sm:$0xf]
      %v478 = vld [vmem:[%s472 + $0x14] sm:$0xf]
      %v479 = vld [vmem:[%s472 + $0x18] sm:$0xf]
      %v480 = vld [vmem:[%s472 + $0x1c] sm:$0xf]
      %v481 = vld [vmem:[%s472 + $0x20] sm:$0xf]
      %v482 = vld [vmem:[%s472 + $0x24] sm:$0xf]
      %v483 = vld [vmem:[%s472 + $0x28] sm:$0xf]
      %v484 = vld [vmem:[%s472 + $0x2c] sm:$0xf]
      %v485 = vld [vmem:[%s472 + $0x30] sm:$0xf]
      %v486 = vld [vmem:[%s472 + $0x34] sm:$0xf]
      %v487 = vld [vmem:[%s472 + $0x38] sm:$0xf]
      %v488 = vld [vmem:[%s472 + $0x3c] sm:$0xf]
      %v489 = vunpack.c.l.b16 %v373
      %v490 = vunpack.c.l.b16 %v387
      %v491 = vunpack.c.l.b16 %v401
      %v492 = vunpack.c.l.b16 %v415
      %v493 = vunpack.c.l.b16 %v429
      %v494 = vunpack.c.l.b16 %v443
      %v495 = vunpack.c.l.b16 %v457
      %v496 = vunpack.c.l.b16 %v471
      %v497 = vpack.c.b16 %v490, %v489
      %v498 = vpack.c.b16 %v492, %v491
      %v499 = vpack.c.b16 %v494, %v493
      %v500 = vpack.c.b16 %v496, %v495
      %v521 = vunpack.c.l.b16 %v473
      %v522 = vunpack.c.l.b16 %v474
      %v523 = vunpack.c.l.b16 %v475
      %v524 = vunpack.c.l.b16 %v476
      %v525 = vunpack.c.l.b16 %v477
      %v526 = vunpack.c.l.b16 %v478
      %v527 = vunpack.c.l.b16 %v479
      %v528 = vunpack.c.l.b16 %v480
      %v529 = vunpack.c.l.b16 %v481
      %v530 = vunpack.c.l.b16 %v482
      %v531 = vunpack.c.l.b16 %v483
      %v532 = vunpack.c.l.b16 %v484
      %v533 = vunpack.c.l.b16 %v485
      %v534 = vunpack.c.l.b16 %v486
      %v535 = vunpack.c.l.b16 %v487
      %v536 = vunpack.c.l.b16 %v488
      %v537 = vpack.c.b16 %v522, %v521
      %v538 = vpack.c.b16 %v524, %v523
      %v539 = vpack.c.b16 %v526, %v525
      %v540 = vpack.c.b16 %v528, %v527
      %v541 = vpack.c.b16 %v530, %v529
      %v542 = vpack.c.b16 %v532, %v531
      %v543 = vpack.c.b16 %v534, %v533
      %v544 = vpack.c.b16 %v536, %v535
      %553 = vmatprep.subr.bf16.mxu0 0
      %554 = vmatpush1.bf16.msra.mxu0 %v537
      %555 = vmatprep.subr.bf16.mxu0 0
      %556 = vmatpush1.bf16.msra.mxu0 %v538
      %557 = vmatprep.subr.bf16.mxu0 0
      %558 = vmatpush1.bf16.msra.mxu0 %v539
      %559 = vmatprep.subr.bf16.mxu0 0
      %560 = vmatpush1.bf16.msra.mxu0 %v540
      %561 = vmatprep.subr.bf16.mxu0 0
      %562 = vmatpush1.bf16.msra.mxu0 %v541
      %563 = vmatprep.subr.bf16.mxu0 0
      %564 = vmatpush1.bf16.msra.mxu0 %v542
      %565 = vmatprep.subr.bf16.mxu0 0
      %566 = vmatpush1.bf16.msra.mxu0 %v543
      %567 = vmatprep.subr.bf16.mxu0 0
      %568 = vmatpush1.bf16.msra.mxu0 %v544
      %569 = vmatprep.subr.bf16.mxu0 0
      %570 = vmatpush1.bf16.msra.mxu0 0
      %571 = vmatprep.subr.bf16.mxu0 0
      %572 = vmatpush1.bf16.msra.mxu0 0
      %573 = vmatprep.subr.bf16.mxu0 0
      %574 = vmatpush1.bf16.msra.mxu0 0
      %575 = vmatprep.subr.bf16.mxu0 0
      %576 = vmatpush1.bf16.msra.mxu0 0
      %577 = vmatprep.subr.bf16.mxu0 0
      %578 = vmatpush1.bf16.msra.mxu0 0
      %579 = vmatprep.subr.bf16.mxu0 0
      %580 = vmatpush1.bf16.msra.mxu0 0
      %581 = vmatprep.subr.bf16.mxu0 0
      %582 = vmatpush1.bf16.msra.mxu0 0
      %583 = vmatprep.subr.bf16.mxu0 0
      %584 = vmatpush1.bf16.msra.mxu0 0
      %585 = vmatprep.mubr.bf16.mxu0 0
      %586 = vmatmul.mubr.bf16.gmra.mrb[0].mxu0 %v497
      %v587 = vpop.f32.mrb[0].mxu0
      %v588 = vadd.f32 0.0, %v587
      %v589 = vpop.f32.mrb[0].mxu0
      %v590 = vpop.f32.mrb[0].mxu0
      %v591 = vadd.f32 0.0, %v590
      %v592 = vpop.f32.mrb[0].mxu0
      %593 = vmatprep.mubr.bf16.mxu0 0
      %594 = vmatmul.mubr.bf16.gmra.mrb[0].mxu0 %v498
      %v595 = vpop.f32.mrb[0].mxu0
      %v596 = vadd.f32 0.0, %v595
      %v597 = vpop.f32.mrb[0].mxu0
      %v598 = vpop.f32.mrb[0].mxu0
      %v599 = vadd.f32 0.0, %v598
      %v600 = vpop.f32.mrb[0].mxu0
      %601 = vmatprep.mubr.bf16.mxu0 0
      %602 = vmatmul.mubr.bf16.gmra.mrb[0].mxu0 %v499
      %v603 = vpop.f32.mrb[0].mxu0
      %v604 = vadd.f32 0.0, %v603
      %v605 = vpop.f32.mrb[0].mxu0
      %v606 = vpop.f32.mrb[0].mxu0
      %v607 = vadd.f32 0.0, %v606
      %v608 = vpop.f32.mrb[0].mxu0
      %609 = vmatprep.mubr.bf16.mxu0 0
      %610 = vmatmul.mubr.bf16.gmra.mrb[0].mxu0 %v500
      %v611 = vpop.f32.mrb[0].mxu0
      %v612 = vadd.f32 0.0, %v611
      %v613 = vpop.f32.mrb[0].mxu0
      %v614 = vpop.f32.mrb[0].mxu0
      %v615 = vadd.f32 0.0, %v614
      %v616 = vpop.f32.mrb[0].mxu0
      %617 = vdwg.mxu0
      %v618 = vld [vmem:[#allocation2] sm:$0xff]
      %v619 = vld [vmem:[#allocation2 + $0x8] sm:$0xff]
      %v620 = vld [vmem:[#allocation2 + $0x10] sm:$0xff]
      %v621 = vld [vmem:[#allocation2 + $0x18] sm:$0xff]
      %v622 = vld [vmem:[#allocation2 + $0x20] sm:$0xff]
      %v623 = vld [vmem:[#allocation2 + $0x28] sm:$0xff]
      %v624 = vld [vmem:[#allocation2 + $0x30] sm:$0xff]
      %v625 = vld [vmem:[#allocation2 + $0x38] sm:$0xff]
      %v626 = vadd.f32 %v618, %v588
      %v627 = vadd.f32 %v619, %v591
      %v628 = vadd.f32 %v620, %v596
      %v629 = vadd.f32 %v621, %v599
      %v630 = vadd.f32 %v622, %v604
      %v631 = vadd.f32 %v623, %v607
      %v632 = vadd.f32 %v624, %v612
      %v633 = vadd.f32 %v625, %v615
      %634 = vst [vmem:[#allocation2] sm:$0xff] %v626
      %635 = vst [vmem:[#allocation2 + $0x8] sm:$0xff] %v627
      %636 = vst [vmem:[#allocation2 + $0x10] sm:$0xff] %v628
      %637 = vst [vmem:[#allocation2 + $0x18] sm:$0xff] %v629
      %638 = vst [vmem:[#allocation2 + $0x20] sm:$0xff] %v630
      %639 = vst [vmem:[#allocation2 + $0x28] sm:$0xff] %v631
      %640 = vst [vmem:[#allocation2 + $0x30] sm:$0xff] %v632
      %641 = vst [vmem:[#allocation2 + $0x38] sm:$0xff] %v633
      %v642 = vld [vmem:[%s165] sm:$0xe]
      %v643 = vld [vmem:[%s165 + $0x4] sm:$0x1]
      %v644 = vld [vmem:[%s165 + $0x8] sm:$0xe]
      %v645 = vld [vmem:[%s165 + $0xc] sm:$0x1]
      %v646 = vld [vmem:[%s165 + $0x10] sm:$0xe]
      %v647 = vld [vmem:[%s165 + $0x14] sm:$0x1]
      %v648 = vld [vmem:[%s165 + $0x18] sm:$0xe]
      %v649 = vld [vmem:[%s165 + $0x1c] sm:$0x1]
      %v650 = vld [vmem:[%s165 + $0x20] sm:$0xe]
      %v651 = vld [vmem:[%s165 + $0x24] sm:$0x1]
      %v652 = vld [vmem:[%s165 + $0x28] sm:$0xe]
      %v653 = vld [vmem:[%s165 + $0x2c] sm:$0x1]
      %v654 = vld [vmem:[%s165 + $0x30] sm:$0xe]
      %v655 = vld [vmem:[%s165 + $0x34] sm:$0x1]
      %v656 = vld [vmem:[%s165 + $0x38] sm:$0xe]
      %v657 = vld [vmem:[%s165 + $0x3c] sm:$0x1]
      %vm674 = vcmask 1042432
      %vm675 = vcmask 1046532
      %vm676 = vmor %vm674, %vm675
      %v677 = vrot.slane %v642, 5
      %v678 = vrot.slane %v677, 4
      %v679 = vrot.slane %v643, 5
      %v680 = vsel %vm676, %v678, %v679
      %v681 = vrot.slane %v644, 5
      %v682 = vrot.slane %v681, 4
      %v683 = vrot.slane %v645, 5
      %v684 = vsel %vm676, %v682, %v683
      %v685 = vrot.slane %v646, 5
      %v686 = vrot.slane %v685, 4
      %v687 = vrot.slane %v647, 5
      %v688 = vsel %vm676, %v686, %v687
      %v689 = vrot.slane %v648, 5
      %v690 = vrot.slane %v689, 4
      %v691 = vrot.slane %v649, 5
      %v692 = vsel %vm676, %v690, %v691
      %v693 = vrot.slane %v650, 5
      %v694 = vrot.slane %v693, 4
      %v695 = vrot.slane %v651, 5
      %v696 = vsel %vm676, %v694, %v695
      %v697 = vrot.slane %v652, 5
      %v698 = vrot.slane %v697, 4
      %v699 = vrot.slane %v653, 5
      %v700 = vsel %vm676, %v698, %v699
      %v701 = vrot.slane %v654, 5
      %v702 = vrot.slane %v701, 4
      %v703 = vrot.slane %v655, 5
      %v704 = vsel %vm676, %v702, %v703
      %v705 = vrot.slane %v656, 5
      %v706 = vrot.slane %v705, 4
      %v707 = vrot.slane %v657, 5
      %v708 = vsel %vm676, %v706, %v707
      %s709 = scalar_lea.vmem %s1, 128
      %v710 = vld [vmem:[%s709] sm:$0xf]
      %v711 = vld [vmem:[%s709 + $0x4] sm:$0xf]
      %v712 = vld [vmem:[%s709 + $0x8] sm:$0xf]
      %v713 = vld [vmem:[%s709 + $0xc] sm:$0xf]
      %v714 = vld [vmem:[%s709 + $0x10] sm:$0xf]
      %v715 = vld [vmem:[%s709 + $0x14] sm:$0xf]
      %v716 = vld [vmem:[%s709 + $0x18] sm:$0xf]
      %v717 = vld [vmem:[%s709 + $0x1c] sm:$0xf]
      %v718 = vld [vmem:[%s709 + $0x20] sm:$0xf]
      %v719 = vld [vmem:[%s709 + $0x24] sm:$0xf]
      %v720 = vld [vmem:[%s709 + $0x28] sm:$0xf]
      %v721 = vld [vmem:[%s709 + $0x2c] sm:$0xf]
      %v722 = vld [vmem:[%s709 + $0x30] sm:$0xf]
      %v723 = vld [vmem:[%s709 + $0x34] sm:$0xf]
      %v724 = vld [vmem:[%s709 + $0x38] sm:$0xf]
      %v725 = vld [vmem:[%s709 + $0x3c] sm:$0xf]
      %v726 = vunpack.c.l.b16 %v680
      %v727 = vunpack.c.l.b16 %v684
      %v728 = vunpack.c.l.b16 %v688
      %v729 = vunpack.c.l.b16 %v692
      %v730 = vunpack.c.l.b16 %v696
      %v731 = vunpack.c.l.b16 %v700
      %v732 = vunpack.c.l.b16 %v704
      %v733 = vunpack.c.l.b16 %v708
      %v734 = vpack.c.b16 %v727, %v726
      %v735 = vpack.c.b16 %v729, %v728
      %v736 = vpack.c.b16 %v731, %v730
      %v737 = vpack.c.b16 %v733, %v732
      %v758 = vunpack.c.l.b16 %v710
      %v759 = vunpack.c.l.b16 %v711
      %v760 = vunpack.c.l.b16 %v712
      %v761 = vunpack.c.l.b16 %v713
      %v762 = vunpack.c.l.b16 %v714
      %v763 = vunpack.c.l.b16 %v715
      %v764 = vunpack.c.l.b16 %v716
      %v765 = vunpack.c.l.b16 %v717
      %v766 = vunpack.c.l.b16 %v718
      %v767 = vunpack.c.l.b16 %v719
      %v768 = vunpack.c.l.b16 %v720
      %v769 = vunpack.c.l.b16 %v721
      %v770 = vunpack.c.l.b16 %v722
      %v771 = vunpack.c.l.b16 %v723
      %v772 = vunpack.c.l.b16 %v724
      %v773 = vunpack.c.l.b16 %v725
      %v774 = vpack.c.b16 %v759, %v758
      %v775 = vpack.c.b16 %v761, %v760
      %v776 = vpack.c.b16 %v763, %v762
      %v777 = vpack.c.b16 %v765, %v764
      %v778 = vpack.c.b16 %v767, %v766
      %v779 = vpack.c.b16 %v769, %v768
      %v780 = vpack.c.b16 %v771, %v770
      %v781 = vpack.c.b16 %v773, %v772
      %790 = vmatprep.subr.bf16.mxu0 0
      %791 = vmatpush1.bf16.msra.mxu0 %v774
      %792 = vmatprep.subr.bf16.mxu0 0
      %793 = vmatpush1.bf16.msra.mxu0 %v775
      %794 = vmatprep.subr.bf16.mxu0 0
      %795 = vmatpush1.bf16.msra.mxu0 %v776
      %796 = vmatprep.subr.bf16.mxu0 0
      %797 = vmatpush1.bf16.msra.mxu0 %v777
      %798 = vmatprep.subr.bf16.mxu0 0
      %799 = vmatpush1.bf16.msra.mxu0 %v778
      %800 = vmatprep.subr.bf16.mxu0 0
      %801 = vmatpush1.bf16.msra.mxu0 %v779
      %802 = vmatprep.subr.bf16.mxu0 0
      %803 = vmatpush1.bf16.msra.mxu0 %v780
      %804 = vmatprep.subr.bf16.mxu0 0
      %805 = vmatpush1.bf16.msra.mxu0 %v781
      %806 = vmatprep.subr.bf16.mxu0 0
      %807 = vmatpush1.bf16.msra.mxu0 0
      %808 = vmatprep.subr.bf16.mxu0 0
      %809 = vmatpush1.bf16.msra.mxu0 0
      %810 = vmatprep.subr.bf16.mxu0 0
      %811 = vmatpush1.bf16.msra.mxu0 0
      %812 = vmatprep.subr.bf16.mxu0 0
      %813 = vmatpush1.bf16.msra.mxu0 0
      %814 = vmatprep.subr.bf16.mxu0 0
      %815 = vmatpush1.bf16.msra.mxu0 0
      %816 = vmatprep.subr.bf16.mxu0 0
      %817 = vmatpush1.bf16.msra.mxu0 0
      %818 = vmatprep.subr.bf16.mxu0 0
      %819 = vmatpush1.bf16.msra.mxu0 0
      %820 = vmatprep.subr.bf16.mxu0 0
      %821 = vmatpush1.bf16.msra.mxu0 0
      %822 = vmatprep.mubr.bf16.mxu0 0
      %823 = vmatmul.mubr.bf16.gmra.mrb[0].mxu0 %v734
      %v824 = vpop.f32.mrb[0].mxu0
      %v825 = vadd.f32 0.0, %v824
      %v826 = vpop.f32.mrb[0].mxu0
      %v827 = vpop.f32.mrb[0].mxu0
      %v828 = vadd.f32 0.0, %v827
      %v829 = vpop.f32.mrb[0].mxu0
      %830 = vmatprep.mubr.bf16.mxu0 0
      %831 = vmatmul.mubr.bf16.gmra.mrb[0].mxu0 %v735
      %v832 = vpop.f32.mrb[0].mxu0
      %v833 = vadd.f32 0.0, %v832
      %v834 = vpop.f32.mrb[0].mxu0
      %v835 = vpop.f32.mrb[0].mxu0
      %v836 = vadd.f32 0.0, %v835
      %v837 = vpop.f32.mrb[0].mxu0
      %838 = vmatprep.mubr.bf16.mxu0 0
      %839 = vmatmul.mubr.bf16.gmra.mrb[0].mxu0 %v736
      %v840 = vpop.f32.mrb[0].mxu0
      %v841 = vadd.f32 0.0, %v840
      %v842 = vpop.f32.mrb[0].mxu0
      %v843 = vpop.f32.mrb[0].mxu0
      %v844 = vadd.f32 0.0, %v843
      %v845 = vpop.f32.mrb[0].mxu0
      %846 = vmatprep.mubr.bf16.mxu0 0
      %847 = vmatmul.mubr.bf16.gmra.mrb[0].mxu0 %v737
      %v848 = vpop.f32.mrb[0].mxu0
      %v849 = vadd.f32 0.0, %v848
      %v850 = vpop.f32.mrb[0].mxu0
      %v851 = vpop.f32.mrb[0].mxu0
      %v852 = vadd.f32 0.0, %v851
      %v853 = vpop.f32.mrb[0].mxu0
      %854 = vdwg.mxu0
      %v855 = vld [vmem:[#allocation2] sm:$0xff]
      %v856 = vld [vmem:[#allocation2 + $0x8] sm:$0xff]
      %v857 = vld [vmem:[#allocation2 + $0x10] sm:$0xff]
      %v858 = vld [vmem:[#allocation2 + $0x18] sm:$0xff]
      %v859 = vld [vmem:[#allocation2 + $0x20] sm:$0xff]
      %v860 = vld [vmem:[#allocation2 + $0x28] sm:$0xff]
      %v861 = vld [vmem:[#allocation2 + $0x30] sm:$0xff]
      %v862 = vld [vmem:[#allocation2 + $0x38] sm:$0xff]
      %v863 = vadd.f32 %v855, %v825
      %v864 = vadd.f32 %v856, %v828
      %v865 = vadd.f32 %v857, %v833
      %v866 = vadd.f32 %v858, %v836
      %v867 = vadd.f32 %v859, %v841
      %v868 = vadd.f32 %v860, %v844
      %v869 = vadd.f32 %v861, %v849
      %v870 = vadd.f32 %v862, %v852
      %871 = vst [vmem:[#allocation2] sm:$0xff] %v863
      %872 = vst [vmem:[#allocation2 + $0x8] sm:$0xff] %v864
      %873 = vst [vmem:[#allocation2 + $0x10] sm:$0xff] %v865
      %874 = vst [vmem:[#allocation2 + $0x18] sm:$0xff] %v866
      %875 = vst [vmem:[#allocation2 + $0x20] sm:$0xff] %v867
      %876 = vst [vmem:[#allocation2 + $0x28] sm:$0xff] %v868
      %877 = vst [vmem:[#allocation2 + $0x30] sm:$0xff] %v869
      %878 = vst [vmem:[#allocation2 + $0x38] sm:$0xff] %v870
      %s879 = scalar_lea.vmem %s165, 8
      %v880 = vld [vmem:[%s879] sm:$0xf]
      %v881 = vld [vmem:[%s879 + $0x8] sm:$0xf]
      %v882 = vld [vmem:[%s879 + $0x10] sm:$0xf]
      %v883 = vld [vmem:[%s879 + $0x18] sm:$0xf]
      %v884 = vld [vmem:[%s879 + $0x20] sm:$0xf]
      %v885 = vld [vmem:[%s879 + $0x28] sm:$0xf]
      %v886 = vld [vmem:[%s879 + $0x30] sm:$0xf]
      %v887 = vld [vmem:[%s879 + $0x38] sm:$0xf]
      %s888 = scalar_lea.vmem %s1, 192
      %v889 = vld [vmem:[%s888] sm:$0xf]
      %v890 = vld [vmem:[%s888 + $0x4] sm:$0xf]
      %v891 = vld [vmem:[%s888 + $0x8] sm:$0xf]
      %v892 = vld [vmem:[%s888 + $0xc] sm:$0xf]
      %v893 = vld [vmem:[%s888 + $0x10] sm:$0xf]
      %v894 = vld [vmem:[%s888 + $0x14] sm:$0xf]
      %v895 = vld [vmem:[%s888 + $0x18] sm:$0xf]
      %v896 = vld [vmem:[%s888 + $0x1c] sm:$0xf]
      %v897 = vld [vmem:[%s888 + $0x20] sm:$0xf]
      %v898 = vld [vmem:[%s888 + $0x24] sm:$0xf]
      %v899 = vld [vmem:[%s888 + $0x28] sm:$0xf]
      %v900 = vld [vmem:[%s888 + $0x2c] sm:$0xf]
      %v901 = vld [vmem:[%s888 + $0x30] sm:$0xf]
      %v902 = vld [vmem:[%s888 + $0x34] sm:$0xf]
      %v903 = vld [vmem:[%s888 + $0x38] sm:$0xf]
      %v904 = vld [vmem:[%s888 + $0x3c] sm:$0xf]
      %v913 = vunpack.c.l.b16 %v880
      %v914 = vunpack.c.l.b16 %v881
      %v915 = vunpack.c.l.b16 %v882
      %v916 = vunpack.c.l.b16 %v883
      %v917 = vunpack.c.l.b16 %v884
      %v918 = vunpack.c.l.b16 %v885
      %v919 = vunpack.c.l.b16 %v886
      %v920 = vunpack.c.l.b16 %v887
      %v921 = vpack.c.b16 %v914, %v913
      %v922 = vpack.c.b16 %v916, %v915
      %v923 = vpack.c.b16 %v918, %v917
      %v924 = vpack.c.b16 %v920, %v919
      %v945 = vunpack.c.l.b16 %v889
      %v946 = vunpack.c.l.b16 %v890
      %v947 = vunpack.c.l.b16 %v891
      %v948 = vunpack.c.l.b16 %v892
      %v949 = vunpack.c.l.b16 %v893
      %v950 = vunpack.c.l.b16 %v894
      %v951 = vunpack.c.l.b16 %v895
      %v952 = vunpack.c.l.b16 %v896
      %v953 = vunpack.c.l.b16 %v897
      %v954 = vunpack.c.l.b16 %v898
      %v955 = vunpack.c.l.b16 %v899
      %v956 = vunpack.c.l.b16 %v900
      %v957 = vunpack.c.l.b16 %v901
      %v958 = vunpack.c.l.b16 %v902
      %v959 = vunpack.c.l.b16 %v903
      %v960 = vunpack.c.l.b16 %v904
      %v961 = vpack.c.b16 %v946, %v945
      %v962 = vpack.c.b16 %v948, %v947
      %v963 = vpack.c.b16 %v950, %v949
      %v964 = vpack.c.b16 %v952, %v951
      %v965 = vpack.c.b16 %v954, %v953
      %v966 = vpack.c.b16 %v956, %v955
      %v967 = vpack.c.b16 %v958, %v957
      %v968 = vpack.c.b16 %v960, %v959
      %977 = vmatprep.subr.bf16.mxu0 0
      %978 = vmatpush1.bf16.msra.mxu0 %v961
      %979 = vmatprep.subr.bf16.mxu0 0
      %980 = vmatpush1.bf16.msra.mxu0 %v962
      %981 = vmatprep.subr.bf16.mxu0 0
      %982 = vmatpush1.bf16.msra.mxu0 %v963
      %983 = vmatprep.subr.bf16.mxu0 0
      %984 = vmatpush1.bf16.msra.mxu0 %v964
      %985 = vmatprep.subr.bf16.mxu0 0
      %986 = vmatpush1.bf16.msra.mxu0 %v965
      %987 = vmatprep.subr.bf16.mxu0 0
      %988 = vmatpush1.bf16.msra.mxu0 %v966
      %989 = vmatprep.subr.bf16.mxu0 0
      %990 = vmatpush1.bf16.msra.mxu0 %v967
      %991 = vmatprep.subr.bf16.mxu0 0
      %992 = vmatpush1.bf16.msra.mxu0 %v968
      %993 = vmatprep.subr.bf16.mxu0 0
      %994 = vmatpush1.bf16.msra.mxu0 0
      %995 = vmatprep.subr.bf16.mxu0 0
      %996 = vmatpush1.bf16.msra.mxu0 0
      %997 = vmatprep.subr.bf16.mxu0 0
      %998 = vmatpush1.bf16.msra.mxu0 0
      %999 = vmatprep.subr.bf16.mxu0 0
      %1000 = vmatpush1.bf16.msra.mxu0 0
      %1001 = vmatprep.subr.bf16.mxu0 0
      %1002 = vmatpush1.bf16.msra.mxu0 0
      %1003 = vmatprep.subr.bf16.mxu0 0
      %1004 = vmatpush1.bf16.msra.mxu0 0
      %1005 = vmatprep.subr.bf16.mxu0 0
      %1006 = vmatpush1.bf16.msra.mxu0 0
      %1007 = vmatprep.subr.bf16.mxu0 0
      %1008 = vmatpush1.bf16.msra.mxu0 0
      %1009 = vmatprep.mubr.bf16.mxu0 0
      %1010 = vmatmul.mubr.bf16.gmra.mrb[0].mxu0 %v921
      %v1011 = vpop.f32.mrb[0].mxu0
      %v1012 = vadd.f32 0.0, %v1011
      %v1013 = vpop.f32.mrb[0].mxu0
      %v1014 = vpop.f32.mrb[0].mxu0
      %v1015 = vadd.f32 0.0, %v1014
      %v1016 = vpop.f32.mrb[0].mxu0
      %1017 = vmatprep.mubr.bf16.mxu0 0
      %1018 = vmatmul.mubr.bf16.gmra.mrb[0].mxu0 %v922
      %v1019 = vpop.f32.mrb[0].mxu0
      %v1020 = vadd.f32 0.0, %v1019
      %v1021 = vpop.f32.mrb[0].mxu0
      %v1022 = vpop.f32.mrb[0].mxu0
      %v1023 = vadd.f32 0.0, %v1022
      %v1024 = vpop.f32.mrb[0].mxu0
      %1025 = vmatprep.mubr.bf16.mxu0 0
      %1026 = vmatmul.mubr.bf16.gmra.mrb[0].mxu0 %v923
      %v1027 = vpop.f32.mrb[0].mxu0
      %v1028 = vadd.f32 0.0, %v1027
      %v1029 = vpop.f32.mrb[0].mxu0
      %v1030 = vpop.f32.mrb[0].mxu0
      %v1031 = vadd.f32 0.0, %v1030
      %v1032 = vpop.f32.mrb[0].mxu0
      %1033 = vmatprep.mubr.bf16.mxu0 0
      %1034 = vmatmul.mubr.bf16.gmra.mrb[0].mxu0 %v924
      %v1035 = vpop.f32.mrb[0].mxu0
      %v1036 = vadd.f32 0.0, %v1035
      %v1037 = vpop.f32.mrb[0].mxu0
      %v1038 = vpop.f32.mrb[0].mxu0
      %v1039 = vadd.f32 0.0, %v1038
      %v1040 = vpop.f32.mrb[0].mxu0
      %1041 = vdwg.mxu0
      %v1042 = vld [vmem:[#allocation2] sm:$0xff]
      %v1043 = vld [vmem:[#allocation2 + $0x8] sm:$0xff]
      %v1044 = vld [vmem:[#allocation2 + $0x10] sm:$0xff]
      %v1045 = vld [vmem:[#allocation2 + $0x18] sm:$0xff]
      %v1046 = vld [vmem:[#allocation2 + $0x20] sm:$0xff]
      %v1047 = vld [vmem:[#allocation2 + $0x28] sm:$0xff]
      %v1048 = vld [vmem:[#allocation2 + $0x30] sm:$0xff]
      %v1049 = vld [vmem:[#allocation2 + $0x38] sm:$0xff]
      %v1050 = vadd.f32 %v1042, %v1012
      %v1051 = vadd.f32 %v1043, %v1015
      %v1052 = vadd.f32 %v1044, %v1020
      %v1053 = vadd.f32 %v1045, %v1023
      %v1054 = vadd.f32 %v1046, %v1028
      %v1055 = vadd.f32 %v1047, %v1031
      %v1056 = vadd.f32 %v1048, %v1036
      %v1057 = vadd.f32 %v1049, %v1039
      %1058 = vst [vmem:[#allocation2] sm:$0xff] %v1050
      %1059 = vst [vmem:[#allocation2 + $0x8] sm:$0xff] %v1051
      %1060 = vst [vmem:[#allocation2 + $0x10] sm:$0xff] %v1052
      %1061 = vst [vmem:[#allocation2 + $0x18] sm:$0xff] %v1053
      %1062 = vst [vmem:[#allocation2 + $0x20] sm:$0xff] %v1054
      %1063 = vst [vmem:[#allocation2 + $0x28] sm:$0xff] %v1055
      %1064 = vst [vmem:[#allocation2 + $0x30] sm:$0xff] %v1056
      %1065 = vst [vmem:[#allocation2 + $0x38] sm:$0xff] %v1057
      %v1066 = vld [vmem:[%s879] sm:$0xf]
      %v1067 = vld [vmem:[%s879 + $0x4] sm:$0x1]
      %v1068 = vld [vmem:[%s879 + $0x8] sm:$0xf]
      %v1069 = vld [vmem:[%s879 + $0xc] sm:$0x1]
      %v1070 = vld [vmem:[%s879 + $0x10] sm:$0xf]
      %v1071 = vld [vmem:[%s879 + $0x14] sm:$0x1]
      %v1072 = vld [vmem:[%s879 + $0x18] sm:$0xf]
      %v1073 = vld [vmem:[%s879 + $0x1c] sm:$0x1]
      %v1074 = vld [vmem:[%s879 + $0x20] sm:$0xf]
      %v1075 = vld [vmem:[%s879 + $0x24] sm:$0x1]
      %v1076 = vld [vmem:[%s879 + $0x28] sm:$0xf]
      %v1077 = vld [vmem:[%s879 + $0x2c] sm:$0x1]
      %v1078 = vld [vmem:[%s879 + $0x30] sm:$0xf]
      %v1079 = vld [vmem:[%s879 + $0x34] sm:$0x1]
      %v1080 = vld [vmem:[%s879 + $0x38] sm:$0xf]
      %v1081 = vld [vmem:[%s879 + $0x3c] sm:$0x1]
      %v1083 = vshrl.u32 %v1066, 16
      %v1085 = vrot.slane %v1083, 4
      %v1086 = vshll.u32 %v1066, 16
      %v1088 = vrot.slane %v1086, 5
      %v1089 = vor.u32 %v1085, %v1088
      %v1090 = vrot.slane %v1089, 4
      %v1092 = vshll.u32 %v1067, 16
      %v1094 = vrot.slane %v1092, 5
      %v1095 = vsel %vm359, %v1090, %v1094
      %v1097 = vshrl.u32 %v1068, 16
      %v1099 = vrot.slane %v1097, 4
      %v1100 = vshll.u32 %v1068, 16
      %v1102 = vrot.slane %v1100, 5
      %v1103 = vor.u32 %v1099, %v1102
      %v1104 = vrot.slane %v1103, 4
      %v1106 = vshll.u32 %v1069, 16
      %v1108 = vrot.slane %v1106, 5
      %v1109 = vsel %vm359, %v1104, %v1108
      %v1111 = vshrl.u32 %v1070, 16
      %v1113 = vrot.slane %v1111, 4
      %v1114 = vshll.u32 %v1070, 16
      %v1116 = vrot.slane %v1114, 5
      %v1117 = vor.u32 %v1113, %v1116
      %v1118 = vrot.slane %v1117, 4
      %v1120 = vshll.u32 %v1071, 16
      %v1122 = vrot.slane %v1120, 5
      %v1123 = vsel %vm359, %v1118, %v1122
      %v1125 = vshrl.u32 %v1072, 16
      %v1127 = vrot.slane %v1125, 4
      %v1128 = vshll.u32 %v1072, 16
      %v1130 = vrot.slane %v1128, 5
      %v1131 = vor.u32 %v1127, %v1130
      %v1132 = vrot.slane %v1131, 4
      %v1134 = vshll.u32 %v1073, 16
      %v1136 = vrot.slane %v1134, 5
      %v1137 = vsel %vm359, %v1132, %v1136
      %v1139 = vshrl.u32 %v1074, 16
      %v1141 = vrot.slane %v1139, 4
      %v1142 = vshll.u32 %v1074, 16
      %v1144 = vrot.slane %v1142, 5
      %v1145 = vor.u32 %v1141, %v1144
      %v1146 = vrot.slane %v1145, 4
      %v1148 = vshll.u32 %v1075, 16
      %v1150 = vrot.slane %v1148, 5
      %v1151 = vsel %vm359, %v1146, %v1150
      %v1153 = vshrl.u32 %v1076, 16
      %v1155 = vrot.slane %v1153, 4
      %v1156 = vshll.u32 %v1076, 16
      %v1158 = vrot.slane %v1156, 5
      %v1159 = vor.u32 %v1155, %v1158
      %v1160 = vrot.slane %v1159, 4
      %v1162 = vshll.u32 %v1077, 16
      %v1164 = vrot.slane %v1162, 5
      %v1165 = vsel %vm359, %v1160, %v1164
      %v1167 = vshrl.u32 %v1078, 16
      %v1169 = vrot.slane %v1167, 4
      %v1170 = vshll.u32 %v1078, 16
      %v1172 = vrot.slane %v1170, 5
      %v1173 = vor.u32 %v1169, %v1172
      %v1174 = vrot.slane %v1173, 4
      %v1176 = vshll.u32 %v1079, 16
      %v1178 = vrot.slane %v1176, 5
      %v1179 = vsel %vm359, %v1174, %v1178
      %v1181 = vshrl.u32 %v1080, 16
      %v1183 = vrot.slane %v1181, 4
      %v1184 = vshll.u32 %v1080, 16
      %v1186 = vrot.slane %v1184, 5
      %v1187 = vor.u32 %v1183, %v1186
      %v1188 = vrot.slane %v1187, 4
      %v1190 = vshll.u32 %v1081, 16
      %v1192 = vrot.slane %v1190, 5
      %v1193 = vsel %vm359, %v1188, %v1192
      %s1194 = scalar_lea.vmem %s1, 256
      %v1195 = vld [vmem:[%s1194] sm:$0xf]
      %v1196 = vld [vmem:[%s1194 + $0x4] sm:$0xf]
      %v1197 = vld [vmem:[%s1194 + $0x8] sm:$0xf]
      %v1198 = vld [vmem:[%s1194 + $0xc] sm:$0xf]
      %v1199 = vld [vmem:[%s1194 + $0x10] sm:$0xf]
      %v1200 = vld [vmem:[%s1194 + $0x14] sm:$0xf]
      %v1201 = vld [vmem:[%s1194 + $0x18] sm:$0xf]
      %v1202 = vld [vmem:[%s1194 + $0x1c] sm:$0xf]
      %v1203 = vld [vmem:[%s1194 + $0x20] sm:$0xf]
      %v1204 = vld [vmem:[%s1194 + $0x24] sm:$0xf]
      %v1205 = vld [vmem:[%s1194 + $0x28] sm:$0xf]
      %v1206 = vld [vmem:[%s1194 + $0x2c] sm:$0xf]
      %v1207 = vld [vmem:[%s1194 + $0x30] sm:$0xf]
      %v1208 = vld [vmem:[%s1194 + $0x34] sm:$0xf]
      %v1209 = vld [vmem:[%s1194 + $0x38] sm:$0xf]
      %v1210 = vld [vmem:[%s1194 + $0x3c] sm:$0xf]
      %v1211 = vunpack.c.l.b16 %v1095
      %v1212 = vunpack.c.l.b16 %v1109
      %v1213 = vunpack.c.l.b16 %v1123
      %v1214 = vunpack.c.l.b16 %v1137
      %v1215 = vunpack.c.l.b16 %v1151
      %v1216 = vunpack.c.l.b16 %v1165
      %v1217 = vunpack.c.l.b16 %v1179
      %v1218 = vunpack.c.l.b16 %v1193
      %v1219 = vpack.c.b16 %v1212, %v1211
      %v1220 = vpack.c.b16 %v1214, %v1213
      %v1221 = vpack.c.b16 %v1216, %v1215
      %v1222 = vpack.c.b16 %v1218, %v1217
      %v1243 = vunpack.c.l.b16 %v1195
      %v1244 = vunpack.c.l.b16 %v1196
      %v1245 = vunpack.c.l.b16 %v1197
      %v1246 = vunpack.c.l.b16 %v1198
      %v1247 = vunpack.c.l.b16 %v1199
      %v1248 = vunpack.c.l.b16 %v1200
      %v1249 = vunpack.c.l.b16 %v1201
      %v1250 = vunpack.c.l.b16 %v1202
      %v1251 = vunpack.c.l.b16 %v1203
      %v1252 = vunpack.c.l.b16 %v1204
      %v1253 = vunpack.c.l.b16 %v1205
      %v1254 = vunpack.c.l.b16 %v1206
      %v1255 = vunpack.c.l.b16 %v1207
      %v1256 = vunpack.c.l.b16 %v1208
      %v1257 = vunpack.c.l.b16 %v1209
      %v1258 = vunpack.c.l.b16 %v1210
      %v1259 = vpack.c.b16 %v1244, %v1243
      %v1260 = vpack.c.b16 %v1246, %v1245
      %v1261 = vpack.c.b16 %v1248, %v1247
      %v1262 = vpack.c.b16 %v1250, %v1249
      %v1263 = vpack.c.b16 %v1252, %v1251
      %v1264 = vpack.c.b16 %v1254, %v1253
      %v1265 = vpack.c.b16 %v1256, %v1255
      %v1266 = vpack.c.b16 %v1258, %v1257
      %1275 = vmatprep.subr.bf16.mxu0 0
      %1276 = vmatpush1.bf16.msra.mxu0 %v1259
      %1277 = vmatprep.subr.bf16.mxu0 0
      %1278 = vmatpush1.bf16.msra.mxu0 %v1260
      %1279 = vmatprep.subr.bf16.mxu0 0
      %1280 = vmatpush1.bf16.msra.mxu0 %v1261
      %1281 = vmatprep.subr.bf16.mxu0 0
      %1282 = vmatpush1.bf16.msra.mxu0 %v1262
      %1283 = vmatprep.subr.bf16.mxu0 0
      %1284 = vmatpush1.bf16.msra.mxu0 %v1263
      %1285 = vmatprep.subr.bf16.mxu0 0
      %1286 = vmatpush1.bf16.msra.mxu0 %v1264
      %1287 = vmatprep.subr.bf16.mxu0 0
      %1288 = vmatpush1.bf16.msra.mxu0 %v1265
      %1289 = vmatprep.subr.bf16.mxu0 0
      %1290 = vmatpush1.bf16.msra.mxu0 %v1266
      %1291 = vmatprep.subr.bf16.mxu0 0
      %1292 = vmatpush1.bf16.msra.mxu0 0
      %1293 = vmatprep.subr.bf16.mxu0 0
      %1294 = vmatpush1.bf16.msra.mxu0 0
      %1295 = vmatprep.subr.bf16.mxu0 0
      %1296 = vmatpush1.bf16.msra.mxu0 0
      %1297 = vmatprep.subr.bf16.mxu0 0
      %1298 = vmatpush1.bf16.msra.mxu0 0
      %1299 = vmatprep.subr.bf16.mxu0 0
      %1300 = vmatpush1.bf16.msra.mxu0 0
      %1301 = vmatprep.subr.bf16.mxu0 0
      %1302 = vmatpush1.bf16.msra.mxu0 0
      %1303 = vmatprep.subr.bf16.mxu0 0
      %1304 = vmatpush1.bf16.msra.mxu0 0
      %1305 = vmatprep.subr.bf16.mxu0 0
      %1306 = vmatpush1.bf16.msra.mxu0 0
      %1307 = vmatprep.mubr.bf16.mxu0 0
      %1308 = vmatmul.mubr.bf16.gmra.mrb[0].mxu0 %v1219
      %v1309 = vpop.f32.mrb[0].mxu0
      %v1310 = vadd.f32 0.0, %v1309
      %v1311 = vpop.f32.mrb[0].mxu0
      %v1312 = vpop.f32.mrb[0].mxu0
      %v1313 = vadd.f32 0.0, %v1312
      %v1314 = vpop.f32.mrb[0].mxu0
      %1315 = vmatprep.mubr.bf16.mxu0 0
      %1316 = vmatmul.mubr.bf16.gmra.mrb[0].mxu0 %v1220
      %v1317 = vpop.f32.mrb[0].mxu0
      %v1318 = vadd.f32 0.0, %v1317
      %v1319 = vpop.f32.mrb[0].mxu0
      %v1320 = vpop.f32.mrb[0].mxu0
      %v1321 = vadd.f32 0.0, %v1320
      %v1322 = vpop.f32.mrb[0].mxu0
      %1323 = vmatprep.mubr.bf16.mxu0 0
      %1324 = vmatmul.mubr.bf16.gmra.mrb[0].mxu0 %v1221
      %v1325 = vpop.f32.mrb[0].mxu0
      %v1326 = vadd.f32 0.0, %v1325
      %v1327 = vpop.f32.mrb[0].mxu0
      %v1328 = vpop.f32.mrb[0].mxu0
      %v1329 = vadd.f32 0.0, %v1328
      %v1330 = vpop.f32.mrb[0].mxu0
      %1331 = vmatprep.mubr.bf16.mxu0 0
      %1332 = vmatmul.mubr.bf16.gmra.mrb[0].mxu0 %v1222
      %v1333 = vpop.f32.mrb[0].mxu0
      %v1334 = vadd.f32 0.0, %v1333
      %v1335 = vpop.f32.mrb[0].mxu0
      %v1336 = vpop.f32.mrb[0].mxu0
      %v1337 = vadd.f32 0.0, %v1336
      %v1338 = vpop.f32.mrb[0].mxu0
      %1339 = vdwg.mxu0
      %v1340 = vld [vmem:[#allocation2] sm:$0xff]
      %v1341 = vld [vmem:[#allocation2 + $0x8] sm:$0xff]
      %v1342 = vld [vmem:[#allocation2 + $0x10] sm:$0xff]
      %v1343 = vld [vmem:[#allocation2 + $0x18] sm:$0xff]
      %v1344 = vld [vmem:[#allocation2 + $0x20] sm:$0xff]
      %v1345 = vld [vmem:[#allocation2 + $0x28] sm:$0xff]
      %v1346 = vld [vmem:[#allocation2 + $0x30] sm:$0xff]
      %v1347 = vld [vmem:[#allocation2 + $0x38] sm:$0xff]
      %v1348 = vadd.f32 %v1340, %v1310
      %v1349 = vadd.f32 %v1341, %v1313
      %v1350 = vadd.f32 %v1342, %v1318
      %v1351 = vadd.f32 %v1343, %v1321
      %v1352 = vadd.f32 %v1344, %v1326
      %v1353 = vadd.f32 %v1345, %v1329
      %v1354 = vadd.f32 %v1346, %v1334
      %v1355 = vadd.f32 %v1347, %v1337
      %1356 = vst [vmem:[#allocation2] sm:$0xff] %v1348
      %1357 = vst [vmem:[#allocation2 + $0x8] sm:$0xff] %v1349
      %1358 = vst [vmem:[#allocation2 + $0x10] sm:$0xff] %v1350
      %1359 = vst [vmem:[#allocation2 + $0x18] sm:$0xff] %v1351
      %1360 = vst [vmem:[#allocation2 + $0x20] sm:$0xff] %v1352
      %1361 = vst [vmem:[#allocation2 + $0x28] sm:$0xff] %v1353
      %1362 = vst [vmem:[#allocation2 + $0x30] sm:$0xff] %v1354
      %1363 = vst [vmem:[#allocation2 + $0x38] sm:$0xff] %v1355
      %v1364 = vld [vmem:[%s879] sm:$0xe]
      %v1365 = vld [vmem:[%s879 + $0x4] sm:$0x1]
      %v1366 = vld [vmem:[%s879 + $0x8] sm:$0xe]
      %v1367 = vld [vmem:[%s879 + $0xc] sm:$0x1]
      %v1368 = vld [vmem:[%s879 + $0x10] sm:$0xe]
      %v1369 = vld [vmem:[%s879 + $0x14] sm:$0x1]
      %v1370 = vld [vmem:[%s879 + $0x18] sm:$0xe]
      %v1371 = vld [vmem:[%s879 + $0x1c] sm:$0x1]
      %v1372 = vld [vmem:[%s879 + $0x20] sm:$0xe]
      %v1373 = vld [vmem:[%s879 + $0x24] sm:$0x1]
      %v1374 = vld [vmem:[%s879 + $0x28] sm:$0xe]
      %v1375 = vld [vmem:[%s879 + $0x2c] sm:$0x1]
      %v1376 = vld [vmem:[%s879 + $0x30] sm:$0xe]
      %v1377 = vld [vmem:[%s879 + $0x34] sm:$0x1]
      %v1378 = vld [vmem:[%s879 + $0x38] sm:$0xe]
      %v1379 = vld [vmem:[%s879 + $0x3c] sm:$0x1]
      %v1396 = vrot.slane %v1364, 5
      %v1397 = vrot.slane %v1396, 4
      %v1398 = vrot.slane %v1365, 5
      %v1399 = vsel %vm676, %v1397, %v1398
      %v1400 = vrot.slane %v1366, 5
      %v1401 = vrot.slane %v1400, 4
      %v1402 = vrot.slane %v1367, 5
      %v1403 = vsel %vm676, %v1401, %v1402
      %v1404 = vrot.slane %v1368, 5
      %v1405 = vrot.slane %v1404, 4
      %v1406 = vrot.slane %v1369, 5
      %v1407 = vsel %vm676, %v1405, %v1406
      %v1408 = vrot.slane %v1370, 5
      %v1409 = vrot.slane %v1408, 4
      %v1410 = vrot.slane %v1371, 5
      %v1411 = vsel %vm676, %v1409, %v1410
      %v1412 = vrot.slane %v1372, 5
      %v1413 = vrot.slane %v1412, 4
      %v1414 = vrot.slane %v1373, 5
      %v1415 = vsel %vm676, %v1413, %v1414
      %v1416 = vrot.slane %v1374, 5
      %v1417 = vrot.slane %v1416, 4
      %v1418 = vrot.slane %v1375, 5
      %v1419 = vsel %vm676, %v1417, %v1418
      %v1420 = vrot.slane %v1376, 5
      %v1421 = vrot.slane %v1420, 4
      %v1422 = vrot.slane %v1377, 5
      %v1423 = vsel %vm676, %v1421, %v1422
      %v1424 = vrot.slane %v1378, 5
      %v1425 = vrot.slane %v1424, 4
      %v1426 = vrot.slane %v1379, 5
      %v1427 = vsel %vm676, %v1425, %v1426
      %s1428 = scalar_lea.vmem %s1, 320
      %v1429 = vld [vmem:[%s1428] sm:$0xf]
      %v1430 = vld [vmem:[%s1428 + $0x4] sm:$0xf]
      %v1431 = vld [vmem:[%s1428 + $0x8] sm:$0xf]
      %v1432 = vld [vmem:[%s1428 + $0xc] sm:$0xf]
      %v1433 = vld [vmem:[%s1428 + $0x10] sm:$0xf]
      %v1434 = vld [vmem:[%s1428 + $0x14] sm:$0xf]
      %v1435 = vld [vmem:[%s1428 + $0x18] sm:$0xf]
      %v1436 = vld [vmem:[%s1428 + $0x1c] sm:$0xf]
      %v1437 = vld [vmem:[%s1428 + $0x20] sm:$0xf]
      %v1438 = vld [vmem:[%s1428 + $0x24] sm:$0xf]
      %v1439 = vld [vmem:[%s1428 + $0x28] sm:$0xf]
      %v1440 = vld [vmem:[%s1428 + $0x2c] sm:$0xf]
      %v1441 = vld [vmem:[%s1428 + $0x30] sm:$0xf]
      %v1442 = vld [vmem:[%s1428 + $0x34] sm:$0xf]
      %v1443 = vld [vmem:[%s1428 + $0x38] sm:$0xf]
      %v1444 = vld [vmem:[%s1428 + $0x3c] sm:$0xf]
      %v1445 = vunpack.c.l.b16 %v1399
      %v1446 = vunpack.c.l.b16 %v1403
      %v1447 = vunpack.c.l.b16 %v1407
      %v1448 = vunpack.c.l.b16 %v1411
      %v1449 = vunpack.c.l.b16 %v1415
      %v1450 = vunpack.c.l.b16 %v1419
      %v1451 = vunpack.c.l.b16 %v1423
      %v1452 = vunpack.c.l.b16 %v1427
      %v1453 = vpack.c.b16 %v1446, %v1445
      %v1454 = vpack.c.b16 %v1448, %v1447
      %v1455 = vpack.c.b16 %v1450, %v1449
      %v1456 = vpack.c.b16 %v1452, %v1451
      %v1477 = vunpack.c.l.b16 %v1429
      %v1478 = vunpack.c.l.b16 %v1430
      %v1479 = vunpack.c.l.b16 %v1431
      %v1480 = vunpack.c.l.b16 %v1432
      %v1481 = vunpack.c.l.b16 %v1433
      %v1482 = vunpack.c.l.b16 %v1434
      %v1483 = vunpack.c.l.b16 %v1435
      %v1484 = vunpack.c.l.b16 %v1436
      %v1485 = vunpack.c.l.b16 %v1437
      %v1486 = vunpack.c.l.b16 %v1438
      %v1487 = vunpack.c.l.b16 %v1439
      %v1488 = vunpack.c.l.b16 %v1440
      %v1489 = vunpack.c.l.b16 %v1441
      %v1490 = vunpack.c.l.b16 %v1442
      %v1491 = vunpack.c.l.b16 %v1443
      %v1492 = vunpack.c.l.b16 %v1444
      %v1493 = vpack.c.b16 %v1478, %v1477
      %v1494 = vpack.c.b16 %v1480, %v1479
      %v1495 = vpack.c.b16 %v1482, %v1481
      %v1496 = vpack.c.b16 %v1484, %v1483
      %v1497 = vpack.c.b16 %v1486, %v1485
      %v1498 = vpack.c.b16 %v1488, %v1487
      %v1499 = vpack.c.b16 %v1490, %v1489
      %v1500 = vpack.c.b16 %v1492, %v1491
      %1509 = vmatprep.subr.bf16.mxu0 0
      %1510 = vmatpush1.bf16.msra.mxu0 %v1493
      %1511 = vmatprep.subr.bf16.mxu0 0
      %1512 = vmatpush1.bf16.msra.mxu0 %v1494
      %1513 = vmatprep.subr.bf16.mxu0 0
      %1514 = vmatpush1.bf16.msra.mxu0 %v1495
      %1515 = vmatprep.subr.bf16.mxu0 0
      %1516 = vmatpush1.bf16.msra.mxu0 %v1496
      %1517 = vmatprep.subr.bf16.mxu0 0
      %1518 = vmatpush1.bf16.msra.mxu0 %v1497
      %1519 = vmatprep.subr.bf16.mxu0 0
      %1520 = vmatpush1.bf16.msra.mxu0 %v1498
      %1521 = vmatprep.subr.bf16.mxu0 0
      %1522 = vmatpush1.bf16.msra.mxu0 %v1499
      %1523 = vmatprep.subr.bf16.mxu0 0
      %1524 = vmatpush1.bf16.msra.mxu0 %v1500
      %1525 = vmatprep.subr.bf16.mxu0 0
      %1526 = vmatpush1.bf16.msra.mxu0 0
      %1527 = vmatprep.subr.bf16.mxu0 0
      %1528 = vmatpush1.bf16.msra.mxu0 0
      %1529 = vmatprep.subr.bf16.mxu0 0
      %1530 = vmatpush1.bf16.msra.mxu0 0
      %1531 = vmatprep.subr.bf16.mxu0 0
      %1532 = vmatpush1.bf16.msra.mxu0 0
      %1533 = vmatprep.subr.bf16.mxu0 0
      %1534 = vmatpush1.bf16.msra.mxu0 0
      %1535 = vmatprep.subr.bf16.mxu0 0
      %1536 = vmatpush1.bf16.msra.mxu0 0
      %1537 = vmatprep.subr.bf16.mxu0 0
      %1538 = vmatpush1.bf16.msra.mxu0 0
      %1539 = vmatprep.subr.bf16.mxu0 0
      %1540 = vmatpush1.bf16.msra.mxu0 0
      %1541 = vmatprep.mubr.bf16.mxu0 0
      %1542 = vmatmul.mubr.bf16.gmra.mrb[0].mxu0 %v1453
      %v1543 = vpop.f32.mrb[0].mxu0
      %v1544 = vadd.f32 0.0, %v1543
      %v1545 = vpop.f32.mrb[0].mxu0
      %v1546 = vpop.f32.mrb[0].mxu0
      %v1547 = vadd.f32 0.0, %v1546
      %v1548 = vpop.f32.mrb[0].mxu0
      %1549 = vmatprep.mubr.bf16.mxu0 0
      %1550 = vmatmul.mubr.bf16.gmra.mrb[0].mxu0 %v1454
      %v1551 = vpop.f32.mrb[0].mxu0
      %v1552 = vadd.f32 0.0, %v1551
      %v1553 = vpop.f32.mrb[0].mxu0
      %v1554 = vpop.f32.mrb[0].mxu0
      %v1555 = vadd.f32 0.0, %v1554
      %v1556 = vpop.f32.mrb[0].mxu0
      %1557 = vmatprep.mubr.bf16.mxu0 0
      %1558 = vmatmul.mubr.bf16.gmra.mrb[0].mxu0 %v1455
      %v1559 = vpop.f32.mrb[0].mxu0
      %v1560 = vadd.f32 0.0, %v1559
      %v1561 = vpop.f32.mrb[0].mxu0
      %v1562 = vpop.f32.mrb[0].mxu0
      %v1563 = vadd.f32 0.0, %v1562
      %v1564 = vpop.f32.mrb[0].mxu0
      %1565 = vmatprep.mubr.bf16.mxu0 0
      %1566 = vmatmul.mubr.bf16.gmra.mrb[0].mxu0 %v1456
      %v1567 = vpop.f32.mrb[0].mxu0
      %v1568 = vadd.f32 0.0, %v1567
      %v1569 = vpop.f32.mrb[0].mxu0
      %v1570 = vpop.f32.mrb[0].mxu0
      %v1571 = vadd.f32 0.0, %v1570
      %v1572 = vpop.f32.mrb[0].mxu0
      %1573 = vdwg.mxu0
      %v1574 = vld [vmem:[#allocation2] sm:$0xff]
      %v1575 = vld [vmem:[#allocation2 + $0x8] sm:$0xff]
      %v1576 = vld [vmem:[#allocation2 + $0x10] sm:$0xff]
      %v1577 = vld [vmem:[#allocation2 + $0x18] sm:$0xff]
      %v1578 = vld [vmem:[#allocation2 + $0x20] sm:$0xff]
      %v1579 = vld [vmem:[#allocation2 + $0x28] sm:$0xff]
      %v1580 = vld [vmem:[#allocation2 + $0x30] sm:$0xff]
      %v1581 = vld [vmem:[#allocation2 + $0x38] sm:$0xff]
      %v1582 = vadd.f32 %v1574, %v1544
      %v1583 = vadd.f32 %v1575, %v1547
      %v1584 = vadd.f32 %v1576, %v1552
      %v1585 = vadd.f32 %v1577, %v1555
      %v1586 = vadd.f32 %v1578, %v1560
      %v1587 = vadd.f32 %v1579, %v1563
      %v1588 = vadd.f32 %v1580, %v1568
      %v1589 = vadd.f32 %v1581, %v1571
      %1590 = vst [vmem:[#allocation2] sm:$0xff] %v1582
      %1591 = vst [vmem:[#allocation2 + $0x8] sm:$0xff] %v1583
      %1592 = vst [vmem:[#allocation2 + $0x10] sm:$0xff] %v1584
      %1593 = vst [vmem:[#allocation2 + $0x18] sm:$0xff] %v1585
      %1594 = vst [vmem:[#allocation2 + $0x20] sm:$0xff] %v1586
      %1595 = vst [vmem:[#allocation2 + $0x28] sm:$0xff] %v1587
      %1596 = vst [vmem:[#allocation2 + $0x30] sm:$0xff] %v1588
      %1597 = vst [vmem:[#allocation2 + $0x38] sm:$0xff] %v1589
      %s1598 = scalar_lea.vmem %s165, 16
      %v1599 = vld [vmem:[%s1598] sm:$0xf]
      %v1600 = vld [vmem:[%s1598 + $0x8] sm:$0xf]
      %v1601 = vld [vmem:[%s1598 + $0x10] sm:$0xf]
      %v1602 = vld [vmem:[%s1598 + $0x18] sm:$0xf]
      %v1603 = vld [vmem:[%s1598 + $0x20] sm:$0xf]
      %v1604 = vld [vmem:[%s1598 + $0x28] sm:$0xf]
      %v1605 = vld [vmem:[%s1598 + $0x30] sm:$0xf]
      %v1606 = vld [vmem:[%s1598 + $0x38] sm:$0xf]
      %s1607 = scalar_lea.vmem %s1, 384
      %v1608 = vld [vmem:[%s1607] sm:$0xf]
      %v1609 = vld [vmem:[%s1607 + $0x4] sm:$0xf]
      %v1610 = vld [vmem:[%s1607 + $0x8] sm:$0xf]
      %v1611 = vld [vmem:[%s1607 + $0xc] sm:$0xf]
      %v1612 = vld [vmem:[%s1607 + $0x10] sm:$0xf]
      %v1613 = vld [vmem:[%s1607 + $0x14] sm:$0xf]
      %v1614 = vld [vmem:[%s1607 + $0x18] sm:$0xf]
      %v1615 = vld [vmem:[%s1607 + $0x1c] sm:$0xf]
      %v1616 = vld [vmem:[%s1607 + $0x20] sm:$0xf]
      %v1617 = vld [vmem:[%s1607 + $0x24] sm:$0xf]
      %v1618 = vld [vmem:[%s1607 + $0x28] sm:$0xf]
      %v1619 = vld [vmem:[%s1607 + $0x2c] sm:$0xf]
      %v1620 = vld [vmem:[%s1607 + $0x30] sm:$0xf]
      %v1621 = vld [vmem:[%s1607 + $0x34] sm:$0xf]
      %v1622 = vld [vmem:[%s1607 + $0x38] sm:$0xf]
      %v1623 = vld [vmem:[%s1607 + $0x3c] sm:$0xf]
      %v1632 = vunpack.c.l.b16 %v1599
      %v1633 = vunpack.c.l.b16 %v1600
      %v1634 = vunpack.c.l.b16 %v1601
      %v1635 = vunpack.c.l.b16 %v1602
      %v1636 = vunpack.c.l.b16 %v1603
      %v1637 = vunpack.c.l.b16 %v1604
      %v1638 = vunpack.c.l.b16 %v1605
      %v1639 = vunpack.c.l.b16 %v1606
      %v1640 = vpack.c.b16 %v1633, %v1632
      %v1641 = vpack.c.b16 %v1635, %v1634
      %v1642 = vpack.c.b16 %v1637, %v1636
      %v1643 = vpack.c.b16 %v1639, %v1638
      %v1664 = vunpack.c.l.b16 %v1608
      %v1665 = vunpack.c.l.b16 %v1609
      %v1666 = vunpack.c.l.b16 %v1610
      %v1667 = vunpack.c.l.b16 %v1611
      %v1668 = vunpack.c.l.b16 %v1612
      %v1669 = vunpack.c.l.b16 %v1613
      %v1670 = vunpack.c.l.b16 %v1614
      %v1671 = vunpack.c.l.b16 %v1615
      %v1672 = vunpack.c.l.b16 %v1616
      %v1673 = vunpack.c.l.b16 %v1617
      %v1674 = vunpack.c.l.b16 %v1618
      %v1675 = vunpack.c.l.b16 %v1619
      %v1676 = vunpack.c.l.b16 %v1620
      %v1677 = vunpack.c.l.b16 %v1621
      %v1678 = vunpack.c.l.b16 %v1622
      %v1679 = vunpack.c.l.b16 %v1623
      %v1680 = vpack.c.b16 %v1665, %v1664
      %v1681 = vpack.c.b16 %v1667, %v1666
      %v1682 = vpack.c.b16 %v1669, %v1668
      %v1683 = vpack.c.b16 %v1671, %v1670
      %v1684 = vpack.c.b16 %v1673, %v1672
      %v1685 = vpack.c.b16 %v1675, %v1674
      %v1686 = vpack.c.b16 %v1677, %v1676
      %v1687 = vpack.c.b16 %v1679, %v1678
      %1696 = vmatprep.subr.bf16.mxu0 0
      %1697 = vmatpush1.bf16.msra.mxu0 %v1680
      %1698 = vmatprep.subr.bf16.mxu0 0
      %1699 = vmatpush1.bf16.msra.mxu0 %v1681
      %1700 = vmatprep.subr.bf16.mxu0 0
      %1701 = vmatpush1.bf16.msra.mxu0 %v1682
      %1702 = vmatprep.subr.bf16.mxu0 0
      %1703 = vmatpush1.bf16.msra.mxu0 %v1683
      %1704 = vmatprep.subr.bf16.mxu0 0
      %1705 = vmatpush1.bf16.msra.mxu0 %v1684
      %1706 = vmatprep.subr.bf16.mxu0 0
      %1707 = vmatpush1.bf16.msra.mxu0 %v1685
      %1708 = vmatprep.subr.bf16.mxu0 0
      %1709 = vmatpush1.bf16.msra.mxu0 %v1686
      %1710 = vmatprep.subr.bf16.mxu0 0
      %1711 = vmatpush1.bf16.msra.mxu0 %v1687
      %1712 = vmatprep.subr.bf16.mxu0 0
      %1713 = vmatpush1.bf16.msra.mxu0 0
      %1714 = vmatprep.subr.bf16.mxu0 0
      %1715 = vmatpush1.bf16.msra.mxu0 0
      %1716 = vmatprep.subr.bf16.mxu0 0
      %1717 = vmatpush1.bf16.msra.mxu0 0
      %1718 = vmatprep.subr.bf16.mxu0 0
      %1719 = vmatpush1.bf16.msra.mxu0 0
      %1720 = vmatprep.subr.bf16.mxu0 0
      %1721 = vmatpush1.bf16.msra.mxu0 0
      %1722 = vmatprep.subr.bf16.mxu0 0
      %1723 = vmatpush1.bf16.msra.mxu0 0
      %1724 = vmatprep.subr.bf16.mxu0 0
      %1725 = vmatpush1.bf16.msra.mxu0 0
      %1726 = vmatprep.subr.bf16.mxu0 0
      %1727 = vmatpush1.bf16.msra.mxu0 0
      %1728 = vmatprep.mubr.bf16.mxu0 0
      %1729 = vmatmul.mubr.bf16.gmra.mrb[0].mxu0 %v1640
      %v1730 = vpop.f32.mrb[0].mxu0
      %v1731 = vadd.f32 0.0, %v1730
      %v1732 = vpop.f32.mrb[0].mxu0
      %v1733 = vpop.f32.mrb[0].mxu0
      %v1734 = vadd.f32 0.0, %v1733
      %v1735 = vpop.f32.mrb[0].mxu0
      %1736 = vmatprep.mubr.bf16.mxu0 0
      %1737 = vmatmul.mubr.bf16.gmra.mrb[0].mxu0 %v1641
      %v1738 = vpop.f32.mrb[0].mxu0
      %v1739 = vadd.f32 0.0, %v1738
      %v1740 = vpop.f32.mrb[0].mxu0
      %v1741 = vpop.f32.mrb[0].mxu0
      %v1742 = vadd.f32 0.0, %v1741
      %v1743 = vpop.f32.mrb[0].mxu0
      %1744 = vmatprep.mubr.bf16.mxu0 0
      %1745 = vmatmul.mubr.bf16.gmra.mrb[0].mxu0 %v1642
      %v1746 = vpop.f32.mrb[0].mxu0
      %v1747 = vadd.f32 0.0, %v1746
      %v1748 = vpop.f32.mrb[0].mxu0
      %v1749 = vpop.f32.mrb[0].mxu0
      %v1750 = vadd.f32 0.0, %v1749
      %v1751 = vpop.f32.mrb[0].mxu0
      %1752 = vmatprep.mubr.bf16.mxu0 0
      %1753 = vmatmul.mubr.bf16.gmra.mrb[0].mxu0 %v1643
      %v1754 = vpop.f32.mrb[0].mxu0
      %v1755 = vadd.f32 0.0, %v1754
      %v1756 = vpop.f32.mrb[0].mxu0
      %v1757 = vpop.f32.mrb[0].mxu0
      %v1758 = vadd.f32 0.0, %v1757
      %v1759 = vpop.f32.mrb[0].mxu0
      %1760 = vdwg.mxu0
      %v1761 = vld [vmem:[#allocation2] sm:$0xff]
      %v1762 = vld [vmem:[#allocation2 + $0x8] sm:$0xff]
      %v1763 = vld [vmem:[#allocation2 + $0x10] sm:$0xff]
      %v1764 = vld [vmem:[#allocation2 + $0x18] sm:$0xff]
      %v1765 = vld [vmem:[#allocation2 + $0x20] sm:$0xff]
      %v1766 = vld [vmem:[#allocation2 + $0x28] sm:$0xff]
      %v1767 = vld [vmem:[#allocation2 + $0x30] sm:$0xff]
      %v1768 = vld [vmem:[#allocation2 + $0x38] sm:$0xff]
      %v1769 = vadd.f32 %v1761, %v1731
      %v1770 = vadd.f32 %v1762, %v1734
      %v1771 = vadd.f32 %v1763, %v1739
      %v1772 = vadd.f32 %v1764, %v1742
      %v1773 = vadd.f32 %v1765, %v1747
      %v1774 = vadd.f32 %v1766, %v1750
      %v1775 = vadd.f32 %v1767, %v1755
      %v1776 = vadd.f32 %v1768, %v1758
      %1777 = vst [vmem:[#allocation2] sm:$0xff] %v1769
      %1778 = vst [vmem:[#allocation2 + $0x8] sm:$0xff] %v1770
      %1779 = vst [vmem:[#allocation2 + $0x10] sm:$0xff] %v1771
      %1780 = vst [vmem:[#allocation2 + $0x18] sm:$0xff] %v1772
      %1781 = vst [vmem:[#allocation2 + $0x20] sm:$0xff] %v1773
      %1782 = vst [vmem:[#allocation2 + $0x28] sm:$0xff] %v1774
      %1783 = vst [vmem:[#allocation2 + $0x30] sm:$0xff] %v1775
      %1784 = vst [vmem:[#allocation2 + $0x38] sm:$0xff] %v1776
      %v1785 = vld [vmem:[%s1598] sm:$0xf]
      %v1786 = vld [vmem:[%s1598 + $0x4] sm:$0x1]
      %v1787 = vld [vmem:[%s1598 + $0x8] sm:$0xf]
      %v1788 = vld [vmem:[%s1598 + $0xc] sm:$0x1]
      %v1789 = vld [vmem:[%s1598 + $0x10] sm:$0xf]
      %v1790 = vld [vmem:[%s1598 + $0x14] sm:$0x1]
      %v1791 = vld [vmem:[%s1598 + $0x18] sm:$0xf]
      %v1792 = vld [vmem:[%s1598 + $0x1c] sm:$0x1]
      %v1793 = vld [vmem:[%s1598 + $0x20] sm:$0xf]
      %v1794 = vld [vmem:[%s1598 + $0x24] sm:$0x1]
      %v1795 = vld [vmem:[%s1598 + $0x28] sm:$0xf]
      %v1796 = vld [vmem:[%s1598 + $0x2c] sm:$0x1]
      %v1797 = vld [vmem:[%s1598 + $0x30] sm:$0xf]
      %v1798 = vld [vmem:[%s1598 + $0x34] sm:$0x1]
      %v1799 = vld [vmem:[%s1598 + $0x38] sm:$0xf]
      %v1800 = vld [vmem:[%s1598 + $0x3c] sm:$0x1]
      %v1802 = vshrl.u32 %v1785, 16
      %v1804 = vrot.slane %v1802, 4
      %v1805 = vshll.u32 %v1785, 16
      %v1807 = vrot.slane %v1805, 5
      %v1808 = vor.u32 %v1804, %v1807
      %v1809 = vrot.slane %v1808, 4
      %v1811 = vshll.u32 %v1786, 16
      %v1813 = vrot.slane %v1811, 5
      %v1814 = vsel %vm359, %v1809, %v1813
      %v1816 = vshrl.u32 %v1787, 16
      %v1818 = vrot.slane %v1816, 4
      %v1819 = vshll.u32 %v1787, 16
      %v1821 = vrot.slane %v1819, 5
      %v1822 = vor.u32 %v1818, %v1821
      %v1823 = vrot.slane %v1822, 4
      %v1825 = vshll.u32 %v1788, 16
      %v1827 = vrot.slane %v1825, 5
      %v1828 = vsel %vm359, %v1823, %v1827
      %v1830 = vshrl.u32 %v1789, 16
      %v1832 = vrot.slane %v1830, 4
      %v1833 = vshll.u32 %v1789, 16
      %v1835 = vrot.slane %v1833, 5
      %v1836 = vor.u32 %v1832, %v1835
      %v1837 = vrot.slane %v1836, 4
      %v1839 = vshll.u32 %v1790, 16
      %v1841 = vrot.slane %v1839, 5
      %v1842 = vsel %vm359, %v1837, %v1841
      %v1844 = vshrl.u32 %v1791, 16
      %v1846 = vrot.slane %v1844, 4
      %v1847 = vshll.u32 %v1791, 16
      %v1849 = vrot.slane %v1847, 5
      %v1850 = vor.u32 %v1846, %v1849
      %v1851 = vrot.slane %v1850, 4
      %v1853 = vshll.u32 %v1792, 16
      %v1855 = vrot.slane %v1853, 5
      %v1856 = vsel %vm359, %v1851, %v1855
      %v1858 = vshrl.u32 %v1793, 16
      %v1860 = vrot.slane %v1858, 4
      %v1861 = vshll.u32 %v1793, 16
      %v1863 = vrot.slane %v1861, 5
      %v1864 = vor.u32 %v1860, %v1863
      %v1865 = vrot.slane %v1864, 4
      %v1867 = vshll.u32 %v1794, 16
      %v1869 = vrot.slane %v1867, 5
      %v1870 = vsel %vm359, %v1865, %v1869
      %v1872 = vshrl.u32 %v1795, 16
      %v1874 = vrot.slane %v1872, 4
      %v1875 = vshll.u32 %v1795, 16
      %v1877 = vrot.slane %v1875, 5
      %v1878 = vor.u32 %v1874, %v1877
      %v1879 = vrot.slane %v1878, 4
      %v1881 = vshll.u32 %v1796, 16
      %v1883 = vrot.slane %v1881, 5
      %v1884 = vsel %vm359, %v1879, %v1883
      %v1886 = vshrl.u32 %v1797, 16
      %v1888 = vrot.slane %v1886, 4
      %v1889 = vshll.u32 %v1797, 16
      %v1891 = vrot.slane %v1889, 5
      %v1892 = vor.u32 %v1888, %v1891
      %v1893 = vrot.slane %v1892, 4
      %v1895 = vshll.u32 %v1798, 16
      %v1897 = vrot.slane %v1895, 5
      %v1898 = vsel %vm359, %v1893, %v1897
      %v1900 = vshrl.u32 %v1799, 16
      %v1902 = vrot.slane %v1900, 4
      %v1903 = vshll.u32 %v1799, 16
      %v1905 = vrot.slane %v1903, 5
      %v1906 = vor.u32 %v1902, %v1905
      %v1907 = vrot.slane %v1906, 4
      %v1909 = vshll.u32 %v1800, 16
      %v1911 = vrot.slane %v1909, 5
      %v1912 = vsel %vm359, %v1907, %v1911
      %s1913 = scalar_lea.vmem %s1, 448
      %v1914 = vld [vmem:[%s1913] sm:$0xf]
      %v1915 = vld [vmem:[%s1913 + $0x4] sm:$0xf]
      %v1916 = vld [vmem:[%s1913 + $0x8] sm:$0xf]
      %v1917 = vld [vmem:[%s1913 + $0xc] sm:$0xf]
      %v1918 = vld [vmem:[%s1913 + $0x10] sm:$0xf]
      %v1919 = vld [vmem:[%s1913 + $0x14] sm:$0xf]
      %v1920 = vld [vmem:[%s1913 + $0x18] sm:$0xf]
      %v1921 = vld [vmem:[%s1913 + $0x1c] sm:$0xf]
      %v1922 = vld [vmem:[%s1913 + $0x20] sm:$0xf]
      %v1923 = vld [vmem:[%s1913 + $0x24] sm:$0xf]
      %v1924 = vld [vmem:[%s1913 + $0x28] sm:$0xf]
      %v1925 = vld [vmem:[%s1913 + $0x2c] sm:$0xf]
      %v1926 = vld [vmem:[%s1913 + $0x30] sm:$0xf]
      %v1927 = vld [vmem:[%s1913 + $0x34] sm:$0xf]
      %v1928 = vld [vmem:[%s1913 + $0x38] sm:$0xf]
      %v1929 = vld [vmem:[%s1913 + $0x3c] sm:$0xf]
      %v1930 = vunpack.c.l.b16 %v1814
      %v1931 = vunpack.c.l.b16 %v1828
      %v1932 = vunpack.c.l.b16 %v1842
      %v1933 = vunpack.c.l.b16 %v1856
      %v1934 = vunpack.c.l.b16 %v1870
      %v1935 = vunpack.c.l.b16 %v1884
      %v1936 = vunpack.c.l.b16 %v1898
      %v1937 = vunpack.c.l.b16 %v1912
      %v1938 = vpack.c.b16 %v1931, %v1930
      %v1939 = vpack.c.b16 %v1933, %v1932
      %v1940 = vpack.c.b16 %v1935, %v1934
      %v1941 = vpack.c.b16 %v1937, %v1936
      %v1962 = vunpack.c.l.b16 %v1914
      %v1963 = vunpack.c.l.b16 %v1915
      %v1964 = vunpack.c.l.b16 %v1916
      %v1965 = vunpack.c.l.b16 %v1917
      %v1966 = vunpack.c.l.b16 %v1918
      %v1967 = vunpack.c.l.b16 %v1919
      %v1968 = vunpack.c.l.b16 %v1920
      %v1969 = vunpack.c.l.b16 %v1921
      %v1970 = vunpack.c.l.b16 %v1922
      %v1971 = vunpack.c.l.b16 %v1923
      %v1972 = vunpack.c.l.b16 %v1924
      %v1973 = vunpack.c.l.b16 %v1925
      %v1974 = vunpack.c.l.b16 %v1926
      %v1975 = vunpack.c.l.b16 %v1927
      %v1976 = vunpack.c.l.b16 %v1928
      %v1977 = vunpack.c.l.b16 %v1929
      %v1978 = vpack.c.b16 %v1963, %v1962
      %v1979 = vpack.c.b16 %v1965, %v1964
      %v1980 = vpack.c.b16 %v1967, %v1966
      %v1981 = vpack.c.b16 %v1969, %v1968
      %v1982 = vpack.c.b16 %v1971, %v1970
      %v1983 = vpack.c.b16 %v1973, %v1972
      %v1984 = vpack.c.b16 %v1975, %v1974
      %v1985 = vpack.c.b16 %v1977, %v1976
      %1994 = vmatprep.subr.bf16.mxu0 0
      %1995 = vmatpush1.bf16.msra.mxu0 %v1978
      %1996 = vmatprep.subr.bf16.mxu0 0
      %1997 = vmatpush1.bf16.msra.mxu0 %v1979
      %1998 = vmatprep.subr.bf16.mxu0 0
      %1999 = vmatpush1.bf16.msra.mxu0 %v1980
      %2000 = vmatprep.subr.bf16.mxu0 0
      %2001 = vmatpush1.bf16.msra.mxu0 %v1981
      %2002 = vmatprep.subr.bf16.mxu0 0
      %2003 = vmatpush1.bf16.msra.mxu0 %v1982
      %2004 = vmatprep.subr.bf16.mxu0 0
      %2005 = vmatpush1.bf16.msra.mxu0 %v1983
      %2006 = vmatprep.subr.bf16.mxu0 0
      %2007 = vmatpush1.bf16.msra.mxu0 %v1984
      %2008 = vmatprep.subr.bf16.mxu0 0
      %2009 = vmatpush1.bf16.msra.mxu0 %v1985
      %2010 = vmatprep.subr.bf16.mxu0 0
      %2011 = vmatpush1.bf16.msra.mxu0 0
      %2012 = vmatprep.subr.bf16.mxu0 0
      %2013 = vmatpush1.bf16.msra.mxu0 0
      %2014 = vmatprep.subr.bf16.mxu0 0
      %2015 = vmatpush1.bf16.msra.mxu0 0
      %2016 = vmatprep.subr.bf16.mxu0 0
      %2017 = vmatpush1.bf16.msra.mxu0 0
      %2018 = vmatprep.subr.bf16.mxu0 0
      %2019 = vmatpush1.bf16.msra.mxu0 0
      %2020 = vmatprep.subr.bf16.mxu0 0
      %2021 = vmatpush1.bf16.msra.mxu0 0
      %2022 = vmatprep.subr.bf16.mxu0 0
      %2023 = vmatpush1.bf16.msra.mxu0 0
      %2024 = vmatprep.subr.bf16.mxu0 0
      %2025 = vmatpush1.bf16.msra.mxu0 0
      %2026 = vmatprep.mubr.bf16.mxu0 0
      %2027 = vmatmul.mubr.bf16.gmra.mrb[0].mxu0 %v1938
      %v2028 = vpop.f32.mrb[0].mxu0
      %v2029 = vadd.f32 0.0, %v2028
      %v2030 = vpop.f32.mrb[0].mxu0
      %v2031 = vpop.f32.mrb[0].mxu0
      %v2032 = vadd.f32 0.0, %v2031
      %v2033 = vpop.f32.mrb[0].mxu0
      %2034 = vmatprep.mubr.bf16.mxu0 0
      %2035 = vmatmul.mubr.bf16.gmra.mrb[0].mxu0 %v1939
      %v2036 = vpop.f32.mrb[0].mxu0
      %v2037 = vadd.f32 0.0, %v2036
      %v2038 = vpop.f32.mrb[0].mxu0
      %v2039 = vpop.f32.mrb[0].mxu0
      %v2040 = vadd.f32 0.0, %v2039
      %v2041 = vpop.f32.mrb[0].mxu0
      %2042 = vmatprep.mubr.bf16.mxu0 0
      %2043 = vmatmul.mubr.bf16.gmra.mrb[0].mxu0 %v1940
      %v2044 = vpop.f32.mrb[0].mxu0
      %v2045 = vadd.f32 0.0, %v2044
      %v2046 = vpop.f32.mrb[0].mxu0
      %v2047 = vpop.f32.mrb[0].mxu0
      %v2048 = vadd.f32 0.0, %v2047
      %v2049 = vpop.f32.mrb[0].mxu0
      %2050 = vmatprep.mubr.bf16.mxu0 0
      %2051 = vmatmul.mubr.bf16.gmra.mrb[0].mxu0 %v1941
      %v2052 = vpop.f32.mrb[0].mxu0
      %v2053 = vadd.f32 0.0, %v2052
      %v2054 = vpop.f32.mrb[0].mxu0
      %v2055 = vpop.f32.mrb[0].mxu0
      %v2056 = vadd.f32 0.0, %v2055
      %v2057 = vpop.f32.mrb[0].mxu0
      %2058 = vdwg.mxu0
      %v2059 = vld [vmem:[#allocation2] sm:$0xff]
      %v2060 = vld [vmem:[#allocation2 + $0x8] sm:$0xff]
      %v2061 = vld [vmem:[#allocation2 + $0x10] sm:$0xff]
      %v2062 = vld [vmem:[#allocation2 + $0x18] sm:$0xff]
      %v2063 = vld [vmem:[#allocation2 + $0x20] sm:$0xff]
      %v2064 = vld [vmem:[#allocation2 + $0x28] sm:$0xff]
      %v2065 = vld [vmem:[#allocation2 + $0x30] sm:$0xff]
      %v2066 = vld [vmem:[#allocation2 + $0x38] sm:$0xff]
      %v2067 = vadd.f32 %v2059, %v2029
      %v2068 = vadd.f32 %v2060, %v2032
      %v2069 = vadd.f32 %v2061, %v2037
      %v2070 = vadd.f32 %v2062, %v2040
      %v2071 = vadd.f32 %v2063, %v2045
      %v2072 = vadd.f32 %v2064, %v2048
      %v2073 = vadd.f32 %v2065, %v2053
      %v2074 = vadd.f32 %v2066, %v2056
      %2075 = vst [vmem:[#allocation2] sm:$0xff] %v2067
      %2076 = vst [vmem:[#allocation2 + $0x8] sm:$0xff] %v2068
      %2077 = vst [vmem:[#allocation2 + $0x10] sm:$0xff] %v2069
      %2078 = vst [vmem:[#allocation2 + $0x18] sm:$0xff] %v2070
      %2079 = vst [vmem:[#allocation2 + $0x20] sm:$0xff] %v2071
      %2080 = vst [vmem:[#allocation2 + $0x28] sm:$0xff] %v2072
      %2081 = vst [vmem:[#allocation2 + $0x30] sm:$0xff] %v2073
      %2082 = vst [vmem:[#allocation2 + $0x38] sm:$0xff] %v2074
      %v2083 = vld [vmem:[%s1598] sm:$0xe]
      %v2084 = vld [vmem:[%s1598 + $0x4] sm:$0x1]
      %v2085 = vld [vmem:[%s1598 + $0x8] sm:$0xe]
      %v2086 = vld [vmem:[%s1598 + $0xc] sm:$0x1]
      %v2087 = vld [vmem:[%s1598 + $0x10] sm:$0xe]
      %v2088 = vld [vmem:[%s1598 + $0x14] sm:$0x1]
      %v2089 = vld [vmem:[%s1598 + $0x18] sm:$0xe]
      %v2090 = vld [vmem:[%s1598 + $0x1c] sm:$0x1]
      %v2091 = vld [vmem:[%s1598 + $0x20] sm:$0xe]
      %v2092 = vld [vmem:[%s1598 + $0x24] sm:$0x1]
      %v2093 = vld [vmem:[%s1598 + $0x28] sm:$0xe]
      %v2094 = vld [vmem:[%s1598 + $0x2c] sm:$0x1]
      %v2095 = vld [vmem:[%s1598 + $0x30] sm:$0xe]
      %v2096 = vld [vmem:[%s1598 + $0x34] sm:$0x1]
      %v2097 = vld [vmem:[%s1598 + $0x38] sm:$0xe]
      %v2098 = vld [vmem:[%s1598 + $0x3c] sm:$0x1]
      %v2115 = vrot.slane %v2083, 5
      %v2116 = vrot.slane %v2115, 4
      %v2117 = vrot.slane %v2084, 5
      %v2118 = vsel %vm676, %v2116, %v2117
      %v2119 = vrot.slane %v2085, 5
      %v2120 = vrot.slane %v2119, 4
      %v2121 = vrot.slane %v2086, 5
      %v2122 = vsel %vm676, %v2120, %v2121
      %v2123 = vrot.slane %v2087, 5
      %v2124 = vrot.slane %v2123, 4
      %v2125 = vrot.slane %v2088, 5
      %v2126 = vsel %vm676, %v2124, %v2125
      %v2127 = vrot.slane %v2089, 5
      %v2128 = vrot.slane %v2127, 4
      %v2129 = vrot.slane %v2090, 5
      %v2130 = vsel %vm676, %v2128, %v2129
      %v2131 = vrot.slane %v2091, 5
      %v2132 = vrot.slane %v2131, 4
      %v2133 = vrot.slane %v2092, 5
      %v2134 = vsel %vm676, %v2132, %v2133
      %v2135 = vrot.slane %v2093, 5
      %v2136 = vrot.slane %v2135, 4
      %v2137 = vrot.slane %v2094, 5
      %v2138 = vsel %vm676, %v2136, %v2137
      %v2139 = vrot.slane %v2095, 5
      %v2140 = vrot.slane %v2139, 4
      %v2141 = vrot.slane %v2096, 5
      %v2142 = vsel %vm676, %v2140, %v2141
      %v2143 = vrot.slane %v2097, 5
      %v2144 = vrot.slane %v2143, 4
      %v2145 = vrot.slane %v2098, 5
      %v2146 = vsel %vm676, %v2144, %v2145
      %s2147 = scalar_lea.vmem %s1, 512
      %v2148 = vld [vmem:[%s2147] sm:$0xf]
      %v2149 = vld [vmem:[%s2147 + $0x4] sm:$0xf]
      %v2150 = vld [vmem:[%s2147 + $0x8] sm:$0xf]
      %v2151 = vld [vmem:[%s2147 + $0xc] sm:$0xf]
      %v2152 = vld [vmem:[%s2147 + $0x10] sm:$0xf]
      %v2153 = vld [vmem:[%s2147 + $0x14] sm:$0xf]
      %v2154 = vld [vmem:[%s2147 + $0x18] sm:$0xf]
      %v2155 = vld [vmem:[%s2147 + $0x1c] sm:$0xf]
      %v2156 = vld [vmem:[%s2147 + $0x20] sm:$0xf]
      %v2157 = vld [vmem:[%s2147 + $0x24] sm:$0xf]
      %v2158 = vld [vmem:[%s2147 + $0x28] sm:$0xf]
      %v2159 = vld [vmem:[%s2147 + $0x2c] sm:$0xf]
      %v2160 = vld [vmem:[%s2147 + $0x30] sm:$0xf]
      %v2161 = vld [vmem:[%s2147 + $0x34] sm:$0xf]
      %v2162 = vld [vmem:[%s2147 + $0x38] sm:$0xf]
      %v2163 = vld [vmem:[%s2147 + $0x3c] sm:$0xf]
      %v2164 = vunpack.c.l.b16 %v2118
      %v2165 = vunpack.c.l.b16 %v2122
      %v2166 = vunpack.c.l.b16 %v2126
      %v2167 = vunpack.c.l.b16 %v2130
      %v2168 = vunpack.c.l.b16 %v2134
      %v2169 = vunpack.c.l.b16 %v2138
      %v2170 = vunpack.c.l.b16 %v2142
      %v2171 = vunpack.c.l.b16 %v2146
      %v2172 = vpack.c.b16 %v2165, %v2164
      %v2173 = vpack.c.b16 %v2167, %v2166
      %v2174 = vpack.c.b16 %v2169, %v2168
      %v2175 = vpack.c.b16 %v2171, %v2170
      %v2196 = vunpack.c.l.b16 %v2148
      %v2197 = vunpack.c.l.b16 %v2149
      %v2198 = vunpack.c.l.b16 %v2150
      %v2199 = vunpack.c.l.b16 %v2151
      %v2200 = vunpack.c.l.b16 %v2152
      %v2201 = vunpack.c.l.b16 %v2153
      %v2202 = vunpack.c.l.b16 %v2154
      %v2203 = vunpack.c.l.b16 %v2155
      %v2204 = vunpack.c.l.b16 %v2156
      %v2205 = vunpack.c.l.b16 %v2157
      %v2206 = vunpack.c.l.b16 %v2158
      %v2207 = vunpack.c.l.b16 %v2159
      %v2208 = vunpack.c.l.b16 %v2160
      %v2209 = vunpack.c.l.b16 %v2161
      %v2210 = vunpack.c.l.b16 %v2162
      %v2211 = vunpack.c.l.b16 %v2163
      %v2212 = vpack.c.b16 %v2197, %v2196
      %v2213 = vpack.c.b16 %v2199, %v2198
      %v2214 = vpack.c.b16 %v2201, %v2200
      %v2215 = vpack.c.b16 %v2203, %v2202
      %v2216 = vpack.c.b16 %v2205, %v2204
      %v2217 = vpack.c.b16 %v2207, %v2206
      %v2218 = vpack.c.b16 %v2209, %v2208
      %v2219 = vpack.c.b16 %v2211, %v2210
      %2228 = vmatprep.subr.bf16.mxu0 0
      %2229 = vmatpush1.bf16.msra.mxu0 %v2212
      %2230 = vmatprep.subr.bf16.mxu0 0
      %2231 = vmatpush1.bf16.msra.mxu0 %v2213
      %2232 = vmatprep.subr.bf16.mxu0 0
      %2233 = vmatpush1.bf16.msra.mxu0 %v2214
      %2234 = vmatprep.subr.bf16.mxu0 0
      %2235 = vmatpush1.bf16.msra.mxu0 %v2215
      %2236 = vmatprep.subr.bf16.mxu0 0
      %2237 = vmatpush1.bf16.msra.mxu0 %v2216
      %2238 = vmatprep.subr.bf16.mxu0 0
      %2239 = vmatpush1.bf16.msra.mxu0 %v2217
      %2240 = vmatprep.subr.bf16.mxu0 0
      %2241 = vmatpush1.bf16.msra.mxu0 %v2218
      %2242 = vmatprep.subr.bf16.mxu0 0
      %2243 = vmatpush1.bf16.msra.mxu0 %v2219
      %2244 = vmatprep.subr.bf16.mxu0 0
      %2245 = vmatpush1.bf16.msra.mxu0 0
      %2246 = vmatprep.subr.bf16.mxu0 0
      %2247 = vmatpush1.bf16.msra.mxu0 0
      %2248 = vmatprep.subr.bf16.mxu0 0
      %2249 = vmatpush1.bf16.msra.mxu0 0
      %2250 = vmatprep.subr.bf16.mxu0 0
      %2251 = vmatpush1.bf16.msra.mxu0 0
      %2252 = vmatprep.subr.bf16.mxu0 0
      %2253 = vmatpush1.bf16.msra.mxu0 0
      %2254 = vmatprep.subr.bf16.mxu0 0
      %2255 = vmatpush1.bf16.msra.mxu0 0
      %2256 = vmatprep.subr.bf16.mxu0 0
      %2257 = vmatpush1.bf16.msra.mxu0 0
      %2258 = vmatprep.subr.bf16.mxu0 0
      %2259 = vmatpush1.bf16.msra.mxu0 0
      %2260 = vmatprep.mubr.bf16.mxu0 0
      %2261 = vmatmul.mubr.bf16.gmra.mrb[0].mxu0 %v2172
      %v2262 = vpop.f32.mrb[0].mxu0
      %v2263 = vadd.f32 0.0, %v2262
      %v2264 = vpop.f32.mrb[0].mxu0
      %v2265 = vpop.f32.mrb[0].mxu0
      %v2266 = vadd.f32 0.0, %v2265
      %v2267 = vpop.f32.mrb[0].mxu0
      %2268 = vmatprep.mubr.bf16.mxu0 0
      %2269 = vmatmul.mubr.bf16.gmra.mrb[0].mxu0 %v2173
      %v2270 = vpop.f32.mrb[0].mxu0
      %v2271 = vadd.f32 0.0, %v2270
      %v2272 = vpop.f32.mrb[0].mxu0
      %v2273 = vpop.f32.mrb[0].mxu0
      %v2274 = vadd.f32 0.0, %v2273
      %v2275 = vpop.f32.mrb[0].mxu0
      %2276 = vmatprep.mubr.bf16.mxu0 0
      %2277 = vmatmul.mubr.bf16.gmra.mrb[0].mxu0 %v2174
      %v2278 = vpop.f32.mrb[0].mxu0
      %v2279 = vadd.f32 0.0, %v2278
      %v2280 = vpop.f32.mrb[0].mxu0
      %v2281 = vpop.f32.mrb[0].mxu0
      %v2282 = vadd.f32 0.0, %v2281
      %v2283 = vpop.f32.mrb[0].mxu0
      %2284 = vmatprep.mubr.bf16.mxu0 0
      %2285 = vmatmul.mubr.bf16.gmra.mrb[0].mxu0 %v2175
      %v2286 = vpop.f32.mrb[0].mxu0
      %v2287 = vadd.f32 0.0, %v2286
      %v2288 = vpop.f32.mrb[0].mxu0
      %v2289 = vpop.f32.mrb[0].mxu0
      %v2290 = vadd.f32 0.0, %v2289
      %v2291 = vpop.f32.mrb[0].mxu0
      %2292 = vdwg.mxu0
      %v2293 = vld [vmem:[#allocation2] sm:$0xff]
      %v2294 = vld [vmem:[#allocation2 + $0x8] sm:$0xff]
      %v2295 = vld [vmem:[#allocation2 + $0x10] sm:$0xff]
      %v2296 = vld [vmem:[#allocation2 + $0x18] sm:$0xff]
      %v2297 = vld [vmem:[#allocation2 + $0x20] sm:$0xff]
      %v2298 = vld [vmem:[#allocation2 + $0x28] sm:$0xff]
      %v2299 = vld [vmem:[#allocation2 + $0x30] sm:$0xff]
      %v2300 = vld [vmem:[#allocation2 + $0x38] sm:$0xff]
      %v2301 = vadd.f32 %v2293, %v2263
      %v2302 = vadd.f32 %v2294, %v2266
      %v2303 = vadd.f32 %v2295, %v2271
      %v2304 = vadd.f32 %v2296, %v2274
      %v2305 = vadd.f32 %v2297, %v2279
      %v2306 = vadd.f32 %v2298, %v2282
      %v2307 = vadd.f32 %v2299, %v2287
      %v2308 = vadd.f32 %v2300, %v2290
      %2309 = vst [vmem:[#allocation2] sm:$0xff] %v2301
      %2310 = vst [vmem:[#allocation2 + $0x8] sm:$0xff] %v2302
      %2311 = vst [vmem:[#allocation2 + $0x10] sm:$0xff] %v2303
      %2312 = vst [vmem:[#allocation2 + $0x18] sm:$0xff] %v2304
      %2313 = vst [vmem:[#allocation2 + $0x20] sm:$0xff] %v2305
      %2314 = vst [vmem:[#allocation2 + $0x28] sm:$0xff] %v2306
      %2315 = vst [vmem:[#allocation2 + $0x30] sm:$0xff] %v2307
      %2316 = vst [vmem:[#allocation2 + $0x38] sm:$0xff] %v2308
      %v2317 = vld [vmem:[%s2] sm:$0x1]
      %v2318 = vld [vmem:[#allocation2] ss:$2 sm:$0xf]
      %s2319 = scalar_lea.vmem [#allocation2], 1
      %v2320 = vld [vmem:[%s2319] ss:$2 sm:$0xf]
      %s2321 = scalar_lea.vmem [#allocation2], 8
      %v2322 = vld [vmem:[%s2321] ss:$2 sm:$0xf]
      %s2323 = scalar_lea.vmem [#allocation2], 9
      %v2324 = vld [vmem:[%s2323] ss:$2 sm:$0xf]
      %v2325 = vmax.f32 %v2318, %v2320
      %v2326 = vmax.f32 %v2322, %v2324
      %v2327 = vmax.f32 %v2325, %v2326
      %v2329 = vlaneseq
      %v2330 = vshrl.u32 %v2329, 7
      %v2331 = vsub.s32 0, %v2330
      %v2332 = vrot.slane %v2317, %v2331
      %v2334 = vadd.f32 %v2327, %v2332
      %v2335 = vmax.f32 %v2334, 0.0
      %v2336 = vpack.c.bf16 %v2335, %v2335
      %2337 = vst [vmem:[%s170] sm:$0x3] %v2336
      %s2338 = scalar_lea.vmem [#allocation2], 16
      %v2339 = vld [vmem:[%s2338] ss:$2 sm:$0xf]
      %s2340 = scalar_lea.vmem [#allocation2], 17
      %v2341 = vld [vmem:[%s2340] ss:$2 sm:$0xf]
      %s2342 = scalar_lea.vmem [#allocation2], 24
      %v2343 = vld [vmem:[%s2342] ss:$2 sm:$0xf]
      %s2344 = scalar_lea.vmem [#allocation2], 25
      %v2345 = vld [vmem:[%s2344] ss:$2 sm:$0xf]
      %v2346 = vmax.f32 %v2339, %v2341
      %v2347 = vmax.f32 %v2343, %v2345
      %v2348 = vmax.f32 %v2346, %v2347
      %v2349 = vadd.f32 %v2348, %v2332
      %v2350 = vmax.f32 %v2349, 0.0
      %v2351 = vpack.c.bf16 %v2350, %v2350
      %s2352 = scalar_lea.vmem %s170, 2
      %2353 = vst [vmem:[%s2352] sm:$0x3] %v2351
      %s2354 = scalar_lea.vmem [#allocation2], 32
      %v2355 = vld [vmem:[%s2354] ss:$2 sm:$0xf]
      %s2356 = scalar_lea.vmem [#allocation2], 33
      %v2357 = vld [vmem:[%s2356] ss:$2 sm:$0xf]
      %s2358 = scalar_lea.vmem [#allocation2], 40
      %v2359 = vld [vmem:[%s2358] ss:$2 sm:$0xf]
      %s2360 = scalar_lea.vmem [#allocation2], 41
      %v2361 = vld [vmem:[%s2360] ss:$2 sm:$0xf]
      %v2362 = vmax.f32 %v2355, %v2357
      %v2363 = vmax.f32 %v2359, %v2361
      %v2364 = vmax.f32 %v2362, %v2363
      %v2365 = vadd.f32 %v2364, %v2332
      %v2366 = vmax.f32 %v2365, 0.0
      %v2367 = vpack.c.bf16 %v2366, %v2366
      %s2368 = scalar_lea.vmem %s170, 4
      %2369 = vst [vmem:[%s2368] sm:$0x3] %v2367
      %s2370 = scalar_lea.vmem [#allocation2], 48
      %v2371 = vld [vmem:[%s2370] ss:$2 sm:$0xf]
      %s2372 = scalar_lea.vmem [#allocation2], 49
      %v2373 = vld [vmem:[%s2372] ss:$2 sm:$0xf]
      %s2374 = scalar_lea.vmem [#allocation2], 56
      %v2375 = vld [vmem:[%s2374] ss:$2 sm:$0xf]
      %s2376 = scalar_lea.vmem [#allocation2], 57
      %v2377 = vld [vmem:[%s2376] ss:$2 sm:$0xf]
      %v2378 = vmax.f32 %v2371, %v2373
      %v2379 = vmax.f32 %v2375, %v2377
      %v2380 = vmax.f32 %v2378, %v2379
      %v2381 = vadd.f32 %v2380, %v2332
      %v2382 = vmax.f32 %v2381, 0.0
      %v2383 = vpack.c.bf16 %v2382, %v2382
      %s2384 = scalar_lea.vmem %s170, 6
      %2385 = vst [vmem:[%s2384] sm:$0x3] %v2383
      %p2386 = scmp.lt.s32.totalorder %s14, 3
      %s2387 = scalar_select %p2386, %s14, 3
      %s2388 = smul.addr %s2387, 4
      %s2389 = smul.addr %s2388, 2
      %s2390 = scalar_lea.vmem %s3, %s2389
      // Predicated region
      $region33: #{similarity_model.6} parent=31 // pred_check
        %p2391 = pneg %p100
      $region34: #{similarity_model.6} parent=31 // pred_check_branch
        %2393 = sbr.rel (%p2391) target = $region36
      $region35: #{similarity_model.6} parent=31 // pred_region
        _
      $region36: #{similarity_model.6} parent=31 // pred_fallthru
        _
    $region32: #{similarity_model.6} parent=5 // pred_fallthru
      _
    %p2394 = scmp.le.s32.totalorder 2, %s9
    // Predicated region
    $region37: #{similarity_model.6} parent=5 // pred_check
      %p2395 = pneg %p2394
    $region38: #{similarity_model.6} parent=5 // pred_check_branch
      %2397 = sbr.rel (%p2395) target = $region40
    $region39: #{similarity_model.6} parent=5 // pred_region
      %s2398 = ssub.s32 %s9, 2
      // Predicated region
      $region41: #{similarity_model.6} parent=39 // pred_check
        %p2399 = pneg %p106
      $region42: #{similarity_model.6} parent=39 // pred_check_branch
        %2401 = sbr.rel (%p2399) target = $region44
      $region43: #{similarity_model.6} parent=39 // pred_region
        %p2402 = scmp.lt.s32.totalorder %s15, 3
        %s2403 = scalar_select %p2402, %s15, 3
        %s2404 = smul.addr %s2403, 4
        %s2405 = smul.addr %s2404, 2
        %s2406 = scalar_lea.vmem %s3, %s2405
      $region44: #{similarity_model.6} parent=39 // pred_fallthru
        _
    $region40: #{similarity_model.6} parent=5 // pred_fallthru
      _
  $region6: #{similarity_model.6} parent=0 // loop_footer
    %s13 = sadd.s32 1, %s9
  $region7: #{similarity_model.6} parent=0 // loop_footer_branch
    %8 = sbr.rel target = $region3
  $region8: #{similarity_model.6} parent=0 // loop_exit
    _

// kernel: similarity_model.8
$region0: #{similarity_model.8}
  #allocation0 [shape = 'u32[]', space=smem, size = 0x4, offset = 0x4, fixed_abs, tag = 'smem constant byte address 0x4 - core index']
  #allocation1 [shape = 'u32[144,128]{1,0:T(1,128)}', space=vmem, size = 0x12000, scoped, tag = 'internal scratch']
  #allocation2 [shape = 'f32[8,128]{1,0:T(8,128)}', space=vmem, size = 0x1000, scoped, tag = 'scratch operand']
  %s0 = inlined_call_operand.vmem [shape: bf16[8,4096], index: 0, kind: input, shape index: {}]
  %s1 = inlined_call_operand.vmem [shape: bf16[4096,128], index: 1, kind: input, shape index: {}]
  %s2 = inlined_call_operand.vmem [shape: f32[1,128], index: 2, kind: input, shape index: {}]
  %s3 = inlined_call_operand.vmem [shape: f32[8,128], index: 3, kind: output, shape index: {}]
  %s4 = sld [smem:[#allocation0]]
  $region53: #{similarity_model.8} parent=0
    _
  %s6 = ssub.s32 1, %s4
  %s7 = scalar_select 0, %s6, %s4
  loop: start=0, step=1, limit=10
  $region2: #{similarity_model.8} parent=0 // loop_pre_header
    _
  $region3: #{similarity_model.8} parent=0 // loop_header
    %s9 = sphi 0, %s13
    %p10 = scmp.ge.s32.totalorder %s9, 10
    %s16 = sphi 0, %s35
    %s17 = sphi 0, %s31
    %s18 = sphi 0, %s27
    %s19 = sphi 0, %s16
    %s20 = sphi 0, %s17
    %s21 = sphi 0, %s18
    %s22 = sphi 0, %s19
    %s23 = sphi 0, %s20
    %s24 = sphi 0, %s21
    %s40 = sphi 0, %s42
    %s43 = sphi 0, %s40
    %s44 = sphi 0, %s43
    %s60 = sphi 0, %s44
    %s68 = sphi 0, %s70
    %s71 = sphi 0, %s68
    %s72 = sphi 0, %s71
    %s88 = sphi 0, %s72
    %s94 = sphi 0, %s96
    %s97 = sphi 0, %s94
    %s98 = sphi 0, %s97
    %s114 = sphi 0, %s98
    %s122 = sphi 0, %s124
    %s125 = sphi 0, %s122
    %s126 = sphi 0, %s125
    %s142 = sphi 0, %s126
  $region4: #{similarity_model.8} parent=0 // loop_header_branch
    %12 = sbr.rel (%p10) target = $region8
  $region5: #{similarity_model.8} parent=0 // loop_body
    %s14 = ssub.s32 %s9, 1
    %s15 = ssub.s32 %s9, 2
    %s25 = sadd.s32 1, %s18
    %p26 = scmp.ge.s32.totalorder %s25, 8
    %s27 = scalar_select %p26, 0, %s25
    %s28 = sadd.s32 1, %s17
    %s29 = scalar_select %p26, %s28, %s17
    %p30 = scmp.ge.s32.totalorder %s29, 1
    %s31 = scalar_select %p30, 0, %s29
    %s32 = sadd.s32 1, %s16
    %s33 = scalar_select %p30, %s32, %s16
    %p34 = scmp.ge.s32.totalorder %s33, 1
    %s35 = scalar_select %p34, 0, %s33
    %s36 = ssub.s32 %s16, %s35
    %s37 = ssub.s32 %s18, %s27
    %s38 = sor.u32 %s36, %s37
    %p39 = scmp.eq.s32.totalorder %s38, 0
    %s41 = sadd.s32 %s40, 1
    %s42 = scalar_select %p39, %s40, %s41
    %p45 = pneg %p39
    %p46 = scmp.eq.s32.totalorder %s9, 7
    %p47 = por %p45, %p46
    %p48 = scmp.ne.s32.totalorder %s40, %s43
    %p49 = scmp.eq.s32.totalorder %s9, 0
    %p50 = por %p48, %p49
    %p51 = scmp.ne.s32.totalorder %s40, %s43
    %p52 = scmp.eq.s32.totalorder %s14, 7
    %p53 = por %p51, %p52
    %p54 = scmp.ne.s32.totalorder %s43, %s44
    %p55 = scmp.eq.s32.totalorder %s14, 0
    %p56 = por %p54, %p55
    %p57 = scmp.ne.s32.totalorder %s43, %s44
    %p58 = scmp.eq.s32.totalorder %s15, 7
    %p59 = por %p57, %p58
    %p61 = scmp.ne.s32.totalorder %s44, %s60
    %p62 = scmp.eq.s32.totalorder %s15, 0
    %p63 = por %p61, %p62
    %s64 = ssub.s32 %s18, %s27
    %s65 = ssub.s32 %s17, %s31
    %s66 = sor.u32 %s64, %s65
    %p67 = scmp.eq.s32.totalorder %s66, 0
    %s69 = sadd.s32 %s68, 1
    %s70 = scalar_select %p67, %s68, %s69
    %p73 = pneg %p67
    %p74 = scmp.eq.s32.totalorder %s9, 7
    %p75 = por %p73, %p74
    %p76 = scmp.ne.s32.totalorder %s68, %s71
    %p77 = scmp.eq.s32.totalorder %s9, 0
    %p78 = por %p76, %p77
    %p79 = scmp.ne.s32.totalorder %s68, %s71
    %p80 = scmp.eq.s32.totalorder %s14, 7
    %p81 = por %p79, %p80
    %p82 = scmp.ne.s32.totalorder %s71, %s72
    %p83 = scmp.eq.s32.totalorder %s14, 0
    %p84 = por %p82, %p83
    %p85 = scmp.ne.s32.totalorder %s71, %s72
    %p86 = scmp.eq.s32.totalorder %s15, 7
    %p87 = por %p85, %p86
    %p89 = scmp.ne.s32.totalorder %s72, %s88
    %p90 = scmp.eq.s32.totalorder %s15, 0
    %p91 = por %p89, %p90
    %s92 = ssub.s32 %s17, %s31
    %p93 = scmp.eq.s32.totalorder %s92, 0
    %s95 = sadd.s32 %s94, 1
    %s96 = scalar_select %p93, %s94, %s95
    %p99 = pneg %p93
    %p100 = scmp.eq.s32.totalorder %s9, 7
    %p101 = por %p99, %p100
    %p102 = scmp.ne.s32.totalorder %s94, %s97
    %p103 = scmp.eq.s32.totalorder %s9, 0
    %p104 = por %p102, %p103
    %p105 = scmp.ne.s32.totalorder %s94, %s97
    %p106 = scmp.eq.s32.totalorder %s14, 7
    %p107 = por %p105, %p106
    %p108 = scmp.ne.s32.totalorder %s97, %s98
    %p109 = scmp.eq.s32.totalorder %s14, 0
    %p110 = por %p108, %p109
    %p111 = scmp.ne.s32.totalorder %s97, %s98
    %p112 = scmp.eq.s32.totalorder %s15, 7
    %p113 = por %p111, %p112
    %p115 = scmp.ne.s32.totalorder %s98, %s114
    %p116 = scmp.eq.s32.totalorder %s15, 0
    %p117 = por %p115, %p116
    %s118 = ssub.s32 %s16, %s35
    %s119 = ssub.s32 %s17, %s31
    %s120 = sor.u32 %s118, %s119
    %p121 = scmp.eq.s32.totalorder %s120, 0
    %s123 = sadd.s32 %s122, 1
    %s124 = scalar_select %p121, %s122, %s123
    %p127 = pneg %p121
    %p128 = scmp.eq.s32.totalorder %s9, 7
    %p129 = por %p127, %p128
    %p130 = scmp.ne.s32.totalorder %s122, %s125
    %p131 = scmp.eq.s32.totalorder %s9, 0
    %p132 = por %p130, %p131
    %p133 = scmp.ne.s32.totalorder %s122, %s125
    %p134 = scmp.eq.s32.totalorder %s14, 7
    %p135 = por %p133, %p134
    %p136 = scmp.ne.s32.totalorder %s125, %s126
    %p137 = scmp.eq.s32.totalorder %s14, 0
    %p138 = por %p136, %p137
    %p139 = scmp.ne.s32.totalorder %s125, %s126
    %p140 = scmp.eq.s32.totalorder %s15, 7
    %p141 = por %p139, %p140
    %p143 = scmp.ne.s32.totalorder %s126, %s142
    %p144 = scmp.eq.s32.totalorder %s15, 0
    %p145 = por %p143, %p144
    %p146 = scmp.le.s32.totalorder 1, %s9
    %p147 = scmp.lt.s32.totalorder %s9, 9
    %p148 = pnand %p146, %p147
    %p149 = pneg %p148
    // Predicated region
    $region9: #{similarity_model.8} parent=5 // pred_check
      _
    $region10: #{similarity_model.8} parent=5 // pred_check_branch
      %151 = sbr.rel (%p148) target = $region12
    $region11: #{similarity_model.8} parent=5 // pred_region
      %s152 = ssub.s32 %s9, 1
      // Predicated region
      $region13: #{similarity_model.8} parent=11 // pred_check
        %p153 = pneg %p110
      $region14: #{similarity_model.8} parent=11 // pred_check_branch
        %155 = sbr.rel (%p153) target = $region16
      $region15: #{similarity_model.8} parent=11 // pred_region
        %p156 = scmp.lt.s32.totalorder %s20, 0
        %s157 = scalar_select %p156, %s20, 0
        %s158 = scalar_lea.vmem %s2, %s157
      $region16: #{similarity_model.8} parent=11 // pred_fallthru
        _
    $region12: #{similarity_model.8} parent=5 // pred_fallthru
      _
    %p159 = scmp.lt.s32.totalorder %s9, 8
    // Predicated region
    $region17: #{similarity_model.8} parent=5 // pred_check
      %p160 = pneg %p159
    $region18: #{similarity_model.8} parent=5 // pred_check_branch
      %162 = sbr.rel (%p160) target = $region20
    $region19: #{similarity_model.8} parent=5 // pred_region
      // Predicated region
      $region21: #{similarity_model.8} parent=19 // pred_check
        %p163 = pneg %p50
      $region22: #{similarity_model.8} parent=19 // pred_check_branch
        %165 = sbr.rel (%p163) target = $region24
      $region23: #{similarity_model.8} parent=19 // pred_region
        %s166 = smul.u32 4, %s18
        %p167 = scmp.lt.s32.totalorder %s16, 0
        %s168 = scalar_select %p167, %s16, 0
        %p169 = scmp.lt.s32.totalorder %s166, 31
        %s170 = scalar_select %p169, %s166, 31
        %s171 = smul.addr %s168, 32
        %s172 = sadd.s32 %s170, %s171
        %s173 = smul.addr %s172, 4
        %s174 = scalar_lea.vmem %s0, %s173
        %s175 = smul.u32 4, %s18
      $region24: #{similarity_model.8} parent=19 // pred_fallthru
        _
      // Predicated region
      $region25: #{similarity_model.8} parent=19 // pred_check
        %p176 = pneg %p78
      $region26: #{similarity_model.8} parent=19 // pred_check_branch
        %178 = sbr.rel (%p176) target = $region28
      $region27: #{similarity_model.8} parent=19 // pred_region
        %s179 = smul.u32 64, %s18
        %p180 = scmp.lt.s32.totalorder %s179, 511
        %s181 = scalar_select %p180, %s179, 511
        %p182 = scmp.lt.s32.totalorder %s17, 0
        %s183 = scalar_select %p182, %s17, 0
        %s184 = sadd.s32 %s183, %s181
        %s185 = smul.addr %s184, 4
        %s186 = scalar_lea.vmem %s1, %s185
        %s187 = smul.u32 64, %s18
      $region28: #{similarity_model.8} parent=19 // pred_fallthru
        _
    $region20: #{similarity_model.8} parent=5 // pred_fallthru
      _
    %p188 = scmp.le.s32.totalorder 1, %s9
    %p189 = scmp.lt.s32.totalorder %s9, 9
    %p190 = pnand %p188, %p189
    %p191 = pneg %p190
    // Predicated region
    $region29: #{similarity_model.8} parent=5 // pred_check
      _
    $region30: #{similarity_model.8} parent=5 // pred_check_branch
      %193 = sbr.rel (%p190) target = $region32
    $region31: #{similarity_model.8} parent=5 // pred_region
      %s194 = ssub.s32 %s9, 1
      %s195 = smul.u32 4, %s21
      %p196 = scmp.lt.s32.totalorder %s19, 0
      %s197 = scalar_select %p196, %s19, 0
      %p198 = scmp.lt.s32.totalorder %s195, 31
      %s199 = scalar_select %p198, %s195, 31
      %s200 = smul.addr %s197, 32
      %s201 = sadd.s32 %s199, %s200
      %s202 = smul.addr %s201, 4
      %s203 = scalar_lea.vmem %s0, %s202
      %p204 = pneg %p56
      %p205 = pneg %p53
      %s206 = smul.u32 64, %s21
      %p207 = scmp.lt.s32.totalorder %s206, 511
      %s208 = scalar_select %p207, %s206, 511
      %p209 = scmp.lt.s32.totalorder %s20, 0
      %s210 = scalar_select %p209, %s20, 0
      %s211 = sadd.s32 %s210, %s208
      %s212 = smul.addr %s211, 4
      %s213 = scalar_lea.vmem %s1, %s212
      %p214 = pneg %p84
      %p215 = pneg %p81
      %p216 = scmp.lt.s32.totalorder %s20, 0
      %s217 = scalar_select %p216, %s20, 0
      %s218 = scalar_lea.vmem %s2, %s217
      %p219 = pneg %p110
      %p220 = pneg %p107
      %p221 = pneg %p138
      %p222 = pneg %p135
      %p223 = scmp.lt.s32.totalorder %s19, 0
      %s224 = scalar_select %p223, %s19, 0
      %p225 = scmp.lt.s32.totalorder %s20, 0
      %s226 = scalar_select %p225, %s20, 0
      %s227 = sadd.s32 %s226, %s224
      %s228 = smul.addr %s227, 8
      %s229 = scalar_lea.vmem %s3, %s228
      %s230 = smul.u32 4, %s21
      %p231 = scmp.lt.s32.totalorder %s19, 0
      %s232 = scalar_select %p231, %s19, 0
      %p233 = scmp.lt.s32.totalorder %s230, 31
      %s234 = scalar_select %p233, %s230, 31
      %s235 = smul.addr %s232, 32
      %s236 = sadd.s32 %s234, %s235
      %s237 = smul.addr %s236, 4
      %s238 = scalar_lea.vmem %s0, %s237
      %s239 = smul.u32 4, %s21
      %s240 = smul.u32 64, %s21
      %p241 = scmp.lt.s32.totalorder %s240, 511
      %s242 = scalar_select %p241, %s240, 511
      %p243 = scmp.lt.s32.totalorder %s20, 0
      %s244 = scalar_select %p243, %s20, 0
      %s245 = sadd.s32 %s244, %s242
      %s246 = smul.addr %s245, 4
      %s247 = scalar_lea.vmem %s1, %s246
      %s248 = smul.u32 64, %s21
      %p249 = scmp.lt.s32.totalorder %s20, 0
      %s250 = scalar_select %p249, %s20, 0
      %s251 = scalar_lea.vmem %s2, %s250
      %p252 = scmp.lt.s32.totalorder %s19, 0
      %s253 = scalar_select %p252, %s19, 0
      %p254 = scmp.lt.s32.totalorder %s20, 0
      %s255 = scalar_select %p254, %s20, 0
      %s256 = sadd.s32 %s255, %s253
      %s257 = smul.addr %s256, 8
      %s258 = scalar_lea.vmem %s3, %s257
      %p260 = scmp.eq.s32.totalorder %s21, 0
      // Predicated region
      $region33: #{similarity_model.8} parent=31 // pred_check
        %p261 = pneg %p260
      $region34: #{similarity_model.8} parent=31 // pred_check_branch
        %263 = sbr.rel (%p261) target = $region36
      $region35: #{similarity_model.8} parent=31 // pred_region
        %264 = vst [vmem:[#allocation2] sm:$0xff] 0.0
      $region36: #{similarity_model.8} parent=31 // pred_fallthru
        _
      %v265 = vld [vmem:[#allocation2] sm:$0xff]
      %v266 = vld [vmem:[%s238] sm:$0xff]
      %v267 = vld [vmem:[%s238 + $0x8] sm:$0xff]
      %v268 = vld [vmem:[%s247] sm:$0xf]
      %v269 = vld [vmem:[%s247 + $0x4] sm:$0xf]
      %v270 = vld [vmem:[%s247 + $0x8] sm:$0xf]
      %v271 = vld [vmem:[%s247 + $0xc] sm:$0xf]
      %v272 = vld [vmem:[%s247 + $0x10] sm:$0xf]
      %v273 = vld [vmem:[%s247 + $0x14] sm:$0xf]
      %v274 = vld [vmem:[%s247 + $0x18] sm:$0xf]
      %v275 = vld [vmem:[%s247 + $0x1c] sm:$0xf]
      %v276 = vld [vmem:[%s247 + $0x20] sm:$0xf]
      %v277 = vld [vmem:[%s247 + $0x24] sm:$0xf]
      %v278 = vld [vmem:[%s247 + $0x28] sm:$0xf]
      %v279 = vld [vmem:[%s247 + $0x2c] sm:$0xf]
      %v280 = vld [vmem:[%s247 + $0x30] sm:$0xf]
      %v281 = vld [vmem:[%s247 + $0x34] sm:$0xf]
      %v282 = vld [vmem:[%s247 + $0x38] sm:$0xf]
      %v283 = vld [vmem:[%s247 + $0x3c] sm:$0xf]
      %v284 = vld [vmem:[%s247 + $0x40] sm:$0xf]
      %v285 = vld [vmem:[%s247 + $0x44] sm:$0xf]
      %v286 = vld [vmem:[%s247 + $0x48] sm:$0xf]
      %v287 = vld [vmem:[%s247 + $0x4c] sm:$0xf]
      %v288 = vld [vmem:[%s247 + $0x50] sm:$0xf]
      %v289 = vld [vmem:[%s247 + $0x54] sm:$0xf]
      %v290 = vld [vmem:[%s247 + $0x58] sm:$0xf]
      %v291 = vld [vmem:[%s247 + $0x5c] sm:$0xf]
      %v292 = vld [vmem:[%s247 + $0x60] sm:$0xf]
      %v293 = vld [vmem:[%s247 + $0x64] sm:$0xf]
      %v294 = vld [vmem:[%s247 + $0x68] sm:$0xf]
      %v295 = vld [vmem:[%s247 + $0x6c] sm:$0xf]
      %v296 = vld [vmem:[%s247 + $0x70] sm:$0xf]
      %v297 = vld [vmem:[%s247 + $0x74] sm:$0xf]
      %v298 = vld [vmem:[%s247 + $0x78] sm:$0xf]
      %v299 = vld [vmem:[%s247 + $0x7c] sm:$0xf]
      %v300 = vld [vmem:[%s247 + $0x80] sm:$0xf]
      %v301 = vld [vmem:[%s247 + $0x84] sm:$0xf]
      %v302 = vld [vmem:[%s247 + $0x88] sm:$0xf]
      %v303 = vld [vmem:[%s247 + $0x8c] sm:$0xf]
      %v304 = vld [vmem:[%s247 + $0x90] sm:$0xf]
      %v305 = vld [vmem:[%s247 + $0x94] sm:$0xf]
      %v306 = vld [vmem:[%s247 + $0x98] sm:$0xf]
      %v307 = vld [vmem:[%s247 + $0x9c] sm:$0xf]
      %v308 = vld [vmem:[%s247 + $0xa0] sm:$0xf]
      %v309 = vld [vmem:[%s247 + $0xa4] sm:$0xf]
      %v310 = vld [vmem:[%s247 + $0xa8] sm:$0xf]
      %v311 = vld [vmem:[%s247 + $0xac] sm:$0xf]
      %v312 = vld [vmem:[%s247 + $0xb0] sm:$0xf]
      %v313 = vld [vmem:[%s247 + $0xb4] sm:$0xf]
      %v314 = vld [vmem:[%s247 + $0xb8] sm:$0xf]
      %v315 = vld [vmem:[%s247 + $0xbc] sm:$0xf]
      %v316 = vld [vmem:[%s247 + $0xc0] sm:$0xf]
      %v317 = vld [vmem:[%s247 + $0xc4] sm:$0xf]
      %v318 = vld [vmem:[%s247 + $0xc8] sm:$0xf]
      %v319 = vld [vmem:[%s247 + $0xcc] sm:$0xf]
      %v320 = vld [vmem:[%s247 + $0xd0] sm:$0xf]
      %v321 = vld [vmem:[%s247 + $0xd4] sm:$0xf]
      %v322 = vld [vmem:[%s247 + $0xd8] sm:$0xf]
      %v323 = vld [vmem:[%s247 + $0xdc] sm:$0xf]
      %v324 = vld [vmem:[%s247 + $0xe0] sm:$0xf]
      %v325 = vld [vmem:[%s247 + $0xe4] sm:$0xf]
      %v326 = vld [vmem:[%s247 + $0xe8] sm:$0xf]
      %v327 = vld [vmem:[%s247 + $0xec] sm:$0xf]
      %v328 = vld [vmem:[%s247 + $0xf0] sm:$0xf]
      %v329 = vld [vmem:[%s247 + $0xf4] sm:$0xf]
      %v330 = vld [vmem:[%s247 + $0xf8] sm:$0xf]
      %v331 = vld [vmem:[%s247 + $0xfc] sm:$0xf]
      %v334 = vunpack.c.l.b16 %v266
      %v335 = vunpack.c.h.b16 %v266
      %v336 = vunpack.c.l.b16 %v267
      %v337 = vunpack.c.h.b16 %v267
      %v338 = vpack.c.b16 %v334, %v334
      %v339 = vpack.c.b16 %v335, %v335
      %v340 = vpack.c.b16 %v336, %v336
      %v341 = vpack.c.b16 %v337, %v337
      %v410 = vunpack.c.l.b16 %v268
      %v411 = vunpack.c.l.b16 %v269
      %v412 = vunpack.c.l.b16 %v270
      %v413 = vunpack.c.l.b16 %v271
      %v414 = vunpack.c.l.b16 %v272
      %v415 = vunpack.c.l.b16 %v273
      %v416 = vunpack.c.l.b16 %v274
      %v417 = vunpack.c.l.b16 %v275
      %v418 = vunpack.c.l.b16 %v276
      %v419 = vunpack.c.l.b16 %v277
      %v420 = vunpack.c.l.b16 %v278
      %v421 = vunpack.c.l.b16 %v279
      %v422 = vunpack.c.l.b16 %v280
      %v423 = vunpack.c.l.b16 %v281
      %v424 = vunpack.c.l.b16 %v282
      %v425 = vunpack.c.l.b16 %v283
      %v426 = vunpack.c.l.b16 %v284
      %v427 = vunpack.c.l.b16 %v285
      %v428 = vunpack.c.l.b16 %v286
      %v429 = vunpack.c.l.b16 %v287
      %v430 = vunpack.c.l.b16 %v288
      %v431 = vunpack.c.l.b16 %v289
      %v432 = vunpack.c.l.b16 %v290
      %v433 = vunpack.c.l.b16 %v291
      %v434 = vunpack.c.l.b16 %v292
      %v435 = vunpack.c.l.b16 %v293
      %v436 = vunpack.c.l.b16 %v294
      %v437 = vunpack.c.l.b16 %v295
      %v438 = vunpack.c.l.b16 %v296
      %v439 = vunpack.c.l.b16 %v297
      %v440 = vunpack.c.l.b16 %v298
      %v441 = vunpack.c.l.b16 %v299
      %v442 = vunpack.c.l.b16 %v300
      %v443 = vunpack.c.l.b16 %v301
      %v444 = vunpack.c.l.b16 %v302
      %v445 = vunpack.c.l.b16 %v303
      %v446 = vunpack.c.l.b16 %v304
      %v447 = vunpack.c.l.b16 %v305
      %v448 = vunpack.c.l.b16 %v306
      %v449 = vunpack.c.l.b16 %v307
      %v450 = vunpack.c.l.b16 %v308
      %v451 = vunpack.c.l.b16 %v309
      %v452 = vunpack.c.l.b16 %v310
      %v453 = vunpack.c.l.b16 %v311
      %v454 = vunpack.c.l.b16 %v312
      %v455 = vunpack.c.l.b16 %v313
      %v456 = vunpack.c.l.b16 %v314
      %v457 = vunpack.c.l.b16 %v315
      %v458 = vunpack.c.l.b16 %v316
      %v459 = vunpack.c.l.b16 %v317
      %v460 = vunpack.c.l.b16 %v318
      %v461 = vunpack.c.l.b16 %v319
      %v462 = vunpack.c.l.b16 %v320
      %v463 = vunpack.c.l.b16 %v321
      %v464 = vunpack.c.l.b16 %v322
      %v465 = vunpack.c.l.b16 %v323
      %v466 = vunpack.c.l.b16 %v324
      %v467 = vunpack.c.l.b16 %v325
      %v468 = vunpack.c.l.b16 %v326
      %v469 = vunpack.c.l.b16 %v327
      %v470 = vunpack.c.l.b16 %v328
      %v471 = vunpack.c.l.b16 %v329
      %v472 = vunpack.c.l.b16 %v330
      %v473 = vunpack.c.l.b16 %v331
      %v474 = vpack.c.b16 %v411, %v410
      %v475 = vpack.c.b16 %v413, %v412
      %v476 = vpack.c.b16 %v415, %v414
      %v477 = vpack.c.b16 %v417, %v416
      %v478 = vpack.c.b16 %v419, %v418
      %v479 = vpack.c.b16 %v421, %v420
      %v480 = vpack.c.b16 %v423, %v422
      %v481 = vpack.c.b16 %v425, %v424
      %v482 = vpack.c.b16 %v427, %v426
      %v483 = vpack.c.b16 %v429, %v428
      %v484 = vpack.c.b16 %v431, %v430
      %v485 = vpack.c.b16 %v433, %v432
      %v486 = vpack.c.b16 %v435, %v434
      %v487 = vpack.c.b16 %v437, %v436
      %v488 = vpack.c.b16 %v439, %v438
      %v489 = vpack.c.b16 %v441, %v440
      %v490 = vpack.c.b16 %v443, %v442
      %v491 = vpack.c.b16 %v445, %v444
      %v492 = vpack.c.b16 %v447, %v446
      %v493 = vpack.c.b16 %v449, %v448
      %v494 = vpack.c.b16 %v451, %v450
      %v495 = vpack.c.b16 %v453, %v452
      %v496 = vpack.c.b16 %v455, %v454
      %v497 = vpack.c.b16 %v457, %v456
      %v498 = vpack.c.b16 %v459, %v458
      %v499 = vpack.c.b16 %v461, %v460
      %v500 = vpack.c.b16 %v463, %v462
      %v501 = vpack.c.b16 %v465, %v464
      %v502 = vpack.c.b16 %v467, %v466
      %v503 = vpack.c.b16 %v469, %v468
      %v504 = vpack.c.b16 %v471, %v470
      %v505 = vpack.c.b16 %v473, %v472
      %538 = vmatprep.subr.bf16.mxu0 0
      %539 = vmatpush1.bf16.msra.mxu0 %v474
      %540 = vmatprep.subr.bf16.mxu0 0
      %541 = vmatpush1.bf16.msra.mxu0 %v475
      %542 = vmatprep.subr.bf16.mxu0 0
      %543 = vmatpush1.bf16.msra.mxu0 %v476
      %544 = vmatprep.subr.bf16.mxu0 0
      %545 = vmatpush1.bf16.msra.mxu0 %v477
      %546 = vmatprep.subr.bf16.mxu0 0
      %547 = vmatpush1.bf16.msra.mxu0 %v478
      %548 = vmatprep.subr.bf16.mxu0 0
      %549 = vmatpush1.bf16.msra.mxu0 %v479
      %550 = vmatprep.subr.bf16.mxu0 0
      %551 = vmatpush1.bf16.msra.mxu0 %v480
      %552 = vmatprep.subr.bf16.mxu0 0
      %553 = vmatpush1.bf16.msra.mxu0 %v481
      %554 = vmatprep.subr.bf16.mxu0 0
      %555 = vmatpush1.bf16.msra.mxu0 %v482
      %556 = vmatprep.subr.bf16.mxu0 0
      %557 = vmatpush1.bf16.msra.mxu0 %v483
      %558 = vmatprep.subr.bf16.mxu0 0
      %559 = vmatpush1.bf16.msra.mxu0 %v484
      %560 = vmatprep.subr.bf16.mxu0 0
      %561 = vmatpush1.bf16.msra.mxu0 %v485
      %562 = vmatprep.subr.bf16.mxu0 0
      %563 = vmatpush1.bf16.msra.mxu0 %v486
      %564 = vmatprep.subr.bf16.mxu0 0
      %565 = vmatpush1.bf16.msra.mxu0 %v487
      %566 = vmatprep.subr.bf16.mxu0 0
      %567 = vmatpush1.bf16.msra.mxu0 %v488
      %568 = vmatprep.subr.bf16.mxu0 0
      %569 = vmatpush1.bf16.msra.mxu0 %v489
      %570 = vmatprep.mubr.bf16.mxu0 %v339
      %571 = vmatmul.mubr.bf16.gmra.mrb[0].mxu0 %v338
      %v572 = vpop.f32.mrb[0].mxu0
      %v573 = vadd.f32 0.0, %v572
      %v574 = vpop.f32.mrb[0].mxu0
      %v575 = vpop.f32.mrb[0].mxu0
      %v576 = vpop.f32.mrb[0].mxu0
      %577 = vdwg.mxu0
      %578 = vmatprep.subr.bf16.mxu0 0
      %579 = vmatpush1.bf16.msra.mxu0 %v490
      %580 = vmatprep.subr.bf16.mxu0 0
      %581 = vmatpush1.bf16.msra.mxu0 %v491
      %582 = vmatprep.subr.bf16.mxu0 0
      %583 = vmatpush1.bf16.msra.mxu0 %v492
      %584 = vmatprep.subr.bf16.mxu0 0
      %585 = vmatpush1.bf16.msra.mxu0 %v493
      %586 = vmatprep.subr.bf16.mxu0 0
      %587 = vmatpush1.bf16.msra.mxu0 %v494
      %588 = vmatprep.subr.bf16.mxu0 0
      %589 = vmatpush1.bf16.msra.mxu0 %v495
      %590 = vmatprep.subr.bf16.mxu0 0
      %591 = vmatpush1.bf16.msra.mxu0 %v496
      %592 = vmatprep.subr.bf16.mxu0 0
      %593 = vmatpush1.bf16.msra.mxu0 %v497
      %594 = vmatprep.subr.bf16.mxu0 0
      %595 = vmatpush1.bf16.msra.mxu0 %v498
      %596 = vmatprep.subr.bf16.mxu0 0
      %597 = vmatpush1.bf16.msra.mxu0 %v499
      %598 = vmatprep.subr.bf16.mxu0 0
      %599 = vmatpush1.bf16.msra.mxu0 %v500
      %600 = vmatprep.subr.bf16.mxu0 0
      %601 = vmatpush1.bf16.msra.mxu0 %v501
      %602 = vmatprep.subr.bf16.mxu0 0
      %603 = vmatpush1.bf16.msra.mxu0 %v502
      %604 = vmatprep.subr.bf16.mxu0 0
      %605 = vmatpush1.bf16.msra.mxu0 %v503
      %606 = vmatprep.subr.bf16.mxu0 0
      %607 = vmatpush1.bf16.msra.mxu0 %v504
      %608 = vmatprep.subr.bf16.mxu0 0
      %609 = vmatpush1.bf16.msra.mxu0 %v505
      %610 = vmatprep.mubr.bf16.mxu0 %v341
      %611 = vmatmul.mubr.bf16.gmra.mrb[0].mxu0 %v340
      %v612 = vpop.f32.mrb[0].mxu0
      %v613 = vadd.f32 %v573, %v612
      %v614 = vpop.f32.mrb[0].mxu0
      %v615 = vpop.f32.mrb[0].mxu0
      %v616 = vpop.f32.mrb[0].mxu0
      %617 = vdwg.mxu0
      %v618 = vadd.f32 %v265, %v613
      %619 = vst [vmem:[#allocation2] sm:$0xff] %v618
      %p620 = scmp.eq.s32.totalorder %s21, 7
      // Predicated region
      $region37: #{similarity_model.8} parent=31 // pred_check
        %p621 = pneg %p620
      $region38: #{similarity_model.8} parent=31 // pred_check_branch
        %623 = sbr.rel (%p621) target = $region40
      $region39: #{similarity_model.8} parent=31 // pred_region
        %v624 = vld [vmem:[#allocation2] sm:$0xff]
        %v625 = vld [vmem:[%s251] sm:$0x1]
        %v627 = vlaneseq
        %v628 = vshrl.u32 %v627, 7
        %v629 = vsub.s32 0, %v628
        %v630 = vrot.slane %v625, %v629
        %v632 = vadd.f32 %v624, %v630
        %v633 = vmax.f32 %v632, 0.0
        %634 = vst [vmem:[%s258] sm:$0xff] %v633
      $region40: #{similarity_model.8} parent=31 // pred_fallthru
        _
      %p635 = scmp.lt.s32.totalorder %s19, 0
      %s636 = scalar_select %p635, %s19, 0
      %p637 = scmp.lt.s32.totalorder %s20, 0
      %s638 = scalar_select %p637, %s20, 0
      %s639 = sadd.s32 %s638, %s636
      %s640 = smul.addr %s639, 8
      %s641 = scalar_lea.vmem %s3, %s640
      // Predicated region
      $region41: #{similarity_model.8} parent=31 // pred_check
        %p642 = pneg %p135
      $region42: #{similarity_model.8} parent=31 // pred_check_branch
        %644 = sbr.rel (%p642) target = $region44
      $region43: #{similarity_model.8} parent=31 // pred_region
        _
      $region44: #{similarity_model.8} parent=31 // pred_fallthru
        _
      // Predicated region
      $region45: #{similarity_model.8} parent=31 // pred_check
        %p645 = pneg %p135
      $region46: #{similarity_model.8} parent=31 // pred_check_branch
        %647 = sbr.rel (%p645) target = $region48
      $region47: #{similarity_model.8} parent=31 // pred_region
        %p648 = scmp.lt.s32.totalorder %s19, 0
        %s649 = scalar_select %p648, %s19, 0
        %p650 = scmp.lt.s32.totalorder %s20, 0
        %s651 = scalar_select %p650, %s20, 0
        %s652 = sadd.s32 %s651, %s649
        %s653 = smul.addr %s652, 8
        %s654 = scalar_lea.vmem %s3, %s653
      $region48: #{similarity_model.8} parent=31 // pred_fallthru
        _
    $region32: #{similarity_model.8} parent=5 // pred_fallthru
      _
    %p655 = scmp.le.s32.totalorder 2, %s9
    // Predicated region
    $region49: #{similarity_model.8} parent=5 // pred_check
      %p656 = pneg %p655
    $region50: #{similarity_model.8} parent=5 // pred_check_branch
      %658 = sbr.rel (%p656) target = $region52
    $region51: #{similarity_model.8} parent=5 // pred_region
      %s659 = ssub.s32 %s9, 2
    $region52: #{similarity_model.8} parent=5 // pred_fallthru
      _
  $region6: #{similarity_model.8} parent=0 // loop_footer
    %s13 = sadd.s32 1, %s9
  $region7: #{similarity_model.8} parent=0 // loop_footer_branch
    %8 = sbr.rel target = $region3
  $region8: #{similarity_model.8} parent=0 // loop_exit
    _

// kernel: similarity_model.9
$region0: #{similarity_model.9}
  #allocation0 [shape = 'u32[]', space=smem, size = 0x4, offset = 0x4, fixed_abs, tag = 'smem constant byte address 0x4 - core index']
  #allocation1 [shape = 'u32[144,128]{1,0:T(1,128)}', space=vmem, size = 0x12000, scoped, tag = 'internal scratch']
  #allocation2 [shape = 'f32[1,1]{1,0:T(1,128)S(1)}', space=vmem, size = 0x200, scoped, tag = 'scoped memory for similarity_model.9']
  %s0 = inlined_call_operand.vmem [shape: f32[2,128], index: 0, kind: input, shape index: {}]
  %s1 = inlined_call_operand.vmem [shape: f32[1,128], index: 1, kind: input, shape index: {}]
  %s2 = inlined_call_operand.<no memory space> [shape: f32[1,1], index: 2, kind: input, shape index: {}]
  %s3 = inlined_call_operand.vmem [shape: f32[2,1], index: 3, kind: output, shape index: {}]
  %s4 = sld [smem:[#allocation0]]
  $region22: #{similarity_model.9} parent=0
    _
  %s6 = ssub.s32 1, %s4
  %s7 = scalar_select 0, %s6, %s4
  %v8 = vstv %s2
  %9 = vst [vmem:[#allocation2] sm:$0x1] %v8
  // Predicated region
  $region2: #{similarity_model.9} parent=0 // pred_check
    _
  $region3: #{similarity_model.9} parent=0 // pred_check_branch
    %11 = sbr.rel (0) target = $region5
  $region4: #{similarity_model.9} parent=0 // pred_region
    _
  $region5: #{similarity_model.9} parent=0 // pred_fallthru
    _
  // Predicated region
  $region6: #{similarity_model.9} parent=0 // pred_check
    _
  $region7: #{similarity_model.9} parent=0 // pred_check_branch
    %13 = sbr.rel (0) target = $region9
  $region8: #{similarity_model.9} parent=0 // pred_region
    _
  $region9: #{similarity_model.9} parent=0 // pred_fallthru
    _
  // Predicated region
  $region10: #{similarity_model.9} parent=0 // pred_check
    _
  $region11: #{similarity_model.9} parent=0 // pred_check_branch
    %15 = sbr.rel (0) target = $region13
  $region12: #{similarity_model.9} parent=0 // pred_region
    _
  $region13: #{similarity_model.9} parent=0 // pred_fallthru
    _
  %v16 = vld [vmem:[%s0] sm:$0x3]
  %v17 = vld [vmem:[%s1] sm:$0x1]
  %v19 = vlaneseq
  %v20 = vshrl.u32 %v19, 7
  %v21 = vsub.s32 0, %v20
  %v22 = vrot.slane %v17, %v21
  %v24 = vmul.f32 %v16, %v22
  %vm25 = vcmask 1041408
  %v26 = vsel %vm25, %v24, 0.0
  %27 = vadd.xlane.f32.xlu0 %v26
  %v28 = vpop.xlane.xlu0 %27
  %v29 = vld [vmem:[#allocation2] sm:$0x1]
  %v31 = vlaneseq
  %v32 = vshrl.u32 %v31, 7
  %v33 = vsub.s32 0, %v32
  %v34 = vrot.slane %v29, %v33
  %v36 = vadd.f32 %v28, %v34
  %v37 = vxor.u32 %v36, 2147483648
  %v38 = vmul.f32 %v37, 1.442695
  %v39 = vpow.pop %v38
  %v40 = vadd.f32 %v39, 1.0
  %v41 = vrcp.pop %v40
  %v42 = vmul.f32 1.0, %v41
  %vm43 = vcmask 1024
  %44 = vst.msk [vmem:[%s3] sm:$0x3] %vm43, %v42
  // Predicated region
  $region14: #{similarity_model.9} parent=0 // pred_check
    _
  $region15: #{similarity_model.9} parent=0 // pred_check_branch
    %46 = sbr.rel (0) target = $region17
  $region16: #{similarity_model.9} parent=0 // pred_region
    _
  $region17: #{similarity_model.9} parent=0 // pred_fallthru
    _
  // Predicated region
  $region18: #{similarity_model.9} parent=0 // pred_check
    _
  $region19: #{similarity_model.9} parent=0 // pred_check_branch
    %48 = sbr.rel (0) target = $region21
  $region20: #{similarity_model.9} parent=0 // pred_region
    _
  $region21: #{similarity_model.9} parent=0 // pred_fallthru
    _

// kernel: similarity_model.5
$region0: #{similarity_model.5}
  #allocation0 [shape = 'u32[]', space=smem, size = 0x4, offset = 0x4, fixed_abs, tag = 'smem constant byte address 0x4 - core index']
  #allocation1 [shape = 'u32[144,128]{1,0:T(1,128)}', space=vmem, size = 0x12000, scoped, tag = 'internal scratch']
  #allocation2 [shape = 'f32[256,128]{1,0:T(8,128)}', space=vmem, size = 0x20000, scoped, tag = 'scratch operand']
  %s0 = inlined_call_operand.vmem [shape: bf16[4,18,18,4], index: 0, kind: input, shape index: {}]
  %s1 = inlined_call_operand.hbm [shape: bf16[9,4,128], index: 1, kind: input, shape index: {}]
  %s2 = inlined_call_operand.hbm [shape: f32[1,128], index: 2, kind: input, shape index: {}]
  %s3 = inlined_call_operand.vmem [shape: bf16[4,8,8,128], index: 3, kind: output, shape index: {}]
  %s4 = sld [smem:[#allocation0]]
  $region53: #{similarity_model.5} parent=0
    _
  %s6 = ssub.s32 1, %s4
  %s7 = scalar_select 0, %s6, %s4
  $region1: #{similarity_model.5} parent=0
    #allocation3 [shape = 'u8[9216]{0}', space=vmem, size = 0x2400, scoped, tag = 'input window, operand 1, single buffered']
    #allocation4 [shape = 's32[2]{0}', space=sflag, size = 0x8, scoped, tag = 'scoped memory for similarity_model.5']
    #allocation5 [shape = 'u8[512]{0}', space=vmem, size = 0x400, scoped, tag = 'input window, operand 2, single buffered']
    #allocation6 [shape = 's32[1]{0}', space=sflag, size = 0x4, scoped, tag = 'scoped memory for similarity_model.5']
    %8 = vsyncpa [#allocation4], 0
    %9 = vsyncpa [#allocation6], 0
    loop: start=0, step=1, limit=6
    $region2: #{similarity_model.5} parent=1 // loop_pre_header
      _
    $region3: #{similarity_model.5} parent=1 // loop_header
      %s11 = sphi 0, %s15
      %p12 = scmp.ge.s32.totalorder %s11, 6
      %s21 = sphi 0, %s23
      %s24 = sphi 0, %s21
      %s25 = sphi 0, %s24
      %s41 = sphi 0, %s25
      %s45 = sphi 0, %s45
      %s47 = sphi 0, %s45
      %s48 = sphi 0, %s47
      %s62 = sphi 0, %s48
      %s66 = sphi 0, %s66
      %s68 = sphi 0, %s66
      %s69 = sphi 0, %s68
      %s83 = sphi 0, %s69
      %s89 = sphi 0, %s91
      %s92 = sphi 0, %s89
      %s93 = sphi 0, %s92
      %s109 = sphi 0, %s93
    $region4: #{similarity_model.5} parent=1 // loop_header_branch
      %14 = sbr.rel (%p12) target = $region8
    $region5: #{similarity_model.5} parent=1 // loop_body
      %s16 = ssub.s32 %s11, 1
      %s17 = ssub.s32 %s11, 2
      %s18 = sadd.s32 %s11, 1
      %s19 = ssub.s32 %s11, %s18
      %p20 = scmp.eq.s32.totalorder %s19, 0
      %s22 = sadd.s32 %s21, 1
      %s23 = scalar_select %p20, %s21, %s22
      %p26 = pneg %p20
      %p27 = scmp.eq.s32.totalorder %s11, 3
      %p28 = por %p26, %p27
      %p29 = scmp.ne.s32.totalorder %s21, %s24
      %p30 = scmp.eq.s32.totalorder %s11, 0
      %p31 = por %p29, %p30
      %p32 = scmp.ne.s32.totalorder %s21, %s24
      %p33 = scmp.eq.s32.totalorder %s16, 3
      %p34 = por %p32, %p33
      %p35 = scmp.ne.s32.totalorder %s24, %s25
      %p36 = scmp.eq.s32.totalorder %s16, 0
      %p37 = por %p35, %p36
      %p38 = scmp.ne.s32.totalorder %s24, %s25
      %p39 = scmp.eq.s32.totalorder %s17, 3
      %p40 = por %p38, %p39
      %p42 = scmp.ne.s32.totalorder %s25, %s41
      %p43 = scmp.eq.s32.totalorder %s17, 0
      %p44 = por %p42, %p43
      %s46 = sadd.s32 %s45, 1
      %p49 = scmp.eq.s32.totalorder %s11, 3
      %p50 = scmp.ne.s32.totalorder %s45, %s47
      %p51 = scmp.eq.s32.totalorder %s11, 0
      %p52 = por %p50, %p51
      %p53 = scmp.ne.s32.totalorder %s45, %s47
      %p54 = scmp.eq.s32.totalorder %s16, 3
      %p55 = por %p53, %p54
      %p56 = scmp.ne.s32.totalorder %s47, %s48
      %p57 = scmp.eq.s32.totalorder %s16, 0
      %p58 = por %p56, %p57
      %p59 = scmp.ne.s32.totalorder %s47, %s48
      %p60 = scmp.eq.s32.totalorder %s17, 3
      %p61 = por %p59, %p60
      %p63 = scmp.ne.s32.totalorder %s48, %s62
      %p64 = scmp.eq.s32.totalorder %s17, 0
      %p65 = por %p63, %p64
      %s67 = sadd.s32 %s66, 1
      %p70 = scmp.eq.s32.totalorder %s11, 3
      %p71 = scmp.ne.s32.totalorder %s66, %s68
      %p72 = scmp.eq.s32.totalorder %s11, 0
      %p73 = por %p71, %p72
      %p74 = scmp.ne.s32.totalorder %s66, %s68
      %p75 = scmp.eq.s32.totalorder %s16, 3
      %p76 = por %p74, %p75
      %p77 = scmp.ne.s32.totalorder %s68, %s69
      %p78 = scmp.eq.s32.totalorder %s16, 0
      %p79 = por %p77, %p78
      %p80 = scmp.ne.s32.totalorder %s68, %s69
      %p81 = scmp.eq.s32.totalorder %s17, 3
      %p82 = por %p80, %p81
      %p84 = scmp.ne.s32.totalorder %s69, %s83
      %p85 = scmp.eq.s32.totalorder %s17, 0
      %p86 = por %p84, %p85
      %s87 = ssub.s32 %s11, %s18
      %p88 = scmp.eq.s32.totalorder %s87, 0
      %s90 = sadd.s32 %s89, 1
      %s91 = scalar_select %p88, %s89, %s90
      %p94 = pneg %p88
      %p95 = scmp.eq.s32.totalorder %s11, 3
      %p96 = por %p94, %p95
      %p97 = scmp.ne.s32.totalorder %s89, %s92
      %p98 = scmp.eq.s32.totalorder %s11, 0
      %p99 = por %p97, %p98
      %p100 = scmp.ne.s32.totalorder %s89, %s92
      %p101 = scmp.eq.s32.totalorder %s16, 3
      %p102 = por %p100, %p101
      %p103 = scmp.ne.s32.totalorder %s92, %s93
      %p104 = scmp.eq.s32.totalorder %s16, 0
      %p105 = por %p103, %p104
      %p106 = scmp.ne.s32.totalorder %s92, %s93
      %p107 = scmp.eq.s32.totalorder %s17, 3
      %p108 = por %p106, %p107
      %p110 = scmp.ne.s32.totalorder %s93, %s109
      %p111 = scmp.eq.s32.totalorder %s17, 0
      %p112 = por %p110, %p111
      %p113 = scmp.le.s32.totalorder 1, %s11
      %p114 = scmp.lt.s32.totalorder %s11, 5
      %p115 = pnand %p113, %p114
      %p116 = pneg %p115
      // Predicated region
      $region9: #{similarity_model.5} parent=5 // pred_check
        _
      $region10: #{similarity_model.5} parent=5 // pred_check_branch
        %118 = sbr.rel (%p115) target = $region12
      $region11: #{similarity_model.5} parent=5 // pred_region
        %s119 = ssub.s32 %s11, 1
        // Predicated region
        $region13: #{similarity_model.5} parent=11 // pred_check
          %p120 = pneg %p58
        $region14: #{similarity_model.5} parent=11 // pred_check_branch
          %122 = sbr.rel (%p120) target = $region16
        $region15: #{similarity_model.5} parent=11 // pred_region
          %s124 = ssub.s32 288, 288
          %125 = vsyncadd [#allocation4], %s124
          %s126 = sshll.u32 [#allocation3], 4
          %s127 = int_to_ptr.vmem [resolvable:$true] %s126
          %132 = dma.hbm_to_vmem [thread:$0]  %s1, 288, %s127, [#allocation4], 32, 32, 2
        $region16: #{similarity_model.5} parent=11 // pred_fallthru
          _
        // Predicated region
        $region17: #{similarity_model.5} parent=11 // pred_check
          %p133 = pneg %p79
        $region18: #{similarity_model.5} parent=11 // pred_check_branch
          %135 = sbr.rel (%p133) target = $region20
        $region19: #{similarity_model.5} parent=11 // pred_region
          %s137 = ssub.s32 16, 16
          %138 = vsyncadd [#allocation6], %s137
          %s140 = sshll.u32 [#allocation5], 4
          %s141 = int_to_ptr.vmem [resolvable:$true] %s140
          %143 = dma.hbm_to_vmem [thread:$0]  %s2, 16, %s141, [#allocation6]
        $region20: #{similarity_model.5} parent=11 // pred_fallthru
          _
      $region12: #{similarity_model.5} parent=5 // pred_fallthru
        _
      %p144 = scmp.lt.s32.totalorder %s11, 4
      // Predicated region
      $region21: #{similarity_model.5} parent=5 // pred_check
        %p145 = pneg %p144
      $region22: #{similarity_model.5} parent=5 // pred_check_branch
        %147 = sbr.rel (%p145) target = $region24
      $region23: #{similarity_model.5} parent=5 // pred_region
        // Predicated region
        $region25: #{similarity_model.5} parent=23 // pred_check
          %p148 = pneg %p31
        $region26: #{similarity_model.5} parent=23 // pred_check_branch
          %150 = sbr.rel (%p148) target = $region28
        $region27: #{similarity_model.5} parent=23 // pred_region
          %p151 = scmp.lt.s32.totalorder %s11, 3
          %s152 = scalar_select %p151, %s11, 3
          %s153 = smul.addr %s152, 54
          %s154 = smul.addr %s153, 4
          %s155 = scalar_lea.vmem %s0, %s154
        $region28: #{similarity_model.5} parent=23 // pred_fallthru
          _
      $region24: #{similarity_model.5} parent=5 // pred_fallthru
        _
      %p156 = scmp.le.s32.totalorder 1, %s11
      %p157 = scmp.lt.s32.totalorder %s11, 5
      %p158 = pnand %p156, %p157
      %p159 = pneg %p158
      // Predicated region
      $region29: #{similarity_model.5} parent=5 // pred_check
        _
      $region30: #{similarity_model.5} parent=5 // pred_check_branch
        %161 = sbr.rel (%p158) target = $region32
      $region31: #{similarity_model.5} parent=5 // pred_region
        %s162 = ssub.s32 %s11, 1
        // Predicated region
        $region33: #{similarity_model.5} parent=31 // pred_check
          %p163 = pneg %p58
        $region34: #{similarity_model.5} parent=31 // pred_check_branch
          %165 = sbr.rel (%p163) target = $region36
        $region35: #{similarity_model.5} parent=31 // pred_region
          %166 = dma.done [#allocation4], 288
        $region36: #{similarity_model.5} parent=31 // pred_fallthru
          _
        // Predicated region
        $region37: #{similarity_model.5} parent=31 // pred_check
          %p167 = pneg %p79
        $region38: #{similarity_model.5} parent=31 // pred_check_branch
          %169 = sbr.rel (%p167) target = $region40
        $region39: #{similarity_model.5} parent=31 // pred_region
          %170 = dma.done [#allocation6], 16
        $region40: #{similarity_model.5} parent=31 // pred_fallthru
          _
        %p171 = scmp.lt.s32.totalorder %s16, 3
        %s172 = scalar_select %p171, %s16, 3
        %s173 = smul.addr %s172, 54
        %s174 = smul.addr %s173, 4
        %s175 = scalar_lea.vmem %s0, %s174
        %p176 = pneg %p37
        %p177 = pneg %p34
        %p178 = pneg %p58
        %p179 = pneg %p55
        %p180 = pneg %p79
        %p181 = pneg %p76
        %p182 = pneg %p105
        %p183 = pneg %p102
        %p184 = scmp.lt.s32.totalorder %s16, 3
        %s185 = scalar_select %p184, %s16, 3
        %s186 = smul.addr %s185, 8
        %s187 = smul.addr %s186, 4
        %s188 = scalar_lea.vmem %s3, %s187
        %p189 = scmp.lt.s32.totalorder %s16, 3
        %s190 = scalar_select %p189, %s16, 3
        %s191 = smul.addr %s190, 54
        %s192 = smul.addr %s191, 4
        %s193 = scalar_lea.vmem %s0, %s192
        %p194 = scmp.lt.s32.totalorder %s16, 3
        %s195 = scalar_select %p194, %s16, 3
        %s196 = smul.addr %s195, 8
        %s197 = smul.addr %s196, 4
        %s198 = scalar_lea.vmem %s3, %s197
        %v200 = vld [vmem:[%s193] sm:$0xf]
        %v201 = vld [vmem:[%s193 + $0x4] sm:$0xf]
        %v202 = vld [vmem:[%s193 + $0xc] sm:$0xf]
        %v203 = vld [vmem:[%s193 + $0x10] sm:$0xf]
        %v204 = vld [vmem:[%s193 + $0x18] sm:$0xf]
        %v205 = vld [vmem:[%s193 + $0x1c] sm:$0xf]
        %v206 = vld [vmem:[%s193 + $0x24] sm:$0xf]
        %v207 = vld [vmem:[%s193 + $0x28] sm:$0xf]
        %v208 = vld [vmem:[%s193 + $0x30] sm:$0xf]
        %v209 = vld [vmem:[%s193 + $0x34] sm:$0xf]
        %v210 = vld [vmem:[%s193 + $0x3c] sm:$0xf]
        %v211 = vld [vmem:[%s193 + $0x40] sm:$0xf]
        %v212 = vld [vmem:[%s193 + $0x48] sm:$0xf]
        %v213 = vld [vmem:[%s193 + $0x4c] sm:$0xf]
        %v214 = vld [vmem:[%s193 + $0x54] sm:$0xf]
        %v215 = vld [vmem:[%s193 + $0x58] sm:$0xf]
        %v216 = vld [vmem:[%s193 + $0x60] sm:$0xf]
        %v217 = vld [vmem:[%s193 + $0x64] sm:$0xf]
        %v218 = vld [vmem:[%s193 + $0x6c] sm:$0xf]
        %v219 = vld [vmem:[%s193 + $0x70] sm:$0xf]
        %v220 = vld [vmem:[%s193 + $0x78] sm:$0xf]
        %v221 = vld [vmem:[%s193 + $0x7c] sm:$0xf]
        %v222 = vld [vmem:[%s193 + $0x84] sm:$0xf]
        %v223 = vld [vmem:[%s193 + $0x88] sm:$0xf]
        %v224 = vld [vmem:[%s193 + $0x90] sm:$0xf]
        %v225 = vld [vmem:[%s193 + $0x94] sm:$0xf]
        %v226 = vld [vmem:[%s193 + $0x9c] sm:$0xf]
        %v227 = vld [vmem:[%s193 + $0xa0] sm:$0xf]
        %v228 = vld [vmem:[%s193 + $0xa8] sm:$0xf]
        %v229 = vld [vmem:[%s193 + $0xac] sm:$0xf]
        %v230 = vld [vmem:[%s193 + $0xb4] sm:$0xf]
        %v231 = vld [vmem:[%s193 + $0xb8] sm:$0xf]
        %v232 = vld [vmem:[#allocation3] sm:$0x3]
        %v265 = vunpack.c.l.b16 %v200
        %v266 = vunpack.c.l.b16 %v201
        %v267 = vunpack.c.l.b16 %v202
        %v268 = vunpack.c.l.b16 %v203
        %v269 = vunpack.c.l.b16 %v204
        %v270 = vunpack.c.l.b16 %v205
        %v271 = vunpack.c.l.b16 %v206
        %v272 = vunpack.c.l.b16 %v207
        %v273 = vunpack.c.l.b16 %v208
        %v274 = vunpack.c.l.b16 %v209
        %v275 = vunpack.c.l.b16 %v210
        %v276 = vunpack.c.l.b16 %v211
        %v277 = vunpack.c.l.b16 %v212
        %v278 = vunpack.c.l.b16 %v213
        %v279 = vunpack.c.l.b16 %v214
        %v280 = vunpack.c.l.b16 %v215
        %v281 = vunpack.c.l.b16 %v216
        %v282 = vunpack.c.l.b16 %v217
        %v283 = vunpack.c.l.b16 %v218
        %v284 = vunpack.c.l.b16 %v219
        %v285 = vunpack.c.l.b16 %v220
        %v286 = vunpack.c.l.b16 %v221
        %v287 = vunpack.c.l.b16 %v222
        %v288 = vunpack.c.l.b16 %v223
        %v289 = vunpack.c.l.b16 %v224
        %v290 = vunpack.c.l.b16 %v225
        %v291 = vunpack.c.l.b16 %v226
        %v292 = vunpack.c.l.b16 %v227
        %v293 = vunpack.c.l.b16 %v228
        %v294 = vunpack.c.l.b16 %v229
        %v295 = vunpack.c.l.b16 %v230
        %v296 = vunpack.c.l.b16 %v231
        %v297 = vpack.c.b16 %v266, %v265
        %v298 = vpack.c.b16 %v268, %v267
        %v299 = vpack.c.b16 %v270, %v269
        %v300 = vpack.c.b16 %v272, %v271
        %v301 = vpack.c.b16 %v274, %v273
        %v302 = vpack.c.b16 %v276, %v275
        %v303 = vpack.c.b16 %v278, %v277
        %v304 = vpack.c.b16 %v280, %v279
        %v305 = vpack.c.b16 %v282, %v281
        %v306 = vpack.c.b16 %v284, %v283
        %v307 = vpack.c.b16 %v286, %v285
        %v308 = vpack.c.b16 %v288, %v287
        %v309 = vpack.c.b16 %v290, %v289
        %v310 = vpack.c.b16 %v292, %v291
        %v311 = vpack.c.b16 %v294, %v293
        %v312 = vpack.c.b16 %v296, %v295
        %vm313 = vcmask 31744
        %v315 = vsel %vm313, %v297, 0
        %v318 = vsel %vm313, %v298, 0
        %v321 = vsel %vm313, %v299, 0
        %v324 = vsel %vm313, %v300, 0
        %v327 = vsel %vm313, %v301, 0
        %v330 = vsel %vm313, %v302, 0
        %v333 = vsel %vm313, %v303, 0
        %v336 = vsel %vm313, %v304, 0
        %v339 = vsel %vm313, %v305, 0
        %v342 = vsel %vm313, %v306, 0
        %v345 = vsel %vm313, %v307, 0
        %v348 = vsel %vm313, %v308, 0
        %v351 = vsel %vm313, %v309, 0
        %v354 = vsel %vm313, %v310, 0
        %v357 = vsel %vm313, %v311, 0
        %v360 = vsel %vm313, %v312, 0
        %vm362 = vcmask 1041408
        %v364 = vsel %vm362, %v232, 0
        %366 = vmatprep.subr.bf16.mxu0 0
        %367 = vmatpush1.bf16.msra.mxu0 %v364
        %368 = vmatprep.subr.bf16.mxu0 0
        %369 = vmatpush1.bf16.msra.mxu0 0
        %370 = vmatprep.subr.bf16.mxu0 0
        %371 = vmatpush1.bf16.msra.mxu0 0
        %372 = vmatprep.subr.bf16.mxu0 0
        %373 = vmatpush1.bf16.msra.mxu0 0
        %374 = vmatprep.subr.bf16.mxu0 0
        %375 = vmatpush1.bf16.msra.mxu0 0
        %376 = vmatprep.subr.bf16.mxu0 0
        %377 = vmatpush1.bf16.msra.mxu0 0
        %378 = vmatprep.subr.bf16.mxu0 0
        %379 = vmatpush1.bf16.msra.mxu0 0
        %380 = vmatprep.subr.bf16.mxu0 0
        %381 = vmatpush1.bf16.msra.mxu0 0
        %382 = vmatprep.subr.bf16.mxu0 0
        %383 = vmatpush1.bf16.msra.mxu0 0
        %384 = vmatprep.subr.bf16.mxu0 0
        %385 = vmatpush1.bf16.msra.mxu0 0
        %386 = vmatprep.subr.bf16.mxu0 0
        %387 = vmatpush1.bf16.msra.mxu0 0
        %388 = vmatprep.subr.bf16.mxu0 0
        %389 = vmatpush1.bf16.msra.mxu0 0
        %390 = vmatprep.subr.bf16.mxu0 0
        %391 = vmatpush1.bf16.msra.mxu0 0
        %392 = vmatprep.subr.bf16.mxu0 0
        %393 = vmatpush1.bf16.msra.mxu0 0
        %394 = vmatprep.subr.bf16.mxu0 0
        %395 = vmatpush1.bf16.msra.mxu0 0
        %396 = vmatprep.subr.bf16.mxu0 0
        %397 = vmatpush1.bf16.msra.mxu0 0
        %398 = vmatprep.mubr.bf16.mxu0 0
        %399 = vmatmul.mubr.bf16.gmra.mrb[0].mxu0 %v315
        %v400 = vpop.f32.mrb[0].mxu0
        %v401 = vadd.f32 0.0, %v400
        %v402 = vpop.f32.mrb[0].mxu0
        %v403 = vpop.f32.mrb[0].mxu0
        %v404 = vadd.f32 0.0, %v403
        %v405 = vpop.f32.mrb[0].mxu0
        %406 = vmatprep.mubr.bf16.mxu0 0
        %407 = vmatmul.mubr.bf16.gmra.mrb[0].mxu0 %v318
        %v408 = vpop.f32.mrb[0].mxu0
        %v409 = vadd.f32 0.0, %v408
        %v410 = vpop.f32.mrb[0].mxu0
        %v411 = vpop.f32.mrb[0].mxu0
        %v412 = vadd.f32 0.0, %v411
        %v413 = vpop.f32.mrb[0].mxu0
        %414 = vmatprep.mubr.bf16.mxu0 0
        %415 = vmatmul.mubr.bf16.gmra.mrb[0].mxu0 %v321
        %v416 = vpop.f32.mrb[0].mxu0
        %v417 = vadd.f32 0.0, %v416
        %v418 = vpop.f32.mrb[0].mxu0
        %v419 = vpop.f32.mrb[0].mxu0
        %v420 = vadd.f32 0.0, %v419
        %v421 = vpop.f32.mrb[0].mxu0
        %422 = vmatprep.mubr.bf16.mxu0 0
        %423 = vmatmul.mubr.bf16.gmra.mrb[0].mxu0 %v324
        %v424 = vpop.f32.mrb[0].mxu0
        %v425 = vadd.f32 0.0, %v424
        %v426 = vpop.f32.mrb[0].mxu0
        %v427 = vpop.f32.mrb[0].mxu0
        %v428 = vadd.f32 0.0, %v427
        %v429 = vpop.f32.mrb[0].mxu0
        %430 = vmatprep.mubr.bf16.mxu0 0
        %431 = vmatmul.mubr.bf16.gmra.mrb[0].mxu0 %v327
        %v432 = vpop.f32.mrb[0].mxu0
        %v433 = vadd.f32 0.0, %v432
        %v434 = vpop.f32.mrb[0].mxu0
        %v435 = vpop.f32.mrb[0].mxu0
        %v436 = vadd.f32 0.0, %v435
        %v437 = vpop.f32.mrb[0].mxu0
        %438 = vmatprep.mubr.bf16.mxu0 0
        %439 = vmatmul.mubr.bf16.gmra.mrb[0].mxu0 %v330
        %v440 = vpop.f32.mrb[0].mxu0
        %v441 = vadd.f32 0.0, %v440
        %v442 = vpop.f32.mrb[0].mxu0
        %v443 = vpop.f32.mrb[0].mxu0
        %v444 = vadd.f32 0.0, %v443
        %v445 = vpop.f32.mrb[0].mxu0
        %446 = vmatprep.mubr.bf16.mxu0 0
        %447 = vmatmul.mubr.bf16.gmra.mrb[0].mxu0 %v333
        %v448 = vpop.f32.mrb[0].mxu0
        %v449 = vadd.f32 0.0, %v448
        %v450 = vpop.f32.mrb[0].mxu0
        %v451 = vpop.f32.mrb[0].mxu0
        %v452 = vadd.f32 0.0, %v451
        %v453 = vpop.f32.mrb[0].mxu0
        %454 = vmatprep.mubr.bf16.mxu0 0
        %455 = vmatmul.mubr.bf16.gmra.mrb[0].mxu0 %v336
        %v456 = vpop.f32.mrb[0].mxu0
        %v457 = vadd.f32 0.0, %v456
        %v458 = vpop.f32.mrb[0].mxu0
        %v459 = vpop.f32.mrb[0].mxu0
        %v460 = vadd.f32 0.0, %v459
        %v461 = vpop.f32.mrb[0].mxu0
        %462 = vmatprep.mubr.bf16.mxu0 0
        %463 = vmatmul.mubr.bf16.gmra.mrb[0].mxu0 %v339
        %v464 = vpop.f32.mrb[0].mxu0
        %v465 = vadd.f32 0.0, %v464
        %v466 = vpop.f32.mrb[0].mxu0
        %v467 = vpop.f32.mrb[0].mxu0
        %v468 = vadd.f32 0.0, %v467
        %v469 = vpop.f32.mrb[0].mxu0
        %470 = vmatprep.mubr.bf16.mxu0 0
        %471 = vmatmul.mubr.bf16.gmra.mrb[0].mxu0 %v342
        %v472 = vpop.f32.mrb[0].mxu0
        %v473 = vadd.f32 0.0, %v472
        %v474 = vpop.f32.mrb[0].mxu0
        %v475 = vpop.f32.mrb[0].mxu0
        %v476 = vadd.f32 0.0, %v475
        %v477 = vpop.f32.mrb[0].mxu0
        %478 = vmatprep.mubr.bf16.mxu0 0
        %479 = vmatmul.mubr.bf16.gmra.mrb[0].mxu0 %v345
        %v480 = vpop.f32.mrb[0].mxu0
        %v481 = vadd.f32 0.0, %v480
        %v482 = vpop.f32.mrb[0].mxu0
        %v483 = vpop.f32.mrb[0].mxu0
        %v484 = vadd.f32 0.0, %v483
        %v485 = vpop.f32.mrb[0].mxu0
        %486 = vmatprep.mubr.bf16.mxu0 0
        %487 = vmatmul.mubr.bf16.gmra.mrb[0].mxu0 %v348
        %v488 = vpop.f32.mrb[0].mxu0
        %v489 = vadd.f32 0.0, %v488
        %v490 = vpop.f32.mrb[0].mxu0
        %v491 = vpop.f32.mrb[0].mxu0
        %v492 = vadd.f32 0.0, %v491
        %v493 = vpop.f32.mrb[0].mxu0
        %494 = vmatprep.mubr.bf16.mxu0 0
        %495 = vmatmul.mubr.bf16.gmra.mrb[0].mxu0 %v351
        %v496 = vpop.f32.mrb[0].mxu0
        %v497 = vadd.f32 0.0, %v496
        %v498 = vpop.f32.mrb[0].mxu0
        %v499 = vpop.f32.mrb[0].mxu0
        %v500 = vadd.f32 0.0, %v499
        %v501 = vpop.f32.mrb[0].mxu0
        %502 = vmatprep.mubr.bf16.mxu0 0
        %503 = vmatmul.mubr.bf16.gmra.mrb[0].mxu0 %v354
        %v504 = vpop.f32.mrb[0].mxu0
        %v505 = vadd.f32 0.0, %v504
        %v506 = vpop.f32.mrb[0].mxu0
        %v507 = vpop.f32.mrb[0].mxu0
        %v508 = vadd.f32 0.0, %v507
        %v509 = vpop.f32.mrb[0].mxu0
        %510 = vmatprep.mubr.bf16.mxu0 0
        %511 = vmatmul.mubr.bf16.gmra.mrb[0].mxu0 %v357
        %v512 = vpop.f32.mrb[0].mxu0
        %v513 = vadd.f32 0.0, %v512
        %v514 = vpop.f32.mrb[0].mxu0
        %v515 = vpop.f32.mrb[0].mxu0
        %v516 = vadd.f32 0.0, %v515
        %v517 = vpop.f32.mrb[0].mxu0
        %518 = vmatprep.mubr.bf16.mxu0 0
        %519 = vmatmul.mubr.bf16.gmra.mrb[0].mxu0 %v360
        %v520 = vpop.f32.mrb[0].mxu0
        %v521 = vadd.f32 0.0, %v520
        %v522 = vpop.f32.mrb[0].mxu0
        %v523 = vpop.f32.mrb[0].mxu0
        %v524 = vadd.f32 0.0, %v523
        %v525 = vpop.f32.mrb[0].mxu0
        %526 = vdwg.mxu0
        %527 = vst [vmem:[#allocation2] sm:$0xff] %v401
        %528 = vst [vmem:[#allocation2 + $0x8] sm:$0xff] %v404
        %529 = vst [vmem:[#allocation2 + $0x10] sm:$0xff] %v409
        %530 = vst [vmem:[#allocation2 + $0x18] sm:$0xff] %v412
        %531 = vst [vmem:[#allocation2 + $0x20] sm:$0xff] %v417
        %532 = vst [vmem:[#allocation2 + $0x28] sm:$0xff] %v420
        %533 = vst [vmem:[#allocation2 + $0x30] sm:$0xff] %v425
        %534 = vst [vmem:[#allocation2 + $0x38] sm:$0xff] %v428
        %535 = vst [vmem:[#allocation2 + $0x40] sm:$0xff] %v433
        %536 = vst [vmem:[#allocation2 + $0x48] sm:$0xff] %v436
        %537 = vst [vmem:[#allocation2 + $0x50] sm:$0xff] %v441
        %538 = vst [vmem:[#allocation2 + $0x58] sm:$0xff] %v444
        %539 = vst [vmem:[#allocation2 + $0x60] sm:$0xff] %v449
        %540 = vst [vmem:[#allocation2 + $0x68] sm:$0xff] %v452
        %541 = vst [vmem:[#allocation2 + $0x70] sm:$0xff] %v457
        %542 = vst [vmem:[#allocation2 + $0x78] sm:$0xff] %v460
        %543 = vst [vmem:[#allocation2 + $0x80] sm:$0xff] %v465
        %544 = vst [vmem:[#allocation2 + $0x88] sm:$0xff] %v468
        %545 = vst [vmem:[#allocation2 + $0x90] sm:$0xff] %v473
        %546 = vst [vmem:[#allocation2 + $0x98] sm:$0xff] %v476
        %547 = vst [vmem:[#allocation2 + $0xa0] sm:$0xff] %v481
        %548 = vst [vmem:[#allocation2 + $0xa8] sm:$0xff] %v484
        %549 = vst [vmem:[#allocation2 + $0xb0] sm:$0xff] %v489
        %550 = vst [vmem:[#allocation2 + $0xb8] sm:$0xff] %v492
        %551 = vst [vmem:[#allocation2 + $0xc0] sm:$0xff] %v497
        %552 = vst [vmem:[#allocation2 + $0xc8] sm:$0xff] %v500
        %553 = vst [vmem:[#allocation2 + $0xd0] sm:$0xff] %v505
        %554 = vst [vmem:[#allocation2 + $0xd8] sm:$0xff] %v508
        %555 = vst [vmem:[#allocation2 + $0xe0] sm:$0xff] %v513
        %556 = vst [vmem:[#allocation2 + $0xe8] sm:$0xff] %v516
        %557 = vst [vmem:[#allocation2 + $0xf0] sm:$0xff] %v521
        %558 = vst [vmem:[#allocation2 + $0xf8] sm:$0xff] %v524
        %v559 = vld [vmem:[%s193] sm:$0xf]
        %v560 = vld [vmem:[%s193 + $0x4] sm:$0xf]
        %v561 = vld [vmem:[%s193 + $0x8] sm:$0x1]
        %v562 = vld [vmem:[%s193 + $0xc] sm:$0xf]
        %v563 = vld [vmem:[%s193 + $0x10] sm:$0xf]
        %v564 = vld [vmem:[%s193 + $0x14] sm:$0x1]
        %v565 = vld [vmem:[%s193 + $0x18] sm:$0xf]
        %v566 = vld [vmem:[%s193 + $0x1c] sm:$0xf]
        %v567 = vld [vmem:[%s193 + $0x20] sm:$0x1]
        %v568 = vld [vmem:[%s193 + $0x24] sm:$0xf]
        %v569 = vld [vmem:[%s193 + $0x28] sm:$0xf]
        %v570 = vld [vmem:[%s193 + $0x2c] sm:$0x1]
        %v571 = vld [vmem:[%s193 + $0x30] sm:$0xf]
        %v572 = vld [vmem:[%s193 + $0x34] sm:$0xf]
        %v573 = vld [vmem:[%s193 + $0x38] sm:$0x1]
        %v574 = vld [vmem:[%s193 + $0x3c] sm:$0xf]
        %v575 = vld [vmem:[%s193 + $0x40] sm:$0xf]
        %v576 = vld [vmem:[%s193 + $0x44] sm:$0x1]
        %v577 = vld [vmem:[%s193 + $0x48] sm:$0xf]
        %v578 = vld [vmem:[%s193 + $0x4c] sm:$0xf]
        %v579 = vld [vmem:[%s193 + $0x50] sm:$0x1]
        %v580 = vld [vmem:[%s193 + $0x54] sm:$0xf]
        %v581 = vld [vmem:[%s193 + $0x58] sm:$0xf]
        %v582 = vld [vmem:[%s193 + $0x5c] sm:$0x1]
        %v583 = vld [vmem:[%s193 + $0x60] sm:$0xf]
        %v584 = vld [vmem:[%s193 + $0x64] sm:$0xf]
        %v585 = vld [vmem:[%s193 + $0x68] sm:$0x1]
        %v586 = vld [vmem:[%s193 + $0x6c] sm:$0xf]
        %v587 = vld [vmem:[%s193 + $0x70] sm:$0xf]
        %v588 = vld [vmem:[%s193 + $0x74] sm:$0x1]
        %v589 = vld [vmem:[%s193 + $0x78] sm:$0xf]
        %v590 = vld [vmem:[%s193 + $0x7c] sm:$0xf]
        %v591 = vld [vmem:[%s193 + $0x80] sm:$0x1]
        %v592 = vld [vmem:[%s193 + $0x84] sm:$0xf]
        %v593 = vld [vmem:[%s193 + $0x88] sm:$0xf]
        %v594 = vld [vmem:[%s193 + $0x8c] sm:$0x1]
        %v595 = vld [vmem:[%s193 + $0x90] sm:$0xf]
        %v596 = vld [vmem:[%s193 + $0x94] sm:$0xf]
        %v597 = vld [vmem:[%s193 + $0x98] sm:$0x1]
        %v598 = vld [vmem:[%s193 + $0x9c] sm:$0xf]
        %v599 = vld [vmem:[%s193 + $0xa0] sm:$0xf]
        %v600 = vld [vmem:[%s193 + $0xa4] sm:$0x1]
        %v601 = vld [vmem:[%s193 + $0xa8] sm:$0xf]
        %v602 = vld [vmem:[%s193 + $0xac] sm:$0xf]
        %v603 = vld [vmem:[%s193 + $0xb0] sm:$0x1]
        %v604 = vld [vmem:[%s193 + $0xb4] sm:$0xf]
        %v605 = vld [vmem:[%s193 + $0xb8] sm:$0xf]
        %v606 = vld [vmem:[%s193 + $0xbc] sm:$0x1]
        %vm607 = vsmask.f32 3328
        %vm608 = vsmask.f32 7440
        %vm609 = vmor %vm607, %vm608
        %v611 = vshrl.u32 %v559, 16
        %v613 = vrot.slane %v611, 4
        %v614 = vshll.u32 %v559, 16
        %v616 = vrot.slane %v614, 5
        %v617 = vor.u32 %v613, %v616
        %v618 = vrot.slane %v617, 4
        %v620 = vshll.u32 %v560, 16
        %v622 = vrot.slane %v620, 5
        %v623 = vsel %vm609, %v618, %v622
        %v624 = vshrl.u32 %v560, 16
        %v626 = vrot.slane %v624, 4
        %v627 = vor.u32 %v626, %v622
        %v628 = vrot.slane %v627, 4
        %v630 = vshll.u32 %v561, 16
        %v632 = vrot.slane %v630, 5
        %v633 = vsel %vm609, %v628, %v632
        %v635 = vshrl.u32 %v562, 16
        %v637 = vrot.slane %v635, 4
        %v638 = vshll.u32 %v562, 16
        %v640 = vrot.slane %v638, 5
        %v641 = vor.u32 %v637, %v640
        %v642 = vrot.slane %v641, 4
        %v644 = vshll.u32 %v563, 16
        %v646 = vrot.slane %v644, 5
        %v647 = vsel %vm609, %v642, %v646
        %v648 = vshrl.u32 %v563, 16
        %v650 = vrot.slane %v648, 4
        %v651 = vor.u32 %v650, %v646
        %v652 = vrot.slane %v651, 4
        %v654 = vshll.u32 %v564, 16
        %v656 = vrot.slane %v654, 5
        %v657 = vsel %vm609, %v652, %v656
        %v659 = vshrl.u32 %v565, 16
        %v661 = vrot.slane %v659, 4
        %v662 = vshll.u32 %v565, 16
        %v664 = vrot.slane %v662, 5
        %v665 = vor.u32 %v661, %v664
        %v666 = vrot.slane %v665, 4
        %v668 = vshll.u32 %v566, 16
        %v670 = vrot.slane %v668, 5
        %v671 = vsel %vm609, %v666, %v670
        %v672 = vshrl.u32 %v566, 16
        %v674 = vrot.slane %v672, 4
        %v675 = vor.u32 %v674, %v670
        %v676 = vrot.slane %v675, 4
        %v678 = vshll.u32 %v567, 16
        %v680 = vrot.slane %v678, 5
        %v681 = vsel %vm609, %v676, %v680
        %v683 = vshrl.u32 %v568, 16
        %v685 = vrot.slane %v683, 4
        %v686 = vshll.u32 %v568, 16
        %v688 = vrot.slane %v686, 5
        %v689 = vor.u32 %v685, %v688
        %v690 = vrot.slane %v689, 4
        %v692 = vshll.u32 %v569, 16
        %v694 = vrot.slane %v692, 5
        %v695 = vsel %vm609, %v690, %v694
        %v696 = vshrl.u32 %v569, 16
        %v698 = vrot.slane %v696, 4
        %v699 = vor.u32 %v698, %v694
        %v700 = vrot.slane %v699, 4
        %v702 = vshll.u32 %v570, 16
        %v704 = vrot.slane %v702, 5
        %v705 = vsel %vm609, %v700, %v704
        %v707 = vshrl.u32 %v571, 16
        %v709 = vrot.slane %v707, 4
        %v710 = vshll.u32 %v571, 16
        %v712 = vrot.slane %v710, 5
        %v713 = vor.u32 %v709, %v712
        %v714 = vrot.slane %v713, 4
        %v716 = vshll.u32 %v572, 16
        %v718 = vrot.slane %v716, 5
        %v719 = vsel %vm609, %v714, %v718
        %v720 = vshrl.u32 %v572, 16
        %v722 = vrot.slane %v720, 4
        %v723 = vor.u32 %v722, %v718
        %v724 = vrot.slane %v723, 4
        %v726 = vshll.u32 %v573, 16
        %v728 = vrot.slane %v726, 5
        %v729 = vsel %vm609, %v724, %v728
        %v731 = vshrl.u32 %v574, 16
        %v733 = vrot.slane %v731, 4
        %v734 = vshll.u32 %v574, 16
        %v736 = vrot.slane %v734, 5
        %v737 = vor.u32 %v733, %v736
        %v738 = vrot.slane %v737, 4
        %v740 = vshll.u32 %v575, 16
        %v742 = vrot.slane %v740, 5
        %v743 = vsel %vm609, %v738, %v742
        %v744 = vshrl.u32 %v575, 16
        %v746 = vrot.slane %v744, 4
        %v747 = vor.u32 %v746, %v742
        %v748 = vrot.slane %v747, 4
        %v750 = vshll.u32 %v576, 16
        %v752 = vrot.slane %v750, 5
        %v753 = vsel %vm609, %v748, %v752
        %v755 = vshrl.u32 %v577, 16
        %v757 = vrot.slane %v755, 4
        %v758 = vshll.u32 %v577, 16
        %v760 = vrot.slane %v758, 5
        %v761 = vor.u32 %v757, %v760
        %v762 = vrot.slane %v761, 4
        %v764 = vshll.u32 %v578, 16
        %v766 = vrot.slane %v764, 5
        %v767 = vsel %vm609, %v762, %v766
        %v768 = vshrl.u32 %v578, 16
        %v770 = vrot.slane %v768, 4
        %v771 = vor.u32 %v770, %v766
        %v772 = vrot.slane %v771, 4
        %v774 = vshll.u32 %v579, 16
        %v776 = vrot.slane %v774, 5
        %v777 = vsel %vm609, %v772, %v776
        %v779 = vshrl.u32 %v580, 16
        %v781 = vrot.slane %v779, 4
        %v782 = vshll.u32 %v580, 16
        %v784 = vrot.slane %v782, 5
        %v785 = vor.u32 %v781, %v784
        %v786 = vrot.slane %v785, 4
        %v788 = vshll.u32 %v581, 16
        %v790 = vrot.slane %v788, 5
        %v791 = vsel %vm609, %v786, %v790
        %v792 = vshrl.u32 %v581, 16
        %v794 = vrot.slane %v792, 4
        %v795 = vor.u32 %v794, %v790
        %v796 = vrot.slane %v795, 4
        %v798 = vshll.u32 %v582, 16
        %v800 = vrot.slane %v798, 5
        %v801 = vsel %vm609, %v796, %v800
        %v803 = vshrl.u32 %v583, 16
        %v805 = vrot.slane %v803, 4
        %v806 = vshll.u32 %v583, 16
        %v808 = vrot.slane %v806, 5
        %v809 = vor.u32 %v805, %v808
        %v810 = vrot.slane %v809, 4
        %v812 = vshll.u32 %v584, 16
        %v814 = vrot.slane %v812, 5
        %v815 = vsel %vm609, %v810, %v814
        %v816 = vshrl.u32 %v584, 16
        %v818 = vrot.slane %v816, 4
        %v819 = vor.u32 %v818, %v814
        %v820 = vrot.slane %v819, 4
        %v822 = vshll.u32 %v585, 16
        %v824 = vrot.slane %v822, 5
        %v825 = vsel %vm609, %v820, %v824
        %v827 = vshrl.u32 %v586, 16
        %v829 = vrot.slane %v827, 4
        %v830 = vshll.u32 %v586, 16
        %v832 = vrot.slane %v830, 5
        %v833 = vor.u32 %v829, %v832
        %v834 = vrot.slane %v833, 4
        %v836 = vshll.u32 %v587, 16
        %v838 = vrot.slane %v836, 5
        %v839 = vsel %vm609, %v834, %v838
        %v840 = vshrl.u32 %v587, 16
        %v842 = vrot.slane %v840, 4
        %v843 = vor.u32 %v842, %v838
        %v844 = vrot.slane %v843, 4
        %v846 = vshll.u32 %v588, 16
        %v848 = vrot.slane %v846, 5
        %v849 = vsel %vm609, %v844, %v848
        %v851 = vshrl.u32 %v589, 16
        %v853 = vrot.slane %v851, 4
        %v854 = vshll.u32 %v589, 16
        %v856 = vrot.slane %v854, 5
        %v857 = vor.u32 %v853, %v856
        %v858 = vrot.slane %v857, 4
        %v860 = vshll.u32 %v590, 16
        %v862 = vrot.slane %v860, 5
        %v863 = vsel %vm609, %v858, %v862
        %v864 = vshrl.u32 %v590, 16
        %v866 = vrot.slane %v864, 4
        %v867 = vor.u32 %v866, %v862
        %v868 = vrot.slane %v867, 4
        %v870 = vshll.u32 %v591, 16
        %v872 = vrot.slane %v870, 5
        %v873 = vsel %vm609, %v868, %v872
        %v875 = vshrl.u32 %v592, 16
        %v877 = vrot.slane %v875, 4
        %v878 = vshll.u32 %v592, 16
        %v880 = vrot.slane %v878, 5
        %v881 = vor.u32 %v877, %v880
        %v882 = vrot.slane %v881, 4
        %v884 = vshll.u32 %v593, 16
        %v886 = vrot.slane %v884, 5
        %v887 = vsel %vm609, %v882, %v886
        %v888 = vshrl.u32 %v593, 16
        %v890 = vrot.slane %v888, 4
        %v891 = vor.u32 %v890, %v886
        %v892 = vrot.slane %v891, 4
        %v894 = vshll.u32 %v594, 16
        %v896 = vrot.slane %v894, 5
        %v897 = vsel %vm609, %v892, %v896
        %v899 = vshrl.u32 %v595, 16
        %v901 = vrot.slane %v899, 4
        %v902 = vshll.u32 %v595, 16
        %v904 = vrot.slane %v902, 5
        %v905 = vor.u32 %v901, %v904
        %v906 = vrot.slane %v905, 4
        %v908 = vshll.u32 %v596, 16
        %v910 = vrot.slane %v908, 5
        %v911 = vsel %vm609, %v906, %v910
        %v912 = vshrl.u32 %v596, 16
        %v914 = vrot.slane %v912, 4
        %v915 = vor.u32 %v914, %v910
        %v916 = vrot.slane %v915, 4
        %v918 = vshll.u32 %v597, 16
        %v920 = vrot.slane %v918, 5
        %v921 = vsel %vm609, %v916, %v920
        %v923 = vshrl.u32 %v598, 16
        %v925 = vrot.slane %v923, 4
        %v926 = vshll.u32 %v598, 16
        %v928 = vrot.slane %v926, 5
        %v929 = vor.u32 %v925, %v928
        %v930 = vrot.slane %v929, 4
        %v932 = vshll.u32 %v599, 16
        %v934 = vrot.slane %v932, 5
        %v935 = vsel %vm609, %v930, %v934
        %v936 = vshrl.u32 %v599, 16
        %v938 = vrot.slane %v936, 4
        %v939 = vor.u32 %v938, %v934
        %v940 = vrot.slane %v939, 4
        %v942 = vshll.u32 %v600, 16
        %v944 = vrot.slane %v942, 5
        %v945 = vsel %vm609, %v940, %v944
        %v947 = vshrl.u32 %v601, 16
        %v949 = vrot.slane %v947, 4
        %v950 = vshll.u32 %v601, 16
        %v952 = vrot.slane %v950, 5
        %v953 = vor.u32 %v949, %v952
        %v954 = vrot.slane %v953, 4
        %v956 = vshll.u32 %v602, 16
        %v958 = vrot.slane %v956, 5
        %v959 = vsel %vm609, %v954, %v958
        %v960 = vshrl.u32 %v602, 16
        %v962 = vrot.slane %v960, 4
        %v963 = vor.u32 %v962, %v958
        %v964 = vrot.slane %v963, 4
        %v966 = vshll.u32 %v603, 16
        %v968 = vrot.slane %v966, 5
        %v969 = vsel %vm609, %v964, %v968
        %v971 = vshrl.u32 %v604, 16
        %v973 = vrot.slane %v971, 4
        %v974 = vshll.u32 %v604, 16
        %v976 = vrot.slane %v974, 5
        %v977 = vor.u32 %v973, %v976
        %v978 = vrot.slane %v977, 4
        %v980 = vshll.u32 %v605, 16
        %v982 = vrot.slane %v980, 5
        %v983 = vsel %vm609, %v978, %v982
        %v984 = vshrl.u32 %v605, 16
        %v986 = vrot.slane %v984, 4
        %v987 = vor.u32 %v986, %v982
        %v988 = vrot.slane %v987, 4
        %v990 = vshll.u32 %v606, 16
        %v992 = vrot.slane %v990, 5
        %v993 = vsel %vm609, %v988, %v992
        %s994 = scalar_lea.vmem [#allocation3], 2
        %v995 = vld [vmem:[%s994] sm:$0x3]
        %v996 = vunpack.c.l.b16 %v623
        %v997 = vunpack.c.l.b16 %v633
        %v998 = vunpack.c.l.b16 %v647
        %v999 = vunpack.c.l.b16 %v657
        %v1000 = vunpack.c.l.b16 %v671
        %v1001 = vunpack.c.l.b16 %v681
        %v1002 = vunpack.c.l.b16 %v695
        %v1003 = vunpack.c.l.b16 %v705
        %v1004 = vunpack.c.l.b16 %v719
        %v1005 = vunpack.c.l.b16 %v729
        %v1006 = vunpack.c.l.b16 %v743
        %v1007 = vunpack.c.l.b16 %v753
        %v1008 = vunpack.c.l.b16 %v767
        %v1009 = vunpack.c.l.b16 %v777
        %v1010 = vunpack.c.l.b16 %v791
        %v1011 = vunpack.c.l.b16 %v801
        %v1012 = vunpack.c.l.b16 %v815
        %v1013 = vunpack.c.l.b16 %v825
        %v1014 = vunpack.c.l.b16 %v839
        %v1015 = vunpack.c.l.b16 %v849
        %v1016 = vunpack.c.l.b16 %v863
        %v1017 = vunpack.c.l.b16 %v873
        %v1018 = vunpack.c.l.b16 %v887
        %v1019 = vunpack.c.l.b16 %v897
        %v1020 = vunpack.c.l.b16 %v911
        %v1021 = vunpack.c.l.b16 %v921
        %v1022 = vunpack.c.l.b16 %v935
        %v1023 = vunpack.c.l.b16 %v945
        %v1024 = vunpack.c.l.b16 %v959
        %v1025 = vunpack.c.l.b16 %v969
        %v1026 = vunpack.c.l.b16 %v983
        %v1027 = vunpack.c.l.b16 %v993
        %v1028 = vpack.c.b16 %v997, %v996
        %v1029 = vpack.c.b16 %v999, %v998
        %v1030 = vpack.c.b16 %v1001, %v1000
        %v1031 = vpack.c.b16 %v1003, %v1002
        %v1032 = vpack.c.b16 %v1005, %v1004
        %v1033 = vpack.c.b16 %v1007, %v1006
        %v1034 = vpack.c.b16 %v1009, %v1008
        %v1035 = vpack.c.b16 %v1011, %v1010
        %v1036 = vpack.c.b16 %v1013, %v1012
        %v1037 = vpack.c.b16 %v1015, %v1014
        %v1038 = vpack.c.b16 %v1017, %v1016
        %v1039 = vpack.c.b16 %v1019, %v1018
        %v1040 = vpack.c.b16 %v1021, %v1020
        %v1041 = vpack.c.b16 %v1023, %v1022
        %v1042 = vpack.c.b16 %v1025, %v1024
        %v1043 = vpack.c.b16 %v1027, %v1026
        %v1045 = vsel %vm313, %v1028, 0
        %v1048 = vsel %vm313, %v1029, 0
        %v1051 = vsel %vm313, %v1030, 0
        %v1054 = vsel %vm313, %v1031, 0
        %v1057 = vsel %vm313, %v1032, 0
        %v1060 = vsel %vm313, %v1033, 0
        %v1063 = vsel %vm313, %v1034, 0
        %v1066 = vsel %vm313, %v1035, 0
        %v1069 = vsel %vm313, %v1036, 0
        %v1072 = vsel %vm313, %v1037, 0
        %v1075 = vsel %vm313, %v1038, 0
        %v1078 = vsel %vm313, %v1039, 0
        %v1081 = vsel %vm313, %v1040, 0
        %v1084 = vsel %vm313, %v1041, 0
        %v1087 = vsel %vm313, %v1042, 0
        %v1090 = vsel %vm313, %v1043, 0
        %v1093 = vsel %vm362, %v995, 0
        %1095 = vmatprep.subr.bf16.mxu0 0
        %1096 = vmatpush1.bf16.msra.mxu0 %v1093
        %1097 = vmatprep.subr.bf16.mxu0 0
        %1098 = vmatpush1.bf16.msra.mxu0 0
        %1099 = vmatprep.subr.bf16.mxu0 0
        %1100 = vmatpush1.bf16.msra.mxu0 0
        %1101 = vmatprep.subr.bf16.mxu0 0
        %1102 = vmatpush1.bf16.msra.mxu0 0
        %1103 = vmatprep.subr.bf16.mxu0 0
        %1104 = vmatpush1.bf16.msra.mxu0 0
        %1105 = vmatprep.subr.bf16.mxu0 0
        %1106 = vmatpush1.bf16.msra.mxu0 0
        %1107 = vmatprep.subr.bf16.mxu0 0
        %1108 = vmatpush1.bf16.msra.mxu0 0
        %1109 = vmatprep.subr.bf16.mxu0 0
        %1110 = vmatpush1.bf16.msra.mxu0 0
        %1111 = vmatprep.subr.bf16.mxu0 0
        %1112 = vmatpush1.bf16.msra.mxu0 0
        %1113 = vmatprep.subr.bf16.mxu0 0
        %1114 = vmatpush1.bf16.msra.mxu0 0
        %1115 = vmatprep.subr.bf16.mxu0 0
        %1116 = vmatpush1.bf16.msra.mxu0 0
        %1117 = vmatprep.subr.bf16.mxu0 0
        %1118 = vmatpush1.bf16.msra.mxu0 0
        %1119 = vmatprep.subr.bf16.mxu0 0
        %1120 = vmatpush1.bf16.msra.mxu0 0
        %1121 = vmatprep.subr.bf16.mxu0 0
        %1122 = vmatpush1.bf16.msra.mxu0 0
        %1123 = vmatprep.subr.bf16.mxu0 0
        %1124 = vmatpush1.bf16.msra.mxu0 0
        %1125 = vmatprep.subr.bf16.mxu0 0
        %1126 = vmatpush1.bf16.msra.mxu0 0
        %1127 = vmatprep.mubr.bf16.mxu0 0
        %1128 = vmatmul.mubr.bf16.gmra.mrb[0].mxu0 %v1045
        %v1129 = vpop.f32.mrb[0].mxu0
        %v1130 = vadd.f32 0.0, %v1129
        %v1131 = vpop.f32.mrb[0].mxu0
        %v1132 = vpop.f32.mrb[0].mxu0
        %v1133 = vadd.f32 0.0, %v1132
        %v1134 = vpop.f32.mrb[0].mxu0
        %1135 = vmatprep.mubr.bf16.mxu0 0
        %1136 = vmatmul.mubr.bf16.gmra.mrb[0].mxu0 %v1048
        %v1137 = vpop.f32.mrb[0].mxu0
        %v1138 = vadd.f32 0.0, %v1137
        %v1139 = vpop.f32.mrb[0].mxu0
        %v1140 = vpop.f32.mrb[0].mxu0
        %v1141 = vadd.f32 0.0, %v1140
        %v1142 = vpop.f32.mrb[0].mxu0
        %1143 = vmatprep.mubr.bf16.mxu0 0
        %1144 = vmatmul.mubr.bf16.gmra.mrb[0].mxu0 %v1051
        %v1145 = vpop.f32.mrb[0].mxu0
        %v1146 = vadd.f32 0.0, %v1145
        %v1147 = vpop.f32.mrb[0].mxu0
        %v1148 = vpop.f32.mrb[0].mxu0
        %v1149 = vadd.f32 0.0, %v1148
        %v1150 = vpop.f32.mrb[0].mxu0
        %1151 = vmatprep.mubr.bf16.mxu0 0
        %1152 = vmatmul.mubr.bf16.gmra.mrb[0].mxu0 %v1054
        %v1153 = vpop.f32.mrb[0].mxu0
        %v1154 = vadd.f32 0.0, %v1153
        %v1155 = vpop.f32.mrb[0].mxu0
        %v1156 = vpop.f32.mrb[0].mxu0
        %v1157 = vadd.f32 0.0, %v1156
        %v1158 = vpop.f32.mrb[0].mxu0
        %1159 = vmatprep.mubr.bf16.mxu0 0
        %1160 = vmatmul.mubr.bf16.gmra.mrb[0].mxu0 %v1057
        %v1161 = vpop.f32.mrb[0].mxu0
        %v1162 = vadd.f32 0.0, %v1161
        %v1163 = vpop.f32.mrb[0].mxu0
        %v1164 = vpop.f32.mrb[0].mxu0
        %v1165 = vadd.f32 0.0, %v1164
        %v1166 = vpop.f32.mrb[0].mxu0
        %1167 = vmatprep.mubr.bf16.mxu0 0
        %1168 = vmatmul.mubr.bf16.gmra.mrb[0].mxu0 %v1060
        %v1169 = vpop.f32.mrb[0].mxu0
        %v1170 = vadd.f32 0.0, %v1169
        %v1171 = vpop.f32.mrb[0].mxu0
        %v1172 = vpop.f32.mrb[0].mxu0
        %v1173 = vadd.f32 0.0, %v1172
        %v1174 = vpop.f32.mrb[0].mxu0
        %1175 = vmatprep.mubr.bf16.mxu0 0
        %1176 = vmatmul.mubr.bf16.gmra.mrb[0].mxu0 %v1063
        %v1177 = vpop.f32.mrb[0].mxu0
        %v1178 = vadd.f32 0.0, %v1177
        %v1179 = vpop.f32.mrb[0].mxu0
        %v1180 = vpop.f32.mrb[0].mxu0
        %v1181 = vadd.f32 0.0, %v1180
        %v1182 = vpop.f32.mrb[0].mxu0
        %1183 = vmatprep.mubr.bf16.mxu0 0
        %1184 = vmatmul.mubr.bf16.gmra.mrb[0].mxu0 %v1066
        %v1185 = vpop.f32.mrb[0].mxu0
        %v1186 = vadd.f32 0.0, %v1185
        %v1187 = vpop.f32.mrb[0].mxu0
        %v1188 = vpop.f32.mrb[0].mxu0
        %v1189 = vadd.f32 0.0, %v1188
        %v1190 = vpop.f32.mrb[0].mxu0
        %1191 = vmatprep.mubr.bf16.mxu0 0
        %1192 = vmatmul.mubr.bf16.gmra.mrb[0].mxu0 %v1069
        %v1193 = vpop.f32.mrb[0].mxu0
        %v1194 = vadd.f32 0.0, %v1193
        %v1195 = vpop.f32.mrb[0].mxu0
        %v1196 = vpop.f32.mrb[0].mxu0
        %v1197 = vadd.f32 0.0, %v1196
        %v1198 = vpop.f32.mrb[0].mxu0
        %1199 = vmatprep.mubr.bf16.mxu0 0
        %1200 = vmatmul.mubr.bf16.gmra.mrb[0].mxu0 %v1072
        %v1201 = vpop.f32.mrb[0].mxu0
        %v1202 = vadd.f32 0.0, %v1201
        %v1203 = vpop.f32.mrb[0].mxu0
        %v1204 = vpop.f32.mrb[0].mxu0
        %v1205 = vadd.f32 0.0, %v1204
        %v1206 = vpop.f32.mrb[0].mxu0
        %1207 = vmatprep.mubr.bf16.mxu0 0
        %1208 = vmatmul.mubr.bf16.gmra.mrb[0].mxu0 %v1075
        %v1209 = vpop.f32.mrb[0].mxu0
        %v1210 = vadd.f32 0.0, %v1209
        %v1211 = vpop.f32.mrb[0].mxu0
        %v1212 = vpop.f32.mrb[0].mxu0
        %v1213 = vadd.f32 0.0, %v1212
        %v1214 = vpop.f32.mrb[0].mxu0
        %1215 = vmatprep.mubr.bf16.mxu0 0
        %1216 = vmatmul.mubr.bf16.gmra.mrb[0].mxu0 %v1078
        %v1217 = vpop.f32.mrb[0].mxu0
        %v1218 = vadd.f32 0.0, %v1217
        %v1219 = vpop.f32.mrb[0].mxu0
        %v1220 = vpop.f32.mrb[0].mxu0
        %v1221 = vadd.f32 0.0, %v1220
        %v1222 = vpop.f32.mrb[0].mxu0
        %1223 = vmatprep.mubr.bf16.mxu0 0
        %1224 = vmatmul.mubr.bf16.gmra.mrb[0].mxu0 %v1081
        %v1225 = vpop.f32.mrb[0].mxu0
        %v1226 = vadd.f32 0.0, %v1225
        %v1227 = vpop.f32.mrb[0].mxu0
        %v1228 = vpop.f32.mrb[0].mxu0
        %v1229 = vadd.f32 0.0, %v1228
        %v1230 = vpop.f32.mrb[0].mxu0
        %1231 = vmatprep.mubr.bf16.mxu0 0
        %1232 = vmatmul.mubr.bf16.gmra.mrb[0].mxu0 %v1084
        %v1233 = vpop.f32.mrb[0].mxu0
        %v1234 = vadd.f32 0.0, %v1233
        %v1235 = vpop.f32.mrb[0].mxu0
        %v1236 = vpop.f32.mrb[0].mxu0
        %v1237 = vadd.f32 0.0, %v1236
        %v1238 = vpop.f32.mrb[0].mxu0
        %1239 = vmatprep.mubr.bf16.mxu0 0
        %1240 = vmatmul.mubr.bf16.gmra.mrb[0].mxu0 %v1087
        %v1241 = vpop.f32.mrb[0].mxu0
        %v1242 = vadd.f32 0.0, %v1241
        %v1243 = vpop.f32.mrb[0].mxu0
        %v1244 = vpop.f32.mrb[0].mxu0
        %v1245 = vadd.f32 0.0, %v1244
        %v1246 = vpop.f32.mrb[0].mxu0
        %1247 = vmatprep.mubr.bf16.mxu0 0
        %1248 = vmatmul.mubr.bf16.gmra.mrb[0].mxu0 %v1090
        %v1249 = vpop.f32.mrb[0].mxu0
        %v1250 = vadd.f32 0.0, %v1249
        %v1251 = vpop.f32.mrb[0].mxu0
        %v1252 = vpop.f32.mrb[0].mxu0
        %v1253 = vadd.f32 0.0, %v1252
        %v1254 = vpop.f32.mrb[0].mxu0
        %1255 = vdwg.mxu0
        %v1256 = vld [vmem:[#allocation2] sm:$0xff]
        %v1257 = vld [vmem:[#allocation2 + $0x8] sm:$0xff]
        %v1258 = vld [vmem:[#allocation2 + $0x10] sm:$0xff]
        %v1259 = vld [vmem:[#allocation2 + $0x18] sm:$0xff]
        %v1260 = vld [vmem:[#allocation2 + $0x20] sm:$0xff]
        %v1261 = vld [vmem:[#allocation2 + $0x28] sm:$0xff]
        %v1262 = vld [vmem:[#allocation2 + $0x30] sm:$0xff]
        %v1263 = vld [vmem:[#allocation2 + $0x38] sm:$0xff]
        %v1264 = vld [vmem:[#allocation2 + $0x40] sm:$0xff]
        %v1265 = vld [vmem:[#allocation2 + $0x48] sm:$0xff]
        %v1266 = vld [vmem:[#allocation2 + $0x50] sm:$0xff]
        %v1267 = vld [vmem:[#allocation2 + $0x58] sm:$0xff]
        %v1268 = vld [vmem:[#allocation2 + $0x60] sm:$0xff]
        %v1269 = vld [vmem:[#allocation2 + $0x68] sm:$0xff]
        %v1270 = vld [vmem:[#allocation2 + $0x70] sm:$0xff]
        %v1271 = vld [vmem:[#allocation2 + $0x78] sm:$0xff]
        %v1272 = vld [vmem:[#allocation2 + $0x80] sm:$0xff]
        %v1273 = vld [vmem:[#allocation2 + $0x88] sm:$0xff]
        %v1274 = vld [vmem:[#allocation2 + $0x90] sm:$0xff]
        %v1275 = vld [vmem:[#allocation2 + $0x98] sm:$0xff]
        %v1276 = vld [vmem:[#allocation2 + $0xa0] sm:$0xff]
        %v1277 = vld [vmem:[#allocation2 + $0xa8] sm:$0xff]
        %v1278 = vld [vmem:[#allocation2 + $0xb0] sm:$0xff]
        %v1279 = vld [vmem:[#allocation2 + $0xb8] sm:$0xff]
        %v1280 = vld [vmem:[#allocation2 + $0xc0] sm:$0xff]
        %v1281 = vld [vmem:[#allocation2 + $0xc8] sm:$0xff]
        %v1282 = vld [vmem:[#allocation2 + $0xd0] sm:$0xff]
        %v1283 = vld [vmem:[#allocation2 + $0xd8] sm:$0xff]
        %v1284 = vld [vmem:[#allocation2 + $0xe0] sm:$0xff]
        %v1285 = vld [vmem:[#allocation2 + $0xe8] sm:$0xff]
        %v1286 = vld [vmem:[#allocation2 + $0xf0] sm:$0xff]
        %v1287 = vld [vmem:[#allocation2 + $0xf8] sm:$0xff]
        %v1288 = vadd.f32 %v1256, %v1130
        %v1289 = vadd.f32 %v1257, %v1133
        %v1290 = vadd.f32 %v1258, %v1138
        %v1291 = vadd.f32 %v1259, %v1141
        %v1292 = vadd.f32 %v1260, %v1146
        %v1293 = vadd.f32 %v1261, %v1149
        %v1294 = vadd.f32 %v1262, %v1154
        %v1295 = vadd.f32 %v1263, %v1157
        %v1296 = vadd.f32 %v1264, %v1162
        %v1297 = vadd.f32 %v1265, %v1165
        %v1298 = vadd.f32 %v1266, %v1170
        %v1299 = vadd.f32 %v1267, %v1173
        %v1300 = vadd.f32 %v1268, %v1178
        %v1301 = vadd.f32 %v1269, %v1181
        %v1302 = vadd.f32 %v1270, %v1186
        %v1303 = vadd.f32 %v1271, %v1189
        %v1304 = vadd.f32 %v1272, %v1194
        %v1305 = vadd.f32 %v1273, %v1197
        %v1306 = vadd.f32 %v1274, %v1202
        %v1307 = vadd.f32 %v1275, %v1205
        %v1308 = vadd.f32 %v1276, %v1210
        %v1309 = vadd.f32 %v1277, %v1213
        %v1310 = vadd.f32 %v1278, %v1218
        %v1311 = vadd.f32 %v1279, %v1221
        %v1312 = vadd.f32 %v1280, %v1226
        %v1313 = vadd.f32 %v1281, %v1229
        %v1314 = vadd.f32 %v1282, %v1234
        %v1315 = vadd.f32 %v1283, %v1237
        %v1316 = vadd.f32 %v1284, %v1242
        %v1317 = vadd.f32 %v1285, %v1245
        %v1318 = vadd.f32 %v1286, %v1250
        %v1319 = vadd.f32 %v1287, %v1253
        %1320 = vst [vmem:[#allocation2] sm:$0xff] %v1288
        %1321 = vst [vmem:[#allocation2 + $0x8] sm:$0xff] %v1289
        %1322 = vst [vmem:[#allocation2 + $0x10] sm:$0xff] %v1290
        %1323 = vst [vmem:[#allocation2 + $0x18] sm:$0xff] %v1291
        %1324 = vst [vmem:[#allocation2 + $0x20] sm:$0xff] %v1292
        %1325 = vst [vmem:[#allocation2 + $0x28] sm:$0xff] %v1293
        %1326 = vst [vmem:[#allocation2 + $0x30] sm:$0xff] %v1294
        %1327 = vst [vmem:[#allocation2 + $0x38] sm:$0xff] %v1295
        %1328 = vst [vmem:[#allocation2 + $0x40] sm:$0xff] %v1296
        %1329 = vst [vmem:[#allocation2 + $0x48] sm:$0xff] %v1297
        %1330 = vst [vmem:[#allocation2 + $0x50] sm:$0xff] %v1298
        %1331 = vst [vmem:[#allocation2 + $0x58] sm:$0xff] %v1299
        %1332 = vst [vmem:[#allocation2 + $0x60] sm:$0xff] %v1300
        %1333 = vst [vmem:[#allocation2 + $0x68] sm:$0xff] %v1301
        %1334 = vst [vmem:[#allocation2 + $0x70] sm:$0xff] %v1302
        %1335 = vst [vmem:[#allocation2 + $0x78] sm:$0xff] %v1303
        %1336 = vst [vmem:[#allocation2 + $0x80] sm:$0xff] %v1304
        %1337 = vst [vmem:[#allocation2 + $0x88] sm:$0xff] %v1305
        %1338 = vst [vmem:[#allocation2 + $0x90] sm:$0xff] %v1306
        %1339 = vst [vmem:[#allocation2 + $0x98] sm:$0xff] %v1307
        %1340 = vst [vmem:[#allocation2 + $0xa0] sm:$0xff] %v1308
        %1341 = vst [vmem:[#allocation2 + $0xa8] sm:$0xff] %v1309
        %1342 = vst [vmem:[#allocation2 + $0xb0] sm:$0xff] %v1310
        %1343 = vst [vmem:[#allocation2 + $0xb8] sm:$0xff] %v1311
        %1344 = vst [vmem:[#allocation2 + $0xc0] sm:$0xff] %v1312
        %1345 = vst [vmem:[#allocation2 + $0xc8] sm:$0xff] %v1313
        %1346 = vst [vmem:[#allocation2 + $0xd0] sm:$0xff] %v1314
        %1347 = vst [vmem:[#allocation2 + $0xd8] sm:$0xff] %v1315
        %1348 = vst [vmem:[#allocation2 + $0xe0] sm:$0xff] %v1316
        %1349 = vst [vmem:[#allocation2 + $0xe8] sm:$0xff] %v1317
        %1350 = vst [vmem:[#allocation2 + $0xf0] sm:$0xff] %v1318
        %1351 = vst [vmem:[#allocation2 + $0xf8] sm:$0xff] %v1319
        %v1352 = vld [vmem:[%s193] sm:$0xe]
        %v1353 = vld [vmem:[%s193 + $0x4] sm:$0xf]
        %v1354 = vld [vmem:[%s193 + $0x8] sm:$0x1]
        %v1355 = vld [vmem:[%s193 + $0xc] sm:$0xe]
        %v1356 = vld [vmem:[%s193 + $0x10] sm:$0xf]
        %v1357 = vld [vmem:[%s193 + $0x14] sm:$0x1]
        %v1358 = vld [vmem:[%s193 + $0x18] sm:$0xe]
        %v1359 = vld [vmem:[%s193 + $0x1c] sm:$0xf]
        %v1360 = vld [vmem:[%s193 + $0x20] sm:$0x1]
        %v1361 = vld [vmem:[%s193 + $0x24] sm:$0xe]
        %v1362 = vld [vmem:[%s193 + $0x28] sm:$0xf]
        %v1363 = vld [vmem:[%s193 + $0x2c] sm:$0x1]
        %v1364 = vld [vmem:[%s193 + $0x30] sm:$0xe]
        %v1365 = vld [vmem:[%s193 + $0x34] sm:$0xf]
        %v1366 = vld [vmem:[%s193 + $0x38] sm:$0x1]
        %v1367 = vld [vmem:[%s193 + $0x3c] sm:$0xe]
        %v1368 = vld [vmem:[%s193 + $0x40] sm:$0xf]
        %v1369 = vld [vmem:[%s193 + $0x44] sm:$0x1]
        %v1370 = vld [vmem:[%s193 + $0x48] sm:$0xe]
        %v1371 = vld [vmem:[%s193 + $0x4c] sm:$0xf]
        %v1372 = vld [vmem:[%s193 + $0x50] sm:$0x1]
        %v1373 = vld [vmem:[%s193 + $0x54] sm:$0xe]
        %v1374 = vld [vmem:[%s193 + $0x58] sm:$0xf]
        %v1375 = vld [vmem:[%s193 + $0x5c] sm:$0x1]
        %v1376 = vld [vmem:[%s193 + $0x60] sm:$0xe]
        %v1377 = vld [vmem:[%s193 + $0x64] sm:$0xf]
        %v1378 = vld [vmem:[%s193 + $0x68] sm:$0x1]
        %v1379 = vld [vmem:[%s193 + $0x6c] sm:$0xe]
        %v1380 = vld [vmem:[%s193 + $0x70] sm:$0xf]
        %v1381 = vld [vmem:[%s193 + $0x74] sm:$0x1]
        %v1382 = vld [vmem:[%s193 + $0x78] sm:$0xe]
        %v1383 = vld [vmem:[%s193 + $0x7c] sm:$0xf]
        %v1384 = vld [vmem:[%s193 + $0x80] sm:$0x1]
        %v1385 = vld [vmem:[%s193 + $0x84] sm:$0xe]
        %v1386 = vld [vmem:[%s193 + $0x88] sm:$0xf]
        %v1387 = vld [vmem:[%s193 + $0x8c] sm:$0x1]
        %v1388 = vld [vmem:[%s193 + $0x90] sm:$0xe]
        %v1389 = vld [vmem:[%s193 + $0x94] sm:$0xf]
        %v1390 = vld [vmem:[%s193 + $0x98] sm:$0x1]
        %v1391 = vld [vmem:[%s193 + $0x9c] sm:$0xe]
        %v1392 = vld [vmem:[%s193 + $0xa0] sm:$0xf]
        %v1393 = vld [vmem:[%s193 + $0xa4] sm:$0x1]
        %v1394 = vld [vmem:[%s193 + $0xa8] sm:$0xe]
        %v1395 = vld [vmem:[%s193 + $0xac] sm:$0xf]
        %v1396 = vld [vmem:[%s193 + $0xb0] sm:$0x1]
        %v1397 = vld [vmem:[%s193 + $0xb4] sm:$0xe]
        %v1398 = vld [vmem:[%s193 + $0xb8] sm:$0xf]
        %v1399 = vld [vmem:[%s193 + $0xbc] sm:$0x1]
        %vm1448 = vcmask 1042432
        %vm1449 = vcmask 1046532
        %vm1450 = vmor %vm1448, %vm1449
        %v1451 = vrot.slane %v1352, 5
        %v1452 = vrot.slane %v1451, 4
        %v1453 = vrot.slane %v1353, 5
        %v1454 = vsel %vm1450, %v1452, %v1453
        %v1455 = vrot.slane %v1453, 4
        %v1456 = vrot.slane %v1354, 5
        %v1457 = vsel %vm1450, %v1455, %v1456
        %v1458 = vrot.slane %v1355, 5
        %v1459 = vrot.slane %v1458, 4
        %v1460 = vrot.slane %v1356, 5
        %v1461 = vsel %vm1450, %v1459, %v1460
        %v1462 = vrot.slane %v1460, 4
        %v1463 = vrot.slane %v1357, 5
        %v1464 = vsel %vm1450, %v1462, %v1463
        %v1465 = vrot.slane %v1358, 5
        %v1466 = vrot.slane %v1465, 4
        %v1467 = vrot.slane %v1359, 5
        %v1468 = vsel %vm1450, %v1466, %v1467
        %v1469 = vrot.slane %v1467, 4
        %v1470 = vrot.slane %v1360, 5
        %v1471 = vsel %vm1450, %v1469, %v1470
        %v1472 = vrot.slane %v1361, 5
        %v1473 = vrot.slane %v1472, 4
        %v1474 = vrot.slane %v1362, 5
        %v1475 = vsel %vm1450, %v1473, %v1474
        %v1476 = vrot.slane %v1474, 4
        %v1477 = vrot.slane %v1363, 5
        %v1478 = vsel %vm1450, %v1476, %v1477
        %v1479 = vrot.slane %v1364, 5
        %v1480 = vrot.slane %v1479, 4
        %v1481 = vrot.slane %v1365, 5
        %v1482 = vsel %vm1450, %v1480, %v1481
        %v1483 = vrot.slane %v1481, 4
        %v1484 = vrot.slane %v1366, 5
        %v1485 = vsel %vm1450, %v1483, %v1484
        %v1486 = vrot.slane %v1367, 5
        %v1487 = vrot.slane %v1486, 4
        %v1488 = vrot.slane %v1368, 5
        %v1489 = vsel %vm1450, %v1487, %v1488
        %v1490 = vrot.slane %v1488, 4
        %v1491 = vrot.slane %v1369, 5
        %v1492 = vsel %vm1450, %v1490, %v1491
        %v1493 = vrot.slane %v1370, 5
        %v1494 = vrot.slane %v1493, 4
        %v1495 = vrot.slane %v1371, 5
        %v1496 = vsel %vm1450, %v1494, %v1495
        %v1497 = vrot.slane %v1495, 4
        %v1498 = vrot.slane %v1372, 5
        %v1499 = vsel %vm1450, %v1497, %v1498
        %v1500 = vrot.slane %v1373, 5
        %v1501 = vrot.slane %v1500, 4
        %v1502 = vrot.slane %v1374, 5
        %v1503 = vsel %vm1450, %v1501, %v1502
        %v1504 = vrot.slane %v1502, 4
        %v1505 = vrot.slane %v1375, 5
        %v1506 = vsel %vm1450, %v1504, %v1505
        %v1507 = vrot.slane %v1376, 5
        %v1508 = vrot.slane %v1507, 4
        %v1509 = vrot.slane %v1377, 5
        %v1510 = vsel %vm1450, %v1508, %v1509
        %v1511 = vrot.slane %v1509, 4
        %v1512 = vrot.slane %v1378, 5
        %v1513 = vsel %vm1450, %v1511, %v1512
        %v1514 = vrot.slane %v1379, 5
        %v1515 = vrot.slane %v1514, 4
        %v1516 = vrot.slane %v1380, 5
        %v1517 = vsel %vm1450, %v1515, %v1516
        %v1518 = vrot.slane %v1516, 4
        %v1519 = vrot.slane %v1381, 5
        %v1520 = vsel %vm1450, %v1518, %v1519
        %v1521 = vrot.slane %v1382, 5
        %v1522 = vrot.slane %v1521, 4
        %v1523 = vrot.slane %v1383, 5
        %v1524 = vsel %vm1450, %v1522, %v1523
        %v1525 = vrot.slane %v1523, 4
        %v1526 = vrot.slane %v1384, 5
        %v1527 = vsel %vm1450, %v1525, %v1526
        %v1528 = vrot.slane %v1385, 5
        %v1529 = vrot.slane %v1528, 4
        %v1530 = vrot.slane %v1386, 5
        %v1531 = vsel %vm1450, %v1529, %v1530
        %v1532 = vrot.slane %v1530, 4
        %v1533 = vrot.slane %v1387, 5
        %v1534 = vsel %vm1450, %v1532, %v1533
        %v1535 = vrot.slane %v1388, 5
        %v1536 = vrot.slane %v1535, 4
        %v1537 = vrot.slane %v1389, 5
        %v1538 = vsel %vm1450, %v1536, %v1537
        %v1539 = vrot.slane %v1537, 4
        %v1540 = vrot.slane %v1390, 5
        %v1541 = vsel %vm1450, %v1539, %v1540
        %v1542 = vrot.slane %v1391, 5
        %v1543 = vrot.slane %v1542, 4
        %v1544 = vrot.slane %v1392, 5
        %v1545 = vsel %vm1450, %v1543, %v1544
        %v1546 = vrot.slane %v1544, 4
        %v1547 = vrot.slane %v1393, 5
        %v1548 = vsel %vm1450, %v1546, %v1547
        %v1549 = vrot.slane %v1394, 5
        %v1550 = vrot.slane %v1549, 4
        %v1551 = vrot.slane %v1395, 5
        %v1552 = vsel %vm1450, %v1550, %v1551
        %v1553 = vrot.slane %v1551, 4
        %v1554 = vrot.slane %v1396, 5
        %v1555 = vsel %vm1450, %v1553, %v1554
        %v1556 = vrot.slane %v1397, 5
        %v1557 = vrot.slane %v1556, 4
        %v1558 = vrot.slane %v1398, 5
        %v1559 = vsel %vm1450, %v1557, %v1558
        %v1560 = vrot.slane %v1558, 4
        %v1561 = vrot.slane %v1399, 5
        %v1562 = vsel %vm1450, %v1560, %v1561
        %s1563 = scalar_lea.vmem [#allocation3], 4
        %v1564 = vld [vmem:[%s1563] sm:$0x3]
        %v1565 = vunpack.c.l.b16 %v1454
        %v1566 = vunpack.c.l.b16 %v1457
        %v1567 = vunpack.c.l.b16 %v1461
        %v1568 = vunpack.c.l.b16 %v1464
        %v1569 = vunpack.c.l.b16 %v1468
        %v1570 = vunpack.c.l.b16 %v1471
        %v1571 = vunpack.c.l.b16 %v1475
        %v1572 = vunpack.c.l.b16 %v1478
        %v1573 = vunpack.c.l.b16 %v1482
        %v1574 = vunpack.c.l.b16 %v1485
        %v1575 = vunpack.c.l.b16 %v1489
        %v1576 = vunpack.c.l.b16 %v1492
        %v1577 = vunpack.c.l.b16 %v1496
        %v1578 = vunpack.c.l.b16 %v1499
        %v1579 = vunpack.c.l.b16 %v1503
        %v1580 = vunpack.c.l.b16 %v1506
        %v1581 = vunpack.c.l.b16 %v1510
        %v1582 = vunpack.c.l.b16 %v1513
        %v1583 = vunpack.c.l.b16 %v1517
        %v1584 = vunpack.c.l.b16 %v1520
        %v1585 = vunpack.c.l.b16 %v1524
        %v1586 = vunpack.c.l.b16 %v1527
        %v1587 = vunpack.c.l.b16 %v1531
        %v1588 = vunpack.c.l.b16 %v1534
        %v1589 = vunpack.c.l.b16 %v1538
        %v1590 = vunpack.c.l.b16 %v1541
        %v1591 = vunpack.c.l.b16 %v1545
        %v1592 = vunpack.c.l.b16 %v1548
        %v1593 = vunpack.c.l.b16 %v1552
        %v1594 = vunpack.c.l.b16 %v1555
        %v1595 = vunpack.c.l.b16 %v1559
        %v1596 = vunpack.c.l.b16 %v1562
        %v1597 = vpack.c.b16 %v1566, %v1565
        %v1598 = vpack.c.b16 %v1568, %v1567
        %v1599 = vpack.c.b16 %v1570, %v1569
        %v1600 = vpack.c.b16 %v1572, %v1571
        %v1601 = vpack.c.b16 %v1574, %v1573
        %v1602 = vpack.c.b16 %v1576, %v1575
        %v1603 = vpack.c.b16 %v1578, %v1577
        %v1604 = vpack.c.b16 %v1580, %v1579
        %v1605 = vpack.c.b16 %v1582, %v1581
        %v1606 = vpack.c.b16 %v1584, %v1583
        %v1607 = vpack.c.b16 %v1586, %v1585
        %v1608 = vpack.c.b16 %v1588, %v1587
        %v1609 = vpack.c.b16 %v1590, %v1589
        %v1610 = vpack.c.b16 %v1592, %v1591
        %v1611 = vpack.c.b16 %v1594, %v1593
        %v1612 = vpack.c.b16 %v1596, %v1595
        %v1614 = vsel %vm313, %v1597, 0
        %v1617 = vsel %vm313, %v1598, 0
        %v1620 = vsel %vm313, %v1599, 0
        %v1623 = vsel %vm313, %v1600, 0
        %v1626 = vsel %vm313, %v1601, 0
        %v1629 = vsel %vm313, %v1602, 0
        %v1632 = vsel %vm313, %v1603, 0
        %v1635 = vsel %vm313, %v1604, 0
        %v1638 = vsel %vm313, %v1605, 0
        %v1641 = vsel %vm313, %v1606, 0
        %v1644 = vsel %vm313, %v1607, 0
        %v1647 = vsel %vm313, %v1608, 0
        %v1650 = vsel %vm313, %v1609, 0
        %v1653 = vsel %vm313, %v1610, 0
        %v1656 = vsel %vm313, %v1611, 0
        %v1659 = vsel %vm313, %v1612, 0
        %v1662 = vsel %vm362, %v1564, 0
        %1664 = vmatprep.subr.bf16.mxu0 0
        %1665 = vmatpush1.bf16.msra.mxu0 %v1662
        %1666 = vmatprep.subr.bf16.mxu0 0
        %1667 = vmatpush1.bf16.msra.mxu0 0
        %1668 = vmatprep.subr.bf16.mxu0 0
        %1669 = vmatpush1.bf16.msra.mxu0 0
        %1670 = vmatprep.subr.bf16.mxu0 0
        %1671 = vmatpush1.bf16.msra.mxu0 0
        %1672 = vmatprep.subr.bf16.mxu0 0
        %1673 = vmatpush1.bf16.msra.mxu0 0
        %1674 = vmatprep.subr.bf16.mxu0 0
        %1675 = vmatpush1.bf16.msra.mxu0 0
        %1676 = vmatprep.subr.bf16.mxu0 0
        %1677 = vmatpush1.bf16.msra.mxu0 0
        %1678 = vmatprep.subr.bf16.mxu0 0
        %1679 = vmatpush1.bf16.msra.mxu0 0
        %1680 = vmatprep.subr.bf16.mxu0 0
        %1681 = vmatpush1.bf16.msra.mxu0 0
        %1682 = vmatprep.subr.bf16.mxu0 0
        %1683 = vmatpush1.bf16.msra.mxu0 0
        %1684 = vmatprep.subr.bf16.mxu0 0
        %1685 = vmatpush1.bf16.msra.mxu0 0
        %1686 = vmatprep.subr.bf16.mxu0 0
        %1687 = vmatpush1.bf16.msra.mxu0 0
        %1688 = vmatprep.subr.bf16.mxu0 0
        %1689 = vmatpush1.bf16.msra.mxu0 0
        %1690 = vmatprep.subr.bf16.mxu0 0
        %1691 = vmatpush1.bf16.msra.mxu0 0
        %1692 = vmatprep.subr.bf16.mxu0 0
        %1693 = vmatpush1.bf16.msra.mxu0 0
        %1694 = vmatprep.subr.bf16.mxu0 0
        %1695 = vmatpush1.bf16.msra.mxu0 0
        %1696 = vmatprep.mubr.bf16.mxu0 0
        %1697 = vmatmul.mubr.bf16.gmra.mrb[0].mxu0 %v1614
        %v1698 = vpop.f32.mrb[0].mxu0
        %v1699 = vadd.f32 0.0, %v1698
        %v1700 = vpop.f32.mrb[0].mxu0
        %v1701 = vpop.f32.mrb[0].mxu0
        %v1702 = vadd.f32 0.0, %v1701
        %v1703 = vpop.f32.mrb[0].mxu0
        %1704 = vmatprep.mubr.bf16.mxu0 0
        %1705 = vmatmul.mubr.bf16.gmra.mrb[0].mxu0 %v1617
        %v1706 = vpop.f32.mrb[0].mxu0
        %v1707 = vadd.f32 0.0, %v1706
        %v1708 = vpop.f32.mrb[0].mxu0
        %v1709 = vpop.f32.mrb[0].mxu0
        %v1710 = vadd.f32 0.0, %v1709
        %v1711 = vpop.f32.mrb[0].mxu0
        %1712 = vmatprep.mubr.bf16.mxu0 0
        %1713 = vmatmul.mubr.bf16.gmra.mrb[0].mxu0 %v1620
        %v1714 = vpop.f32.mrb[0].mxu0
        %v1715 = vadd.f32 0.0, %v1714
        %v1716 = vpop.f32.mrb[0].mxu0
        %v1717 = vpop.f32.mrb[0].mxu0
        %v1718 = vadd.f32 0.0, %v1717
        %v1719 = vpop.f32.mrb[0].mxu0
        %1720 = vmatprep.mubr.bf16.mxu0 0
        %1721 = vmatmul.mubr.bf16.gmra.mrb[0].mxu0 %v1623
        %v1722 = vpop.f32.mrb[0].mxu0
        %v1723 = vadd.f32 0.0, %v1722
        %v1724 = vpop.f32.mrb[0].mxu0
        %v1725 = vpop.f32.mrb[0].mxu0
        %v1726 = vadd.f32 0.0, %v1725
        %v1727 = vpop.f32.mrb[0].mxu0
        %1728 = vmatprep.mubr.bf16.mxu0 0
        %1729 = vmatmul.mubr.bf16.gmra.mrb[0].mxu0 %v1626
        %v1730 = vpop.f32.mrb[0].mxu0
        %v1731 = vadd.f32 0.0, %v1730
        %v1732 = vpop.f32.mrb[0].mxu0
        %v1733 = vpop.f32.mrb[0].mxu0
        %v1734 = vadd.f32 0.0, %v1733
        %v1735 = vpop.f32.mrb[0].mxu0
        %1736 = vmatprep.mubr.bf16.mxu0 0
        %1737 = vmatmul.mubr.bf16.gmra.mrb[0].mxu0 %v1629
        %v1738 = vpop.f32.mrb[0].mxu0
        %v1739 = vadd.f32 0.0, %v1738
        %v1740 = vpop.f32.mrb[0].mxu0
        %v1741 = vpop.f32.mrb[0].mxu0
        %v1742 = vadd.f32 0.0, %v1741
        %v1743 = vpop.f32.mrb[0].mxu0
        %1744 = vmatprep.mubr.bf16.mxu0 0
        %1745 = vmatmul.mubr.bf16.gmra.mrb[0].mxu0 %v1632
        %v1746 = vpop.f32.mrb[0].mxu0
        %v1747 = vadd.f32 0.0, %v1746
        %v1748 = vpop.f32.mrb[0].mxu0
        %v1749 = vpop.f32.mrb[0].mxu0
        %v1750 = vadd.f32 0.0, %v1749
        %v1751 = vpop.f32.mrb[0].mxu0
        %1752 = vmatprep.mubr.bf16.mxu0 0
        %1753 = vmatmul.mubr.bf16.gmra.mrb[0].mxu0 %v1635
        %v1754 = vpop.f32.mrb[0].mxu0
        %v1755 = vadd.f32 0.0, %v1754
        %v1756 = vpop.f32.mrb[0].mxu0
        %v1757 = vpop.f32.mrb[0].mxu0
        %v1758 = vadd.f32 0.0, %v1757
        %v1759 = vpop.f32.mrb[0].mxu0
        %1760 = vmatprep.mubr.bf16.mxu0 0
        %1761 = vmatmul.mubr.bf16.gmra.mrb[0].mxu0 %v1638
        %v1762 = vpop.f32.mrb[0].mxu0
        %v1763 = vadd.f32 0.0, %v1762
        %v1764 = vpop.f32.mrb[0].mxu0
        %v1765 = vpop.f32.mrb[0].mxu0
        %v1766 = vadd.f32 0.0, %v1765
        %v1767 = vpop.f32.mrb[0].mxu0
        %1768 = vmatprep.mubr.bf16.mxu0 0
        %1769 = vmatmul.mubr.bf16.gmra.mrb[0].mxu0 %v1641
        %v1770 = vpop.f32.mrb[0].mxu0
        %v1771 = vadd.f32 0.0, %v1770
        %v1772 = vpop.f32.mrb[0].mxu0
        %v1773 = vpop.f32.mrb[0].mxu0
        %v1774 = vadd.f32 0.0, %v1773
        %v1775 = vpop.f32.mrb[0].mxu0
        %1776 = vmatprep.mubr.bf16.mxu0 0
        %1777 = vmatmul.mubr.bf16.gmra.mrb[0].mxu0 %v1644
        %v1778 = vpop.f32.mrb[0].mxu0
        %v1779 = vadd.f32 0.0, %v1778
        %v1780 = vpop.f32.mrb[0].mxu0
        %v1781 = vpop.f32.mrb[0].mxu0
        %v1782 = vadd.f32 0.0, %v1781
        %v1783 = vpop.f32.mrb[0].mxu0
        %1784 = vmatprep.mubr.bf16.mxu0 0
        %1785 = vmatmul.mubr.bf16.gmra.mrb[0].mxu0 %v1647
        %v1786 = vpop.f32.mrb[0].mxu0
        %v1787 = vadd.f32 0.0, %v1786
        %v1788 = vpop.f32.mrb[0].mxu0
        %v1789 = vpop.f32.mrb[0].mxu0
        %v1790 = vadd.f32 0.0, %v1789
        %v1791 = vpop.f32.mrb[0].mxu0
        %1792 = vmatprep.mubr.bf16.mxu0 0
        %1793 = vmatmul.mubr.bf16.gmra.mrb[0].mxu0 %v1650
        %v1794 = vpop.f32.mrb[0].mxu0
        %v1795 = vadd.f32 0.0, %v1794
        %v1796 = vpop.f32.mrb[0].mxu0
        %v1797 = vpop.f32.mrb[0].mxu0
        %v1798 = vadd.f32 0.0, %v1797
        %v1799 = vpop.f32.mrb[0].mxu0
        %1800 = vmatprep.mubr.bf16.mxu0 0
        %1801 = vmatmul.mubr.bf16.gmra.mrb[0].mxu0 %v1653
        %v1802 = vpop.f32.mrb[0].mxu0
        %v1803 = vadd.f32 0.0, %v1802
        %v1804 = vpop.f32.mrb[0].mxu0
        %v1805 = vpop.f32.mrb[0].mxu0
        %v1806 = vadd.f32 0.0, %v1805
        %v1807 = vpop.f32.mrb[0].mxu0
        %1808 = vmatprep.mubr.bf16.mxu0 0
        %1809 = vmatmul.mubr.bf16.gmra.mrb[0].mxu0 %v1656
        %v1810 = vpop.f32.mrb[0].mxu0
        %v1811 = vadd.f32 0.0, %v1810
        %v1812 = vpop.f32.mrb[0].mxu0
        %v1813 = vpop.f32.mrb[0].mxu0
        %v1814 = vadd.f32 0.0, %v1813
        %v1815 = vpop.f32.mrb[0].mxu0
        %1816 = vmatprep.mubr.bf16.mxu0 0
        %1817 = vmatmul.mubr.bf16.gmra.mrb[0].mxu0 %v1659
        %v1818 = vpop.f32.mrb[0].mxu0
        %v1819 = vadd.f32 0.0, %v1818
        %v1820 = vpop.f32.mrb[0].mxu0
        %v1821 = vpop.f32.mrb[0].mxu0
        %v1822 = vadd.f32 0.0, %v1821
        %v1823 = vpop.f32.mrb[0].mxu0
        %1824 = vdwg.mxu0
        %v1825 = vld [vmem:[#allocation2] sm:$0xff]
        %v1826 = vld [vmem:[#allocation2 + $0x8] sm:$0xff]
        %v1827 = vld [vmem:[#allocation2 + $0x10] sm:$0xff]
        %v1828 = vld [vmem:[#allocation2 + $0x18] sm:$0xff]
        %v1829 = vld [vmem:[#allocation2 + $0x20] sm:$0xff]
        %v1830 = vld [vmem:[#allocation2 + $0x28] sm:$0xff]
        %v1831 = vld [vmem:[#allocation2 + $0x30] sm:$0xff]
        %v1832 = vld [vmem:[#allocation2 + $0x38] sm:$0xff]
        %v1833 = vld [vmem:[#allocation2 + $0x40] sm:$0xff]
        %v1834 = vld [vmem:[#allocation2 + $0x48] sm:$0xff]
        %v1835 = vld [vmem:[#allocation2 + $0x50] sm:$0xff]
        %v1836 = vld [vmem:[#allocation2 + $0x58] sm:$0xff]
        %v1837 = vld [vmem:[#allocation2 + $0x60] sm:$0xff]
        %v1838 = vld [vmem:[#allocation2 + $0x68] sm:$0xff]
        %v1839 = vld [vmem:[#allocation2 + $0x70] sm:$0xff]
        %v1840 = vld [vmem:[#allocation2 + $0x78] sm:$0xff]
        %v1841 = vld [vmem:[#allocation2 + $0x80] sm:$0xff]
        %v1842 = vld [vmem:[#allocation2 + $0x88] sm:$0xff]
        %v1843 = vld [vmem:[#allocation2 + $0x90] sm:$0xff]
        %v1844 = vld [vmem:[#allocation2 + $0x98] sm:$0xff]
        %v1845 = vld [vmem:[#allocation2 + $0xa0] sm:$0xff]
        %v1846 = vld [vmem:[#allocation2 + $0xa8] sm:$0xff]
        %v1847 = vld [vmem:[#allocation2 + $0xb0] sm:$0xff]
        %v1848 = vld [vmem:[#allocation2 + $0xb8] sm:$0xff]
        %v1849 = vld [vmem:[#allocation2 + $0xc0] sm:$0xff]
        %v1850 = vld [vmem:[#allocation2 + $0xc8] sm:$0xff]
        %v1851 = vld [vmem:[#allocation2 + $0xd0] sm:$0xff]
        %v1852 = vld [vmem:[#allocation2 + $0xd8] sm:$0xff]
        %v1853 = vld [vmem:[#allocation2 + $0xe0] sm:$0xff]
        %v1854 = vld [vmem:[#allocation2 + $0xe8] sm:$0xff]
        %v1855 = vld [vmem:[#allocation2 + $0xf0] sm:$0xff]
        %v1856 = vld [vmem:[#allocation2 + $0xf8] sm:$0xff]
        %v1857 = vadd.f32 %v1825, %v1699
        %v1858 = vadd.f32 %v1826, %v1702
        %v1859 = vadd.f32 %v1827, %v1707
        %v1860 = vadd.f32 %v1828, %v1710
        %v1861 = vadd.f32 %v1829, %v1715
        %v1862 = vadd.f32 %v1830, %v1718
        %v1863 = vadd.f32 %v1831, %v1723
        %v1864 = vadd.f32 %v1832, %v1726
        %v1865 = vadd.f32 %v1833, %v1731
        %v1866 = vadd.f32 %v1834, %v1734
        %v1867 = vadd.f32 %v1835, %v1739
        %v1868 = vadd.f32 %v1836, %v1742
        %v1869 = vadd.f32 %v1837, %v1747
        %v1870 = vadd.f32 %v1838, %v1750
        %v1871 = vadd.f32 %v1839, %v1755
        %v1872 = vadd.f32 %v1840, %v1758
        %v1873 = vadd.f32 %v1841, %v1763
        %v1874 = vadd.f32 %v1842, %v1766
        %v1875 = vadd.f32 %v1843, %v1771
        %v1876 = vadd.f32 %v1844, %v1774
        %v1877 = vadd.f32 %v1845, %v1779
        %v1878 = vadd.f32 %v1846, %v1782
        %v1879 = vadd.f32 %v1847, %v1787
        %v1880 = vadd.f32 %v1848, %v1790
        %v1881 = vadd.f32 %v1849, %v1795
        %v1882 = vadd.f32 %v1850, %v1798
        %v1883 = vadd.f32 %v1851, %v1803
        %v1884 = vadd.f32 %v1852, %v1806
        %v1885 = vadd.f32 %v1853, %v1811
        %v1886 = vadd.f32 %v1854, %v1814
        %v1887 = vadd.f32 %v1855, %v1819
        %v1888 = vadd.f32 %v1856, %v1822
        %1889 = vst [vmem:[#allocation2] sm:$0xff] %v1857
        %1890 = vst [vmem:[#allocation2 + $0x8] sm:$0xff] %v1858
        %1891 = vst [vmem:[#allocation2 + $0x10] sm:$0xff] %v1859
        %1892 = vst [vmem:[#allocation2 + $0x18] sm:$0xff] %v1860
        %1893 = vst [vmem:[#allocation2 + $0x20] sm:$0xff] %v1861
        %1894 = vst [vmem:[#allocation2 + $0x28] sm:$0xff] %v1862
        %1895 = vst [vmem:[#allocation2 + $0x30] sm:$0xff] %v1863
        %1896 = vst [vmem:[#allocation2 + $0x38] sm:$0xff] %v1864
        %1897 = vst [vmem:[#allocation2 + $0x40] sm:$0xff] %v1865
        %1898 = vst [vmem:[#allocation2 + $0x48] sm:$0xff] %v1866
        %1899 = vst [vmem:[#allocation2 + $0x50] sm:$0xff] %v1867
        %1900 = vst [vmem:[#allocation2 + $0x58] sm:$0xff] %v1868
        %1901 = vst [vmem:[#allocation2 + $0x60] sm:$0xff] %v1869
        %1902 = vst [vmem:[#allocation2 + $0x68] sm:$0xff] %v1870
        %1903 = vst [vmem:[#allocation2 + $0x70] sm:$0xff] %v1871
        %1904 = vst [vmem:[#allocation2 + $0x78] sm:$0xff] %v1872
        %1905 = vst [vmem:[#allocation2 + $0x80] sm:$0xff] %v1873
        %1906 = vst [vmem:[#allocation2 + $0x88] sm:$0xff] %v1874
        %1907 = vst [vmem:[#allocation2 + $0x90] sm:$0xff] %v1875
        %1908 = vst [vmem:[#allocation2 + $0x98] sm:$0xff] %v1876
        %1909 = vst [vmem:[#allocation2 + $0xa0] sm:$0xff] %v1877
        %1910 = vst [vmem:[#allocation2 + $0xa8] sm:$0xff] %v1878
        %1911 = vst [vmem:[#allocation2 + $0xb0] sm:$0xff] %v1879
        %1912 = vst [vmem:[#allocation2 + $0xb8] sm:$0xff] %v1880
        %1913 = vst [vmem:[#allocation2 + $0xc0] sm:$0xff] %v1881
        %1914 = vst [vmem:[#allocation2 + $0xc8] sm:$0xff] %v1882
        %1915 = vst [vmem:[#allocation2 + $0xd0] sm:$0xff] %v1883
        %1916 = vst [vmem:[#allocation2 + $0xd8] sm:$0xff] %v1884
        %1917 = vst [vmem:[#allocation2 + $0xe0] sm:$0xff] %v1885
        %1918 = vst [vmem:[#allocation2 + $0xe8] sm:$0xff] %v1886
        %1919 = vst [vmem:[#allocation2 + $0xf0] sm:$0xff] %v1887
        %1920 = vst [vmem:[#allocation2 + $0xf8] sm:$0xff] %v1888
        %s1921 = scalar_lea.vmem %s193, 12
        %v1922 = vld [vmem:[%s1921] sm:$0xf]
        %v1923 = vld [vmem:[%s1921 + $0x4] sm:$0xf]
        %v1924 = vld [vmem:[%s1921 + $0xc] sm:$0xf]
        %v1925 = vld [vmem:[%s1921 + $0x10] sm:$0xf]
        %v1926 = vld [vmem:[%s1921 + $0x18] sm:$0xf]
        %v1927 = vld [vmem:[%s1921 + $0x1c] sm:$0xf]
        %v1928 = vld [vmem:[%s1921 + $0x24] sm:$0xf]
        %v1929 = vld [vmem:[%s1921 + $0x28] sm:$0xf]
        %v1930 = vld [vmem:[%s1921 + $0x30] sm:$0xf]
        %v1931 = vld [vmem:[%s1921 + $0x34] sm:$0xf]
        %v1932 = vld [vmem:[%s1921 + $0x3c] sm:$0xf]
        %v1933 = vld [vmem:[%s1921 + $0x40] sm:$0xf]
        %v1934 = vld [vmem:[%s1921 + $0x48] sm:$0xf]
        %v1935 = vld [vmem:[%s1921 + $0x4c] sm:$0xf]
        %v1936 = vld [vmem:[%s1921 + $0x54] sm:$0xf]
        %v1937 = vld [vmem:[%s1921 + $0x58] sm:$0xf]
        %v1938 = vld [vmem:[%s1921 + $0x60] sm:$0xf]
        %v1939 = vld [vmem:[%s1921 + $0x64] sm:$0xf]
        %v1940 = vld [vmem:[%s1921 + $0x6c] sm:$0xf]
        %v1941 = vld [vmem:[%s1921 + $0x70] sm:$0xf]
        %v1942 = vld [vmem:[%s1921 + $0x78] sm:$0xf]
        %v1943 = vld [vmem:[%s1921 + $0x7c] sm:$0xf]
        %v1944 = vld [vmem:[%s1921 + $0x84] sm:$0xf]
        %v1945 = vld [vmem:[%s1921 + $0x88] sm:$0xf]
        %v1946 = vld [vmem:[%s1921 + $0x90] sm:$0xf]
        %v1947 = vld [vmem:[%s1921 + $0x94] sm:$0xf]
        %v1948 = vld [vmem:[%s1921 + $0x9c] sm:$0xf]
        %v1949 = vld [vmem:[%s1921 + $0xa0] sm:$0xf]
        %v1950 = vld [vmem:[%s1921 + $0xa8] sm:$0xf]
        %v1951 = vld [vmem:[%s1921 + $0xac] sm:$0xf]
        %v1952 = vld [vmem:[%s1921 + $0xb4] sm:$0xf]
        %v1953 = vld [vmem:[%s1921 + $0xb8] sm:$0xf]
        %s1954 = scalar_lea.vmem [#allocation3], 6
        %v1955 = vld [vmem:[%s1954] sm:$0x3]
        %v1988 = vunpack.c.l.b16 %v1922
        %v1989 = vunpack.c.l.b16 %v1923
        %v1990 = vunpack.c.l.b16 %v1924
        %v1991 = vunpack.c.l.b16 %v1925
        %v1992 = vunpack.c.l.b16 %v1926
        %v1993 = vunpack.c.l.b16 %v1927
        %v1994 = vunpack.c.l.b16 %v1928
        %v1995 = vunpack.c.l.b16 %v1929
        %v1996 = vunpack.c.l.b16 %v1930
        %v1997 = vunpack.c.l.b16 %v1931
        %v1998 = vunpack.c.l.b16 %v1932
        %v1999 = vunpack.c.l.b16 %v1933
        %v2000 = vunpack.c.l.b16 %v1934
        %v2001 = vunpack.c.l.b16 %v1935
        %v2002 = vunpack.c.l.b16 %v1936
        %v2003 = vunpack.c.l.b16 %v1937
        %v2004 = vunpack.c.l.b16 %v1938
        %v2005 = vunpack.c.l.b16 %v1939
        %v2006 = vunpack.c.l.b16 %v1940
        %v2007 = vunpack.c.l.b16 %v1941
        %v2008 = vunpack.c.l.b16 %v1942
        %v2009 = vunpack.c.l.b16 %v1943
        %v2010 = vunpack.c.l.b16 %v1944
        %v2011 = vunpack.c.l.b16 %v1945
        %v2012 = vunpack.c.l.b16 %v1946
        %v2013 = vunpack.c.l.b16 %v1947
        %v2014 = vunpack.c.l.b16 %v1948
        %v2015 = vunpack.c.l.b16 %v1949
        %v2016 = vunpack.c.l.b16 %v1950
        %v2017 = vunpack.c.l.b16 %v1951
        %v2018 = vunpack.c.l.b16 %v1952
        %v2019 = vunpack.c.l.b16 %v1953
        %v2020 = vpack.c.b16 %v1989, %v1988
        %v2021 = vpack.c.b16 %v1991, %v1990
        %v2022 = vpack.c.b16 %v1993, %v1992
        %v2023 = vpack.c.b16 %v1995, %v1994
        %v2024 = vpack.c.b16 %v1997, %v1996
        %v2025 = vpack.c.b16 %v1999, %v1998
        %v2026 = vpack.c.b16 %v2001, %v2000
        %v2027 = vpack.c.b16 %v2003, %v2002
        %v2028 = vpack.c.b16 %v2005, %v2004
        %v2029 = vpack.c.b16 %v2007, %v2006
        %v2030 = vpack.c.b16 %v2009, %v2008
        %v2031 = vpack.c.b16 %v2011, %v2010
        %v2032 = vpack.c.b16 %v2013, %v2012
        %v2033 = vpack.c.b16 %v2015, %v2014
        %v2034 = vpack.c.b16 %v2017, %v2016
        %v2035 = vpack.c.b16 %v2019, %v2018
        %v2037 = vsel %vm313, %v2020, 0
        %v2040 = vsel %vm313, %v2021, 0
        %v2043 = vsel %vm313, %v2022, 0
        %v2046 = vsel %vm313, %v2023, 0
        %v2049 = vsel %vm313, %v2024, 0
        %v2052 = vsel %vm313, %v2025, 0
        %v2055 = vsel %vm313, %v2026, 0
        %v2058 = vsel %vm313, %v2027, 0
        %v2061 = vsel %vm313, %v2028, 0
        %v2064 = vsel %vm313, %v2029, 0
        %v2067 = vsel %vm313, %v2030, 0
        %v2070 = vsel %vm313, %v2031, 0
        %v2073 = vsel %vm313, %v2032, 0
        %v2076 = vsel %vm313, %v2033, 0
        %v2079 = vsel %vm313, %v2034, 0
        %v2082 = vsel %vm313, %v2035, 0
        %v2085 = vsel %vm362, %v1955, 0
        %2087 = vmatprep.subr.bf16.mxu0 0
        %2088 = vmatpush1.bf16.msra.mxu0 %v2085
        %2089 = vmatprep.subr.bf16.mxu0 0
        %2090 = vmatpush1.bf16.msra.mxu0 0
        %2091 = vmatprep.subr.bf16.mxu0 0
        %2092 = vmatpush1.bf16.msra.mxu0 0
        %2093 = vmatprep.subr.bf16.mxu0 0
        %2094 = vmatpush1.bf16.msra.mxu0 0
        %2095 = vmatprep.subr.bf16.mxu0 0
        %2096 = vmatpush1.bf16.msra.mxu0 0
        %2097 = vmatprep.subr.bf16.mxu0 0
        %2098 = vmatpush1.bf16.msra.mxu0 0
        %2099 = vmatprep.subr.bf16.mxu0 0
        %2100 = vmatpush1.bf16.msra.mxu0 0
        %2101 = vmatprep.subr.bf16.mxu0 0
        %2102 = vmatpush1.bf16.msra.mxu0 0
        %2103 = vmatprep.subr.bf16.mxu0 0
        %2104 = vmatpush1.bf16.msra.mxu0 0
        %2105 = vmatprep.subr.bf16.mxu0 0
        %2106 = vmatpush1.bf16.msra.mxu0 0
        %2107 = vmatprep.subr.bf16.mxu0 0
        %2108 = vmatpush1.bf16.msra.mxu0 0
        %2109 = vmatprep.subr.bf16.mxu0 0
        %2110 = vmatpush1.bf16.msra.mxu0 0
        %2111 = vmatprep.subr.bf16.mxu0 0
        %2112 = vmatpush1.bf16.msra.mxu0 0
        %2113 = vmatprep.subr.bf16.mxu0 0
        %2114 = vmatpush1.bf16.msra.mxu0 0
        %2115 = vmatprep.subr.bf16.mxu0 0
        %2116 = vmatpush1.bf16.msra.mxu0 0
        %2117 = vmatprep.subr.bf16.mxu0 0
        %2118 = vmatpush1.bf16.msra.mxu0 0
        %2119 = vmatprep.mubr.bf16.mxu0 0
        %2120 = vmatmul.mubr.bf16.gmra.mrb[0].mxu0 %v2037
        %v2121 = vpop.f32.mrb[0].mxu0
        %v2122 = vadd.f32 0.0, %v2121
        %v2123 = vpop.f32.mrb[0].mxu0
        %v2124 = vpop.f32.mrb[0].mxu0
        %v2125 = vadd.f32 0.0, %v2124
        %v2126 = vpop.f32.mrb[0].mxu0
        %2127 = vmatprep.mubr.bf16.mxu0 0
        %2128 = vmatmul.mubr.bf16.gmra.mrb[0].mxu0 %v2040
        %v2129 = vpop.f32.mrb[0].mxu0
        %v2130 = vadd.f32 0.0, %v2129
        %v2131 = vpop.f32.mrb[0].mxu0
        %v2132 = vpop.f32.mrb[0].mxu0
        %v2133 = vadd.f32 0.0, %v2132
        %v2134 = vpop.f32.mrb[0].mxu0
        %2135 = vmatprep.mubr.bf16.mxu0 0
        %2136 = vmatmul.mubr.bf16.gmra.mrb[0].mxu0 %v2043
        %v2137 = vpop.f32.mrb[0].mxu0
        %v2138 = vadd.f32 0.0, %v2137
        %v2139 = vpop.f32.mrb[0].mxu0
        %v2140 = vpop.f32.mrb[0].mxu0
        %v2141 = vadd.f32 0.0, %v2140
        %v2142 = vpop.f32.mrb[0].mxu0
        %2143 = vmatprep.mubr.bf16.mxu0 0
        %2144 = vmatmul.mubr.bf16.gmra.mrb[0].mxu0 %v2046
        %v2145 = vpop.f32.mrb[0].mxu0
        %v2146 = vadd.f32 0.0, %v2145
        %v2147 = vpop.f32.mrb[0].mxu0
        %v2148 = vpop.f32.mrb[0].mxu0
        %v2149 = vadd.f32 0.0, %v2148
        %v2150 = vpop.f32.mrb[0].mxu0
        %2151 = vmatprep.mubr.bf16.mxu0 0
        %2152 = vmatmul.mubr.bf16.gmra.mrb[0].mxu0 %v2049
        %v2153 = vpop.f32.mrb[0].mxu0
        %v2154 = vadd.f32 0.0, %v2153
        %v2155 = vpop.f32.mrb[0].mxu0
        %v2156 = vpop.f32.mrb[0].mxu0
        %v2157 = vadd.f32 0.0, %v2156
        %v2158 = vpop.f32.mrb[0].mxu0
        %2159 = vmatprep.mubr.bf16.mxu0 0
        %2160 = vmatmul.mubr.bf16.gmra.mrb[0].mxu0 %v2052
        %v2161 = vpop.f32.mrb[0].mxu0
        %v2162 = vadd.f32 0.0, %v2161
        %v2163 = vpop.f32.mrb[0].mxu0
        %v2164 = vpop.f32.mrb[0].mxu0
        %v2165 = vadd.f32 0.0, %v2164
        %v2166 = vpop.f32.mrb[0].mxu0
        %2167 = vmatprep.mubr.bf16.mxu0 0
        %2168 = vmatmul.mubr.bf16.gmra.mrb[0].mxu0 %v2055
        %v2169 = vpop.f32.mrb[0].mxu0
        %v2170 = vadd.f32 0.0, %v2169
        %v2171 = vpop.f32.mrb[0].mxu0
        %v2172 = vpop.f32.mrb[0].mxu0
        %v2173 = vadd.f32 0.0, %v2172
        %v2174 = vpop.f32.mrb[0].mxu0
        %2175 = vmatprep.mubr.bf16.mxu0 0
        %2176 = vmatmul.mubr.bf16.gmra.mrb[0].mxu0 %v2058
        %v2177 = vpop.f32.mrb[0].mxu0
        %v2178 = vadd.f32 0.0, %v2177
        %v2179 = vpop.f32.mrb[0].mxu0
        %v2180 = vpop.f32.mrb[0].mxu0
        %v2181 = vadd.f32 0.0, %v2180
        %v2182 = vpop.f32.mrb[0].mxu0
        %2183 = vmatprep.mubr.bf16.mxu0 0
        %2184 = vmatmul.mubr.bf16.gmra.mrb[0].mxu0 %v2061
        %v2185 = vpop.f32.mrb[0].mxu0
        %v2186 = vadd.f32 0.0, %v2185
        %v2187 = vpop.f32.mrb[0].mxu0
        %v2188 = vpop.f32.mrb[0].mxu0
        %v2189 = vadd.f32 0.0, %v2188
        %v2190 = vpop.f32.mrb[0].mxu0
        %2191 = vmatprep.mubr.bf16.mxu0 0
        %2192 = vmatmul.mubr.bf16.gmra.mrb[0].mxu0 %v2064
        %v2193 = vpop.f32.mrb[0].mxu0
        %v2194 = vadd.f32 0.0, %v2193
        %v2195 = vpop.f32.mrb[0].mxu0
        %v2196 = vpop.f32.mrb[0].mxu0
        %v2197 = vadd.f32 0.0, %v2196
        %v2198 = vpop.f32.mrb[0].mxu0
        %2199 = vmatprep.mubr.bf16.mxu0 0
        %2200 = vmatmul.mubr.bf16.gmra.mrb[0].mxu0 %v2067
        %v2201 = vpop.f32.mrb[0].mxu0
        %v2202 = vadd.f32 0.0, %v2201
        %v2203 = vpop.f32.mrb[0].mxu0
        %v2204 = vpop.f32.mrb[0].mxu0
        %v2205 = vadd.f32 0.0, %v2204
        %v2206 = vpop.f32.mrb[0].mxu0
        %2207 = vmatprep.mubr.bf16.mxu0 0
        %2208 = vmatmul.mubr.bf16.gmra.mrb[0].mxu0 %v2070
        %v2209 = vpop.f32.mrb[0].mxu0
        %v2210 = vadd.f32 0.0, %v2209
        %v2211 = vpop.f32.mrb[0].mxu0
        %v2212 = vpop.f32.mrb[0].mxu0
        %v2213 = vadd.f32 0.0, %v2212
        %v2214 = vpop.f32.mrb[0].mxu0
        %2215 = vmatprep.mubr.bf16.mxu0 0
        %2216 = vmatmul.mubr.bf16.gmra.mrb[0].mxu0 %v2073
        %v2217 = vpop.f32.mrb[0].mxu0
        %v2218 = vadd.f32 0.0, %v2217
        %v2219 = vpop.f32.mrb[0].mxu0
        %v2220 = vpop.f32.mrb[0].mxu0
        %v2221 = vadd.f32 0.0, %v2220
        %v2222 = vpop.f32.mrb[0].mxu0
        %2223 = vmatprep.mubr.bf16.mxu0 0
        %2224 = vmatmul.mubr.bf16.gmra.mrb[0].mxu0 %v2076
        %v2225 = vpop.f32.mrb[0].mxu0
        %v2226 = vadd.f32 0.0, %v2225
        %v2227 = vpop.f32.mrb[0].mxu0
        %v2228 = vpop.f32.mrb[0].mxu0
        %v2229 = vadd.f32 0.0, %v2228
        %v2230 = vpop.f32.mrb[0].mxu0
        %2231 = vmatprep.mubr.bf16.mxu0 0
        %2232 = vmatmul.mubr.bf16.gmra.mrb[0].mxu0 %v2079
        %v2233 = vpop.f32.mrb[0].mxu0
        %v2234 = vadd.f32 0.0, %v2233
        %v2235 = vpop.f32.mrb[0].mxu0
        %v2236 = vpop.f32.mrb[0].mxu0
        %v2237 = vadd.f32 0.0, %v2236
        %v2238 = vpop.f32.mrb[0].mxu0
        %2239 = vmatprep.mubr.bf16.mxu0 0
        %2240 = vmatmul.mubr.bf16.gmra.mrb[0].mxu0 %v2082
        %v2241 = vpop.f32.mrb[0].mxu0
        %v2242 = vadd.f32 0.0, %v2241
        %v2243 = vpop.f32.mrb[0].mxu0
        %v2244 = vpop.f32.mrb[0].mxu0
        %v2245 = vadd.f32 0.0, %v2244
        %v2246 = vpop.f32.mrb[0].mxu0
        %2247 = vdwg.mxu0
        %v2248 = vld [vmem:[#allocation2] sm:$0xff]
        %v2249 = vld [vmem:[#allocation2 + $0x8] sm:$0xff]
        %v2250 = vld [vmem:[#allocation2 + $0x10] sm:$0xff]
        %v2251 = vld [vmem:[#allocation2 + $0x18] sm:$0xff]
        %v2252 = vld [vmem:[#allocation2 + $0x20] sm:$0xff]
        %v2253 = vld [vmem:[#allocation2 + $0x28] sm:$0xff]
        %v2254 = vld [vmem:[#allocation2 + $0x30] sm:$0xff]
        %v2255 = vld [vmem:[#allocation2 + $0x38] sm:$0xff]
        %v2256 = vld [vmem:[#allocation2 + $0x40] sm:$0xff]
        %v2257 = vld [vmem:[#allocation2 + $0x48] sm:$0xff]
        %v2258 = vld [vmem:[#allocation2 + $0x50] sm:$0xff]
        %v2259 = vld [vmem:[#allocation2 + $0x58] sm:$0xff]
        %v2260 = vld [vmem:[#allocation2 + $0x60] sm:$0xff]
        %v2261 = vld [vmem:[#allocation2 + $0x68] sm:$0xff]
        %v2262 = vld [vmem:[#allocation2 + $0x70] sm:$0xff]
        %v2263 = vld [vmem:[#allocation2 + $0x78] sm:$0xff]
        %v2264 = vld [vmem:[#allocation2 + $0x80] sm:$0xff]
        %v2265 = vld [vmem:[#allocation2 + $0x88] sm:$0xff]
        %v2266 = vld [vmem:[#allocation2 + $0x90] sm:$0xff]
        %v2267 = vld [vmem:[#allocation2 + $0x98] sm:$0xff]
        %v2268 = vld [vmem:[#allocation2 + $0xa0] sm:$0xff]
        %v2269 = vld [vmem:[#allocation2 + $0xa8] sm:$0xff]
        %v2270 = vld [vmem:[#allocation2 + $0xb0] sm:$0xff]
        %v2271 = vld [vmem:[#allocation2 + $0xb8] sm:$0xff]
        %v2272 = vld [vmem:[#allocation2 + $0xc0] sm:$0xff]
        %v2273 = vld [vmem:[#allocation2 + $0xc8] sm:$0xff]
        %v2274 = vld [vmem:[#allocation2 + $0xd0] sm:$0xff]
        %v2275 = vld [vmem:[#allocation2 + $0xd8] sm:$0xff]
        %v2276 = vld [vmem:[#allocation2 + $0xe0] sm:$0xff]
        %v2277 = vld [vmem:[#allocation2 + $0xe8] sm:$0xff]
        %v2278 = vld [vmem:[#allocation2 + $0xf0] sm:$0xff]
        %v2279 = vld [vmem:[#allocation2 + $0xf8] sm:$0xff]
        %v2280 = vadd.f32 %v2248, %v2122
        %v2281 = vadd.f32 %v2249, %v2125
        %v2282 = vadd.f32 %v2250, %v2130
        %v2283 = vadd.f32 %v2251, %v2133
        %v2284 = vadd.f32 %v2252, %v2138
        %v2285 = vadd.f32 %v2253, %v2141
        %v2286 = vadd.f32 %v2254, %v2146
        %v2287 = vadd.f32 %v2255, %v2149
        %v2288 = vadd.f32 %v2256, %v2154
        %v2289 = vadd.f32 %v2257, %v2157
        %v2290 = vadd.f32 %v2258, %v2162
        %v2291 = vadd.f32 %v2259, %v2165
        %v2292 = vadd.f32 %v2260, %v2170
        %v2293 = vadd.f32 %v2261, %v2173
        %v2294 = vadd.f32 %v2262, %v2178
        %v2295 = vadd.f32 %v2263, %v2181
        %v2296 = vadd.f32 %v2264, %v2186
        %v2297 = vadd.f32 %v2265, %v2189
        %v2298 = vadd.f32 %v2266, %v2194
        %v2299 = vadd.f32 %v2267, %v2197
        %v2300 = vadd.f32 %v2268, %v2202
        %v2301 = vadd.f32 %v2269, %v2205
        %v2302 = vadd.f32 %v2270, %v2210
        %v2303 = vadd.f32 %v2271, %v2213
        %v2304 = vadd.f32 %v2272, %v2218
        %v2305 = vadd.f32 %v2273, %v2221
        %v2306 = vadd.f32 %v2274, %v2226
        %v2307 = vadd.f32 %v2275, %v2229
        %v2308 = vadd.f32 %v2276, %v2234
        %v2309 = vadd.f32 %v2277, %v2237
        %v2310 = vadd.f32 %v2278, %v2242
        %v2311 = vadd.f32 %v2279, %v2245
        %2312 = vst [vmem:[#allocation2] sm:$0xff] %v2280
        %2313 = vst [vmem:[#allocation2 + $0x8] sm:$0xff] %v2281
        %2314 = vst [vmem:[#allocation2 + $0x10] sm:$0xff] %v2282
        %2315 = vst [vmem:[#allocation2 + $0x18] sm:$0xff] %v2283
        %2316 = vst [vmem:[#allocation2 + $0x20] sm:$0xff] %v2284
        %2317 = vst [vmem:[#allocation2 + $0x28] sm:$0xff] %v2285
        %2318 = vst [vmem:[#allocation2 + $0x30] sm:$0xff] %v2286
        %2319 = vst [vmem:[#allocation2 + $0x38] sm:$0xff] %v2287
        %2320 = vst [vmem:[#allocation2 + $0x40] sm:$0xff] %v2288
        %2321 = vst [vmem:[#allocation2 + $0x48] sm:$0xff] %v2289
        %2322 = vst [vmem:[#allocation2 + $0x50] sm:$0xff] %v2290
        %2323 = vst [vmem:[#allocation2 + $0x58] sm:$0xff] %v2291
        %2324 = vst [vmem:[#allocation2 + $0x60] sm:$0xff] %v2292
        %2325 = vst [vmem:[#allocation2 + $0x68] sm:$0xff] %v2293
        %2326 = vst [vmem:[#allocation2 + $0x70] sm:$0xff] %v2294
        %2327 = vst [vmem:[#allocation2 + $0x78] sm:$0xff] %v2295
        %2328 = vst [vmem:[#allocation2 + $0x80] sm:$0xff] %v2296
        %2329 = vst [vmem:[#allocation2 + $0x88] sm:$0xff] %v2297
        %2330 = vst [vmem:[#allocation2 + $0x90] sm:$0xff] %v2298
        %2331 = vst [vmem:[#allocation2 + $0x98] sm:$0xff] %v2299
        %2332 = vst [vmem:[#allocation2 + $0xa0] sm:$0xff] %v2300
        %2333 = vst [vmem:[#allocation2 + $0xa8] sm:$0xff] %v2301
        %2334 = vst [vmem:[#allocation2 + $0xb0] sm:$0xff] %v2302
        %2335 = vst [vmem:[#allocation2 + $0xb8] sm:$0xff] %v2303
        %2336 = vst [vmem:[#allocation2 + $0xc0] sm:$0xff] %v2304
        %2337 = vst [vmem:[#allocation2 + $0xc8] sm:$0xff] %v2305
        %2338 = vst [vmem:[#allocation2 + $0xd0] sm:$0xff] %v2306
        %2339 = vst [vmem:[#allocation2 + $0xd8] sm:$0xff] %v2307
        %2340 = vst [vmem:[#allocation2 + $0xe0] sm:$0xff] %v2308
        %2341 = vst [vmem:[#allocation2 + $0xe8] sm:$0xff] %v2309
        %2342 = vst [vmem:[#allocation2 + $0xf0] sm:$0xff] %v2310
        %2343 = vst [vmem:[#allocation2 + $0xf8] sm:$0xff] %v2311
        %v2344 = vld [vmem:[%s1921] sm:$0xf]
        %v2345 = vld [vmem:[%s1921 + $0x4] sm:$0xf]
        %v2346 = vld [vmem:[%s1921 + $0x8] sm:$0x1]
        %v2347 = vld [vmem:[%s1921 + $0xc] sm:$0xf]
        %v2348 = vld [vmem:[%s1921 + $0x10] sm:$0xf]
        %v2349 = vld [vmem:[%s1921 + $0x14] sm:$0x1]
        %v2350 = vld [vmem:[%s1921 + $0x18] sm:$0xf]
        %v2351 = vld [vmem:[%s1921 + $0x1c] sm:$0xf]
        %v2352 = vld [vmem:[%s1921 + $0x20] sm:$0x1]
        %v2353 = vld [vmem:[%s1921 + $0x24] sm:$0xf]
        %v2354 = vld [vmem:[%s1921 + $0x28] sm:$0xf]
        %v2355 = vld [vmem:[%s1921 + $0x2c] sm:$0x1]
        %v2356 = vld [vmem:[%s1921 + $0x30] sm:$0xf]
        %v2357 = vld [vmem:[%s1921 + $0x34] sm:$0xf]
        %v2358 = vld [vmem:[%s1921 + $0x38] sm:$0x1]
        %v2359 = vld [vmem:[%s1921 + $0x3c] sm:$0xf]
        %v2360 = vld [vmem:[%s1921 + $0x40] sm:$0xf]
        %v2361 = vld [vmem:[%s1921 + $0x44] sm:$0x1]
        %v2362 = vld [vmem:[%s1921 + $0x48] sm:$0xf]
        %v2363 = vld [vmem:[%s1921 + $0x4c] sm:$0xf]
        %v2364 = vld [vmem:[%s1921 + $0x50] sm:$0x1]
        %v2365 = vld [vmem:[%s1921 + $0x54] sm:$0xf]
        %v2366 = vld [vmem:[%s1921 + $0x58] sm:$0xf]
        %v2367 = vld [vmem:[%s1921 + $0x5c] sm:$0x1]
        %v2368 = vld [vmem:[%s1921 + $0x60] sm:$0xf]
        %v2369 = vld [vmem:[%s1921 + $0x64] sm:$0xf]
        %v2370 = vld [vmem:[%s1921 + $0x68] sm:$0x1]
        %v2371 = vld [vmem:[%s1921 + $0x6c] sm:$0xf]
        %v2372 = vld [vmem:[%s1921 + $0x70] sm:$0xf]
        %v2373 = vld [vmem:[%s1921 + $0x74] sm:$0x1]
        %v2374 = vld [vmem:[%s1921 + $0x78] sm:$0xf]
        %v2375 = vld [vmem:[%s1921 + $0x7c] sm:$0xf]
        %v2376 = vld [vmem:[%s1921 + $0x80] sm:$0x1]
        %v2377 = vld [vmem:[%s1921 + $0x84] sm:$0xf]
        %v2378 = vld [vmem:[%s1921 + $0x88] sm:$0xf]
        %v2379 = vld [vmem:[%s1921 + $0x8c] sm:$0x1]
        %v2380 = vld [vmem:[%s1921 + $0x90] sm:$0xf]
        %v2381 = vld [vmem:[%s1921 + $0x94] sm:$0xf]
        %v2382 = vld [vmem:[%s1921 + $0x98] sm:$0x1]
        %v2383 = vld [vmem:[%s1921 + $0x9c] sm:$0xf]
        %v2384 = vld [vmem:[%s1921 + $0xa0] sm:$0xf]
        %v2385 = vld [vmem:[%s1921 + $0xa4] sm:$0x1]
        %v2386 = vld [vmem:[%s1921 + $0xa8] sm:$0xf]
        %v2387 = vld [vmem:[%s1921 + $0xac] sm:$0xf]
        %v2388 = vld [vmem:[%s1921 + $0xb0] sm:$0x1]
        %v2389 = vld [vmem:[%s1921 + $0xb4] sm:$0xf]
        %v2390 = vld [vmem:[%s1921 + $0xb8] sm:$0xf]
        %v2391 = vld [vmem:[%s1921 + $0xbc] sm:$0x1]
        %v2393 = vshrl.u32 %v2344, 16
        %v2395 = vrot.slane %v2393, 4
        %v2396 = vshll.u32 %v2344, 16
        %v2398 = vrot.slane %v2396, 5
        %v2399 = vor.u32 %v2395, %v2398
        %v2400 = vrot.slane %v2399, 4
        %v2402 = vshll.u32 %v2345, 16
        %v2404 = vrot.slane %v2402, 5
        %v2405 = vsel %vm609, %v2400, %v2404
        %v2406 = vshrl.u32 %v2345, 16
        %v2408 = vrot.slane %v2406, 4
        %v2409 = vor.u32 %v2408, %v2404
        %v2410 = vrot.slane %v2409, 4
        %v2412 = vshll.u32 %v2346, 16
        %v2414 = vrot.slane %v2412, 5
        %v2415 = vsel %vm609, %v2410, %v2414
        %v2417 = vshrl.u32 %v2347, 16
        %v2419 = vrot.slane %v2417, 4
        %v2420 = vshll.u32 %v2347, 16
        %v2422 = vrot.slane %v2420, 5
        %v2423 = vor.u32 %v2419, %v2422
        %v2424 = vrot.slane %v2423, 4
        %v2426 = vshll.u32 %v2348, 16
        %v2428 = vrot.slane %v2426, 5
        %v2429 = vsel %vm609, %v2424, %v2428
        %v2430 = vshrl.u32 %v2348, 16
        %v2432 = vrot.slane %v2430, 4
        %v2433 = vor.u32 %v2432, %v2428
        %v2434 = vrot.slane %v2433, 4
        %v2436 = vshll.u32 %v2349, 16
        %v2438 = vrot.slane %v2436, 5
        %v2439 = vsel %vm609, %v2434, %v2438
        %v2441 = vshrl.u32 %v2350, 16
        %v2443 = vrot.slane %v2441, 4
        %v2444 = vshll.u32 %v2350, 16
        %v2446 = vrot.slane %v2444, 5
        %v2447 = vor.u32 %v2443, %v2446
        %v2448 = vrot.slane %v2447, 4
        %v2450 = vshll.u32 %v2351, 16
        %v2452 = vrot.slane %v2450, 5
        %v2453 = vsel %vm609, %v2448, %v2452
        %v2454 = vshrl.u32 %v2351, 16
        %v2456 = vrot.slane %v2454, 4
        %v2457 = vor.u32 %v2456, %v2452
        %v2458 = vrot.slane %v2457, 4
        %v2460 = vshll.u32 %v2352, 16
        %v2462 = vrot.slane %v2460, 5
        %v2463 = vsel %vm609, %v2458, %v2462
        %v2465 = vshrl.u32 %v2353, 16
        %v2467 = vrot.slane %v2465, 4
        %v2468 = vshll.u32 %v2353, 16
        %v2470 = vrot.slane %v2468, 5
        %v2471 = vor.u32 %v2467, %v2470
        %v2472 = vrot.slane %v2471, 4
        %v2474 = vshll.u32 %v2354, 16
        %v2476 = vrot.slane %v2474, 5
        %v2477 = vsel %vm609, %v2472, %v2476
        %v2478 = vshrl.u32 %v2354, 16
        %v2480 = vrot.slane %v2478, 4
        %v2481 = vor.u32 %v2480, %v2476
        %v2482 = vrot.slane %v2481, 4
        %v2484 = vshll.u32 %v2355, 16
        %v2486 = vrot.slane %v2484, 5
        %v2487 = vsel %vm609, %v2482, %v2486
        %v2489 = vshrl.u32 %v2356, 16
        %v2491 = vrot.slane %v2489, 4
        %v2492 = vshll.u32 %v2356, 16
        %v2494 = vrot.slane %v2492, 5
        %v2495 = vor.u32 %v2491, %v2494
        %v2496 = vrot.slane %v2495, 4
        %v2498 = vshll.u32 %v2357, 16
        %v2500 = vrot.slane %v2498, 5
        %v2501 = vsel %vm609, %v2496, %v2500
        %v2502 = vshrl.u32 %v2357, 16
        %v2504 = vrot.slane %v2502, 4
        %v2505 = vor.u32 %v2504, %v2500
        %v2506 = vrot.slane %v2505, 4
        %v2508 = vshll.u32 %v2358, 16
        %v2510 = vrot.slane %v2508, 5
        %v2511 = vsel %vm609, %v2506, %v2510
        %v2513 = vshrl.u32 %v2359, 16
        %v2515 = vrot.slane %v2513, 4
        %v2516 = vshll.u32 %v2359, 16
        %v2518 = vrot.slane %v2516, 5
        %v2519 = vor.u32 %v2515, %v2518
        %v2520 = vrot.slane %v2519, 4
        %v2522 = vshll.u32 %v2360, 16
        %v2524 = vrot.slane %v2522, 5
        %v2525 = vsel %vm609, %v2520, %v2524
        %v2526 = vshrl.u32 %v2360, 16
        %v2528 = vrot.slane %v2526, 4
        %v2529 = vor.u32 %v2528, %v2524
        %v2530 = vrot.slane %v2529, 4
        %v2532 = vshll.u32 %v2361, 16
        %v2534 = vrot.slane %v2532, 5
        %v2535 = vsel %vm609, %v2530, %v2534
        %v2537 = vshrl.u32 %v2362, 16
        %v2539 = vrot.slane %v2537, 4
        %v2540 = vshll.u32 %v2362, 16
        %v2542 = vrot.slane %v2540, 5
        %v2543 = vor.u32 %v2539, %v2542
        %v2544 = vrot.slane %v2543, 4
        %v2546 = vshll.u32 %v2363, 16
        %v2548 = vrot.slane %v2546, 5
        %v2549 = vsel %vm609, %v2544, %v2548
        %v2550 = vshrl.u32 %v2363, 16
        %v2552 = vrot.slane %v2550, 4
        %v2553 = vor.u32 %v2552, %v2548
        %v2554 = vrot.slane %v2553, 4
        %v2556 = vshll.u32 %v2364, 16
        %v2558 = vrot.slane %v2556, 5
        %v2559 = vsel %vm609, %v2554, %v2558
        %v2561 = vshrl.u32 %v2365, 16
        %v2563 = vrot.slane %v2561, 4
        %v2564 = vshll.u32 %v2365, 16
        %v2566 = vrot.slane %v2564, 5
        %v2567 = vor.u32 %v2563, %v2566
        %v2568 = vrot.slane %v2567, 4
        %v2570 = vshll.u32 %v2366, 16
        %v2572 = vrot.slane %v2570, 5
        %v2573 = vsel %vm609, %v2568, %v2572
        %v2574 = vshrl.u32 %v2366, 16
        %v2576 = vrot.slane %v2574, 4
        %v2577 = vor.u32 %v2576, %v2572
        %v2578 = vrot.slane %v2577, 4
        %v2580 = vshll.u32 %v2367, 16
        %v2582 = vrot.slane %v2580, 5
        %v2583 = vsel %vm609, %v2578, %v2582
        %v2585 = vshrl.u32 %v2368, 16
        %v2587 = vrot.slane %v2585, 4
        %v2588 = vshll.u32 %v2368, 16
        %v2590 = vrot.slane %v2588, 5
        %v2591 = vor.u32 %v2587, %v2590
        %v2592 = vrot.slane %v2591, 4
        %v2594 = vshll.u32 %v2369, 16
        %v2596 = vrot.slane %v2594, 5
        %v2597 = vsel %vm609, %v2592, %v2596
        %v2598 = vshrl.u32 %v2369, 16
        %v2600 = vrot.slane %v2598, 4
        %v2601 = vor.u32 %v2600, %v2596
        %v2602 = vrot.slane %v2601, 4
        %v2604 = vshll.u32 %v2370, 16
        %v2606 = vrot.slane %v2604, 5
        %v2607 = vsel %vm609, %v2602, %v2606
        %v2609 = vshrl.u32 %v2371, 16
        %v2611 = vrot.slane %v2609, 4
        %v2612 = vshll.u32 %v2371, 16
        %v2614 = vrot.slane %v2612, 5
        %v2615 = vor.u32 %v2611, %v2614
        %v2616 = vrot.slane %v2615, 4
        %v2618 = vshll.u32 %v2372, 16
        %v2620 = vrot.slane %v2618, 5
        %v2621 = vsel %vm609, %v2616, %v2620
        %v2622 = vshrl.u32 %v2372, 16
        %v2624 = vrot.slane %v2622, 4
        %v2625 = vor.u32 %v2624, %v2620
        %v2626 = vrot.slane %v2625, 4
        %v2628 = vshll.u32 %v2373, 16
        %v2630 = vrot.slane %v2628, 5
        %v2631 = vsel %vm609, %v2626, %v2630
        %v2633 = vshrl.u32 %v2374, 16
        %v2635 = vrot.slane %v2633, 4
        %v2636 = vshll.u32 %v2374, 16
        %v2638 = vrot.slane %v2636, 5
        %v2639 = vor.u32 %v2635, %v2638
        %v2640 = vrot.slane %v2639, 4
        %v2642 = vshll.u32 %v2375, 16
        %v2644 = vrot.slane %v2642, 5
        %v2645 = vsel %vm609, %v2640, %v2644
        %v2646 = vshrl.u32 %v2375, 16
        %v2648 = vrot.slane %v2646, 4
        %v2649 = vor.u32 %v2648, %v2644
        %v2650 = vrot.slane %v2649, 4
        %v2652 = vshll.u32 %v2376, 16
        %v2654 = vrot.slane %v2652, 5
        %v2655 = vsel %vm609, %v2650, %v2654
        %v2657 = vshrl.u32 %v2377, 16
        %v2659 = vrot.slane %v2657, 4
        %v2660 = vshll.u32 %v2377, 16
        %v2662 = vrot.slane %v2660, 5
        %v2663 = vor.u32 %v2659, %v2662
        %v2664 = vrot.slane %v2663, 4
        %v2666 = vshll.u32 %v2378, 16
        %v2668 = vrot.slane %v2666, 5
        %v2669 = vsel %vm609, %v2664, %v2668
        %v2670 = vshrl.u32 %v2378, 16
        %v2672 = vrot.slane %v2670, 4
        %v2673 = vor.u32 %v2672, %v2668
        %v2674 = vrot.slane %v2673, 4
        %v2676 = vshll.u32 %v2379, 16
        %v2678 = vrot.slane %v2676, 5
        %v2679 = vsel %vm609, %v2674, %v2678
        %v2681 = vshrl.u32 %v2380, 16
        %v2683 = vrot.slane %v2681, 4
        %v2684 = vshll.u32 %v2380, 16
        %v2686 = vrot.slane %v2684, 5
        %v2687 = vor.u32 %v2683, %v2686
        %v2688 = vrot.slane %v2687, 4
        %v2690 = vshll.u32 %v2381, 16
        %v2692 = vrot.slane %v2690, 5
        %v2693 = vsel %vm609, %v2688, %v2692
        %v2694 = vshrl.u32 %v2381, 16
        %v2696 = vrot.slane %v2694, 4
        %v2697 = vor.u32 %v2696, %v2692
        %v2698 = vrot.slane %v2697, 4
        %v2700 = vshll.u32 %v2382, 16
        %v2702 = vrot.slane %v2700, 5
        %v2703 = vsel %vm609, %v2698, %v2702
        %v2705 = vshrl.u32 %v2383, 16
        %v2707 = vrot.slane %v2705, 4
        %v2708 = vshll.u32 %v2383, 16
        %v2710 = vrot.slane %v2708, 5
        %v2711 = vor.u32 %v2707, %v2710
        %v2712 = vrot.slane %v2711, 4
        %v2714 = vshll.u32 %v2384, 16
        %v2716 = vrot.slane %v2714, 5
        %v2717 = vsel %vm609, %v2712, %v2716
        %v2718 = vshrl.u32 %v2384, 16
        %v2720 = vrot.slane %v2718, 4
        %v2721 = vor.u32 %v2720, %v2716
        %v2722 = vrot.slane %v2721, 4
        %v2724 = vshll.u32 %v2385, 16
        %v2726 = vrot.slane %v2724, 5
        %v2727 = vsel %vm609, %v2722, %v2726
        %v2729 = vshrl.u32 %v2386, 16
        %v2731 = vrot.slane %v2729, 4
        %v2732 = vshll.u32 %v2386, 16
        %v2734 = vrot.slane %v2732, 5
        %v2735 = vor.u32 %v2731, %v2734
        %v2736 = vrot.slane %v2735, 4
        %v2738 = vshll.u32 %v2387, 16
        %v2740 = vrot.slane %v2738, 5
        %v2741 = vsel %vm609, %v2736, %v2740
        %v2742 = vshrl.u32 %v2387, 16
        %v2744 = vrot.slane %v2742, 4
        %v2745 = vor.u32 %v2744, %v2740
        %v2746 = vrot.slane %v2745, 4
        %v2748 = vshll.u32 %v2388, 16
        %v2750 = vrot.slane %v2748, 5
        %v2751 = vsel %vm609, %v2746, %v2750
        %v2753 = vshrl.u32 %v2389, 16
        %v2755 = vrot.slane %v2753, 4
        %v2756 = vshll.u32 %v2389, 16
        %v2758 = vrot.slane %v2756, 5
        %v2759 = vor.u32 %v2755, %v2758
        %v2760 = vrot.slane %v2759, 4
        %v2762 = vshll.u32 %v2390, 16
        %v2764 = vrot.slane %v2762, 5
        %v2765 = vsel %vm609, %v2760, %v2764
        %v2766 = vshrl.u32 %v2390, 16
        %v2768 = vrot.slane %v2766, 4
        %v2769 = vor.u32 %v2768, %v2764
        %v2770 = vrot.slane %v2769, 4
        %v2772 = vshll.u32 %v2391, 16
        %v2774 = vrot.slane %v2772, 5
        %v2775 = vsel %vm609, %v2770, %v2774
        %s2776 = scalar_lea.vmem [#allocation3], 8
        %v2777 = vld [vmem:[%s2776] sm:$0x3]
        %v2778 = vunpack.c.l.b16 %v2405
        %v2779 = vunpack.c.l.b16 %v2415
        %v2780 = vunpack.c.l.b16 %v2429
        %v2781 = vunpack.c.l.b16 %v2439
        %v2782 = vunpack.c.l.b16 %v2453
        %v2783 = vunpack.c.l.b16 %v2463
        %v2784 = vunpack.c.l.b16 %v2477
        %v2785 = vunpack.c.l.b16 %v2487
        %v2786 = vunpack.c.l.b16 %v2501
        %v2787 = vunpack.c.l.b16 %v2511
        %v2788 = vunpack.c.l.b16 %v2525
        %v2789 = vunpack.c.l.b16 %v2535
        %v2790 = vunpack.c.l.b16 %v2549
        %v2791 = vunpack.c.l.b16 %v2559
        %v2792 = vunpack.c.l.b16 %v2573
        %v2793 = vunpack.c.l.b16 %v2583
        %v2794 = vunpack.c.l.b16 %v2597
        %v2795 = vunpack.c.l.b16 %v2607
        %v2796 = vunpack.c.l.b16 %v2621
        %v2797 = vunpack.c.l.b16 %v2631
        %v2798 = vunpack.c.l.b16 %v2645
        %v2799 = vunpack.c.l.b16 %v2655
        %v2800 = vunpack.c.l.b16 %v2669
        %v2801 = vunpack.c.l.b16 %v2679
        %v2802 = vunpack.c.l.b16 %v2693
        %v2803 = vunpack.c.l.b16 %v2703
        %v2804 = vunpack.c.l.b16 %v2717
        %v2805 = vunpack.c.l.b16 %v2727
        %v2806 = vunpack.c.l.b16 %v2741
        %v2807 = vunpack.c.l.b16 %v2751
        %v2808 = vunpack.c.l.b16 %v2765
        %v2809 = vunpack.c.l.b16 %v2775
        %v2810 = vpack.c.b16 %v2779, %v2778
        %v2811 = vpack.c.b16 %v2781, %v2780
        %v2812 = vpack.c.b16 %v2783, %v2782
        %v2813 = vpack.c.b16 %v2785, %v2784
        %v2814 = vpack.c.b16 %v2787, %v2786
        %v2815 = vpack.c.b16 %v2789, %v2788
        %v2816 = vpack.c.b16 %v2791, %v2790
        %v2817 = vpack.c.b16 %v2793, %v2792
        %v2818 = vpack.c.b16 %v2795, %v2794
        %v2819 = vpack.c.b16 %v2797, %v2796
        %v2820 = vpack.c.b16 %v2799, %v2798
        %v2821 = vpack.c.b16 %v2801, %v2800
        %v2822 = vpack.c.b16 %v2803, %v2802
        %v2823 = vpack.c.b16 %v2805, %v2804
        %v2824 = vpack.c.b16 %v2807, %v2806
        %v2825 = vpack.c.b16 %v2809, %v2808
        %v2827 = vsel %vm313, %v2810, 0
        %v2830 = vsel %vm313, %v2811, 0
        %v2833 = vsel %vm313, %v2812, 0
        %v2836 = vsel %vm313, %v2813, 0
        %v2839 = vsel %vm313, %v2814, 0
        %v2842 = vsel %vm313, %v2815, 0
        %v2845 = vsel %vm313, %v2816, 0
        %v2848 = vsel %vm313, %v2817, 0
        %v2851 = vsel %vm313, %v2818, 0
        %v2854 = vsel %vm313, %v2819, 0
        %v2857 = vsel %vm313, %v2820, 0
        %v2860 = vsel %vm313, %v2821, 0
        %v2863 = vsel %vm313, %v2822, 0
        %v2866 = vsel %vm313, %v2823, 0
        %v2869 = vsel %vm313, %v2824, 0
        %v2872 = vsel %vm313, %v2825, 0
        %v2875 = vsel %vm362, %v2777, 0
        %2877 = vmatprep.subr.bf16.mxu0 0
        %2878 = vmatpush1.bf16.msra.mxu0 %v2875
        %2879 = vmatprep.subr.bf16.mxu0 0
        %2880 = vmatpush1.bf16.msra.mxu0 0
        %2881 = vmatprep.subr.bf16.mxu0 0
        %2882 = vmatpush1.bf16.msra.mxu0 0
        %2883 = vmatprep.subr.bf16.mxu0 0
        %2884 = vmatpush1.bf16.msra.mxu0 0
        %2885 = vmatprep.subr.bf16.mxu0 0
        %2886 = vmatpush1.bf16.msra.mxu0 0
        %2887 = vmatprep.subr.bf16.mxu0 0
        %2888 = vmatpush1.bf16.msra.mxu0 0
        %2889 = vmatprep.subr.bf16.mxu0 0
        %2890 = vmatpush1.bf16.msra.mxu0 0
        %2891 = vmatprep.subr.bf16.mxu0 0
        %2892 = vmatpush1.bf16.msra.mxu0 0
        %2893 = vmatprep.subr.bf16.mxu0 0
        %2894 = vmatpush1.bf16.msra.mxu0 0
        %2895 = vmatprep.subr.bf16.mxu0 0
        %2896 = vmatpush1.bf16.msra.mxu0 0
        %2897 = vmatprep.subr.bf16.mxu0 0
        %2898 = vmatpush1.bf16.msra.mxu0 0
        %2899 = vmatprep.subr.bf16.mxu0 0
        %2900 = vmatpush1.bf16.msra.mxu0 0
        %2901 = vmatprep.subr.bf16.mxu0 0
        %2902 = vmatpush1.bf16.msra.mxu0 0
        %2903 = vmatprep.subr.bf16.mxu0 0
        %2904 = vmatpush1.bf16.msra.mxu0 0
        %2905 = vmatprep.subr.bf16.mxu0 0
        %2906 = vmatpush1.bf16.msra.mxu0 0
        %2907 = vmatprep.subr.bf16.mxu0 0
        %2908 = vmatpush1.bf16.msra.mxu0 0
        %2909 = vmatprep.mubr.bf16.mxu0 0
        %2910 = vmatmul.mubr.bf16.gmra.mrb[0].mxu0 %v2827
        %v2911 = vpop.f32.mrb[0].mxu0
        %v2912 = vadd.f32 0.0, %v2911
        %v2913 = vpop.f32.mrb[0].mxu0
        %v2914 = vpop.f32.mrb[0].mxu0
        %v2915 = vadd.f32 0.0, %v2914
        %v2916 = vpop.f32.mrb[0].mxu0
        %2917 = vmatprep.mubr.bf16.mxu0 0
        %2918 = vmatmul.mubr.bf16.gmra.mrb[0].mxu0 %v2830
        %v2919 = vpop.f32.mrb[0].mxu0
        %v2920 = vadd.f32 0.0, %v2919
        %v2921 = vpop.f32.mrb[0].mxu0
        %v2922 = vpop.f32.mrb[0].mxu0
        %v2923 = vadd.f32 0.0, %v2922
        %v2924 = vpop.f32.mrb[0].mxu0
        %2925 = vmatprep.mubr.bf16.mxu0 0
        %2926 = vmatmul.mubr.bf16.gmra.mrb[0].mxu0 %v2833
        %v2927 = vpop.f32.mrb[0].mxu0
        %v2928 = vadd.f32 0.0, %v2927
        %v2929 = vpop.f32.mrb[0].mxu0
        %v2930 = vpop.f32.mrb[0].mxu0
        %v2931 = vadd.f32 0.0, %v2930
        %v2932 = vpop.f32.mrb[0].mxu0
        %2933 = vmatprep.mubr.bf16.mxu0 0
        %2934 = vmatmul.mubr.bf16.gmra.mrb[0].mxu0 %v2836
        %v2935 = vpop.f32.mrb[0].mxu0
        %v2936 = vadd.f32 0.0, %v2935
        %v2937 = vpop.f32.mrb[0].mxu0
        %v2938 = vpop.f32.mrb[0].mxu0
        %v2939 = vadd.f32 0.0, %v2938
        %v2940 = vpop.f32.mrb[0].mxu0
        %2941 = vmatprep.mubr.bf16.mxu0 0
        %2942 = vmatmul.mubr.bf16.gmra.mrb[0].mxu0 %v2839
        %v2943 = vpop.f32.mrb[0].mxu0
        %v2944 = vadd.f32 0.0, %v2943
        %v2945 = vpop.f32.mrb[0].mxu0
        %v2946 = vpop.f32.mrb[0].mxu0
        %v2947 = vadd.f32 0.0, %v2946
        %v2948 = vpop.f32.mrb[0].mxu0
        %2949 = vmatprep.mubr.bf16.mxu0 0
        %2950 = vmatmul.mubr.bf16.gmra.mrb[0].mxu0 %v2842
        %v2951 = vpop.f32.mrb[0].mxu0
        %v2952 = vadd.f32 0.0, %v2951
        %v2953 = vpop.f32.mrb[0].mxu0
        %v2954 = vpop.f32.mrb[0].mxu0
        %v2955 = vadd.f32 0.0, %v2954
        %v2956 = vpop.f32.mrb[0].mxu0
        %2957 = vmatprep.mubr.bf16.mxu0 0
        %2958 = vmatmul.mubr.bf16.gmra.mrb[0].mxu0 %v2845
        %v2959 = vpop.f32.mrb[0].mxu0
        %v2960 = vadd.f32 0.0, %v2959
        %v2961 = vpop.f32.mrb[0].mxu0
        %v2962 = vpop.f32.mrb[0].mxu0
        %v2963 = vadd.f32 0.0, %v2962
        %v2964 = vpop.f32.mrb[0].mxu0
        %2965 = vmatprep.mubr.bf16.mxu0 0
        %2966 = vmatmul.mubr.bf16.gmra.mrb[0].mxu0 %v2848
        %v2967 = vpop.f32.mrb[0].mxu0
        %v2968 = vadd.f32 0.0, %v2967
        %v2969 = vpop.f32.mrb[0].mxu0
        %v2970 = vpop.f32.mrb[0].mxu0
        %v2971 = vadd.f32 0.0, %v2970
        %v2972 = vpop.f32.mrb[0].mxu0
        %2973 = vmatprep.mubr.bf16.mxu0 0
        %2974 = vmatmul.mubr.bf16.gmra.mrb[0].mxu0 %v2851
        %v2975 = vpop.f32.mrb[0].mxu0
        %v2976 = vadd.f32 0.0, %v2975
        %v2977 = vpop.f32.mrb[0].mxu0
        %v2978 = vpop.f32.mrb[0].mxu0
        %v2979 = vadd.f32 0.0, %v2978
        %v2980 = vpop.f32.mrb[0].mxu0
        %2981 = vmatprep.mubr.bf16.mxu0 0
        %2982 = vmatmul.mubr.bf16.gmra.mrb[0].mxu0 %v2854
        %v2983 = vpop.f32.mrb[0].mxu0
        %v2984 = vadd.f32 0.0, %v2983
        %v2985 = vpop.f32.mrb[0].mxu0
        %v2986 = vpop.f32.mrb[0].mxu0
        %v2987 = vadd.f32 0.0, %v2986
        %v2988 = vpop.f32.mrb[0].mxu0
        %2989 = vmatprep.mubr.bf16.mxu0 0
        %2990 = vmatmul.mubr.bf16.gmra.mrb[0].mxu0 %v2857
        %v2991 = vpop.f32.mrb[0].mxu0
        %v2992 = vadd.f32 0.0, %v2991
        %v2993 = vpop.f32.mrb[0].mxu0
        %v2994 = vpop.f32.mrb[0].mxu0
        %v2995 = vadd.f32 0.0, %v2994
        %v2996 = vpop.f32.mrb[0].mxu0
        %2997 = vmatprep.mubr.bf16.mxu0 0
        %2998 = vmatmul.mubr.bf16.gmra.mrb[0].mxu0 %v2860
        %v2999 = vpop.f32.mrb[0].mxu0
        %v3000 = vadd.f32 0.0, %v2999
        %v3001 = vpop.f32.mrb[0].mxu0
        %v3002 = vpop.f32.mrb[0].mxu0
        %v3003 = vadd.f32 0.0, %v3002
        %v3004 = vpop.f32.mrb[0].mxu0
        %3005 = vmatprep.mubr.bf16.mxu0 0
        %3006 = vmatmul.mubr.bf16.gmra.mrb[0].mxu0 %v2863
        %v3007 = vpop.f32.mrb[0].mxu0
        %v3008 = vadd.f32 0.0, %v3007
        %v3009 = vpop.f32.mrb[0].mxu0
        %v3010 = vpop.f32.mrb[0].mxu0
        %v3011 = vadd.f32 0.0, %v3010
        %v3012 = vpop.f32.mrb[0].mxu0
        %3013 = vmatprep.mubr.bf16.mxu0 0
        %3014 = vmatmul.mubr.bf16.gmra.mrb[0].mxu0 %v2866
        %v3015 = vpop.f32.mrb[0].mxu0
        %v3016 = vadd.f32 0.0, %v3015
        %v3017 = vpop.f32.mrb[0].mxu0
        %v3018 = vpop.f32.mrb[0].mxu0
        %v3019 = vadd.f32 0.0, %v3018
        %v3020 = vpop.f32.mrb[0].mxu0
        %3021 = vmatprep.mubr.bf16.mxu0 0
        %3022 = vmatmul.mubr.bf16.gmra.mrb[0].mxu0 %v2869
        %v3023 = vpop.f32.mrb[0].mxu0
        %v3024 = vadd.f32 0.0, %v3023
        %v3025 = vpop.f32.mrb[0].mxu0
        %v3026 = vpop.f32.mrb[0].mxu0
        %v3027 = vadd.f32 0.0, %v3026
        %v3028 = vpop.f32.mrb[0].mxu0
        %3029 = vmatprep.mubr.bf16.mxu0 0
        %3030 = vmatmul.mubr.bf16.gmra.mrb[0].mxu0 %v2872
        %v3031 = vpop.f32.mrb[0].mxu0
        %v3032 = vadd.f32 0.0, %v3031
        %v3033 = vpop.f32.mrb[0].mxu0
        %v3034 = vpop.f32.mrb[0].mxu0
        %v3035 = vadd.f32 0.0, %v3034
        %v3036 = vpop.f32.mrb[0].mxu0
        %3037 = vdwg.mxu0
        %v3038 = vld [vmem:[#allocation2] sm:$0xff]
        %v3039 = vld [vmem:[#allocation2 + $0x8] sm:$0xff]
        %v3040 = vld [vmem:[#allocation2 + $0x10] sm:$0xff]
        %v3041 = vld [vmem:[#allocation2 + $0x18] sm:$0xff]
        %v3042 = vld [vmem:[#allocation2 + $0x20] sm:$0xff]
        %v3043 = vld [vmem:[#allocation2 + $0x28] sm:$0xff]
        %v3044 = vld [vmem:[#allocation2 + $0x30] sm:$0xff]
        %v3045 = vld [vmem:[#allocation2 + $0x38] sm:$0xff]
        %v3046 = vld [vmem:[#allocation2 + $0x40] sm:$0xff]
        %v3047 = vld [vmem:[#allocation2 + $0x48] sm:$0xff]
        %v3048 = vld [vmem:[#allocation2 + $0x50] sm:$0xff]
        %v3049 = vld [vmem:[#allocation2 + $0x58] sm:$0xff]
        %v3050 = vld [vmem:[#allocation2 + $0x60] sm:$0xff]
        %v3051 = vld [vmem:[#allocation2 + $0x68] sm:$0xff]
        %v3052 = vld [vmem:[#allocation2 + $0x70] sm:$0xff]
        %v3053 = vld [vmem:[#allocation2 + $0x78] sm:$0xff]
        %v3054 = vld [vmem:[#allocation2 + $0x80] sm:$0xff]
        %v3055 = vld [vmem:[#allocation2 + $0x88] sm:$0xff]
        %v3056 = vld [vmem:[#allocation2 + $0x90] sm:$0xff]
        %v3057 = vld [vmem:[#allocation2 + $0x98] sm:$0xff]
        %v3058 = vld [vmem:[#allocation2 + $0xa0] sm:$0xff]
        %v3059 = vld [vmem:[#allocation2 + $0xa8] sm:$0xff]
        %v3060 = vld [vmem:[#allocation2 + $0xb0] sm:$0xff]
        %v3061 = vld [vmem:[#allocation2 + $0xb8] sm:$0xff]
        %v3062 = vld [vmem:[#allocation2 + $0xc0] sm:$0xff]
        %v3063 = vld [vmem:[#allocation2 + $0xc8] sm:$0xff]
        %v3064 = vld [vmem:[#allocation2 + $0xd0] sm:$0xff]
        %v3065 = vld [vmem:[#allocation2 + $0xd8] sm:$0xff]
        %v3066 = vld [vmem:[#allocation2 + $0xe0] sm:$0xff]
        %v3067 = vld [vmem:[#allocation2 + $0xe8] sm:$0xff]
        %v3068 = vld [vmem:[#allocation2 + $0xf0] sm:$0xff]
        %v3069 = vld [vmem:[#allocation2 + $0xf8] sm:$0xff]
        %v3070 = vadd.f32 %v3038, %v2912
        %v3071 = vadd.f32 %v3039, %v2915
        %v3072 = vadd.f32 %v3040, %v2920
        %v3073 = vadd.f32 %v3041, %v2923
        %v3074 = vadd.f32 %v3042, %v2928
        %v3075 = vadd.f32 %v3043, %v2931
        %v3076 = vadd.f32 %v3044, %v2936
        %v3077 = vadd.f32 %v3045, %v2939
        %v3078 = vadd.f32 %v3046, %v2944
        %v3079 = vadd.f32 %v3047, %v2947
        %v3080 = vadd.f32 %v3048, %v2952
        %v3081 = vadd.f32 %v3049, %v2955
        %v3082 = vadd.f32 %v3050, %v2960
        %v3083 = vadd.f32 %v3051, %v2963
        %v3084 = vadd.f32 %v3052, %v2968
        %v3085 = vadd.f32 %v3053, %v2971
        %v3086 = vadd.f32 %v3054, %v2976
        %v3087 = vadd.f32 %v3055, %v2979
        %v3088 = vadd.f32 %v3056, %v2984
        %v3089 = vadd.f32 %v3057, %v2987
        %v3090 = vadd.f32 %v3058, %v2992
        %v3091 = vadd.f32 %v3059, %v2995
        %v3092 = vadd.f32 %v3060, %v3000
        %v3093 = vadd.f32 %v3061, %v3003
        %v3094 = vadd.f32 %v3062, %v3008
        %v3095 = vadd.f32 %v3063, %v3011
        %v3096 = vadd.f32 %v3064, %v3016
        %v3097 = vadd.f32 %v3065, %v3019
        %v3098 = vadd.f32 %v3066, %v3024
        %v3099 = vadd.f32 %v3067, %v3027
        %v3100 = vadd.f32 %v3068, %v3032
        %v3101 = vadd.f32 %v3069, %v3035
        %3102 = vst [vmem:[#allocation2] sm:$0xff] %v3070
        %3103 = vst [vmem:[#allocation2 + $0x8] sm:$0xff] %v3071
        %3104 = vst [vmem:[#allocation2 + $0x10] sm:$0xff] %v3072
        %3105 = vst [vmem:[#allocation2 + $0x18] sm:$0xff] %v3073
        %3106 = vst [vmem:[#allocation2 + $0x20] sm:$0xff] %v3074
        %3107 = vst [vmem:[#allocation2 + $0x28] sm:$0xff] %v3075
        %3108 = vst [vmem:[#allocation2 + $0x30] sm:$0xff] %v3076
        %3109 = vst [vmem:[#allocation2 + $0x38] sm:$0xff] %v3077
        %3110 = vst [vmem:[#allocation2 + $0x40] sm:$0xff] %v3078
        %3111 = vst [vmem:[#allocation2 + $0x48] sm:$0xff] %v3079
        %3112 = vst [vmem:[#allocation2 + $0x50] sm:$0xff] %v3080
        %3113 = vst [vmem:[#allocation2 + $0x58] sm:$0xff] %v3081
        %3114 = vst [vmem:[#allocation2 + $0x60] sm:$0xff] %v3082
        %3115 = vst [vmem:[#allocation2 + $0x68] sm:$0xff] %v3083
        %3116 = vst [vmem:[#allocation2 + $0x70] sm:$0xff] %v3084
        %3117 = vst [vmem:[#allocation2 + $0x78] sm:$0xff] %v3085
        %3118 = vst [vmem:[#allocation2 + $0x80] sm:$0xff] %v3086
        %3119 = vst [vmem:[#allocation2 + $0x88] sm:$0xff] %v3087
        %3120 = vst [vmem:[#allocation2 + $0x90] sm:$0xff] %v3088
        %3121 = vst [vmem:[#allocation2 + $0x98] sm:$0xff] %v3089
        %3122 = vst [vmem:[#allocation2 + $0xa0] sm:$0xff] %v3090
        %3123 = vst [vmem:[#allocation2 + $0xa8] sm:$0xff] %v3091
        %3124 = vst [vmem:[#allocation2 + $0xb0] sm:$0xff] %v3092
        %3125 = vst [vmem:[#allocation2 + $0xb8] sm:$0xff] %v3093
        %3126 = vst [vmem:[#allocation2 + $0xc0] sm:$0xff] %v3094
        %3127 = vst [vmem:[#allocation2 + $0xc8] sm:$0xff] %v3095
        %3128 = vst [vmem:[#allocation2 + $0xd0] sm:$0xff] %v3096
        %3129 = vst [vmem:[#allocation2 + $0xd8] sm:$0xff] %v3097
        %3130 = vst [vmem:[#allocation2 + $0xe0] sm:$0xff] %v3098
        %3131 = vst [vmem:[#allocation2 + $0xe8] sm:$0xff] %v3099
        %3132 = vst [vmem:[#allocation2 + $0xf0] sm:$0xff] %v3100
        %3133 = vst [vmem:[#allocation2 + $0xf8] sm:$0xff] %v3101
        %v3134 = vld [vmem:[%s1921] sm:$0xe]
        %v3135 = vld [vmem:[%s1921 + $0x4] sm:$0xf]
        %v3136 = vld [vmem:[%s1921 + $0x8] sm:$0x1]
        %v3137 = vld [vmem:[%s1921 + $0xc] sm:$0xe]
        %v3138 = vld [vmem:[%s1921 + $0x10] sm:$0xf]
        %v3139 = vld [vmem:[%s1921 + $0x14] sm:$0x1]
        %v3140 = vld [vmem:[%s1921 + $0x18] sm:$0xe]
        %v3141 = vld [vmem:[%s1921 + $0x1c] sm:$0xf]
        %v3142 = vld [vmem:[%s1921 + $0x20] sm:$0x1]
        %v3143 = vld [vmem:[%s1921 + $0x24] sm:$0xe]
        %v3144 = vld [vmem:[%s1921 + $0x28] sm:$0xf]
        %v3145 = vld [vmem:[%s1921 + $0x2c] sm:$0x1]
        %v3146 = vld [vmem:[%s1921 + $0x30] sm:$0xe]
        %v3147 = vld [vmem:[%s1921 + $0x34] sm:$0xf]
        %v3148 = vld [vmem:[%s1921 + $0x38] sm:$0x1]
        %v3149 = vld [vmem:[%s1921 + $0x3c] sm:$0xe]
        %v3150 = vld [vmem:[%s1921 + $0x40] sm:$0xf]
        %v3151 = vld [vmem:[%s1921 + $0x44] sm:$0x1]
        %v3152 = vld [vmem:[%s1921 + $0x48] sm:$0xe]
        %v3153 = vld [vmem:[%s1921 + $0x4c] sm:$0xf]
        %v3154 = vld [vmem:[%s1921 + $0x50] sm:$0x1]
        %v3155 = vld [vmem:[%s1921 + $0x54] sm:$0xe]
        %v3156 = vld [vmem:[%s1921 + $0x58] sm:$0xf]
        %v3157 = vld [vmem:[%s1921 + $0x5c] sm:$0x1]
        %v3158 = vld [vmem:[%s1921 + $0x60] sm:$0xe]
        %v3159 = vld [vmem:[%s1921 + $0x64] sm:$0xf]
        %v3160 = vld [vmem:[%s1921 + $0x68] sm:$0x1]
        %v3161 = vld [vmem:[%s1921 + $0x6c] sm:$0xe]
        %v3162 = vld [vmem:[%s1921 + $0x70] sm:$0xf]
        %v3163 = vld [vmem:[%s1921 + $0x74] sm:$0x1]
        %v3164 = vld [vmem:[%s1921 + $0x78] sm:$0xe]
        %v3165 = vld [vmem:[%s1921 + $0x7c] sm:$0xf]
        %v3166 = vld [vmem:[%s1921 + $0x80] sm:$0x1]
        %v3167 = vld [vmem:[%s1921 + $0x84] sm:$0xe]
        %v3168 = vld [vmem:[%s1921 + $0x88] sm:$0xf]
        %v3169 = vld [vmem:[%s1921 + $0x8c] sm:$0x1]
        %v3170 = vld [vmem:[%s1921 + $0x90] sm:$0xe]
        %v3171 = vld [vmem:[%s1921 + $0x94] sm:$0xf]
        %v3172 = vld [vmem:[%s1921 + $0x98] sm:$0x1]
        %v3173 = vld [vmem:[%s1921 + $0x9c] sm:$0xe]
        %v3174 = vld [vmem:[%s1921 + $0xa0] sm:$0xf]
        %v3175 = vld [vmem:[%s1921 + $0xa4] sm:$0x1]
        %v3176 = vld [vmem:[%s1921 + $0xa8] sm:$0xe]
        %v3177 = vld [vmem:[%s1921 + $0xac] sm:$0xf]
        %v3178 = vld [vmem:[%s1921 + $0xb0] sm:$0x1]
        %v3179 = vld [vmem:[%s1921 + $0xb4] sm:$0xe]
        %v3180 = vld [vmem:[%s1921 + $0xb8] sm:$0xf]
        %v3181 = vld [vmem:[%s1921 + $0xbc] sm:$0x1]
        %v3230 = vrot.slane %v3134, 5
        %v3231 = vrot.slane %v3230, 4
        %v3232 = vrot.slane %v3135, 5
        %v3233 = vsel %vm1450, %v3231, %v3232
        %v3234 = vrot.slane %v3232, 4
        %v3235 = vrot.slane %v3136, 5
        %v3236 = vsel %vm1450, %v3234, %v3235
        %v3237 = vrot.slane %v3137, 5
        %v3238 = vrot.slane %v3237, 4
        %v3239 = vrot.slane %v3138, 5
        %v3240 = vsel %vm1450, %v3238, %v3239
        %v3241 = vrot.slane %v3239, 4
        %v3242 = vrot.slane %v3139, 5
        %v3243 = vsel %vm1450, %v3241, %v3242
        %v3244 = vrot.slane %v3140, 5
        %v3245 = vrot.slane %v3244, 4
        %v3246 = vrot.slane %v3141, 5
        %v3247 = vsel %vm1450, %v3245, %v3246
        %v3248 = vrot.slane %v3246, 4
        %v3249 = vrot.slane %v3142, 5
        %v3250 = vsel %vm1450, %v3248, %v3249
        %v3251 = vrot.slane %v3143, 5
        %v3252 = vrot.slane %v3251, 4
        %v3253 = vrot.slane %v3144, 5
        %v3254 = vsel %vm1450, %v3252, %v3253
        %v3255 = vrot.slane %v3253, 4
        %v3256 = vrot.slane %v3145, 5
        %v3257 = vsel %vm1450, %v3255, %v3256
        %v3258 = vrot.slane %v3146, 5
        %v3259 = vrot.slane %v3258, 4
        %v3260 = vrot.slane %v3147, 5
        %v3261 = vsel %vm1450, %v3259, %v3260
        %v3262 = vrot.slane %v3260, 4
        %v3263 = vrot.slane %v3148, 5
        %v3264 = vsel %vm1450, %v3262, %v3263
        %v3265 = vrot.slane %v3149, 5
        %v3266 = vrot.slane %v3265, 4
        %v3267 = vrot.slane %v3150, 5
        %v3268 = vsel %vm1450, %v3266, %v3267
        %v3269 = vrot.slane %v3267, 4
        %v3270 = vrot.slane %v3151, 5
        %v3271 = vsel %vm1450, %v3269, %v3270
        %v3272 = vrot.slane %v3152, 5
        %v3273 = vrot.slane %v3272, 4
        %v3274 = vrot.slane %v3153, 5
        %v3275 = vsel %vm1450, %v3273, %v3274
        %v3276 = vrot.slane %v3274, 4
        %v3277 = vrot.slane %v3154, 5
        %v3278 = vsel %vm1450, %v3276, %v3277
        %v3279 = vrot.slane %v3155, 5
        %v3280 = vrot.slane %v3279, 4
        %v3281 = vrot.slane %v3156, 5
        %v3282 = vsel %vm1450, %v3280, %v3281
        %v3283 = vrot.slane %v3281, 4
        %v3284 = vrot.slane %v3157, 5
        %v3285 = vsel %vm1450, %v3283, %v3284
        %v3286 = vrot.slane %v3158, 5
        %v3287 = vrot.slane %v3286, 4
        %v3288 = vrot.slane %v3159, 5
        %v3289 = vsel %vm1450, %v3287, %v3288
        %v3290 = vrot.slane %v3288, 4
        %v3291 = vrot.slane %v3160, 5
        %v3292 = vsel %vm1450, %v3290, %v3291
        %v3293 = vrot.slane %v3161, 5
        %v3294 = vrot.slane %v3293, 4
        %v3295 = vrot.slane %v3162, 5
        %v3296 = vsel %vm1450, %v3294, %v3295
        %v3297 = vrot.slane %v3295, 4
        %v3298 = vrot.slane %v3163, 5
        %v3299 = vsel %vm1450, %v3297, %v3298
        %v3300 = vrot.slane %v3164, 5
        %v3301 = vrot.slane %v3300, 4
        %v3302 = vrot.slane %v3165, 5
        %v3303 = vsel %vm1450, %v3301, %v3302
        %v3304 = vrot.slane %v3302, 4
        %v3305 = vrot.slane %v3166, 5
        %v3306 = vsel %vm1450, %v3304, %v3305
        %v3307 = vrot.slane %v3167, 5
        %v3308 = vrot.slane %v3307, 4
        %v3309 = vrot.slane %v3168, 5
        %v3310 = vsel %vm1450, %v3308, %v3309
        %v3311 = vrot.slane %v3309, 4
        %v3312 = vrot.slane %v3169, 5
        %v3313 = vsel %vm1450, %v3311, %v3312
        %v3314 = vrot.slane %v3170, 5
        %v3315 = vrot.slane %v3314, 4
        %v3316 = vrot.slane %v3171, 5
        %v3317 = vsel %vm1450, %v3315, %v3316
        %v3318 = vrot.slane %v3316, 4
        %v3319 = vrot.slane %v3172, 5
        %v3320 = vsel %vm1450, %v3318, %v3319
        %v3321 = vrot.slane %v3173, 5
        %v3322 = vrot.slane %v3321, 4
        %v3323 = vrot.slane %v3174, 5
        %v3324 = vsel %vm1450, %v3322, %v3323
        %v3325 = vrot.slane %v3323, 4
        %v3326 = vrot.slane %v3175, 5
        %v3327 = vsel %vm1450, %v3325, %v3326
        %v3328 = vrot.slane %v3176, 5
        %v3329 = vrot.slane %v3328, 4
        %v3330 = vrot.slane %v3177, 5
        %v3331 = vsel %vm1450, %v3329, %v3330
        %v3332 = vrot.slane %v3330, 4
        %v3333 = vrot.slane %v3178, 5
        %v3334 = vsel %vm1450, %v3332, %v3333
        %v3335 = vrot.slane %v3179, 5
        %v3336 = vrot.slane %v3335, 4
        %v3337 = vrot.slane %v3180, 5
        %v3338 = vsel %vm1450, %v3336, %v3337
        %v3339 = vrot.slane %v3337, 4
        %v3340 = vrot.slane %v3181, 5
        %v3341 = vsel %vm1450, %v3339, %v3340
        %s3342 = scalar_lea.vmem [#allocation3], 10
        %v3343 = vld [vmem:[%s3342] sm:$0x3]
        %v3344 = vunpack.c.l.b16 %v3233
        %v3345 = vunpack.c.l.b16 %v3236
        %v3346 = vunpack.c.l.b16 %v3240
        %v3347 = vunpack.c.l.b16 %v3243
        %v3348 = vunpack.c.l.b16 %v3247
        %v3349 = vunpack.c.l.b16 %v3250
        %v3350 = vunpack.c.l.b16 %v3254
        %v3351 = vunpack.c.l.b16 %v3257
        %v3352 = vunpack.c.l.b16 %v3261
        %v3353 = vunpack.c.l.b16 %v3264
        %v3354 = vunpack.c.l.b16 %v3268
        %v3355 = vunpack.c.l.b16 %v3271
        %v3356 = vunpack.c.l.b16 %v3275
        %v3357 = vunpack.c.l.b16 %v3278
        %v3358 = vunpack.c.l.b16 %v3282
        %v3359 = vunpack.c.l.b16 %v3285
        %v3360 = vunpack.c.l.b16 %v3289
        %v3361 = vunpack.c.l.b16 %v3292
        %v3362 = vunpack.c.l.b16 %v3296
        %v3363 = vunpack.c.l.b16 %v3299
        %v3364 = vunpack.c.l.b16 %v3303
        %v3365 = vunpack.c.l.b16 %v3306
        %v3366 = vunpack.c.l.b16 %v3310
        %v3367 = vunpack.c.l.b16 %v3313
        %v3368 = vunpack.c.l.b16 %v3317
        %v3369 = vunpack.c.l.b16 %v3320
        %v3370 = vunpack.c.l.b16 %v3324
        %v3371 = vunpack.c.l.b16 %v3327
        %v3372 = vunpack.c.l.b16 %v3331
        %v3373 = vunpack.c.l.b16 %v3334
        %v3374 = vunpack.c.l.b16 %v3338
        %v3375 = vunpack.c.l.b16 %v3341
        %v3376 = vpack.c.b16 %v3345, %v3344
        %v3377 = vpack.c.b16 %v3347, %v3346
        %v3378 = vpack.c.b16 %v3349, %v3348
        %v3379 = vpack.c.b16 %v3351, %v3350
        %v3380 = vpack.c.b16 %v3353, %v3352
        %v3381 = vpack.c.b16 %v3355, %v3354
        %v3382 = vpack.c.b16 %v3357, %v3356
        %v3383 = vpack.c.b16 %v3359, %v3358
        %v3384 = vpack.c.b16 %v3361, %v3360
        %v3385 = vpack.c.b16 %v3363, %v3362
        %v3386 = vpack.c.b16 %v3365, %v3364
        %v3387 = vpack.c.b16 %v3367, %v3366
        %v3388 = vpack.c.b16 %v3369, %v3368
        %v3389 = vpack.c.b16 %v3371, %v3370
        %v3390 = vpack.c.b16 %v3373, %v3372
        %v3391 = vpack.c.b16 %v3375, %v3374
        %v3393 = vsel %vm313, %v3376, 0
        %v3396 = vsel %vm313, %v3377, 0
        %v3399 = vsel %vm313, %v3378, 0
        %v3402 = vsel %vm313, %v3379, 0
        %v3405 = vsel %vm313, %v3380, 0
        %v3408 = vsel %vm313, %v3381, 0
        %v3411 = vsel %vm313, %v3382, 0
        %v3414 = vsel %vm313, %v3383, 0
        %v3417 = vsel %vm313, %v3384, 0
        %v3420 = vsel %vm313, %v3385, 0
        %v3423 = vsel %vm313, %v3386, 0
        %v3426 = vsel %vm313, %v3387, 0
        %v3429 = vsel %vm313, %v3388, 0
        %v3432 = vsel %vm313, %v3389, 0
        %v3435 = vsel %vm313, %v3390, 0
        %v3438 = vsel %vm313, %v3391, 0
        %v3441 = vsel %vm362, %v3343, 0
        %3443 = vmatprep.subr.bf16.mxu0 0
        %3444 = vmatpush1.bf16.msra.mxu0 %v3441
        %3445 = vmatprep.subr.bf16.mxu0 0
        %3446 = vmatpush1.bf16.msra.mxu0 0
        %3447 = vmatprep.subr.bf16.mxu0 0
        %3448 = vmatpush1.bf16.msra.mxu0 0
        %3449 = vmatprep.subr.bf16.mxu0 0
        %3450 = vmatpush1.bf16.msra.mxu0 0
        %3451 = vmatprep.subr.bf16.mxu0 0
        %3452 = vmatpush1.bf16.msra.mxu0 0
        %3453 = vmatprep.subr.bf16.mxu0 0
        %3454 = vmatpush1.bf16.msra.mxu0 0
        %3455 = vmatprep.subr.bf16.mxu0 0
        %3456 = vmatpush1.bf16.msra.mxu0 0
        %3457 = vmatprep.subr.bf16.mxu0 0
        %3458 = vmatpush1.bf16.msra.mxu0 0
        %3459 = vmatprep.subr.bf16.mxu0 0
        %3460 = vmatpush1.bf16.msra.mxu0 0
        %3461 = vmatprep.subr.bf16.mxu0 0
        %3462 = vmatpush1.bf16.msra.mxu0 0
        %3463 = vmatprep.subr.bf16.mxu0 0
        %3464 = vmatpush1.bf16.msra.mxu0 0
        %3465 = vmatprep.subr.bf16.mxu0 0
        %3466 = vmatpush1.bf16.msra.mxu0 0
        %3467 = vmatprep.subr.bf16.mxu0 0
        %3468 = vmatpush1.bf16.msra.mxu0 0
        %3469 = vmatprep.subr.bf16.mxu0 0
        %3470 = vmatpush1.bf16.msra.mxu0 0
        %3471 = vmatprep.subr.bf16.mxu0 0
        %3472 = vmatpush1.bf16.msra.mxu0 0
        %3473 = vmatprep.subr.bf16.mxu0 0
        %3474 = vmatpush1.bf16.msra.mxu0 0
        %3475 = vmatprep.mubr.bf16.mxu0 0
        %3476 = vmatmul.mubr.bf16.gmra.mrb[0].mxu0 %v3393
        %v3477 = vpop.f32.mrb[0].mxu0
        %v3478 = vadd.f32 0.0, %v3477
        %v3479 = vpop.f32.mrb[0].mxu0
        %v3480 = vpop.f32.mrb[0].mxu0
        %v3481 = vadd.f32 0.0, %v3480
        %v3482 = vpop.f32.mrb[0].mxu0
        %3483 = vmatprep.mubr.bf16.mxu0 0
        %3484 = vmatmul.mubr.bf16.gmra.mrb[0].mxu0 %v3396
        %v3485 = vpop.f32.mrb[0].mxu0
        %v3486 = vadd.f32 0.0, %v3485
        %v3487 = vpop.f32.mrb[0].mxu0
        %v3488 = vpop.f32.mrb[0].mxu0
        %v3489 = vadd.f32 0.0, %v3488
        %v3490 = vpop.f32.mrb[0].mxu0
        %3491 = vmatprep.mubr.bf16.mxu0 0
        %3492 = vmatmul.mubr.bf16.gmra.mrb[0].mxu0 %v3399
        %v3493 = vpop.f32.mrb[0].mxu0
        %v3494 = vadd.f32 0.0, %v3493
        %v3495 = vpop.f32.mrb[0].mxu0
        %v3496 = vpop.f32.mrb[0].mxu0
        %v3497 = vadd.f32 0.0, %v3496
        %v3498 = vpop.f32.mrb[0].mxu0
        %3499 = vmatprep.mubr.bf16.mxu0 0
        %3500 = vmatmul.mubr.bf16.gmra.mrb[0].mxu0 %v3402
        %v3501 = vpop.f32.mrb[0].mxu0
        %v3502 = vadd.f32 0.0, %v3501
        %v3503 = vpop.f32.mrb[0].mxu0
        %v3504 = vpop.f32.mrb[0].mxu0
        %v3505 = vadd.f32 0.0, %v3504
        %v3506 = vpop.f32.mrb[0].mxu0
        %3507 = vmatprep.mubr.bf16.mxu0 0
        %3508 = vmatmul.mubr.bf16.gmra.mrb[0].mxu0 %v3405
        %v3509 = vpop.f32.mrb[0].mxu0
        %v3510 = vadd.f32 0.0, %v3509
        %v3511 = vpop.f32.mrb[0].mxu0
        %v3512 = vpop.f32.mrb[0].mxu0
        %v3513 = vadd.f32 0.0, %v3512
        %v3514 = vpop.f32.mrb[0].mxu0
        %3515 = vmatprep.mubr.bf16.mxu0 0
        %3516 = vmatmul.mubr.bf16.gmra.mrb[0].mxu0 %v3408
        %v3517 = vpop.f32.mrb[0].mxu0
        %v3518 = vadd.f32 0.0, %v3517
        %v3519 = vpop.f32.mrb[0].mxu0
        %v3520 = vpop.f32.mrb[0].mxu0
        %v3521 = vadd.f32 0.0, %v3520
        %v3522 = vpop.f32.mrb[0].mxu0
        %3523 = vmatprep.mubr.bf16.mxu0 0
        %3524 = vmatmul.mubr.bf16.gmra.mrb[0].mxu0 %v3411
        %v3525 = vpop.f32.mrb[0].mxu0
        %v3526 = vadd.f32 0.0, %v3525
        %v3527 = vpop.f32.mrb[0].mxu0
        %v3528 = vpop.f32.mrb[0].mxu0
        %v3529 = vadd.f32 0.0, %v3528
        %v3530 = vpop.f32.mrb[0].mxu0
        %3531 = vmatprep.mubr.bf16.mxu0 0
        %3532 = vmatmul.mubr.bf16.gmra.mrb[0].mxu0 %v3414
        %v3533 = vpop.f32.mrb[0].mxu0
        %v3534 = vadd.f32 0.0, %v3533
        %v3535 = vpop.f32.mrb[0].mxu0
        %v3536 = vpop.f32.mrb[0].mxu0
        %v3537 = vadd.f32 0.0, %v3536
        %v3538 = vpop.f32.mrb[0].mxu0
        %3539 = vmatprep.mubr.bf16.mxu0 0
        %3540 = vmatmul.mubr.bf16.gmra.mrb[0].mxu0 %v3417
        %v3541 = vpop.f32.mrb[0].mxu0
        %v3542 = vadd.f32 0.0, %v3541
        %v3543 = vpop.f32.mrb[0].mxu0
        %v3544 = vpop.f32.mrb[0].mxu0
        %v3545 = vadd.f32 0.0, %v3544
        %v3546 = vpop.f32.mrb[0].mxu0
        %3547 = vmatprep.mubr.bf16.mxu0 0
        %3548 = vmatmul.mubr.bf16.gmra.mrb[0].mxu0 %v3420
        %v3549 = vpop.f32.mrb[0].mxu0
        %v3550 = vadd.f32 0.0, %v3549
        %v3551 = vpop.f32.mrb[0].mxu0
        %v3552 = vpop.f32.mrb[0].mxu0
        %v3553 = vadd.f32 0.0, %v3552
        %v3554 = vpop.f32.mrb[0].mxu0
        %3555 = vmatprep.mubr.bf16.mxu0 0
        %3556 = vmatmul.mubr.bf16.gmra.mrb[0].mxu0 %v3423
        %v3557 = vpop.f32.mrb[0].mxu0
        %v3558 = vadd.f32 0.0, %v3557
        %v3559 = vpop.f32.mrb[0].mxu0
        %v3560 = vpop.f32.mrb[0].mxu0
        %v3561 = vadd.f32 0.0, %v3560
        %v3562 = vpop.f32.mrb[0].mxu0
        %3563 = vmatprep.mubr.bf16.mxu0 0
        %3564 = vmatmul.mubr.bf16.gmra.mrb[0].mxu0 %v3426
        %v3565 = vpop.f32.mrb[0].mxu0
        %v3566 = vadd.f32 0.0, %v3565
        %v3567 = vpop.f32.mrb[0].mxu0
        %v3568 = vpop.f32.mrb[0].mxu0
        %v3569 = vadd.f32 0.0, %v3568
        %v3570 = vpop.f32.mrb[0].mxu0
        %3571 = vmatprep.mubr.bf16.mxu0 0
        %3572 = vmatmul.mubr.bf16.gmra.mrb[0].mxu0 %v3429
        %v3573 = vpop.f32.mrb[0].mxu0
        %v3574 = vadd.f32 0.0, %v3573
        %v3575 = vpop.f32.mrb[0].mxu0
        %v3576 = vpop.f32.mrb[0].mxu0
        %v3577 = vadd.f32 0.0, %v3576
        %v3578 = vpop.f32.mrb[0].mxu0
        %3579 = vmatprep.mubr.bf16.mxu0 0
        %3580 = vmatmul.mubr.bf16.gmra.mrb[0].mxu0 %v3432
        %v3581 = vpop.f32.mrb[0].mxu0
        %v3582 = vadd.f32 0.0, %v3581
        %v3583 = vpop.f32.mrb[0].mxu0
        %v3584 = vpop.f32.mrb[0].mxu0
        %v3585 = vadd.f32 0.0, %v3584
        %v3586 = vpop.f32.mrb[0].mxu0
        %3587 = vmatprep.mubr.bf16.mxu0 0
        %3588 = vmatmul.mubr.bf16.gmra.mrb[0].mxu0 %v3435
        %v3589 = vpop.f32.mrb[0].mxu0
        %v3590 = vadd.f32 0.0, %v3589
        %v3591 = vpop.f32.mrb[0].mxu0
        %v3592 = vpop.f32.mrb[0].mxu0
        %v3593 = vadd.f32 0.0, %v3592
        %v3594 = vpop.f32.mrb[0].mxu0
        %3595 = vmatprep.mubr.bf16.mxu0 0
        %3596 = vmatmul.mubr.bf16.gmra.mrb[0].mxu0 %v3438
        %v3597 = vpop.f32.mrb[0].mxu0
        %v3598 = vadd.f32 0.0, %v3597
        %v3599 = vpop.f32.mrb[0].mxu0
        %v3600 = vpop.f32.mrb[0].mxu0
        %v3601 = vadd.f32 0.0, %v3600
        %v3602 = vpop.f32.mrb[0].mxu0
        %3603 = vdwg.mxu0
        %v3604 = vld [vmem:[#allocation2] sm:$0xff]
        %v3605 = vld [vmem:[#allocation2 + $0x8] sm:$0xff]
        %v3606 = vld [vmem:[#allocation2 + $0x10] sm:$0xff]
        %v3607 = vld [vmem:[#allocation2 + $0x18] sm:$0xff]
        %v3608 = vld [vmem:[#allocation2 + $0x20] sm:$0xff]
        %v3609 = vld [vmem:[#allocation2 + $0x28] sm:$0xff]
        %v3610 = vld [vmem:[#allocation2 + $0x30] sm:$0xff]
        %v3611 = vld [vmem:[#allocation2 + $0x38] sm:$0xff]
        %v3612 = vld [vmem:[#allocation2 + $0x40] sm:$0xff]
        %v3613 = vld [vmem:[#allocation2 + $0x48] sm:$0xff]
        %v3614 = vld [vmem:[#allocation2 + $0x50] sm:$0xff]
        %v3615 = vld [vmem:[#allocation2 + $0x58] sm:$0xff]
        %v3616 = vld [vmem:[#allocation2 + $0x60] sm:$0xff]
        %v3617 = vld [vmem:[#allocation2 + $0x68] sm:$0xff]
        %v3618 = vld [vmem:[#allocation2 + $0x70] sm:$0xff]
        %v3619 = vld [vmem:[#allocation2 + $0x78] sm:$0xff]
        %v3620 = vld [vmem:[#allocation2 + $0x80] sm:$0xff]
        %v3621 = vld [vmem:[#allocation2 + $0x88] sm:$0xff]
        %v3622 = vld [vmem:[#allocation2 + $0x90] sm:$0xff]
        %v3623 = vld [vmem:[#allocation2 + $0x98] sm:$0xff]
        %v3624 = vld [vmem:[#allocation2 + $0xa0] sm:$0xff]
        %v3625 = vld [vmem:[#allocation2 + $0xa8] sm:$0xff]
        %v3626 = vld [vmem:[#allocation2 + $0xb0] sm:$0xff]
        %v3627 = vld [vmem:[#allocation2 + $0xb8] sm:$0xff]
        %v3628 = vld [vmem:[#allocation2 + $0xc0] sm:$0xff]
        %v3629 = vld [vmem:[#allocation2 + $0xc8] sm:$0xff]
        %v3630 = vld [vmem:[#allocation2 + $0xd0] sm:$0xff]
        %v3631 = vld [vmem:[#allocation2 + $0xd8] sm:$0xff]
        %v3632 = vld [vmem:[#allocation2 + $0xe0] sm:$0xff]
        %v3633 = vld [vmem:[#allocation2 + $0xe8] sm:$0xff]
        %v3634 = vld [vmem:[#allocation2 + $0xf0] sm:$0xff]
        %v3635 = vld [vmem:[#allocation2 + $0xf8] sm:$0xff]
        %v3636 = vadd.f32 %v3604, %v3478
        %v3637 = vadd.f32 %v3605, %v3481
        %v3638 = vadd.f32 %v3606, %v3486
        %v3639 = vadd.f32 %v3607, %v3489
        %v3640 = vadd.f32 %v3608, %v3494
        %v3641 = vadd.f32 %v3609, %v3497
        %v3642 = vadd.f32 %v3610, %v3502
        %v3643 = vadd.f32 %v3611, %v3505
        %v3644 = vadd.f32 %v3612, %v3510
        %v3645 = vadd.f32 %v3613, %v3513
        %v3646 = vadd.f32 %v3614, %v3518
        %v3647 = vadd.f32 %v3615, %v3521
        %v3648 = vadd.f32 %v3616, %v3526
        %v3649 = vadd.f32 %v3617, %v3529
        %v3650 = vadd.f32 %v3618, %v3534
        %v3651 = vadd.f32 %v3619, %v3537
        %v3652 = vadd.f32 %v3620, %v3542
        %v3653 = vadd.f32 %v3621, %v3545
        %v3654 = vadd.f32 %v3622, %v3550
        %v3655 = vadd.f32 %v3623, %v3553
        %v3656 = vadd.f32 %v3624, %v3558
        %v3657 = vadd.f32 %v3625, %v3561
        %v3658 = vadd.f32 %v3626, %v3566
        %v3659 = vadd.f32 %v3627, %v3569
        %v3660 = vadd.f32 %v3628, %v3574
        %v3661 = vadd.f32 %v3629, %v3577
        %v3662 = vadd.f32 %v3630, %v3582
        %v3663 = vadd.f32 %v3631, %v3585
        %v3664 = vadd.f32 %v3632, %v3590
        %v3665 = vadd.f32 %v3633, %v3593
        %v3666 = vadd.f32 %v3634, %v3598
        %v3667 = vadd.f32 %v3635, %v3601
        %3668 = vst [vmem:[#allocation2] sm:$0xff] %v3636
        %3669 = vst [vmem:[#allocation2 + $0x8] sm:$0xff] %v3637
        %3670 = vst [vmem:[#allocation2 + $0x10] sm:$0xff] %v3638
        %3671 = vst [vmem:[#allocation2 + $0x18] sm:$0xff] %v3639
        %3672 = vst [vmem:[#allocation2 + $0x20] sm:$0xff] %v3640
        %3673 = vst [vmem:[#allocation2 + $0x28] sm:$0xff] %v3641
        %3674 = vst [vmem:[#allocation2 + $0x30] sm:$0xff] %v3642
        %3675 = vst [vmem:[#allocation2 + $0x38] sm:$0xff] %v3643
        %3676 = vst [vmem:[#allocation2 + $0x40] sm:$0xff] %v3644
        %3677 = vst [vmem:[#allocation2 + $0x48] sm:$0xff] %v3645
        %3678 = vst [vmem:[#allocation2 + $0x50] sm:$0xff] %v3646
        %3679 = vst [vmem:[#allocation2 + $0x58] sm:$0xff] %v3647
        %3680 = vst [vmem:[#allocation2 + $0x60] sm:$0xff] %v3648
        %3681 = vst [vmem:[#allocation2 + $0x68] sm:$0xff] %v3649
        %3682 = vst [vmem:[#allocation2 + $0x70] sm:$0xff] %v3650
        %3683 = vst [vmem:[#allocation2 + $0x78] sm:$0xff] %v3651
        %3684 = vst [vmem:[#allocation2 + $0x80] sm:$0xff] %v3652
        %3685 = vst [vmem:[#allocation2 + $0x88] sm:$0xff] %v3653
        %3686 = vst [vmem:[#allocation2 + $0x90] sm:$0xff] %v3654
        %3687 = vst [vmem:[#allocation2 + $0x98] sm:$0xff] %v3655
        %3688 = vst [vmem:[#allocation2 + $0xa0] sm:$0xff] %v3656
        %3689 = vst [vmem:[#allocation2 + $0xa8] sm:$0xff] %v3657
        %3690 = vst [vmem:[#allocation2 + $0xb0] sm:$0xff] %v3658
        %3691 = vst [vmem:[#allocation2 + $0xb8] sm:$0xff] %v3659
        %3692 = vst [vmem:[#allocation2 + $0xc0] sm:$0xff] %v3660
        %3693 = vst [vmem:[#allocation2 + $0xc8] sm:$0xff] %v3661
        %3694 = vst [vmem:[#allocation2 + $0xd0] sm:$0xff] %v3662
        %3695 = vst [vmem:[#allocation2 + $0xd8] sm:$0xff] %v3663
        %3696 = vst [vmem:[#allocation2 + $0xe0] sm:$0xff] %v3664
        %3697 = vst [vmem:[#allocation2 + $0xe8] sm:$0xff] %v3665
        %3698 = vst [vmem:[#allocation2 + $0xf0] sm:$0xff] %v3666
        %3699 = vst [vmem:[#allocation2 + $0xf8] sm:$0xff] %v3667
        %s3700 = scalar_lea.vmem %s193, 24
        %v3701 = vld [vmem:[%s3700] sm:$0xf]
        %v3702 = vld [vmem:[%s3700 + $0x4] sm:$0xf]
        %v3703 = vld [vmem:[%s3700 + $0xc] sm:$0xf]
        %v3704 = vld [vmem:[%s3700 + $0x10] sm:$0xf]
        %v3705 = vld [vmem:[%s3700 + $0x18] sm:$0xf]
        %v3706 = vld [vmem:[%s3700 + $0x1c] sm:$0xf]
        %v3707 = vld [vmem:[%s3700 + $0x24] sm:$0xf]
        %v3708 = vld [vmem:[%s3700 + $0x28] sm:$0xf]
        %v3709 = vld [vmem:[%s3700 + $0x30] sm:$0xf]
        %v3710 = vld [vmem:[%s3700 + $0x34] sm:$0xf]
        %v3711 = vld [vmem:[%s3700 + $0x3c] sm:$0xf]
        %v3712 = vld [vmem:[%s3700 + $0x40] sm:$0xf]
        %v3713 = vld [vmem:[%s3700 + $0x48] sm:$0xf]
        %v3714 = vld [vmem:[%s3700 + $0x4c] sm:$0xf]
        %v3715 = vld [vmem:[%s3700 + $0x54] sm:$0xf]
        %v3716 = vld [vmem:[%s3700 + $0x58] sm:$0xf]
        %v3717 = vld [vmem:[%s3700 + $0x60] sm:$0xf]
        %v3718 = vld [vmem:[%s3700 + $0x64] sm:$0xf]
        %v3719 = vld [vmem:[%s3700 + $0x6c] sm:$0xf]
        %v3720 = vld [vmem:[%s3700 + $0x70] sm:$0xf]
        %v3721 = vld [vmem:[%s3700 + $0x78] sm:$0xf]
        %v3722 = vld [vmem:[%s3700 + $0x7c] sm:$0xf]
        %v3723 = vld [vmem:[%s3700 + $0x84] sm:$0xf]
        %v3724 = vld [vmem:[%s3700 + $0x88] sm:$0xf]
        %v3725 = vld [vmem:[%s3700 + $0x90] sm:$0xf]
        %v3726 = vld [vmem:[%s3700 + $0x94] sm:$0xf]
        %v3727 = vld [vmem:[%s3700 + $0x9c] sm:$0xf]
        %v3728 = vld [vmem:[%s3700 + $0xa0] sm:$0xf]
        %v3729 = vld [vmem:[%s3700 + $0xa8] sm:$0xf]
        %v3730 = vld [vmem:[%s3700 + $0xac] sm:$0xf]
        %v3731 = vld [vmem:[%s3700 + $0xb4] sm:$0xf]
        %v3732 = vld [vmem:[%s3700 + $0xb8] sm:$0xf]
        %s3733 = scalar_lea.vmem [#allocation3], 12
        %v3734 = vld [vmem:[%s3733] sm:$0x3]
        %v3767 = vunpack.c.l.b16 %v3701
        %v3768 = vunpack.c.l.b16 %v3702
        %v3769 = vunpack.c.l.b16 %v3703
        %v3770 = vunpack.c.l.b16 %v3704
        %v3771 = vunpack.c.l.b16 %v3705
        %v3772 = vunpack.c.l.b16 %v3706
        %v3773 = vunpack.c.l.b16 %v3707
        %v3774 = vunpack.c.l.b16 %v3708
        %v3775 = vunpack.c.l.b16 %v3709
        %v3776 = vunpack.c.l.b16 %v3710
        %v3777 = vunpack.c.l.b16 %v3711
        %v3778 = vunpack.c.l.b16 %v3712
        %v3779 = vunpack.c.l.b16 %v3713
        %v3780 = vunpack.c.l.b16 %v3714
        %v3781 = vunpack.c.l.b16 %v3715
        %v3782 = vunpack.c.l.b16 %v3716
        %v3783 = vunpack.c.l.b16 %v3717
        %v3784 = vunpack.c.l.b16 %v3718
        %v3785 = vunpack.c.l.b16 %v3719
        %v3786 = vunpack.c.l.b16 %v3720
        %v3787 = vunpack.c.l.b16 %v3721
        %v3788 = vunpack.c.l.b16 %v3722
        %v3789 = vunpack.c.l.b16 %v3723
        %v3790 = vunpack.c.l.b16 %v3724
        %v3791 = vunpack.c.l.b16 %v3725
        %v3792 = vunpack.c.l.b16 %v3726
        %v3793 = vunpack.c.l.b16 %v3727
        %v3794 = vunpack.c.l.b16 %v3728
        %v3795 = vunpack.c.l.b16 %v3729
        %v3796 = vunpack.c.l.b16 %v3730
        %v3797 = vunpack.c.l.b16 %v3731
        %v3798 = vunpack.c.l.b16 %v3732
        %v3799 = vpack.c.b16 %v3768, %v3767
        %v3800 = vpack.c.b16 %v3770, %v3769
        %v3801 = vpack.c.b16 %v3772, %v3771
        %v3802 = vpack.c.b16 %v3774, %v3773
        %v3803 = vpack.c.b16 %v3776, %v3775
        %v3804 = vpack.c.b16 %v3778, %v3777
        %v3805 = vpack.c.b16 %v3780, %v3779
        %v3806 = vpack.c.b16 %v3782, %v3781
        %v3807 = vpack.c.b16 %v3784, %v3783
        %v3808 = vpack.c.b16 %v3786, %v3785
        %v3809 = vpack.c.b16 %v3788, %v3787
        %v3810 = vpack.c.b16 %v3790, %v3789
        %v3811 = vpack.c.b16 %v3792, %v3791
        %v3812 = vpack.c.b16 %v3794, %v3793
        %v3813 = vpack.c.b16 %v3796, %v3795
        %v3814 = vpack.c.b16 %v3798, %v3797
        %v3816 = vsel %vm313, %v3799, 0
        %v3819 = vsel %vm313, %v3800, 0
        %v3822 = vsel %vm313, %v3801, 0
        %v3825 = vsel %vm313, %v3802, 0
        %v3828 = vsel %vm313, %v3803, 0
        %v3831 = vsel %vm313, %v3804, 0
        %v3834 = vsel %vm313, %v3805, 0
        %v3837 = vsel %vm313, %v3806, 0
        %v3840 = vsel %vm313, %v3807, 0
        %v3843 = vsel %vm313, %v3808, 0
        %v3846 = vsel %vm313, %v3809, 0
        %v3849 = vsel %vm313, %v3810, 0
        %v3852 = vsel %vm313, %v3811, 0
        %v3855 = vsel %vm313, %v3812, 0
        %v3858 = vsel %vm313, %v3813, 0
        %v3861 = vsel %vm313, %v3814, 0
        %v3864 = vsel %vm362, %v3734, 0
        %3866 = vmatprep.subr.bf16.mxu0 0
        %3867 = vmatpush1.bf16.msra.mxu0 %v3864
        %3868 = vmatprep.subr.bf16.mxu0 0
        %3869 = vmatpush1.bf16.msra.mxu0 0
        %3870 = vmatprep.subr.bf16.mxu0 0
        %3871 = vmatpush1.bf16.msra.mxu0 0
        %3872 = vmatprep.subr.bf16.mxu0 0
        %3873 = vmatpush1.bf16.msra.mxu0 0
        %3874 = vmatprep.subr.bf16.mxu0 0
        %3875 = vmatpush1.bf16.msra.mxu0 0
        %3876 = vmatprep.subr.bf16.mxu0 0
        %3877 = vmatpush1.bf16.msra.mxu0 0
        %3878 = vmatprep.subr.bf16.mxu0 0
        %3879 = vmatpush1.bf16.msra.mxu0 0
        %3880 = vmatprep.subr.bf16.mxu0 0
        %3881 = vmatpush1.bf16.msra.mxu0 0
        %3882 = vmatprep.subr.bf16.mxu0 0
        %3883 = vmatpush1.bf16.msra.mxu0 0
        %3884 = vmatprep.subr.bf16.mxu0 0
        %3885 = vmatpush1.bf16.msra.mxu0 0
        %3886 = vmatprep.subr.bf16.mxu0 0
        %3887 = vmatpush1.bf16.msra.mxu0 0
        %3888 = vmatprep.subr.bf16.mxu0 0
        %3889 = vmatpush1.bf16.msra.mxu0 0
        %3890 = vmatprep.subr.bf16.mxu0 0
        %3891 = vmatpush1.bf16.msra.mxu0 0
        %3892 = vmatprep.subr.bf16.mxu0 0
        %3893 = vmatpush1.bf16.msra.mxu0 0
        %3894 = vmatprep.subr.bf16.mxu0 0
        %3895 = vmatpush1.bf16.msra.mxu0 0
        %3896 = vmatprep.subr.bf16.mxu0 0
        %3897 = vmatpush1.bf16.msra.mxu0 0
        %3898 = vmatprep.mubr.bf16.mxu0 0
        %3899 = vmatmul.mubr.bf16.gmra.mrb[0].mxu0 %v3816
        %v3900 = vpop.f32.mrb[0].mxu0
        %v3901 = vadd.f32 0.0, %v3900
        %v3902 = vpop.f32.mrb[0].mxu0
        %v3903 = vpop.f32.mrb[0].mxu0
        %v3904 = vadd.f32 0.0, %v3903
        %v3905 = vpop.f32.mrb[0].mxu0
        %3906 = vmatprep.mubr.bf16.mxu0 0
        %3907 = vmatmul.mubr.bf16.gmra.mrb[0].mxu0 %v3819
        %v3908 = vpop.f32.mrb[0].mxu0
        %v3909 = vadd.f32 0.0, %v3908
        %v3910 = vpop.f32.mrb[0].mxu0
        %v3911 = vpop.f32.mrb[0].mxu0
        %v3912 = vadd.f32 0.0, %v3911
        %v3913 = vpop.f32.mrb[0].mxu0
        %3914 = vmatprep.mubr.bf16.mxu0 0
        %3915 = vmatmul.mubr.bf16.gmra.mrb[0].mxu0 %v3822
        %v3916 = vpop.f32.mrb[0].mxu0
        %v3917 = vadd.f32 0.0, %v3916
        %v3918 = vpop.f32.mrb[0].mxu0
        %v3919 = vpop.f32.mrb[0].mxu0
        %v3920 = vadd.f32 0.0, %v3919
        %v3921 = vpop.f32.mrb[0].mxu0
        %3922 = vmatprep.mubr.bf16.mxu0 0
        %3923 = vmatmul.mubr.bf16.gmra.mrb[0].mxu0 %v3825
        %v3924 = vpop.f32.mrb[0].mxu0
        %v3925 = vadd.f32 0.0, %v3924
        %v3926 = vpop.f32.mrb[0].mxu0
        %v3927 = vpop.f32.mrb[0].mxu0
        %v3928 = vadd.f32 0.0, %v3927
        %v3929 = vpop.f32.mrb[0].mxu0
        %3930 = vmatprep.mubr.bf16.mxu0 0
        %3931 = vmatmul.mubr.bf16.gmra.mrb[0].mxu0 %v3828
        %v3932 = vpop.f32.mrb[0].mxu0
        %v3933 = vadd.f32 0.0, %v3932
        %v3934 = vpop.f32.mrb[0].mxu0
        %v3935 = vpop.f32.mrb[0].mxu0
        %v3936 = vadd.f32 0.0, %v3935
        %v3937 = vpop.f32.mrb[0].mxu0
        %3938 = vmatprep.mubr.bf16.mxu0 0
        %3939 = vmatmul.mubr.bf16.gmra.mrb[0].mxu0 %v3831
        %v3940 = vpop.f32.mrb[0].mxu0
        %v3941 = vadd.f32 0.0, %v3940
        %v3942 = vpop.f32.mrb[0].mxu0
        %v3943 = vpop.f32.mrb[0].mxu0
        %v3944 = vadd.f32 0.0, %v3943
        %v3945 = vpop.f32.mrb[0].mxu0
        %3946 = vmatprep.mubr.bf16.mxu0 0
        %3947 = vmatmul.mubr.bf16.gmra.mrb[0].mxu0 %v3834
        %v3948 = vpop.f32.mrb[0].mxu0
        %v3949 = vadd.f32 0.0, %v3948
        %v3950 = vpop.f32.mrb[0].mxu0
        %v3951 = vpop.f32.mrb[0].mxu0
        %v3952 = vadd.f32 0.0, %v3951
        %v3953 = vpop.f32.mrb[0].mxu0
        %3954 = vmatprep.mubr.bf16.mxu0 0
        %3955 = vmatmul.mubr.bf16.gmra.mrb[0].mxu0 %v3837
        %v3956 = vpop.f32.mrb[0].mxu0
        %v3957 = vadd.f32 0.0, %v3956
        %v3958 = vpop.f32.mrb[0].mxu0
        %v3959 = vpop.f32.mrb[0].mxu0
        %v3960 = vadd.f32 0.0, %v3959
        %v3961 = vpop.f32.mrb[0].mxu0
        %3962 = vmatprep.mubr.bf16.mxu0 0
        %3963 = vmatmul.mubr.bf16.gmra.mrb[0].mxu0 %v3840
        %v3964 = vpop.f32.mrb[0].mxu0
        %v3965 = vadd.f32 0.0, %v3964
        %v3966 = vpop.f32.mrb[0].mxu0
        %v3967 = vpop.f32.mrb[0].mxu0
        %v3968 = vadd.f32 0.0, %v3967
        %v3969 = vpop.f32.mrb[0].mxu0
        %3970 = vmatprep.mubr.bf16.mxu0 0
        %3971 = vmatmul.mubr.bf16.gmra.mrb[0].mxu0 %v3843
        %v3972 = vpop.f32.mrb[0].mxu0
        %v3973 = vadd.f32 0.0, %v3972
        %v3974 = vpop.f32.mrb[0].mxu0
        %v3975 = vpop.f32.mrb[0].mxu0
        %v3976 = vadd.f32 0.0, %v3975
        %v3977 = vpop.f32.mrb[0].mxu0
        %3978 = vmatprep.mubr.bf16.mxu0 0
        %3979 = vmatmul.mubr.bf16.gmra.mrb[0].mxu0 %v3846
        %v3980 = vpop.f32.mrb[0].mxu0
        %v3981 = vadd.f32 0.0, %v3980
        %v3982 = vpop.f32.mrb[0].mxu0
        %v3983 = vpop.f32.mrb[0].mxu0
        %v3984 = vadd.f32 0.0, %v3983
        %v3985 = vpop.f32.mrb[0].mxu0
        %3986 = vmatprep.mubr.bf16.mxu0 0
        %3987 = vmatmul.mubr.bf16.gmra.mrb[0].mxu0 %v3849
        %v3988 = vpop.f32.mrb[0].mxu0
        %v3989 = vadd.f32 0.0, %v3988
        %v3990 = vpop.f32.mrb[0].mxu0
        %v3991 = vpop.f32.mrb[0].mxu0
        %v3992 = vadd.f32 0.0, %v3991
        %v3993 = vpop.f32.mrb[0].mxu0
        %3994 = vmatprep.mubr.bf16.mxu0 0
        %3995 = vmatmul.mubr.bf16.gmra.mrb[0].mxu0 %v3852
        %v3996 = vpop.f32.mrb[0].mxu0
        %v3997 = vadd.f32 0.0, %v3996
        %v3998 = vpop.f32.mrb[0].mxu0
        %v3999 = vpop.f32.mrb[0].mxu0
        %v4000 = vadd.f32 0.0, %v3999
        %v4001 = vpop.f32.mrb[0].mxu0
        %4002 = vmatprep.mubr.bf16.mxu0 0
        %4003 = vmatmul.mubr.bf16.gmra.mrb[0].mxu0 %v3855
        %v4004 = vpop.f32.mrb[0].mxu0
        %v4005 = vadd.f32 0.0, %v4004
        %v4006 = vpop.f32.mrb[0].mxu0
        %v4007 = vpop.f32.mrb[0].mxu0
        %v4008 = vadd.f32 0.0, %v4007
        %v4009 = vpop.f32.mrb[0].mxu0
        %4010 = vmatprep.mubr.bf16.mxu0 0
        %4011 = vmatmul.mubr.bf16.gmra.mrb[0].mxu0 %v3858
        %v4012 = vpop.f32.mrb[0].mxu0
        %v4013 = vadd.f32 0.0, %v4012
        %v4014 = vpop.f32.mrb[0].mxu0
        %v4015 = vpop.f32.mrb[0].mxu0
        %v4016 = vadd.f32 0.0, %v4015
        %v4017 = vpop.f32.mrb[0].mxu0
        %4018 = vmatprep.mubr.bf16.mxu0 0
        %4019 = vmatmul.mubr.bf16.gmra.mrb[0].mxu0 %v3861
        %v4020 = vpop.f32.mrb[0].mxu0
        %v4021 = vadd.f32 0.0, %v4020
        %v4022 = vpop.f32.mrb[0].mxu0
        %v4023 = vpop.f32.mrb[0].mxu0
        %v4024 = vadd.f32 0.0, %v4023
        %v4025 = vpop.f32.mrb[0].mxu0
        %4026 = vdwg.mxu0
        %v4027 = vld [vmem:[#allocation2] sm:$0xff]
        %v4028 = vld [vmem:[#allocation2 + $0x8] sm:$0xff]
        %v4029 = vld [vmem:[#allocation2 + $0x10] sm:$0xff]
        %v4030 = vld [vmem:[#allocation2 + $0x18] sm:$0xff]
        %v4031 = vld [vmem:[#allocation2 + $0x20] sm:$0xff]
        %v4032 = vld [vmem:[#allocation2 + $0x28] sm:$0xff]
        %v4033 = vld [vmem:[#allocation2 + $0x30] sm:$0xff]
        %v4034 = vld [vmem:[#allocation2 + $0x38] sm:$0xff]
        %v4035 = vld [vmem:[#allocation2 + $0x40] sm:$0xff]
        %v4036 = vld [vmem:[#allocation2 + $0x48] sm:$0xff]
        %v4037 = vld [vmem:[#allocation2 + $0x50] sm:$0xff]
        %v4038 = vld [vmem:[#allocation2 + $0x58] sm:$0xff]
        %v4039 = vld [vmem:[#allocation2 + $0x60] sm:$0xff]
        %v4040 = vld [vmem:[#allocation2 + $0x68] sm:$0xff]
        %v4041 = vld [vmem:[#allocation2 + $0x70] sm:$0xff]
        %v4042 = vld [vmem:[#allocation2 + $0x78] sm:$0xff]
        %v4043 = vld [vmem:[#allocation2 + $0x80] sm:$0xff]
        %v4044 = vld [vmem:[#allocation2 + $0x88] sm:$0xff]
        %v4045 = vld [vmem:[#allocation2 + $0x90] sm:$0xff]
        %v4046 = vld [vmem:[#allocation2 + $0x98] sm:$0xff]
        %v4047 = vld [vmem:[#allocation2 + $0xa0] sm:$0xff]
        %v4048 = vld [vmem:[#allocation2 + $0xa8] sm:$0xff]
        %v4049 = vld [vmem:[#allocation2 + $0xb0] sm:$0xff]
        %v4050 = vld [vmem:[#allocation2 + $0xb8] sm:$0xff]
        %v4051 = vld [vmem:[#allocation2 + $0xc0] sm:$0xff]
        %v4052 = vld [vmem:[#allocation2 + $0xc8] sm:$0xff]
        %v4053 = vld [vmem:[#allocation2 + $0xd0] sm:$0xff]
        %v4054 = vld [vmem:[#allocation2 + $0xd8] sm:$0xff]
        %v4055 = vld [vmem:[#allocation2 + $0xe0] sm:$0xff]
        %v4056 = vld [vmem:[#allocation2 + $0xe8] sm:$0xff]
        %v4057 = vld [vmem:[#allocation2 + $0xf0] sm:$0xff]
        %v4058 = vld [vmem:[#allocation2 + $0xf8] sm:$0xff]
        %v4059 = vadd.f32 %v4027, %v3901
        %v4060 = vadd.f32 %v4028, %v3904
        %v4061 = vadd.f32 %v4029, %v3909
        %v4062 = vadd.f32 %v4030, %v3912
        %v4063 = vadd.f32 %v4031, %v3917
        %v4064 = vadd.f32 %v4032, %v3920
        %v4065 = vadd.f32 %v4033, %v3925
        %v4066 = vadd.f32 %v4034, %v3928
        %v4067 = vadd.f32 %v4035, %v3933
        %v4068 = vadd.f32 %v4036, %v3936
        %v4069 = vadd.f32 %v4037, %v3941
        %v4070 = vadd.f32 %v4038, %v3944
        %v4071 = vadd.f32 %v4039, %v3949
        %v4072 = vadd.f32 %v4040, %v3952
        %v4073 = vadd.f32 %v4041, %v3957
        %v4074 = vadd.f32 %v4042, %v3960
        %v4075 = vadd.f32 %v4043, %v3965
        %v4076 = vadd.f32 %v4044, %v3968
        %v4077 = vadd.f32 %v4045, %v3973
        %v4078 = vadd.f32 %v4046, %v3976
        %v4079 = vadd.f32 %v4047, %v3981
        %v4080 = vadd.f32 %v4048, %v3984
        %v4081 = vadd.f32 %v4049, %v3989
        %v4082 = vadd.f32 %v4050, %v3992
        %v4083 = vadd.f32 %v4051, %v3997
        %v4084 = vadd.f32 %v4052, %v4000
        %v4085 = vadd.f32 %v4053, %v4005
        %v4086 = vadd.f32 %v4054, %v4008
        %v4087 = vadd.f32 %v4055, %v4013
        %v4088 = vadd.f32 %v4056, %v4016
        %v4089 = vadd.f32 %v4057, %v4021
        %v4090 = vadd.f32 %v4058, %v4024
        %4091 = vst [vmem:[#allocation2] sm:$0xff] %v4059
        %4092 = vst [vmem:[#allocation2 + $0x8] sm:$0xff] %v4060
        %4093 = vst [vmem:[#allocation2 + $0x10] sm:$0xff] %v4061
        %4094 = vst [vmem:[#allocation2 + $0x18] sm:$0xff] %v4062
        %4095 = vst [vmem:[#allocation2 + $0x20] sm:$0xff] %v4063
        %4096 = vst [vmem:[#allocation2 + $0x28] sm:$0xff] %v4064
        %4097 = vst [vmem:[#allocation2 + $0x30] sm:$0xff] %v4065
        %4098 = vst [vmem:[#allocation2 + $0x38] sm:$0xff] %v4066
        %4099 = vst [vmem:[#allocation2 + $0x40] sm:$0xff] %v4067
        %4100 = vst [vmem:[#allocation2 + $0x48] sm:$0xff] %v4068
        %4101 = vst [vmem:[#allocation2 + $0x50] sm:$0xff] %v4069
        %4102 = vst [vmem:[#allocation2 + $0x58] sm:$0xff] %v4070
        %4103 = vst [vmem:[#allocation2 + $0x60] sm:$0xff] %v4071
        %4104 = vst [vmem:[#allocation2 + $0x68] sm:$0xff] %v4072
        %4105 = vst [vmem:[#allocation2 + $0x70] sm:$0xff] %v4073
        %4106 = vst [vmem:[#allocation2 + $0x78] sm:$0xff] %v4074
        %4107 = vst [vmem:[#allocation2 + $0x80] sm:$0xff] %v4075
        %4108 = vst [vmem:[#allocation2 + $0x88] sm:$0xff] %v4076
        %4109 = vst [vmem:[#allocation2 + $0x90] sm:$0xff] %v4077
        %4110 = vst [vmem:[#allocation2 + $0x98] sm:$0xff] %v4078
        %4111 = vst [vmem:[#allocation2 + $0xa0] sm:$0xff] %v4079
        %4112 = vst [vmem:[#allocation2 + $0xa8] sm:$0xff] %v4080
        %4113 = vst [vmem:[#allocation2 + $0xb0] sm:$0xff] %v4081
        %4114 = vst [vmem:[#allocation2 + $0xb8] sm:$0xff] %v4082
        %4115 = vst [vmem:[#allocation2 + $0xc0] sm:$0xff] %v4083
        %4116 = vst [vmem:[#allocation2 + $0xc8] sm:$0xff] %v4084
        %4117 = vst [vmem:[#allocation2 + $0xd0] sm:$0xff] %v4085
        %4118 = vst [vmem:[#allocation2 + $0xd8] sm:$0xff] %v4086
        %4119 = vst [vmem:[#allocation2 + $0xe0] sm:$0xff] %v4087
        %4120 = vst [vmem:[#allocation2 + $0xe8] sm:$0xff] %v4088
        %4121 = vst [vmem:[#allocation2 + $0xf0] sm:$0xff] %v4089
        %4122 = vst [vmem:[#allocation2 + $0xf8] sm:$0xff] %v4090
        %v4123 = vld [vmem:[%s3700] sm:$0xf]
        %v4124 = vld [vmem:[%s3700 + $0x4] sm:$0xf]
        %v4125 = vld [vmem:[%s3700 + $0x8] sm:$0x1]
        %v4126 = vld [vmem:[%s3700 + $0xc] sm:$0xf]
        %v4127 = vld [vmem:[%s3700 + $0x10] sm:$0xf]
        %v4128 = vld [vmem:[%s3700 + $0x14] sm:$0x1]
        %v4129 = vld [vmem:[%s3700 + $0x18] sm:$0xf]
        %v4130 = vld [vmem:[%s3700 + $0x1c] sm:$0xf]
        %v4131 = vld [vmem:[%s3700 + $0x20] sm:$0x1]
        %v4132 = vld [vmem:[%s3700 + $0x24] sm:$0xf]
        %v4133 = vld [vmem:[%s3700 + $0x28] sm:$0xf]
        %v4134 = vld [vmem:[%s3700 + $0x2c] sm:$0x1]
        %v4135 = vld [vmem:[%s3700 + $0x30] sm:$0xf]
        %v4136 = vld [vmem:[%s3700 + $0x34] sm:$0xf]
        %v4137 = vld [vmem:[%s3700 + $0x38] sm:$0x1]
        %v4138 = vld [vmem:[%s3700 + $0x3c] sm:$0xf]
        %v4139 = vld [vmem:[%s3700 + $0x40] sm:$0xf]
        %v4140 = vld [vmem:[%s3700 + $0x44] sm:$0x1]
        %v4141 = vld [vmem:[%s3700 + $0x48] sm:$0xf]
        %v4142 = vld [vmem:[%s3700 + $0x4c] sm:$0xf]
        %v4143 = vld [vmem:[%s3700 + $0x50] sm:$0x1]
        %v4144 = vld [vmem:[%s3700 + $0x54] sm:$0xf]
        %v4145 = vld [vmem:[%s3700 + $0x58] sm:$0xf]
        %v4146 = vld [vmem:[%s3700 + $0x5c] sm:$0x1]
        %v4147 = vld [vmem:[%s3700 + $0x60] sm:$0xf]
        %v4148 = vld [vmem:[%s3700 + $0x64] sm:$0xf]
        %v4149 = vld [vmem:[%s3700 + $0x68] sm:$0x1]
        %v4150 = vld [vmem:[%s3700 + $0x6c] sm:$0xf]
        %v4151 = vld [vmem:[%s3700 + $0x70] sm:$0xf]
        %v4152 = vld [vmem:[%s3700 + $0x74] sm:$0x1]
        %v4153 = vld [vmem:[%s3700 + $0x78] sm:$0xf]
        %v4154 = vld [vmem:[%s3700 + $0x7c] sm:$0xf]
        %v4155 = vld [vmem:[%s3700 + $0x80] sm:$0x1]
        %v4156 = vld [vmem:[%s3700 + $0x84] sm:$0xf]
        %v4157 = vld [vmem:[%s3700 + $0x88] sm:$0xf]
        %v4158 = vld [vmem:[%s3700 + $0x8c] sm:$0x1]
        %v4159 = vld [vmem:[%s3700 + $0x90] sm:$0xf]
        %v4160 = vld [vmem:[%s3700 + $0x94] sm:$0xf]
        %v4161 = vld [vmem:[%s3700 + $0x98] sm:$0x1]
        %v4162 = vld [vmem:[%s3700 + $0x9c] sm:$0xf]
        %v4163 = vld [vmem:[%s3700 + $0xa0] sm:$0xf]
        %v4164 = vld [vmem:[%s3700 + $0xa4] sm:$0x1]
        %v4165 = vld [vmem:[%s3700 + $0xa8] sm:$0xf]
        %v4166 = vld [vmem:[%s3700 + $0xac] sm:$0xf]
        %v4167 = vld [vmem:[%s3700 + $0xb0] sm:$0x1]
        %v4168 = vld [vmem:[%s3700 + $0xb4] sm:$0xf]
        %v4169 = vld [vmem:[%s3700 + $0xb8] sm:$0xf]
        %v4170 = vld [vmem:[%s3700 + $0xbc] sm:$0x1]
        %v4172 = vshrl.u32 %v4123, 16
        %v4174 = vrot.slane %v4172, 4
        %v4175 = vshll.u32 %v4123, 16
        %v4177 = vrot.slane %v4175, 5
        %v4178 = vor.u32 %v4174, %v4177
        %v4179 = vrot.slane %v4178, 4
        %v4181 = vshll.u32 %v4124, 16
        %v4183 = vrot.slane %v4181, 5
        %v4184 = vsel %vm609, %v4179, %v4183
        %v4185 = vshrl.u32 %v4124, 16
        %v4187 = vrot.slane %v4185, 4
        %v4188 = vor.u32 %v4187, %v4183
        %v4189 = vrot.slane %v4188, 4
        %v4191 = vshll.u32 %v4125, 16
        %v4193 = vrot.slane %v4191, 5
        %v4194 = vsel %vm609, %v4189, %v4193
        %v4196 = vshrl.u32 %v4126, 16
        %v4198 = vrot.slane %v4196, 4
        %v4199 = vshll.u32 %v4126, 16
        %v4201 = vrot.slane %v4199, 5
        %v4202 = vor.u32 %v4198, %v4201
        %v4203 = vrot.slane %v4202, 4
        %v4205 = vshll.u32 %v4127, 16
        %v4207 = vrot.slane %v4205, 5
        %v4208 = vsel %vm609, %v4203, %v4207
        %v4209 = vshrl.u32 %v4127, 16
        %v4211 = vrot.slane %v4209, 4
        %v4212 = vor.u32 %v4211, %v4207
        %v4213 = vrot.slane %v4212, 4
        %v4215 = vshll.u32 %v4128, 16
        %v4217 = vrot.slane %v4215, 5
        %v4218 = vsel %vm609, %v4213, %v4217
        %v4220 = vshrl.u32 %v4129, 16
        %v4222 = vrot.slane %v4220, 4
        %v4223 = vshll.u32 %v4129, 16
        %v4225 = vrot.slane %v4223, 5
        %v4226 = vor.u32 %v4222, %v4225
        %v4227 = vrot.slane %v4226, 4
        %v4229 = vshll.u32 %v4130, 16
        %v4231 = vrot.slane %v4229, 5
        %v4232 = vsel %vm609, %v4227, %v4231
        %v4233 = vshrl.u32 %v4130, 16
        %v4235 = vrot.slane %v4233, 4
        %v4236 = vor.u32 %v4235, %v4231
        %v4237 = vrot.slane %v4236, 4
        %v4239 = vshll.u32 %v4131, 16
        %v4241 = vrot.slane %v4239, 5
        %v4242 = vsel %vm609, %v4237, %v4241
        %v4244 = vshrl.u32 %v4132, 16
        %v4246 = vrot.slane %v4244, 4
        %v4247 = vshll.u32 %v4132, 16
        %v4249 = vrot.slane %v4247, 5
        %v4250 = vor.u32 %v4246, %v4249
        %v4251 = vrot.slane %v4250, 4
        %v4253 = vshll.u32 %v4133, 16
        %v4255 = vrot.slane %v4253, 5
        %v4256 = vsel %vm609, %v4251, %v4255
        %v4257 = vshrl.u32 %v4133, 16
        %v4259 = vrot.slane %v4257, 4
        %v4260 = vor.u32 %v4259, %v4255
        %v4261 = vrot.slane %v4260, 4
        %v4263 = vshll.u32 %v4134, 16
        %v4265 = vrot.slane %v4263, 5
        %v4266 = vsel %vm609, %v4261, %v4265
        %v4268 = vshrl.u32 %v4135, 16
        %v4270 = vrot.slane %v4268, 4
        %v4271 = vshll.u32 %v4135, 16
        %v4273 = vrot.slane %v4271, 5
        %v4274 = vor.u32 %v4270, %v4273
        %v4275 = vrot.slane %v4274, 4
        %v4277 = vshll.u32 %v4136, 16
        %v4279 = vrot.slane %v4277, 5
        %v4280 = vsel %vm609, %v4275, %v4279
        %v4281 = vshrl.u32 %v4136, 16
        %v4283 = vrot.slane %v4281, 4
        %v4284 = vor.u32 %v4283, %v4279
        %v4285 = vrot.slane %v4284, 4
        %v4287 = vshll.u32 %v4137, 16
        %v4289 = vrot.slane %v4287, 5
        %v4290 = vsel %vm609, %v4285, %v4289
        %v4292 = vshrl.u32 %v4138, 16
        %v4294 = vrot.slane %v4292, 4
        %v4295 = vshll.u32 %v4138, 16
        %v4297 = vrot.slane %v4295, 5
        %v4298 = vor.u32 %v4294, %v4297
        %v4299 = vrot.slane %v4298, 4
        %v4301 = vshll.u32 %v4139, 16
        %v4303 = vrot.slane %v4301, 5
        %v4304 = vsel %vm609, %v4299, %v4303
        %v4305 = vshrl.u32 %v4139, 16
        %v4307 = vrot.slane %v4305, 4
        %v4308 = vor.u32 %v4307, %v4303
        %v4309 = vrot.slane %v4308, 4
        %v4311 = vshll.u32 %v4140, 16
        %v4313 = vrot.slane %v4311, 5
        %v4314 = vsel %vm609, %v4309, %v4313
        %v4316 = vshrl.u32 %v4141, 16
        %v4318 = vrot.slane %v4316, 4
        %v4319 = vshll.u32 %v4141, 16
        %v4321 = vrot.slane %v4319, 5
        %v4322 = vor.u32 %v4318, %v4321
        %v4323 = vrot.slane %v4322, 4
        %v4325 = vshll.u32 %v4142, 16
        %v4327 = vrot.slane %v4325, 5
        %v4328 = vsel %vm609, %v4323, %v4327
        %v4329 = vshrl.u32 %v4142, 16
        %v4331 = vrot.slane %v4329, 4
        %v4332 = vor.u32 %v4331, %v4327
        %v4333 = vrot.slane %v4332, 4
        %v4335 = vshll.u32 %v4143, 16
        %v4337 = vrot.slane %v4335, 5
        %v4338 = vsel %vm609, %v4333, %v4337
        %v4340 = vshrl.u32 %v4144, 16
        %v4342 = vrot.slane %v4340, 4
        %v4343 = vshll.u32 %v4144, 16
        %v4345 = vrot.slane %v4343, 5
        %v4346 = vor.u32 %v4342, %v4345
        %v4347 = vrot.slane %v4346, 4
        %v4349 = vshll.u32 %v4145, 16
        %v4351 = vrot.slane %v4349, 5
        %v4352 = vsel %vm609, %v4347, %v4351
        %v4353 = vshrl.u32 %v4145, 16
        %v4355 = vrot.slane %v4353, 4
        %v4356 = vor.u32 %v4355, %v4351
        %v4357 = vrot.slane %v4356, 4
        %v4359 = vshll.u32 %v4146, 16
        %v4361 = vrot.slane %v4359, 5
        %v4362 = vsel %vm609, %v4357, %v4361
        %v4364 = vshrl.u32 %v4147, 16
        %v4366 = vrot.slane %v4364, 4
        %v4367 = vshll.u32 %v4147, 16
        %v4369 = vrot.slane %v4367, 5
        %v4370 = vor.u32 %v4366, %v4369
        %v4371 = vrot.slane %v4370, 4
        %v4373 = vshll.u32 %v4148, 16
        %v4375 = vrot.slane %v4373, 5
        %v4376 = vsel %vm609, %v4371, %v4375
        %v4377 = vshrl.u32 %v4148, 16
        %v4379 = vrot.slane %v4377, 4
        %v4380 = vor.u32 %v4379, %v4375
        %v4381 = vrot.slane %v4380, 4
        %v4383 = vshll.u32 %v4149, 16
        %v4385 = vrot.slane %v4383, 5
        %v4386 = vsel %vm609, %v4381, %v4385
        %v4388 = vshrl.u32 %v4150, 16
        %v4390 = vrot.slane %v4388, 4
        %v4391 = vshll.u32 %v4150, 16
        %v4393 = vrot.slane %v4391, 5
        %v4394 = vor.u32 %v4390, %v4393
        %v4395 = vrot.slane %v4394, 4
        %v4397 = vshll.u32 %v4151, 16
        %v4399 = vrot.slane %v4397, 5
        %v4400 = vsel %vm609, %v4395, %v4399
        %v4401 = vshrl.u32 %v4151, 16
        %v4403 = vrot.slane %v4401, 4
        %v4404 = vor.u32 %v4403, %v4399
        %v4405 = vrot.slane %v4404, 4
        %v4407 = vshll.u32 %v4152, 16
        %v4409 = vrot.slane %v4407, 5
        %v4410 = vsel %vm609, %v4405, %v4409
        %v4412 = vshrl.u32 %v4153, 16
        %v4414 = vrot.slane %v4412, 4
        %v4415 = vshll.u32 %v4153, 16
        %v4417 = vrot.slane %v4415, 5
        %v4418 = vor.u32 %v4414, %v4417
        %v4419 = vrot.slane %v4418, 4
        %v4421 = vshll.u32 %v4154, 16
        %v4423 = vrot.slane %v4421, 5
        %v4424 = vsel %vm609, %v4419, %v4423
        %v4425 = vshrl.u32 %v4154, 16
        %v4427 = vrot.slane %v4425, 4
        %v4428 = vor.u32 %v4427, %v4423
        %v4429 = vrot.slane %v4428, 4
        %v4431 = vshll.u32 %v4155, 16
        %v4433 = vrot.slane %v4431, 5
        %v4434 = vsel %vm609, %v4429, %v4433
        %v4436 = vshrl.u32 %v4156, 16
        %v4438 = vrot.slane %v4436, 4
        %v4439 = vshll.u32 %v4156, 16
        %v4441 = vrot.slane %v4439, 5
        %v4442 = vor.u32 %v4438, %v4441
        %v4443 = vrot.slane %v4442, 4
        %v4445 = vshll.u32 %v4157, 16
        %v4447 = vrot.slane %v4445, 5
        %v4448 = vsel %vm609, %v4443, %v4447
        %v4449 = vshrl.u32 %v4157, 16
        %v4451 = vrot.slane %v4449, 4
        %v4452 = vor.u32 %v4451, %v4447
        %v4453 = vrot.slane %v4452, 4
        %v4455 = vshll.u32 %v4158, 16
        %v4457 = vrot.slane %v4455, 5
        %v4458 = vsel %vm609, %v4453, %v4457
        %v4460 = vshrl.u32 %v4159, 16
        %v4462 = vrot.slane %v4460, 4
        %v4463 = vshll.u32 %v4159, 16
        %v4465 = vrot.slane %v4463, 5
        %v4466 = vor.u32 %v4462, %v4465
        %v4467 = vrot.slane %v4466, 4
        %v4469 = vshll.u32 %v4160, 16
        %v4471 = vrot.slane %v4469, 5
        %v4472 = vsel %vm609, %v4467, %v4471
        %v4473 = vshrl.u32 %v4160, 16
        %v4475 = vrot.slane %v4473, 4
        %v4476 = vor.u32 %v4475, %v4471
        %v4477 = vrot.slane %v4476, 4
        %v4479 = vshll.u32 %v4161, 16
        %v4481 = vrot.slane %v4479, 5
        %v4482 = vsel %vm609, %v4477, %v4481
        %v4484 = vshrl.u32 %v4162, 16
        %v4486 = vrot.slane %v4484, 4
        %v4487 = vshll.u32 %v4162, 16
        %v4489 = vrot.slane %v4487, 5
        %v4490 = vor.u32 %v4486, %v4489
        %v4491 = vrot.slane %v4490, 4
        %v4493 = vshll.u32 %v4163, 16
        %v4495 = vrot.slane %v4493, 5
        %v4496 = vsel %vm609, %v4491, %v4495
        %v4497 = vshrl.u32 %v4163, 16
        %v4499 = vrot.slane %v4497, 4
        %v4500 = vor.u32 %v4499, %v4495
        %v4501 = vrot.slane %v4500, 4
        %v4503 = vshll.u32 %v4164, 16
        %v4505 = vrot.slane %v4503, 5
        %v4506 = vsel %vm609, %v4501, %v4505
        %v4508 = vshrl.u32 %v4165, 16
        %v4510 = vrot.slane %v4508, 4
        %v4511 = vshll.u32 %v4165, 16
        %v4513 = vrot.slane %v4511, 5
        %v4514 = vor.u32 %v4510, %v4513
        %v4515 = vrot.slane %v4514, 4
        %v4517 = vshll.u32 %v4166, 16
        %v4519 = vrot.slane %v4517, 5
        %v4520 = vsel %vm609, %v4515, %v4519
        %v4521 = vshrl.u32 %v4166, 16
        %v4523 = vrot.slane %v4521, 4
        %v4524 = vor.u32 %v4523, %v4519
        %v4525 = vrot.slane %v4524, 4
        %v4527 = vshll.u32 %v4167, 16
        %v4529 = vrot.slane %v4527, 5
        %v4530 = vsel %vm609, %v4525, %v4529
        %v4532 = vshrl.u32 %v4168, 16
        %v4534 = vrot.slane %v4532, 4
        %v4535 = vshll.u32 %v4168, 16
        %v4537 = vrot.slane %v4535, 5
        %v4538 = vor.u32 %v4534, %v4537
        %v4539 = vrot.slane %v4538, 4
        %v4541 = vshll.u32 %v4169, 16
        %v4543 = vrot.slane %v4541, 5
        %v4544 = vsel %vm609, %v4539, %v4543
        %v4545 = vshrl.u32 %v4169, 16
        %v4547 = vrot.slane %v4545, 4
        %v4548 = vor.u32 %v4547, %v4543
        %v4549 = vrot.slane %v4548, 4
        %v4551 = vshll.u32 %v4170, 16
        %v4553 = vrot.slane %v4551, 5
        %v4554 = vsel %vm609, %v4549, %v4553
        %s4555 = scalar_lea.vmem [#allocation3], 14
        %v4556 = vld [vmem:[%s4555] sm:$0x3]
        %v4557 = vunpack.c.l.b16 %v4184
        %v4558 = vunpack.c.l.b16 %v4194
        %v4559 = vunpack.c.l.b16 %v4208
        %v4560 = vunpack.c.l.b16 %v4218
        %v4561 = vunpack.c.l.b16 %v4232
        %v4562 = vunpack.c.l.b16 %v4242
        %v4563 = vunpack.c.l.b16 %v4256
        %v4564 = vunpack.c.l.b16 %v4266
        %v4565 = vunpack.c.l.b16 %v4280
        %v4566 = vunpack.c.l.b16 %v4290
        %v4567 = vunpack.c.l.b16 %v4304
        %v4568 = vunpack.c.l.b16 %v4314
        %v4569 = vunpack.c.l.b16 %v4328
        %v4570 = vunpack.c.l.b16 %v4338
        %v4571 = vunpack.c.l.b16 %v4352
        %v4572 = vunpack.c.l.b16 %v4362
        %v4573 = vunpack.c.l.b16 %v4376
        %v4574 = vunpack.c.l.b16 %v4386
        %v4575 = vunpack.c.l.b16 %v4400
        %v4576 = vunpack.c.l.b16 %v4410
        %v4577 = vunpack.c.l.b16 %v4424
        %v4578 = vunpack.c.l.b16 %v4434
        %v4579 = vunpack.c.l.b16 %v4448
        %v4580 = vunpack.c.l.b16 %v4458
        %v4581 = vunpack.c.l.b16 %v4472
        %v4582 = vunpack.c.l.b16 %v4482
        %v4583 = vunpack.c.l.b16 %v4496
        %v4584 = vunpack.c.l.b16 %v4506
        %v4585 = vunpack.c.l.b16 %v4520
        %v4586 = vunpack.c.l.b16 %v4530
        %v4587 = vunpack.c.l.b16 %v4544
        %v4588 = vunpack.c.l.b16 %v4554
        %v4589 = vpack.c.b16 %v4558, %v4557
        %v4590 = vpack.c.b16 %v4560, %v4559
        %v4591 = vpack.c.b16 %v4562, %v4561
        %v4592 = vpack.c.b16 %v4564, %v4563
        %v4593 = vpack.c.b16 %v4566, %v4565
        %v4594 = vpack.c.b16 %v4568, %v4567
        %v4595 = vpack.c.b16 %v4570, %v4569
        %v4596 = vpack.c.b16 %v4572, %v4571
        %v4597 = vpack.c.b16 %v4574, %v4573
        %v4598 = vpack.c.b16 %v4576, %v4575
        %v4599 = vpack.c.b16 %v4578, %v4577
        %v4600 = vpack.c.b16 %v4580, %v4579
        %v4601 = vpack.c.b16 %v4582, %v4581
        %v4602 = vpack.c.b16 %v4584, %v4583
        %v4603 = vpack.c.b16 %v4586, %v4585
        %v4604 = vpack.c.b16 %v4588, %v4587
        %v4606 = vsel %vm313, %v4589, 0
        %v4609 = vsel %vm313, %v4590, 0
        %v4612 = vsel %vm313, %v4591, 0
        %v4615 = vsel %vm313, %v4592, 0
        %v4618 = vsel %vm313, %v4593, 0
        %v4621 = vsel %vm313, %v4594, 0
        %v4624 = vsel %vm313, %v4595, 0
        %v4627 = vsel %vm313, %v4596, 0
        %v4630 = vsel %vm313, %v4597, 0
        %v4633 = vsel %vm313, %v4598, 0
        %v4636 = vsel %vm313, %v4599, 0
        %v4639 = vsel %vm313, %v4600, 0
        %v4642 = vsel %vm313, %v4601, 0
        %v4645 = vsel %vm313, %v4602, 0
        %v4648 = vsel %vm313, %v4603, 0
        %v4651 = vsel %vm313, %v4604, 0
        %v4654 = vsel %vm362, %v4556, 0
        %4656 = vmatprep.subr.bf16.mxu0 0
        %4657 = vmatpush1.bf16.msra.mxu0 %v4654
        %4658 = vmatprep.subr.bf16.mxu0 0
        %4659 = vmatpush1.bf16.msra.mxu0 0
        %4660 = vmatprep.subr.bf16.mxu0 0
        %4661 = vmatpush1.bf16.msra.mxu0 0
        %4662 = vmatprep.subr.bf16.mxu0 0
        %4663 = vmatpush1.bf16.msra.mxu0 0
        %4664 = vmatprep.subr.bf16.mxu0 0
        %4665 = vmatpush1.bf16.msra.mxu0 0
        %4666 = vmatprep.subr.bf16.mxu0 0
        %4667 = vmatpush1.bf16.msra.mxu0 0
        %4668 = vmatprep.subr.bf16.mxu0 0
        %4669 = vmatpush1.bf16.msra.mxu0 0
        %4670 = vmatprep.subr.bf16.mxu0 0
        %4671 = vmatpush1.bf16.msra.mxu0 0
        %4672 = vmatprep.subr.bf16.mxu0 0
        %4673 = vmatpush1.bf16.msra.mxu0 0
        %4674 = vmatprep.subr.bf16.mxu0 0
        %4675 = vmatpush1.bf16.msra.mxu0 0
        %4676 = vmatprep.subr.bf16.mxu0 0
        %4677 = vmatpush1.bf16.msra.mxu0 0
        %4678 = vmatprep.subr.bf16.mxu0 0
        %4679 = vmatpush1.bf16.msra.mxu0 0
        %4680 = vmatprep.subr.bf16.mxu0 0
        %4681 = vmatpush1.bf16.msra.mxu0 0
        %4682 = vmatprep.subr.bf16.mxu0 0
        %4683 = vmatpush1.bf16.msra.mxu0 0
        %4684 = vmatprep.subr.bf16.mxu0 0
        %4685 = vmatpush1.bf16.msra.mxu0 0
        %4686 = vmatprep.subr.bf16.mxu0 0
        %4687 = vmatpush1.bf16.msra.mxu0 0
        %4688 = vmatprep.mubr.bf16.mxu0 0
        %4689 = vmatmul.mubr.bf16.gmra.mrb[0].mxu0 %v4606
        %v4690 = vpop.f32.mrb[0].mxu0
        %v4691 = vadd.f32 0.0, %v4690
        %v4692 = vpop.f32.mrb[0].mxu0
        %v4693 = vpop.f32.mrb[0].mxu0
        %v4694 = vadd.f32 0.0, %v4693
        %v4695 = vpop.f32.mrb[0].mxu0
        %4696 = vmatprep.mubr.bf16.mxu0 0
        %4697 = vmatmul.mubr.bf16.gmra.mrb[0].mxu0 %v4609
        %v4698 = vpop.f32.mrb[0].mxu0
        %v4699 = vadd.f32 0.0, %v4698
        %v4700 = vpop.f32.mrb[0].mxu0
        %v4701 = vpop.f32.mrb[0].mxu0
        %v4702 = vadd.f32 0.0, %v4701
        %v4703 = vpop.f32.mrb[0].mxu0
        %4704 = vmatprep.mubr.bf16.mxu0 0
        %4705 = vmatmul.mubr.bf16.gmra.mrb[0].mxu0 %v4612
        %v4706 = vpop.f32.mrb[0].mxu0
        %v4707 = vadd.f32 0.0, %v4706
        %v4708 = vpop.f32.mrb[0].mxu0
        %v4709 = vpop.f32.mrb[0].mxu0
        %v4710 = vadd.f32 0.0, %v4709
        %v4711 = vpop.f32.mrb[0].mxu0
        %4712 = vmatprep.mubr.bf16.mxu0 0
        %4713 = vmatmul.mubr.bf16.gmra.mrb[0].mxu0 %v4615
        %v4714 = vpop.f32.mrb[0].mxu0
        %v4715 = vadd.f32 0.0, %v4714
        %v4716 = vpop.f32.mrb[0].mxu0
        %v4717 = vpop.f32.mrb[0].mxu0
        %v4718 = vadd.f32 0.0, %v4717
        %v4719 = vpop.f32.mrb[0].mxu0
        %4720 = vmatprep.mubr.bf16.mxu0 0
        %4721 = vmatmul.mubr.bf16.gmra.mrb[0].mxu0 %v4618
        %v4722 = vpop.f32.mrb[0].mxu0
        %v4723 = vadd.f32 0.0, %v4722
        %v4724 = vpop.f32.mrb[0].mxu0
        %v4725 = vpop.f32.mrb[0].mxu0
        %v4726 = vadd.f32 0.0, %v4725
        %v4727 = vpop.f32.mrb[0].mxu0
        %4728 = vmatprep.mubr.bf16.mxu0 0
        %4729 = vmatmul.mubr.bf16.gmra.mrb[0].mxu0 %v4621
        %v4730 = vpop.f32.mrb[0].mxu0
        %v4731 = vadd.f32 0.0, %v4730
        %v4732 = vpop.f32.mrb[0].mxu0
        %v4733 = vpop.f32.mrb[0].mxu0
        %v4734 = vadd.f32 0.0, %v4733
        %v4735 = vpop.f32.mrb[0].mxu0
        %4736 = vmatprep.mubr.bf16.mxu0 0
        %4737 = vmatmul.mubr.bf16.gmra.mrb[0].mxu0 %v4624
        %v4738 = vpop.f32.mrb[0].mxu0
        %v4739 = vadd.f32 0.0, %v4738
        %v4740 = vpop.f32.mrb[0].mxu0
        %v4741 = vpop.f32.mrb[0].mxu0
        %v4742 = vadd.f32 0.0, %v4741
        %v4743 = vpop.f32.mrb[0].mxu0
        %4744 = vmatprep.mubr.bf16.mxu0 0
        %4745 = vmatmul.mubr.bf16.gmra.mrb[0].mxu0 %v4627
        %v4746 = vpop.f32.mrb[0].mxu0
        %v4747 = vadd.f32 0.0, %v4746
        %v4748 = vpop.f32.mrb[0].mxu0
        %v4749 = vpop.f32.mrb[0].mxu0
        %v4750 = vadd.f32 0.0, %v4749
        %v4751 = vpop.f32.mrb[0].mxu0
        %4752 = vmatprep.mubr.bf16.mxu0 0
        %4753 = vmatmul.mubr.bf16.gmra.mrb[0].mxu0 %v4630
        %v4754 = vpop.f32.mrb[0].mxu0
        %v4755 = vadd.f32 0.0, %v4754
        %v4756 = vpop.f32.mrb[0].mxu0
        %v4757 = vpop.f32.mrb[0].mxu0
        %v4758 = vadd.f32 0.0, %v4757
        %v4759 = vpop.f32.mrb[0].mxu0
        %4760 = vmatprep.mubr.bf16.mxu0 0
        %4761 = vmatmul.mubr.bf16.gmra.mrb[0].mxu0 %v4633
        %v4762 = vpop.f32.mrb[0].mxu0
        %v4763 = vadd.f32 0.0, %v4762
        %v4764 = vpop.f32.mrb[0].mxu0
        %v4765 = vpop.f32.mrb[0].mxu0
        %v4766 = vadd.f32 0.0, %v4765
        %v4767 = vpop.f32.mrb[0].mxu0
        %4768 = vmatprep.mubr.bf16.mxu0 0
        %4769 = vmatmul.mubr.bf16.gmra.mrb[0].mxu0 %v4636
        %v4770 = vpop.f32.mrb[0].mxu0
        %v4771 = vadd.f32 0.0, %v4770
        %v4772 = vpop.f32.mrb[0].mxu0
        %v4773 = vpop.f32.mrb[0].mxu0
        %v4774 = vadd.f32 0.0, %v4773
        %v4775 = vpop.f32.mrb[0].mxu0
        %4776 = vmatprep.mubr.bf16.mxu0 0
        %4777 = vmatmul.mubr.bf16.gmra.mrb[0].mxu0 %v4639
        %v4778 = vpop.f32.mrb[0].mxu0
        %v4779 = vadd.f32 0.0, %v4778
        %v4780 = vpop.f32.mrb[0].mxu0
        %v4781 = vpop.f32.mrb[0].mxu0
        %v4782 = vadd.f32 0.0, %v4781
        %v4783 = vpop.f32.mrb[0].mxu0
        %4784 = vmatprep.mubr.bf16.mxu0 0
        %4785 = vmatmul.mubr.bf16.gmra.mrb[0].mxu0 %v4642
        %v4786 = vpop.f32.mrb[0].mxu0
        %v4787 = vadd.f32 0.0, %v4786
        %v4788 = vpop.f32.mrb[0].mxu0
        %v4789 = vpop.f32.mrb[0].mxu0
        %v4790 = vadd.f32 0.0, %v4789
        %v4791 = vpop.f32.mrb[0].mxu0
        %4792 = vmatprep.mubr.bf16.mxu0 0
        %4793 = vmatmul.mubr.bf16.gmra.mrb[0].mxu0 %v4645
        %v4794 = vpop.f32.mrb[0].mxu0
        %v4795 = vadd.f32 0.0, %v4794
        %v4796 = vpop.f32.mrb[0].mxu0
        %v4797 = vpop.f32.mrb[0].mxu0
        %v4798 = vadd.f32 0.0, %v4797
        %v4799 = vpop.f32.mrb[0].mxu0
        %4800 = vmatprep.mubr.bf16.mxu0 0
        %4801 = vmatmul.mubr.bf16.gmra.mrb[0].mxu0 %v4648
        %v4802 = vpop.f32.mrb[0].mxu0
        %v4803 = vadd.f32 0.0, %v4802
        %v4804 = vpop.f32.mrb[0].mxu0
        %v4805 = vpop.f32.mrb[0].mxu0
        %v4806 = vadd.f32 0.0, %v4805
        %v4807 = vpop.f32.mrb[0].mxu0
        %4808 = vmatprep.mubr.bf16.mxu0 0
        %4809 = vmatmul.mubr.bf16.gmra.mrb[0].mxu0 %v4651
        %v4810 = vpop.f32.mrb[0].mxu0
        %v4811 = vadd.f32 0.0, %v4810
        %v4812 = vpop.f32.mrb[0].mxu0
        %v4813 = vpop.f32.mrb[0].mxu0
        %v4814 = vadd.f32 0.0, %v4813
        %v4815 = vpop.f32.mrb[0].mxu0
        %4816 = vdwg.mxu0
        %v4817 = vld [vmem:[#allocation2] sm:$0xff]
        %v4818 = vld [vmem:[#allocation2 + $0x8] sm:$0xff]
        %v4819 = vld [vmem:[#allocation2 + $0x10] sm:$0xff]
        %v4820 = vld [vmem:[#allocation2 + $0x18] sm:$0xff]
        %v4821 = vld [vmem:[#allocation2 + $0x20] sm:$0xff]
        %v4822 = vld [vmem:[#allocation2 + $0x28] sm:$0xff]
        %v4823 = vld [vmem:[#allocation2 + $0x30] sm:$0xff]
        %v4824 = vld [vmem:[#allocation2 + $0x38] sm:$0xff]
        %v4825 = vld [vmem:[#allocation2 + $0x40] sm:$0xff]
        %v4826 = vld [vmem:[#allocation2 + $0x48] sm:$0xff]
        %v4827 = vld [vmem:[#allocation2 + $0x50] sm:$0xff]
        %v4828 = vld [vmem:[#allocation2 + $0x58] sm:$0xff]
        %v4829 = vld [vmem:[#allocation2 + $0x60] sm:$0xff]
        %v4830 = vld [vmem:[#allocation2 + $0x68] sm:$0xff]
        %v4831 = vld [vmem:[#allocation2 + $0x70] sm:$0xff]
        %v4832 = vld [vmem:[#allocation2 + $0x78] sm:$0xff]
        %v4833 = vld [vmem:[#allocation2 + $0x80] sm:$0xff]
        %v4834 = vld [vmem:[#allocation2 + $0x88] sm:$0xff]
        %v4835 = vld [vmem:[#allocation2 + $0x90] sm:$0xff]
        %v4836 = vld [vmem:[#allocation2 + $0x98] sm:$0xff]
        %v4837 = vld [vmem:[#allocation2 + $0xa0] sm:$0xff]
        %v4838 = vld [vmem:[#allocation2 + $0xa8] sm:$0xff]
        %v4839 = vld [vmem:[#allocation2 + $0xb0] sm:$0xff]
        %v4840 = vld [vmem:[#allocation2 + $0xb8] sm:$0xff]
        %v4841 = vld [vmem:[#allocation2 + $0xc0] sm:$0xff]
        %v4842 = vld [vmem:[#allocation2 + $0xc8] sm:$0xff]
        %v4843 = vld [vmem:[#allocation2 + $0xd0] sm:$0xff]
        %v4844 = vld [vmem:[#allocation2 + $0xd8] sm:$0xff]
        %v4845 = vld [vmem:[#allocation2 + $0xe0] sm:$0xff]
        %v4846 = vld [vmem:[#allocation2 + $0xe8] sm:$0xff]
        %v4847 = vld [vmem:[#allocation2 + $0xf0] sm:$0xff]
        %v4848 = vld [vmem:[#allocation2 + $0xf8] sm:$0xff]
        %v4849 = vadd.f32 %v4817, %v4691
        %v4850 = vadd.f32 %v4818, %v4694
        %v4851 = vadd.f32 %v4819, %v4699
        %v4852 = vadd.f32 %v4820, %v4702
        %v4853 = vadd.f32 %v4821, %v4707
        %v4854 = vadd.f32 %v4822, %v4710
        %v4855 = vadd.f32 %v4823, %v4715
        %v4856 = vadd.f32 %v4824, %v4718
        %v4857 = vadd.f32 %v4825, %v4723
        %v4858 = vadd.f32 %v4826, %v4726
        %v4859 = vadd.f32 %v4827, %v4731
        %v4860 = vadd.f32 %v4828, %v4734
        %v4861 = vadd.f32 %v4829, %v4739
        %v4862 = vadd.f32 %v4830, %v4742
        %v4863 = vadd.f32 %v4831, %v4747
        %v4864 = vadd.f32 %v4832, %v4750
        %v4865 = vadd.f32 %v4833, %v4755
        %v4866 = vadd.f32 %v4834, %v4758
        %v4867 = vadd.f32 %v4835, %v4763
        %v4868 = vadd.f32 %v4836, %v4766
        %v4869 = vadd.f32 %v4837, %v4771
        %v4870 = vadd.f32 %v4838, %v4774
        %v4871 = vadd.f32 %v4839, %v4779
        %v4872 = vadd.f32 %v4840, %v4782
        %v4873 = vadd.f32 %v4841, %v4787
        %v4874 = vadd.f32 %v4842, %v4790
        %v4875 = vadd.f32 %v4843, %v4795
        %v4876 = vadd.f32 %v4844, %v4798
        %v4877 = vadd.f32 %v4845, %v4803
        %v4878 = vadd.f32 %v4846, %v4806
        %v4879 = vadd.f32 %v4847, %v4811
        %v4880 = vadd.f32 %v4848, %v4814
        %4881 = vst [vmem:[#allocation2] sm:$0xff] %v4849
        %4882 = vst [vmem:[#allocation2 + $0x8] sm:$0xff] %v4850
        %4883 = vst [vmem:[#allocation2 + $0x10] sm:$0xff] %v4851
        %4884 = vst [vmem:[#allocation2 + $0x18] sm:$0xff] %v4852
        %4885 = vst [vmem:[#allocation2 + $0x20] sm:$0xff] %v4853
        %4886 = vst [vmem:[#allocation2 + $0x28] sm:$0xff] %v4854
        %4887 = vst [vmem:[#allocation2 + $0x30] sm:$0xff] %v4855
        %4888 = vst [vmem:[#allocation2 + $0x38] sm:$0xff] %v4856
        %4889 = vst [vmem:[#allocation2 + $0x40] sm:$0xff] %v4857
        %4890 = vst [vmem:[#allocation2 + $0x48] sm:$0xff] %v4858
        %4891 = vst [vmem:[#allocation2 + $0x50] sm:$0xff] %v4859
        %4892 = vst [vmem:[#allocation2 + $0x58] sm:$0xff] %v4860
        %4893 = vst [vmem:[#allocation2 + $0x60] sm:$0xff] %v4861
        %4894 = vst [vmem:[#allocation2 + $0x68] sm:$0xff] %v4862
        %4895 = vst [vmem:[#allocation2 + $0x70] sm:$0xff] %v4863
        %4896 = vst [vmem:[#allocation2 + $0x78] sm:$0xff] %v4864
        %4897 = vst [vmem:[#allocation2 + $0x80] sm:$0xff] %v4865
        %4898 = vst [vmem:[#allocation2 + $0x88] sm:$0xff] %v4866
        %4899 = vst [vmem:[#allocation2 + $0x90] sm:$0xff] %v4867
        %4900 = vst [vmem:[#allocation2 + $0x98] sm:$0xff] %v4868
        %4901 = vst [vmem:[#allocation2 + $0xa0] sm:$0xff] %v4869
        %4902 = vst [vmem:[#allocation2 + $0xa8] sm:$0xff] %v4870
        %4903 = vst [vmem:[#allocation2 + $0xb0] sm:$0xff] %v4871
        %4904 = vst [vmem:[#allocation2 + $0xb8] sm:$0xff] %v4872
        %4905 = vst [vmem:[#allocation2 + $0xc0] sm:$0xff] %v4873
        %4906 = vst [vmem:[#allocation2 + $0xc8] sm:$0xff] %v4874
        %4907 = vst [vmem:[#allocation2 + $0xd0] sm:$0xff] %v4875
        %4908 = vst [vmem:[#allocation2 + $0xd8] sm:$0xff] %v4876
        %4909 = vst [vmem:[#allocation2 + $0xe0] sm:$0xff] %v4877
        %4910 = vst [vmem:[#allocation2 + $0xe8] sm:$0xff] %v4878
        %4911 = vst [vmem:[#allocation2 + $0xf0] sm:$0xff] %v4879
        %4912 = vst [vmem:[#allocation2 + $0xf8] sm:$0xff] %v4880
        %v4913 = vld [vmem:[%s3700] sm:$0xe]
        %v4914 = vld [vmem:[%s3700 + $0x4] sm:$0xf]
        %v4915 = vld [vmem:[%s3700 + $0x8] sm:$0x1]
        %v4916 = vld [vmem:[%s3700 + $0xc] sm:$0xe]
        %v4917 = vld [vmem:[%s3700 + $0x10] sm:$0xf]
        %v4918 = vld [vmem:[%s3700 + $0x14] sm:$0x1]
        %v4919 = vld [vmem:[%s3700 + $0x18] sm:$0xe]
        %v4920 = vld [vmem:[%s3700 + $0x1c] sm:$0xf]
        %v4921 = vld [vmem:[%s3700 + $0x20] sm:$0x1]
        %v4922 = vld [vmem:[%s3700 + $0x24] sm:$0xe]
        %v4923 = vld [vmem:[%s3700 + $0x28] sm:$0xf]
        %v4924 = vld [vmem:[%s3700 + $0x2c] sm:$0x1]
        %v4925 = vld [vmem:[%s3700 + $0x30] sm:$0xe]
        %v4926 = vld [vmem:[%s3700 + $0x34] sm:$0xf]
        %v4927 = vld [vmem:[%s3700 + $0x38] sm:$0x1]
        %v4928 = vld [vmem:[%s3700 + $0x3c] sm:$0xe]
        %v4929 = vld [vmem:[%s3700 + $0x40] sm:$0xf]
        %v4930 = vld [vmem:[%s3700 + $0x44] sm:$0x1]
        %v4931 = vld [vmem:[%s3700 + $0x48] sm:$0xe]
        %v4932 = vld [vmem:[%s3700 + $0x4c] sm:$0xf]
        %v4933 = vld [vmem:[%s3700 + $0x50] sm:$0x1]
        %v4934 = vld [vmem:[%s3700 + $0x54] sm:$0xe]
        %v4935 = vld [vmem:[%s3700 + $0x58] sm:$0xf]
        %v4936 = vld [vmem:[%s3700 + $0x5c] sm:$0x1]
        %v4937 = vld [vmem:[%s3700 + $0x60] sm:$0xe]
        %v4938 = vld [vmem:[%s3700 + $0x64] sm:$0xf]
        %v4939 = vld [vmem:[%s3700 + $0x68] sm:$0x1]
        %v4940 = vld [vmem:[%s3700 + $0x6c] sm:$0xe]
        %v4941 = vld [vmem:[%s3700 + $0x70] sm:$0xf]
        %v4942 = vld [vmem:[%s3700 + $0x74] sm:$0x1]
        %v4943 = vld [vmem:[%s3700 + $0x78] sm:$0xe]
        %v4944 = vld [vmem:[%s3700 + $0x7c] sm:$0xf]
        %v4945 = vld [vmem:[%s3700 + $0x80] sm:$0x1]
        %v4946 = vld [vmem:[%s3700 + $0x84] sm:$0xe]
        %v4947 = vld [vmem:[%s3700 + $0x88] sm:$0xf]
        %v4948 = vld [vmem:[%s3700 + $0x8c] sm:$0x1]
        %v4949 = vld [vmem:[%s3700 + $0x90] sm:$0xe]
        %v4950 = vld [vmem:[%s3700 + $0x94] sm:$0xf]
        %v4951 = vld [vmem:[%s3700 + $0x98] sm:$0x1]
        %v4952 = vld [vmem:[%s3700 + $0x9c] sm:$0xe]
        %v4953 = vld [vmem:[%s3700 + $0xa0] sm:$0xf]
        %v4954 = vld [vmem:[%s3700 + $0xa4] sm:$0x1]
        %v4955 = vld [vmem:[%s3700 + $0xa8] sm:$0xe]
        %v4956 = vld [vmem:[%s3700 + $0xac] sm:$0xf]
        %v4957 = vld [vmem:[%s3700 + $0xb0] sm:$0x1]
        %v4958 = vld [vmem:[%s3700 + $0xb4] sm:$0xe]
        %v4959 = vld [vmem:[%s3700 + $0xb8] sm:$0xf]
        %v4960 = vld [vmem:[%s3700 + $0xbc] sm:$0x1]
        %v5009 = vrot.slane %v4913, 5
        %v5010 = vrot.slane %v5009, 4
        %v5011 = vrot.slane %v4914, 5
        %v5012 = vsel %vm1450, %v5010, %v5011
        %v5013 = vrot.slane %v5011, 4
        %v5014 = vrot.slane %v4915, 5
        %v5015 = vsel %vm1450, %v5013, %v5014
        %v5016 = vrot.slane %v4916, 5
        %v5017 = vrot.slane %v5016, 4
        %v5018 = vrot.slane %v4917, 5
        %v5019 = vsel %vm1450, %v5017, %v5018
        %v5020 = vrot.slane %v5018, 4
        %v5021 = vrot.slane %v4918, 5
        %v5022 = vsel %vm1450, %v5020, %v5021
        %v5023 = vrot.slane %v4919, 5
        %v5024 = vrot.slane %v5023, 4
        %v5025 = vrot.slane %v4920, 5
        %v5026 = vsel %vm1450, %v5024, %v5025
        %v5027 = vrot.slane %v5025, 4
        %v5028 = vrot.slane %v4921, 5
        %v5029 = vsel %vm1450, %v5027, %v5028
        %v5030 = vrot.slane %v4922, 5
        %v5031 = vrot.slane %v5030, 4
        %v5032 = vrot.slane %v4923, 5
        %v5033 = vsel %vm1450, %v5031, %v5032
        %v5034 = vrot.slane %v5032, 4
        %v5035 = vrot.slane %v4924, 5
        %v5036 = vsel %vm1450, %v5034, %v5035
        %v5037 = vrot.slane %v4925, 5
        %v5038 = vrot.slane %v5037, 4
        %v5039 = vrot.slane %v4926, 5
        %v5040 = vsel %vm1450, %v5038, %v5039
        %v5041 = vrot.slane %v5039, 4
        %v5042 = vrot.slane %v4927, 5
        %v5043 = vsel %vm1450, %v5041, %v5042
        %v5044 = vrot.slane %v4928, 5
        %v5045 = vrot.slane %v5044, 4
        %v5046 = vrot.slane %v4929, 5
        %v5047 = vsel %vm1450, %v5045, %v5046
        %v5048 = vrot.slane %v5046, 4
        %v5049 = vrot.slane %v4930, 5
        %v5050 = vsel %vm1450, %v5048, %v5049
        %v5051 = vrot.slane %v4931, 5
        %v5052 = vrot.slane %v5051, 4
        %v5053 = vrot.slane %v4932, 5
        %v5054 = vsel %vm1450, %v5052, %v5053
        %v5055 = vrot.slane %v5053, 4
        %v5056 = vrot.slane %v4933, 5
        %v5057 = vsel %vm1450, %v5055, %v5056
        %v5058 = vrot.slane %v4934, 5
        %v5059 = vrot.slane %v5058, 4
        %v5060 = vrot.slane %v4935, 5
        %v5061 = vsel %vm1450, %v5059, %v5060
        %v5062 = vrot.slane %v5060, 4
        %v5063 = vrot.slane %v4936, 5
        %v5064 = vsel %vm1450, %v5062, %v5063
        %v5065 = vrot.slane %v4937, 5
        %v5066 = vrot.slane %v5065, 4
        %v5067 = vrot.slane %v4938, 5
        %v5068 = vsel %vm1450, %v5066, %v5067
        %v5069 = vrot.slane %v5067, 4
        %v5070 = vrot.slane %v4939, 5
        %v5071 = vsel %vm1450, %v5069, %v5070
        %v5072 = vrot.slane %v4940, 5
        %v5073 = vrot.slane %v5072, 4
        %v5074 = vrot.slane %v4941, 5
        %v5075 = vsel %vm1450, %v5073, %v5074
        %v5076 = vrot.slane %v5074, 4
        %v5077 = vrot.slane %v4942, 5
        %v5078 = vsel %vm1450, %v5076, %v5077
        %v5079 = vrot.slane %v4943, 5
        %v5080 = vrot.slane %v5079, 4
        %v5081 = vrot.slane %v4944, 5
        %v5082 = vsel %vm1450, %v5080, %v5081
        %v5083 = vrot.slane %v5081, 4
        %v5084 = vrot.slane %v4945, 5
        %v5085 = vsel %vm1450, %v5083, %v5084
        %v5086 = vrot.slane %v4946, 5
        %v5087 = vrot.slane %v5086, 4
        %v5088 = vrot.slane %v4947, 5
        %v5089 = vsel %vm1450, %v5087, %v5088
        %v5090 = vrot.slane %v5088, 4
        %v5091 = vrot.slane %v4948, 5
        %v5092 = vsel %vm1450, %v5090, %v5091
        %v5093 = vrot.slane %v4949, 5
        %v5094 = vrot.slane %v5093, 4
        %v5095 = vrot.slane %v4950, 5
        %v5096 = vsel %vm1450, %v5094, %v5095
        %v5097 = vrot.slane %v5095, 4
        %v5098 = vrot.slane %v4951, 5
        %v5099 = vsel %vm1450, %v5097, %v5098
        %v5100 = vrot.slane %v4952, 5
        %v5101 = vrot.slane %v5100, 4
        %v5102 = vrot.slane %v4953, 5
        %v5103 = vsel %vm1450, %v5101, %v5102
        %v5104 = vrot.slane %v5102, 4
        %v5105 = vrot.slane %v4954, 5
        %v5106 = vsel %vm1450, %v5104, %v5105
        %v5107 = vrot.slane %v4955, 5
        %v5108 = vrot.slane %v5107, 4
        %v5109 = vrot.slane %v4956, 5
        %v5110 = vsel %vm1450, %v5108, %v5109
        %v5111 = vrot.slane %v5109, 4
        %v5112 = vrot.slane %v4957, 5
        %v5113 = vsel %vm1450, %v5111, %v5112
        %v5114 = vrot.slane %v4958, 5
        %v5115 = vrot.slane %v5114, 4
        %v5116 = vrot.slane %v4959, 5
        %v5117 = vsel %vm1450, %v5115, %v5116
        %v5118 = vrot.slane %v5116, 4
        %v5119 = vrot.slane %v4960, 5
        %v5120 = vsel %vm1450, %v5118, %v5119
        %s5121 = scalar_lea.vmem [#allocation3], 16
        %v5122 = vld [vmem:[%s5121] sm:$0x3]
        %v5123 = vunpack.c.l.b16 %v5012
        %v5124 = vunpack.c.l.b16 %v5015
        %v5125 = vunpack.c.l.b16 %v5019
        %v5126 = vunpack.c.l.b16 %v5022
        %v5127 = vunpack.c.l.b16 %v5026
        %v5128 = vunpack.c.l.b16 %v5029
        %v5129 = vunpack.c.l.b16 %v5033
        %v5130 = vunpack.c.l.b16 %v5036
        %v5131 = vunpack.c.l.b16 %v5040
        %v5132 = vunpack.c.l.b16 %v5043
        %v5133 = vunpack.c.l.b16 %v5047
        %v5134 = vunpack.c.l.b16 %v5050
        %v5135 = vunpack.c.l.b16 %v5054
        %v5136 = vunpack.c.l.b16 %v5057
        %v5137 = vunpack.c.l.b16 %v5061
        %v5138 = vunpack.c.l.b16 %v5064
        %v5139 = vunpack.c.l.b16 %v5068
        %v5140 = vunpack.c.l.b16 %v5071
        %v5141 = vunpack.c.l.b16 %v5075
        %v5142 = vunpack.c.l.b16 %v5078
        %v5143 = vunpack.c.l.b16 %v5082
        %v5144 = vunpack.c.l.b16 %v5085
        %v5145 = vunpack.c.l.b16 %v5089
        %v5146 = vunpack.c.l.b16 %v5092
        %v5147 = vunpack.c.l.b16 %v5096
        %v5148 = vunpack.c.l.b16 %v5099
        %v5149 = vunpack.c.l.b16 %v5103
        %v5150 = vunpack.c.l.b16 %v5106
        %v5151 = vunpack.c.l.b16 %v5110
        %v5152 = vunpack.c.l.b16 %v5113
        %v5153 = vunpack.c.l.b16 %v5117
        %v5154 = vunpack.c.l.b16 %v5120
        %v5155 = vpack.c.b16 %v5124, %v5123
        %v5156 = vpack.c.b16 %v5126, %v5125
        %v5157 = vpack.c.b16 %v5128, %v5127
        %v5158 = vpack.c.b16 %v5130, %v5129
        %v5159 = vpack.c.b16 %v5132, %v5131
        %v5160 = vpack.c.b16 %v5134, %v5133
        %v5161 = vpack.c.b16 %v5136, %v5135
        %v5162 = vpack.c.b16 %v5138, %v5137
        %v5163 = vpack.c.b16 %v5140, %v5139
        %v5164 = vpack.c.b16 %v5142, %v5141
        %v5165 = vpack.c.b16 %v5144, %v5143
        %v5166 = vpack.c.b16 %v5146, %v5145
        %v5167 = vpack.c.b16 %v5148, %v5147
        %v5168 = vpack.c.b16 %v5150, %v5149
        %v5169 = vpack.c.b16 %v5152, %v5151
        %v5170 = vpack.c.b16 %v5154, %v5153
        %v5172 = vsel %vm313, %v5155, 0
        %v5175 = vsel %vm313, %v5156, 0
        %v5178 = vsel %vm313, %v5157, 0
        %v5181 = vsel %vm313, %v5158, 0
        %v5184 = vsel %vm313, %v5159, 0
        %v5187 = vsel %vm313, %v5160, 0
        %v5190 = vsel %vm313, %v5161, 0
        %v5193 = vsel %vm313, %v5162, 0
        %v5196 = vsel %vm313, %v5163, 0
        %v5199 = vsel %vm313, %v5164, 0
        %v5202 = vsel %vm313, %v5165, 0
        %v5205 = vsel %vm313, %v5166, 0
        %v5208 = vsel %vm313, %v5167, 0
        %v5211 = vsel %vm313, %v5168, 0
        %v5214 = vsel %vm313, %v5169, 0
        %v5217 = vsel %vm313, %v5170, 0
        %v5220 = vsel %vm362, %v5122, 0
        %5222 = vmatprep.subr.bf16.mxu0 0
        %5223 = vmatpush1.bf16.msra.mxu0 %v5220
        %5224 = vmatprep.subr.bf16.mxu0 0
        %5225 = vmatpush1.bf16.msra.mxu0 0
        %5226 = vmatprep.subr.bf16.mxu0 0
        %5227 = vmatpush1.bf16.msra.mxu0 0
        %5228 = vmatprep.subr.bf16.mxu0 0
        %5229 = vmatpush1.bf16.msra.mxu0 0
        %5230 = vmatprep.subr.bf16.mxu0 0
        %5231 = vmatpush1.bf16.msra.mxu0 0
        %5232 = vmatprep.subr.bf16.mxu0 0
        %5233 = vmatpush1.bf16.msra.mxu0 0
        %5234 = vmatprep.subr.bf16.mxu0 0
        %5235 = vmatpush1.bf16.msra.mxu0 0
        %5236 = vmatprep.subr.bf16.mxu0 0
        %5237 = vmatpush1.bf16.msra.mxu0 0
        %5238 = vmatprep.subr.bf16.mxu0 0
        %5239 = vmatpush1.bf16.msra.mxu0 0
        %5240 = vmatprep.subr.bf16.mxu0 0
        %5241 = vmatpush1.bf16.msra.mxu0 0
        %5242 = vmatprep.subr.bf16.mxu0 0
        %5243 = vmatpush1.bf16.msra.mxu0 0
        %5244 = vmatprep.subr.bf16.mxu0 0
        %5245 = vmatpush1.bf16.msra.mxu0 0
        %5246 = vmatprep.subr.bf16.mxu0 0
        %5247 = vmatpush1.bf16.msra.mxu0 0
        %5248 = vmatprep.subr.bf16.mxu0 0
        %5249 = vmatpush1.bf16.msra.mxu0 0
        %5250 = vmatprep.subr.bf16.mxu0 0
        %5251 = vmatpush1.bf16.msra.mxu0 0
        %5252 = vmatprep.subr.bf16.mxu0 0
        %5253 = vmatpush1.bf16.msra.mxu0 0
        %5254 = vmatprep.mubr.bf16.mxu0 0
        %5255 = vmatmul.mubr.bf16.gmra.mrb[0].mxu0 %v5172
        %v5256 = vpop.f32.mrb[0].mxu0
        %v5257 = vadd.f32 0.0, %v5256
        %v5258 = vpop.f32.mrb[0].mxu0
        %v5259 = vpop.f32.mrb[0].mxu0
        %v5260 = vadd.f32 0.0, %v5259
        %v5261 = vpop.f32.mrb[0].mxu0
        %5262 = vmatprep.mubr.bf16.mxu0 0
        %5263 = vmatmul.mubr.bf16.gmra.mrb[0].mxu0 %v5175
        %v5264 = vpop.f32.mrb[0].mxu0
        %v5265 = vadd.f32 0.0, %v5264
        %v5266 = vpop.f32.mrb[0].mxu0
        %v5267 = vpop.f32.mrb[0].mxu0
        %v5268 = vadd.f32 0.0, %v5267
        %v5269 = vpop.f32.mrb[0].mxu0
        %5270 = vmatprep.mubr.bf16.mxu0 0
        %5271 = vmatmul.mubr.bf16.gmra.mrb[0].mxu0 %v5178
        %v5272 = vpop.f32.mrb[0].mxu0
        %v5273 = vadd.f32 0.0, %v5272
        %v5274 = vpop.f32.mrb[0].mxu0
        %v5275 = vpop.f32.mrb[0].mxu0
        %v5276 = vadd.f32 0.0, %v5275
        %v5277 = vpop.f32.mrb[0].mxu0
        %5278 = vmatprep.mubr.bf16.mxu0 0
        %5279 = vmatmul.mubr.bf16.gmra.mrb[0].mxu0 %v5181
        %v5280 = vpop.f32.mrb[0].mxu0
        %v5281 = vadd.f32 0.0, %v5280
        %v5282 = vpop.f32.mrb[0].mxu0
        %v5283 = vpop.f32.mrb[0].mxu0
        %v5284 = vadd.f32 0.0, %v5283
        %v5285 = vpop.f32.mrb[0].mxu0
        %5286 = vmatprep.mubr.bf16.mxu0 0
        %5287 = vmatmul.mubr.bf16.gmra.mrb[0].mxu0 %v5184
        %v5288 = vpop.f32.mrb[0].mxu0
        %v5289 = vadd.f32 0.0, %v5288
        %v5290 = vpop.f32.mrb[0].mxu0
        %v5291 = vpop.f32.mrb[0].mxu0
        %v5292 = vadd.f32 0.0, %v5291
        %v5293 = vpop.f32.mrb[0].mxu0
        %5294 = vmatprep.mubr.bf16.mxu0 0
        %5295 = vmatmul.mubr.bf16.gmra.mrb[0].mxu0 %v5187
        %v5296 = vpop.f32.mrb[0].mxu0
        %v5297 = vadd.f32 0.0, %v5296
        %v5298 = vpop.f32.mrb[0].mxu0
        %v5299 = vpop.f32.mrb[0].mxu0
        %v5300 = vadd.f32 0.0, %v5299
        %v5301 = vpop.f32.mrb[0].mxu0
        %5302 = vmatprep.mubr.bf16.mxu0 0
        %5303 = vmatmul.mubr.bf16.gmra.mrb[0].mxu0 %v5190
        %v5304 = vpop.f32.mrb[0].mxu0
        %v5305 = vadd.f32 0.0, %v5304
        %v5306 = vpop.f32.mrb[0].mxu0
        %v5307 = vpop.f32.mrb[0].mxu0
        %v5308 = vadd.f32 0.0, %v5307
        %v5309 = vpop.f32.mrb[0].mxu0
        %5310 = vmatprep.mubr.bf16.mxu0 0
        %5311 = vmatmul.mubr.bf16.gmra.mrb[0].mxu0 %v5193
        %v5312 = vpop.f32.mrb[0].mxu0
        %v5313 = vadd.f32 0.0, %v5312
        %v5314 = vpop.f32.mrb[0].mxu0
        %v5315 = vpop.f32.mrb[0].mxu0
        %v5316 = vadd.f32 0.0, %v5315
        %v5317 = vpop.f32.mrb[0].mxu0
        %5318 = vmatprep.mubr.bf16.mxu0 0
        %5319 = vmatmul.mubr.bf16.gmra.mrb[0].mxu0 %v5196
        %v5320 = vpop.f32.mrb[0].mxu0
        %v5321 = vadd.f32 0.0, %v5320
        %v5322 = vpop.f32.mrb[0].mxu0
        %v5323 = vpop.f32.mrb[0].mxu0
        %v5324 = vadd.f32 0.0, %v5323
        %v5325 = vpop.f32.mrb[0].mxu0
        %5326 = vmatprep.mubr.bf16.mxu0 0
        %5327 = vmatmul.mubr.bf16.gmra.mrb[0].mxu0 %v5199
        %v5328 = vpop.f32.mrb[0].mxu0
        %v5329 = vadd.f32 0.0, %v5328
        %v5330 = vpop.f32.mrb[0].mxu0
        %v5331 = vpop.f32.mrb[0].mxu0
        %v5332 = vadd.f32 0.0, %v5331
        %v5333 = vpop.f32.mrb[0].mxu0
        %5334 = vmatprep.mubr.bf16.mxu0 0
        %5335 = vmatmul.mubr.bf16.gmra.mrb[0].mxu0 %v5202
        %v5336 = vpop.f32.mrb[0].mxu0
        %v5337 = vadd.f32 0.0, %v5336
        %v5338 = vpop.f32.mrb[0].mxu0
        %v5339 = vpop.f32.mrb[0].mxu0
        %v5340 = vadd.f32 0.0, %v5339
        %v5341 = vpop.f32.mrb[0].mxu0
        %5342 = vmatprep.mubr.bf16.mxu0 0
        %5343 = vmatmul.mubr.bf16.gmra.mrb[0].mxu0 %v5205
        %v5344 = vpop.f32.mrb[0].mxu0
        %v5345 = vadd.f32 0.0, %v5344
        %v5346 = vpop.f32.mrb[0].mxu0
        %v5347 = vpop.f32.mrb[0].mxu0
        %v5348 = vadd.f32 0.0, %v5347
        %v5349 = vpop.f32.mrb[0].mxu0
        %5350 = vmatprep.mubr.bf16.mxu0 0
        %5351 = vmatmul.mubr.bf16.gmra.mrb[0].mxu0 %v5208
        %v5352 = vpop.f32.mrb[0].mxu0
        %v5353 = vadd.f32 0.0, %v5352
        %v5354 = vpop.f32.mrb[0].mxu0
        %v5355 = vpop.f32.mrb[0].mxu0
        %v5356 = vadd.f32 0.0, %v5355
        %v5357 = vpop.f32.mrb[0].mxu0
        %5358 = vmatprep.mubr.bf16.mxu0 0
        %5359 = vmatmul.mubr.bf16.gmra.mrb[0].mxu0 %v5211
        %v5360 = vpop.f32.mrb[0].mxu0
        %v5361 = vadd.f32 0.0, %v5360
        %v5362 = vpop.f32.mrb[0].mxu0
        %v5363 = vpop.f32.mrb[0].mxu0
        %v5364 = vadd.f32 0.0, %v5363
        %v5365 = vpop.f32.mrb[0].mxu0
        %5366 = vmatprep.mubr.bf16.mxu0 0
        %5367 = vmatmul.mubr.bf16.gmra.mrb[0].mxu0 %v5214
        %v5368 = vpop.f32.mrb[0].mxu0
        %v5369 = vadd.f32 0.0, %v5368
        %v5370 = vpop.f32.mrb[0].mxu0
        %v5371 = vpop.f32.mrb[0].mxu0
        %v5372 = vadd.f32 0.0, %v5371
        %v5373 = vpop.f32.mrb[0].mxu0
        %5374 = vmatprep.mubr.bf16.mxu0 0
        %5375 = vmatmul.mubr.bf16.gmra.mrb[0].mxu0 %v5217
        %v5376 = vpop.f32.mrb[0].mxu0
        %v5377 = vadd.f32 0.0, %v5376
        %v5378 = vpop.f32.mrb[0].mxu0
        %v5379 = vpop.f32.mrb[0].mxu0
        %v5380 = vadd.f32 0.0, %v5379
        %v5381 = vpop.f32.mrb[0].mxu0
        %5382 = vdwg.mxu0
        %v5383 = vld [vmem:[#allocation2] sm:$0xff]
        %v5384 = vld [vmem:[#allocation2 + $0x8] sm:$0xff]
        %v5385 = vld [vmem:[#allocation2 + $0x10] sm:$0xff]
        %v5386 = vld [vmem:[#allocation2 + $0x18] sm:$0xff]
        %v5387 = vld [vmem:[#allocation2 + $0x20] sm:$0xff]
        %v5388 = vld [vmem:[#allocation2 + $0x28] sm:$0xff]
        %v5389 = vld [vmem:[#allocation2 + $0x30] sm:$0xff]
        %v5390 = vld [vmem:[#allocation2 + $0x38] sm:$0xff]
        %v5391 = vld [vmem:[#allocation2 + $0x40] sm:$0xff]
        %v5392 = vld [vmem:[#allocation2 + $0x48] sm:$0xff]
        %v5393 = vld [vmem:[#allocation2 + $0x50] sm:$0xff]
        %v5394 = vld [vmem:[#allocation2 + $0x58] sm:$0xff]
        %v5395 = vld [vmem:[#allocation2 + $0x60] sm:$0xff]
        %v5396 = vld [vmem:[#allocation2 + $0x68] sm:$0xff]
        %v5397 = vld [vmem:[#allocation2 + $0x70] sm:$0xff]
        %v5398 = vld [vmem:[#allocation2 + $0x78] sm:$0xff]
        %v5399 = vld [vmem:[#allocation2 + $0x80] sm:$0xff]
        %v5400 = vld [vmem:[#allocation2 + $0x88] sm:$0xff]
        %v5401 = vld [vmem:[#allocation2 + $0x90] sm:$0xff]
        %v5402 = vld [vmem:[#allocation2 + $0x98] sm:$0xff]
        %v5403 = vld [vmem:[#allocation2 + $0xa0] sm:$0xff]
        %v5404 = vld [vmem:[#allocation2 + $0xa8] sm:$0xff]
        %v5405 = vld [vmem:[#allocation2 + $0xb0] sm:$0xff]
        %v5406 = vld [vmem:[#allocation2 + $0xb8] sm:$0xff]
        %v5407 = vld [vmem:[#allocation2 + $0xc0] sm:$0xff]
        %v5408 = vld [vmem:[#allocation2 + $0xc8] sm:$0xff]
        %v5409 = vld [vmem:[#allocation2 + $0xd0] sm:$0xff]
        %v5410 = vld [vmem:[#allocation2 + $0xd8] sm:$0xff]
        %v5411 = vld [vmem:[#allocation2 + $0xe0] sm:$0xff]
        %v5412 = vld [vmem:[#allocation2 + $0xe8] sm:$0xff]
        %v5413 = vld [vmem:[#allocation2 + $0xf0] sm:$0xff]
        %v5414 = vld [vmem:[#allocation2 + $0xf8] sm:$0xff]
        %v5415 = vadd.f32 %v5383, %v5257
        %v5416 = vadd.f32 %v5384, %v5260
        %v5417 = vadd.f32 %v5385, %v5265
        %v5418 = vadd.f32 %v5386, %v5268
        %v5419 = vadd.f32 %v5387, %v5273
        %v5420 = vadd.f32 %v5388, %v5276
        %v5421 = vadd.f32 %v5389, %v5281
        %v5422 = vadd.f32 %v5390, %v5284
        %v5423 = vadd.f32 %v5391, %v5289
        %v5424 = vadd.f32 %v5392, %v5292
        %v5425 = vadd.f32 %v5393, %v5297
        %v5426 = vadd.f32 %v5394, %v5300
        %v5427 = vadd.f32 %v5395, %v5305
        %v5428 = vadd.f32 %v5396, %v5308
        %v5429 = vadd.f32 %v5397, %v5313
        %v5430 = vadd.f32 %v5398, %v5316
        %v5431 = vadd.f32 %v5399, %v5321
        %v5432 = vadd.f32 %v5400, %v5324
        %v5433 = vadd.f32 %v5401, %v5329
        %v5434 = vadd.f32 %v5402, %v5332
        %v5435 = vadd.f32 %v5403, %v5337
        %v5436 = vadd.f32 %v5404, %v5340
        %v5437 = vadd.f32 %v5405, %v5345
        %v5438 = vadd.f32 %v5406, %v5348
        %v5439 = vadd.f32 %v5407, %v5353
        %v5440 = vadd.f32 %v5408, %v5356
        %v5441 = vadd.f32 %v5409, %v5361
        %v5442 = vadd.f32 %v5410, %v5364
        %v5443 = vadd.f32 %v5411, %v5369
        %v5444 = vadd.f32 %v5412, %v5372
        %v5445 = vadd.f32 %v5413, %v5377
        %v5446 = vadd.f32 %v5414, %v5380
        %5447 = vst [vmem:[#allocation2] sm:$0xff] %v5415
        %5448 = vst [vmem:[#allocation2 + $0x8] sm:$0xff] %v5416
        %5449 = vst [vmem:[#allocation2 + $0x10] sm:$0xff] %v5417
        %5450 = vst [vmem:[#allocation2 + $0x18] sm:$0xff] %v5418
        %5451 = vst [vmem:[#allocation2 + $0x20] sm:$0xff] %v5419
        %5452 = vst [vmem:[#allocation2 + $0x28] sm:$0xff] %v5420
        %5453 = vst [vmem:[#allocation2 + $0x30] sm:$0xff] %v5421
        %5454 = vst [vmem:[#allocation2 + $0x38] sm:$0xff] %v5422
        %5455 = vst [vmem:[#allocation2 + $0x40] sm:$0xff] %v5423
        %5456 = vst [vmem:[#allocation2 + $0x48] sm:$0xff] %v5424
        %5457 = vst [vmem:[#allocation2 + $0x50] sm:$0xff] %v5425
        %5458 = vst [vmem:[#allocation2 + $0x58] sm:$0xff] %v5426
        %5459 = vst [vmem:[#allocation2 + $0x60] sm:$0xff] %v5427
        %5460 = vst [vmem:[#allocation2 + $0x68] sm:$0xff] %v5428
        %5461 = vst [vmem:[#allocation2 + $0x70] sm:$0xff] %v5429
        %5462 = vst [vmem:[#allocation2 + $0x78] sm:$0xff] %v5430
        %5463 = vst [vmem:[#allocation2 + $0x80] sm:$0xff] %v5431
        %5464 = vst [vmem:[#allocation2 + $0x88] sm:$0xff] %v5432
        %5465 = vst [vmem:[#allocation2 + $0x90] sm:$0xff] %v5433
        %5466 = vst [vmem:[#allocation2 + $0x98] sm:$0xff] %v5434
        %5467 = vst [vmem:[#allocation2 + $0xa0] sm:$0xff] %v5435
        %5468 = vst [vmem:[#allocation2 + $0xa8] sm:$0xff] %v5436
        %5469 = vst [vmem:[#allocation2 + $0xb0] sm:$0xff] %v5437
        %5470 = vst [vmem:[#allocation2 + $0xb8] sm:$0xff] %v5438
        %5471 = vst [vmem:[#allocation2 + $0xc0] sm:$0xff] %v5439
        %5472 = vst [vmem:[#allocation2 + $0xc8] sm:$0xff] %v5440
        %5473 = vst [vmem:[#allocation2 + $0xd0] sm:$0xff] %v5441
        %5474 = vst [vmem:[#allocation2 + $0xd8] sm:$0xff] %v5442
        %5475 = vst [vmem:[#allocation2 + $0xe0] sm:$0xff] %v5443
        %5476 = vst [vmem:[#allocation2 + $0xe8] sm:$0xff] %v5444
        %5477 = vst [vmem:[#allocation2 + $0xf0] sm:$0xff] %v5445
        %5478 = vst [vmem:[#allocation2 + $0xf8] sm:$0xff] %v5446
        %v5479 = vld [vmem:[#allocation5] sm:$0x1]
        %v5480 = vld [vmem:[#allocation2] ss:$2 sm:$0xff]
        %s5481 = scalar_lea.vmem [#allocation2], 1
        %v5482 = vld [vmem:[%s5481] ss:$2 sm:$0xff]
        %s5483 = scalar_lea.vmem [#allocation2], 16
        %v5484 = vld [vmem:[%s5483] ss:$2 sm:$0xff]
        %s5485 = scalar_lea.vmem [#allocation2], 17
        %v5486 = vld [vmem:[%s5485] ss:$2 sm:$0xff]
        %v5487 = vmax.f32 %v5480, %v5482
        %v5488 = vmax.f32 %v5484, %v5486
        %v5489 = vmax.f32 %v5487, %v5488
        %v5491 = vlaneseq
        %v5492 = vshrl.u32 %v5491, 7
        %v5493 = vsub.s32 0, %v5492
        %v5494 = vrot.slane %v5479, %v5493
        %v5496 = vadd.f32 %v5489, %v5494
        %v5497 = vmax.f32 %v5496, 0.0
        %v5498 = vpack.c.bf16 %v5497, %v5497
        %5499 = vst [vmem:[%s198] sm:$0xf] %v5498
        %s5500 = scalar_lea.vmem [#allocation2], 32
        %v5501 = vld [vmem:[%s5500] ss:$2 sm:$0xff]
        %s5502 = scalar_lea.vmem [#allocation2], 33
        %v5503 = vld [vmem:[%s5502] ss:$2 sm:$0xff]
        %s5504 = scalar_lea.vmem [#allocation2], 48
        %v5505 = vld [vmem:[%s5504] ss:$2 sm:$0xff]
        %s5506 = scalar_lea.vmem [#allocation2], 49
        %v5507 = vld [vmem:[%s5506] ss:$2 sm:$0xff]
        %v5508 = vmax.f32 %v5501, %v5503
        %v5509 = vmax.f32 %v5505, %v5507
        %v5510 = vmax.f32 %v5508, %v5509
        %v5511 = vadd.f32 %v5510, %v5494
        %v5512 = vmax.f32 %v5511, 0.0
        %v5513 = vpack.c.bf16 %v5512, %v5512
        %s5514 = scalar_lea.vmem %s198, 4
        %5515 = vst [vmem:[%s5514] sm:$0xf] %v5513
        %s5516 = scalar_lea.vmem [#allocation2], 64
        %v5517 = vld [vmem:[%s5516] ss:$2 sm:$0xff]
        %s5518 = scalar_lea.vmem [#allocation2], 65
        %v5519 = vld [vmem:[%s5518] ss:$2 sm:$0xff]
        %s5520 = scalar_lea.vmem [#allocation2], 80
        %v5521 = vld [vmem:[%s5520] ss:$2 sm:$0xff]
        %s5522 = scalar_lea.vmem [#allocation2], 81
        %v5523 = vld [vmem:[%s5522] ss:$2 sm:$0xff]
        %v5524 = vmax.f32 %v5517, %v5519
        %v5525 = vmax.f32 %v5521, %v5523
        %v5526 = vmax.f32 %v5524, %v5525
        %v5527 = vadd.f32 %v5526, %v5494
        %v5528 = vmax.f32 %v5527, 0.0
        %v5529 = vpack.c.bf16 %v5528, %v5528
        %s5530 = scalar_lea.vmem %s198, 8
        %5531 = vst [vmem:[%s5530] sm:$0xf] %v5529
        %s5532 = scalar_lea.vmem [#allocation2], 96
        %v5533 = vld [vmem:[%s5532] ss:$2 sm:$0xff]
        %s5534 = scalar_lea.vmem [#allocation2], 97
        %v5535 = vld [vmem:[%s5534] ss:$2 sm:$0xff]
        %s5536 = scalar_lea.vmem [#allocation2], 112
        %v5537 = vld [vmem:[%s5536] ss:$2 sm:$0xff]
        %s5538 = scalar_lea.vmem [#allocation2], 113
        %v5539 = vld [vmem:[%s5538] ss:$2 sm:$0xff]
        %v5540 = vmax.f32 %v5533, %v5535
        %v5541 = vmax.f32 %v5537, %v5539
        %v5542 = vmax.f32 %v5540, %v5541
        %v5543 = vadd.f32 %v5542, %v5494
        %v5544 = vmax.f32 %v5543, 0.0
        %v5545 = vpack.c.bf16 %v5544, %v5544
        %s5546 = scalar_lea.vmem %s198, 12
        %5547 = vst [vmem:[%s5546] sm:$0xf] %v5545
        %s5548 = scalar_lea.vmem [#allocation2], 128
        %v5549 = vld [vmem:[%s5548] ss:$2 sm:$0xff]
        %s5550 = scalar_lea.vmem [#allocation2], 129
        %v5551 = vld [vmem:[%s5550] ss:$2 sm:$0xff]
        %s5552 = scalar_lea.vmem [#allocation2], 144
        %v5553 = vld [vmem:[%s5552] ss:$2 sm:$0xff]
        %s5554 = scalar_lea.vmem [#allocation2], 145
        %v5555 = vld [vmem:[%s5554] ss:$2 sm:$0xff]
        %v5556 = vmax.f32 %v5549, %v5551
        %v5557 = vmax.f32 %v5553, %v5555
        %v5558 = vmax.f32 %v5556, %v5557
        %v5559 = vadd.f32 %v5558, %v5494
        %v5560 = vmax.f32 %v5559, 0.0
        %v5561 = vpack.c.bf16 %v5560, %v5560
        %s5562 = scalar_lea.vmem %s198, 16
        %5563 = vst [vmem:[%s5562] sm:$0xf] %v5561
        %s5564 = scalar_lea.vmem [#allocation2], 160
        %v5565 = vld [vmem:[%s5564] ss:$2 sm:$0xff]
        %s5566 = scalar_lea.vmem [#allocation2], 161
        %v5567 = vld [vmem:[%s5566] ss:$2 sm:$0xff]
        %s5568 = scalar_lea.vmem [#allocation2], 176
        %v5569 = vld [vmem:[%s5568] ss:$2 sm:$0xff]
        %s5570 = scalar_lea.vmem [#allocation2], 177
        %v5571 = vld [vmem:[%s5570] ss:$2 sm:$0xff]
        %v5572 = vmax.f32 %v5565, %v5567
        %v5573 = vmax.f32 %v5569, %v5571
        %v5574 = vmax.f32 %v5572, %v5573
        %v5575 = vadd.f32 %v5574, %v5494
        %v5576 = vmax.f32 %v5575, 0.0
        %v5577 = vpack.c.bf16 %v5576, %v5576
        %s5578 = scalar_lea.vmem %s198, 20
        %5579 = vst [vmem:[%s5578] sm:$0xf] %v5577
        %s5580 = scalar_lea.vmem [#allocation2], 192
        %v5581 = vld [vmem:[%s5580] ss:$2 sm:$0xff]
        %s5582 = scalar_lea.vmem [#allocation2], 193
        %v5583 = vld [vmem:[%s5582] ss:$2 sm:$0xff]
        %s5584 = scalar_lea.vmem [#allocation2], 208
        %v5585 = vld [vmem:[%s5584] ss:$2 sm:$0xff]
        %s5586 = scalar_lea.vmem [#allocation2], 209
        %v5587 = vld [vmem:[%s5586] ss:$2 sm:$0xff]
        %v5588 = vmax.f32 %v5581, %v5583
        %v5589 = vmax.f32 %v5585, %v5587
        %v5590 = vmax.f32 %v5588, %v5589
        %v5591 = vadd.f32 %v5590, %v5494
        %v5592 = vmax.f32 %v5591, 0.0
        %v5593 = vpack.c.bf16 %v5592, %v5592
        %s5594 = scalar_lea.vmem %s198, 24
        %5595 = vst [vmem:[%s5594] sm:$0xf] %v5593
        %s5596 = scalar_lea.vmem [#allocation2], 224
        %v5597 = vld [vmem:[%s5596] ss:$2 sm:$0xff]
        %s5598 = scalar_lea.vmem [#allocation2], 225
        %v5599 = vld [vmem:[%s5598] ss:$2 sm:$0xff]
        %s5600 = scalar_lea.vmem [#allocation2], 240
        %v5601 = vld [vmem:[%s5600] ss:$2 sm:$0xff]
        %s5602 = scalar_lea.vmem [#allocation2], 241
        %v5603 = vld [vmem:[%s5602] ss:$2 sm:$0xff]
        %v5604 = vmax.f32 %v5597, %v5599
        %v5605 = vmax.f32 %v5601, %v5603
        %v5606 = vmax.f32 %v5604, %v5605
        %v5607 = vadd.f32 %v5606, %v5494
        %v5608 = vmax.f32 %v5607, 0.0
        %v5609 = vpack.c.bf16 %v5608, %v5608
        %s5610 = scalar_lea.vmem %s198, 28
        %5611 = vst [vmem:[%s5610] sm:$0xf] %v5609
        %p5612 = scmp.lt.s32.totalorder %s16, 3
        %s5613 = scalar_select %p5612, %s16, 3
        %s5614 = smul.addr %s5613, 8
        %s5615 = smul.addr %s5614, 4
        %s5616 = scalar_lea.vmem %s3, %s5615
        // Predicated region
        $region41: #{similarity_model.5} parent=31 // pred_check
          %p5617 = pneg %p102
        $region42: #{similarity_model.5} parent=31 // pred_check_branch
          %5619 = sbr.rel (%p5617) target = $region44
        $region43: #{similarity_model.5} parent=31 // pred_region
          _
        $region44: #{similarity_model.5} parent=31 // pred_fallthru
          _
      $region32: #{similarity_model.5} parent=5 // pred_fallthru
        _
      %p5620 = scmp.le.s32.totalorder 2, %s11
      // Predicated region
      $region45: #{similarity_model.5} parent=5 // pred_check
        %p5621 = pneg %p5620
      $region46: #{similarity_model.5} parent=5 // pred_check_branch
        %5623 = sbr.rel (%p5621) target = $region48
      $region47: #{similarity_model.5} parent=5 // pred_region
        %s5624 = ssub.s32 %s11, 2
        // Predicated region
        $region49: #{similarity_model.5} parent=47 // pred_check
          %p5625 = pneg %p108
        $region50: #{similarity_model.5} parent=47 // pred_check_branch
          %5627 = sbr.rel (%p5625) target = $region52
        $region51: #{similarity_model.5} parent=47 // pred_region
          %p5628 = scmp.lt.s32.totalorder %s17, 3
          %s5629 = scalar_select %p5628, %s17, 3
          %s5630 = smul.addr %s5629, 8
          %s5631 = smul.addr %s5630, 4
          %s5632 = scalar_lea.vmem %s3, %s5631
        $region52: #{similarity_model.5} parent=47 // pred_fallthru
          _
      $region48: #{similarity_model.5} parent=5 // pred_fallthru
        _
    $region6: #{similarity_model.5} parent=1 // loop_footer
      %s15 = sadd.s32 1, %s11
    $region7: #{similarity_model.5} parent=1 // loop_footer_branch
      %10 = sbr.rel target = $region3
    $region8: #{similarity_model.5} parent=1 // loop_exit
      _
    %5633 = vsyncpa [#allocation4], 1
    %s5634 = scalar_lea.sflag [#allocation4], 1
    %5635 = vsyncpa %s5634, 1
    %5636 = vsyncpa [#allocation6], 1

</llo_original>
